<compile_context>
chip_gen: v5e
topology: v5e:2x2
jax: 0.10.0
libtpu: 0.0.40
codegen_flags: <defaults>
</compile_context>

<pallas_src>
import functools
import math

import jax
import jax.numpy as jnp
from jax.experimental import pallas as pl
from jax.experimental.pallas import tpu as pltpu

# ----------------------------- config (small, consistent with the module) ------------------------
B = 2            # batch per image input
IN_CH = 3        # RGB
IMG = 32         # image H = W
PATCH = 8        # patch size -> 4x4 = 16 patches
HP = WP = IMG // PATCH
NUM_PATCHES = HP * WP
NUM_TOKENS = NUM_PATCHES + 1           # + cls token (stored LAST inside the kernel)
N_PAD = 24                             # tokens padded up to a multiple of 8 sublanes
DIM = 32         # embed dim
HEADS = 4
HEAD_DIM = DIM // HEADS
MLP = 4 * DIM
DEPTH = 2
LAYER1 = 1       # layer to extract facet from (dino2=None -> shared model, layer2=layer1)
FACET1 = "query"
FACET2 = "query"
LN_EPS = 1e-6
NEG_INF = -1e30
N_IMG = 2        # img_1 and img_2 processed together

BT = N_IMG * B                         # both images folded into one batch -> single grid step
R = BT * N_PAD                         # 96 token rows fed to every matmul
G = BT * HEADS                         # 16 (batch, head) pairs for the batched attention einsums
PATCH_FEAT = IN_CH * PATCH * PATCH     # 192
PATCH_FEAT_PAD = 256                   # zero-padded to a full 128-lane multiple
OUT_LANES = 128                        # lane-dense output slab (DIM real cols + zero pad)

MATMUL_DTYPE = jnp.bfloat16            # MXU operand dtype (f32 accumulate); f32 -> exact parity


def check_facet(facet):
    if facet in {None, "query", "key", "value", "token"}:
        return
    raise ValueError('facet must be one of {None, "query", "key", "value", "token"}')


def _transpose01(x):
    """(A, M, D) -> (M, A, D); the minor (lane) dim is untouched."""
    if hasattr(pltpu, "einshape"):
        return pltpu.einshape("mhd->hmd", x)
    return jnp.transpose(x, (1, 0, 2))


# ----------------------------- fused Pallas kernel ------------------------------------------------
def _fused_vit_facet_kernel(patches_ref, patch_w_ref, patch_b_ref, pos_ref,
                            ln1_g_ref, ln1_b_ref, qkv_w_ref, qkv_b_ref,
                            proj_w_ref, proj_b_ref, ln2_g_ref, ln2_b_ref,
                            fc1_w_ref, fc1_b_ref, fc2_w_ref, fc2_b_ref,
                            out_ref, *, layer_idx, facet):
    """Single grid step = both images' whole batch. Everything stays in VMEM/vregs."""
    scale = 1.0 / math.sqrt(HEAD_DIM)

    def mm(a, w):
        # bf16 operands on the MXU, f32 accumulate.
        return jnp.dot(a.astype(MATMUL_DTYPE), w.astype(MATMUL_DTYPE),
                       preferred_element_type=jnp.float32)

    def layer_norm(x, g, b):
        mean = jnp.mean(x, axis=-1, keepdims=True)
        var = jnp.mean(jnp.square(x - mean), axis=-1, keepdims=True)
        return (x - mean) * jax.lax.rsqrt(var + LN_EPS) * g + b

    # ---- patch embedding: one (BT*Np, 256) @ (256, D) MXU matmul (K dim lane-dense) ----
    emb = mm(patches_ref[...], patch_w_ref[...]) + patch_b_ref[...]           # (BT*Np, D)
    emb = emb.reshape(BT, NUM_PATCHES, DIM)

    # ---- token assembly in registers (no VMEM scratch) ----
    # rows 0..15 = patch tokens (+ their pos), row 16 = cls (+ its pos), rows 17..23 = 0.
    emb = jnp.concatenate(
        [emb, jnp.zeros((BT, N_PAD - NUM_PATCHES, DIM), jnp.float32)], axis=1)
    x = (emb + pos_ref[...][None, :, :]).reshape(R, DIM)                      # (R, D)

    # padded key positions (token id >= NUM_TOKENS) get a large negative score before softmax
    key_ids = jax.lax.broadcasted_iota(jnp.int32, (1, 1, N_PAD), 2)
    key_mask = jnp.where(key_ids < NUM_TOKENS, 0.0, NEG_INF).astype(jnp.float32)

    def attention(y, li):
        # q/k/v for all heads in one (R, D) @ (D, 3D) matmul
        qkv = mm(y, qkv_w_ref[li]) + qkv_b_ref[li]                            # (R, 3D) f32
        # single head-split relayout -> batched (head, batch) contraction, no per-head loop
        qkv = qkv.reshape(R, 3 * HEADS, HEAD_DIM)                             # (96, 12, 8)
        qkv = _transpose01(qkv)                                               # (12, 96, 8)
        qkv = qkv.reshape(3 * G, N_PAD, HEAD_DIM)                             # (48, 24, 8)
        q, k, v = qkv[:G], qkv[G:2 * G], qkv[2 * G:]                          # g = h*BT + b
        s = jnp.einsum("gnd,gmd->gnm", q, k,
                       preferred_element_type=jnp.float32) * scale + key_mask
        m = jnp.max(s, axis=-1, keepdims=True)
        p = jnp.exp(s - m)
        # NOTE: approx reciprocal (EUP slot); use approx=False + MATMUL_DTYPE=f32 for bit parity.
        p = p * pl.reciprocal(jnp.sum(p, axis=-1, keepdims=True), approx=True)
        o = jnp.einsum("gnm,gmd->gnd", p, v,
                       preferred_element_type=jnp.float32)                    # (16, 24, 8)
        o = _transpose01(o.reshape(HEADS, R, HEAD_DIM))                       # (96, 4, 8)
        return o.reshape(R, DIM)                                              # merged heads

    def full_block(x, li):
        # attention branch
        y = layer_norm(x, ln1_g_ref[li], ln1_b_ref[li])
        a = mm(attention(y, li), proj_w_ref[li]) + proj_b_ref[li]
        x = x + a
        # MLP branch
        y = layer_norm(x, ln2_g_ref[li], ln2_b_ref[li])
        h1 = mm(y, fc1_w_ref[li]) + fc1_b_ref[li]
        h1 = 0.5 * h1 * (1.0 + jax.lax.erf(h1 * (1.0 / math.sqrt(2.0))))      # exact (erf) GELU
        h2 = mm(h1, fc2_w_ref[li]) + fc2_b_ref[li]
        return x + h2

    if facet == "token":
        for li in range(layer_idx + 1):
            x = full_block(x, li)
        feat = x
    else:
        for li in range(layer_idx):
            x = full_block(x, li)
        # extraction layer: only LN1 + the facet's slice of the qkv projection is needed.
        y = layer_norm(x, ln1_g_ref[layer_idx], ln1_b_ref[layer_idx])
        off = {"query": 0, "key": DIM, "value": 2 * DIM}[facet]
        w_f = qkv_w_ref[layer_idx][:, off:off + DIM]                          # (D, D)
        b_f = qkv_b_ref[layer_idx][:, off:off + DIM]                          # (1, D)
        feat = mm(y, w_f) + b_f                                               # (R, D)

    # keep the patch tokens only (rows 0..15 of each 24-row block: 8-sublane-aligned slice)
    # and write a lane-dense 128-wide slab so writeback uses unmasked full-tile stores.
    feat = feat.reshape(BT, N_PAD, DIM)[:, :NUM_PATCHES, :].reshape(BT * NUM_PATCHES, DIM)
    out_ref[...] = jnp.concatenate(
        [feat, jnp.zeros((BT * NUM_PATCHES, OUT_LANES - DIM), jnp.float32)], axis=-1)


_W_ORDER = ("patch_w", "patch_b", "pos_cls",
            "ln1_g", "ln1_b", "qkv_w", "qkv_b", "proj_w", "proj_b",
            "ln2_g", "ln2_b", "fc1_w", "fc1_b", "fc2_w", "fc2_b")


def fused_vit_facet(packed, patches):
    """patches: (BT*Np, 256) -> lane-dense facet slab (BT*Np, 128); cols [0, DIM) are real."""
    weights = [packed[name] for name in _W_ORDER]

    def const_spec(arr):
        nd = arr.ndim
        return pl.BlockSpec(arr.shape, lambda i, _nd=nd: (0,) * _nd)          # VMEM-resident

    in_specs = [pl.BlockSpec((BT * NUM_PATCHES, PATCH_FEAT_PAD), lambda i: (0, 0))]
    in_specs += [const_spec(w) for w in weights]

    return pl.pallas_call(
        functools.partial(_fused_vit_facet_kernel, layer_idx=LAYER1, facet=FACET1),
        out_shape=jax.ShapeDtypeStruct((BT * NUM_PATCHES, OUT_LANES), jnp.float32),
        grid=(1,),   # N_IMG folded into the batch: every matmul runs at M = 96 rows
        in_specs=in_specs,
        out_specs=pl.BlockSpec((BT * NUM_PATCHES, OUT_LANES), lambda i: (0, 0)),
        compiler_params=pltpu.CompilerParams(
            dimension_semantics=("arbitrary",),
            vmem_limit_bytes=32 * 1024 * 1024),
    )(patches, *weights)


# ----------------------------- glue (layout plumbing only) ----------------------------------------
def _patchify(img):
    """NCHW image -> (B*NumPatches, 256) in conv-weight flattening order (c, i, j), zero-padded."""
    b, c, h, w = img.shape
    x = img.reshape(b, c, HP, PATCH, WP, PATCH)
    x = x.transpose(0, 2, 4, 1, 3, 5)                     # (B, Hp, Wp, C, P, P)
    x = x.reshape(b * HP * WP, c * PATCH * PATCH)         # (B*Np, 192)
    return jnp.pad(x, ((0, 0), (0, PATCH_FEAT_PAD - PATCH_FEAT)))


def dino_encoder_forward(packed, img_1, img_2):
    """DinoEncoder.forward: facet maps from both images, NHWC -> NCHW permute.

    FACET1 == FACET2 and the backbone/layer are shared, so running both images through one
    fused call (batch-concatenated) is exact.
    """
    imgs = jnp.concatenate([img_1, img_2], axis=0)        # (2B, C, H, W)
    patches = _patchify(imgs)                             # (2B*Np, 256)
    feat = fused_vit_facet(packed, patches)[:, :DIM]      # (2B*Np, D)
    feat = feat.reshape(N_IMG, B, HP, WP, DIM)            # (2, B, Hp, Wp, D)
    x1 = feat[0].transpose(0, 3, 1, 2)                    # permute(0, 3, 1, 2)
    x2 = feat[1].transpose(0, 3, 1, 2)
    return x1, x2


# ----------------------------- deterministic parameter init ---------------------------------------
def _dense(key, shape, scale=0.02):
    return scale * jax.random.normal(key, shape, dtype=jnp.float32)


def init_params(key):
    keys = iter(jax.random.split(key, 8 + 8 * DEPTH))
    params = {
        "patch_w": _dense(next(keys), (IN_CH * PATCH * PATCH, DIM)),
        "patch_b": jnp.zeros((DIM,), jnp.float32),
        "cls": _dense(next(keys), (1, 1, DIM)),
        "pos": _dense(next(keys), (1, NUM_TOKENS, DIM)),
        "blocks": [],
    }
    for _ in range(DEPTH):
        params["blocks"].append({
            "ln1_g": jnp.ones((DIM,), jnp.float32),
            "ln1_b": jnp.zeros((DIM,), jnp.float32),
            "qkv_w": _dense(next(keys), (DIM, 3 * DIM)),
            "qkv_b": jnp.zeros((3 * DIM,), jnp.float32),
            "proj_w": _dense(next(keys), (DIM, DIM)),
            "proj_b": jnp.zeros((DIM,), jnp.float32),
            "ln2_g": jnp.ones((DIM,), jnp.float32),
            "ln2_b": jnp.zeros((DIM,), jnp.float32),
            "fc1_w": _dense(next(keys), (DIM, MLP)),
            "fc1_b": jnp.zeros((MLP,), jnp.float32),
            "fc2_w": _dense(next(keys), (MLP, DIM)),
            "fc2_b": jnp.zeros((DIM,), jnp.float32),
        })
    return params


def pack_params(params):
    """One-time packing: stack per-block weights over DEPTH, pre-reshape biases, cast matmul
    weights to MATMUL_DTYPE, zero-pad patch_w rows 192->256, and fold cls+pos into a padded
    (N_PAD, DIM) table matching the kernel token order [patches, cls, pad]."""
    mdt = MATMUL_DTYPE
    pos = params["pos"][0]                                # (NUM_TOKENS, D); row 0 = cls pos
    cls = params["cls"][0, 0]                             # (D,)
    pos_cls = jnp.zeros((N_PAD, DIM), jnp.float32)
    pos_cls = pos_cls.at[:NUM_PATCHES].set(pos[1:])       # patch tokens first (8-aligned)
    pos_cls = pos_cls.at[NUM_PATCHES].set(cls + pos[0])   # cls token last

    patch_w = jnp.zeros((PATCH_FEAT_PAD, DIM), jnp.float32)
    patch_w = patch_w.at[:PATCH_FEAT].set(params["patch_w"])

    def stack(name, cols, dtype=jnp.float32):
        return jnp.stack([blk[name] for blk in params["blocks"]]
                         ).reshape(DEPTH, -1, cols).astype(dtype)

    return {
        "patch_w": patch_w.astype(mdt),
        "patch_b": params["patch_b"].reshape(1, DIM),
        "pos_cls": pos_cls,
        "ln1_g": stack("ln1_g", DIM), "ln1_b": stack("ln1_b", DIM),
        "qkv_w": stack("qkv_w", 3 * DIM, mdt), "qkv_b": stack("qkv_b", 3 * DIM),
        "proj_w": stack("proj_w", DIM, mdt), "proj_b": stack("proj_b", DIM),
        "ln2_g": stack("ln2_g", DIM), "ln2_b": stack("ln2_b", DIM),
        "fc1_w": stack("fc1_w", MLP, mdt), "fc1_b": stack("fc1_b", MLP),
        "fc2_w": stack("fc2_w", DIM, mdt), "fc2_b": stack("fc2_b", DIM),
    }


# ----------------------------- main ----------------------------------------------------------------
if __name__ == "__main__":
    check_facet(FACET1)
    check_facet(FACET2)

    key = jax.random.PRNGKey(0)
    k_params, k_img1, k_img2 = jax.random.split(key, 3)

    params = init_params(k_params)
    packed = pack_params(params)
    img_1 = jax.random.normal(k_img1, (B, IN_CH, IMG, IMG), dtype=jnp.float32)
    img_2 = jax.random.normal(k_img2, (B, IN_CH, IMG, IMG), dtype=jnp.float32)

    fwd = jax.jit(dino_encoder_forward)
    x1, x2 = fwd(packed, img_1, img_2)
    jax.block_until_ready((x1, x2))

    assert x1.shape == (B, DIM, HP, WP), x1.shape
    assert x2.shape == (B, DIM, HP, WP), x2.shape
    assert x1.dtype == jnp.float32 and x2.dtype == jnp.float32
    assert bool(jnp.all(jnp.isfinite(x1))) and bool(jnp.all(jnp.isfinite(x2)))
    print("KERNEL_OK")
</pallas_src>

<mosaic_0001>
module attributes {stable_mosaic.version = 11 : i64} {
  func.func @_fused_vit_facet_kernel(%arg0: i32, %arg1: memref<64x256xf32, #tpu.memory_space<vmem>>, %arg2: memref<256x32xbf16, #tpu.memory_space<vmem>>, %arg3: memref<1x32xf32, #tpu.memory_space<vmem>>, %arg4: memref<24x32xf32, #tpu.memory_space<vmem>>, %arg5: memref<2x1x32xf32, #tpu.memory_space<vmem>>, %arg6: memref<2x1x32xf32, #tpu.memory_space<vmem>>, %arg7: memref<2x32x96xbf16, #tpu.memory_space<vmem>>, %arg8: memref<2x1x96xf32, #tpu.memory_space<vmem>>, %arg9: memref<2x32x32xbf16, #tpu.memory_space<vmem>>, %arg10: memref<2x1x32xf32, #tpu.memory_space<vmem>>, %arg11: memref<2x1x32xf32, #tpu.memory_space<vmem>>, %arg12: memref<2x1x32xf32, #tpu.memory_space<vmem>>, %arg13: memref<2x32x128xbf16, #tpu.memory_space<vmem>>, %arg14: memref<2x1x128xf32, #tpu.memory_space<vmem>>, %arg15: memref<2x128x32xbf16, #tpu.memory_space<vmem>>, %arg16: memref<2x1x32xf32, #tpu.memory_space<vmem>>, %arg17: memref<64x128xf32, #tpu.memory_space<vmem>>) attributes {dimension_semantics = [#tpu.dimension_semantics<arbitrary>], iteration_bounds = array<i64: 1>, scalar_prefetch = 0 : i64, scratch_operands = 0 : i64, tpu.core_type = #tpu.core_type<tc>, window_params = [{pipeline_mode = #tpu.pipeline_mode<synchronous>, transform_indices = @transform_0, window_bounds = array<i64: 64, 256>}, {pipeline_mode = #tpu.pipeline_mode<synchronous>, transform_indices = @transform_1, window_bounds = array<i64: 256, 32>}, {pipeline_mode = #tpu.pipeline_mode<synchronous>, transform_indices = @transform_2, window_bounds = array<i64: 1, 32>}, {pipeline_mode = #tpu.pipeline_mode<synchronous>, transform_indices = @transform_3, window_bounds = array<i64: 24, 32>}, {pipeline_mode = #tpu.pipeline_mode<synchronous>, transform_indices = @transform_4, window_bounds = array<i64: 2, 1, 32>}, {pipeline_mode = #tpu.pipeline_mode<synchronous>, transform_indices = @transform_5, window_bounds = array<i64: 2, 1, 32>}, {pipeline_mode = #tpu.pipeline_mode<synchronous>, transform_indices = @transform_6, window_bounds = array<i64: 2, 32, 96>}, {pipeline_mode = #tpu.pipeline_mode<synchronous>, transform_indices = @transform_7, window_bounds = array<i64: 2, 1, 96>}, {pipeline_mode = #tpu.pipeline_mode<synchronous>, transform_indices = @transform_8, window_bounds = array<i64: 2, 32, 32>}, {pipeline_mode = #tpu.pipeline_mode<synchronous>, transform_indices = @transform_9, window_bounds = array<i64: 2, 1, 32>}, {pipeline_mode = #tpu.pipeline_mode<synchronous>, transform_indices = @transform_10, window_bounds = array<i64: 2, 1, 32>}, {pipeline_mode = #tpu.pipeline_mode<synchronous>, transform_indices = @transform_11, window_bounds = array<i64: 2, 1, 32>}, {pipeline_mode = #tpu.pipeline_mode<synchronous>, transform_indices = @transform_12, window_bounds = array<i64: 2, 32, 128>}, {pipeline_mode = #tpu.pipeline_mode<synchronous>, transform_indices = @transform_13, window_bounds = array<i64: 2, 1, 128>}, {pipeline_mode = #tpu.pipeline_mode<synchronous>, transform_indices = @transform_14, window_bounds = array<i64: 2, 128, 32>}, {pipeline_mode = #tpu.pipeline_mode<synchronous>, transform_indices = @transform_15, window_bounds = array<i64: 2, 1, 32>}, {pipeline_mode = #tpu.pipeline_mode<synchronous>, transform_indices = @transform_16, window_bounds = array<i64: 64, 128>}]} {
    %c0 = arith.constant 0 : index
    %c0_0 = arith.constant 0 : index
    %0 = vector.load %arg1[%c0, %c0_0] : memref<64x256xf32, #tpu.memory_space<vmem>>, vector<64x256xf32>
    %c0_1 = arith.constant 0 : index
    %c0_2 = arith.constant 0 : index
    %1 = vector.load %arg2[%c0_1, %c0_2] : memref<256x32xbf16, #tpu.memory_space<vmem>>, vector<256x32xbf16>
    %2 = arith.truncf %0 : vector<64x256xf32> to vector<64x256xbf16>
    %cst = arith.constant dense<0.000000e+00> : vector<64x32xf32>
    %3 = tpu.matmul %2, %1, %cst {dimension_numbers = #tpu.dot_dimension_numbers<[1], [0], [0], [1], [0, 0, 1, 1], [], []>} : vector<64x256xbf16>, vector<256x32xbf16>, vector<64x32xf32> -> vector<64x32xf32>
    %c0_3 = arith.constant 0 : index
    %c0_4 = arith.constant 0 : index
    %4 = vector.load %arg3[%c0_3, %c0_4] : memref<1x32xf32, #tpu.memory_space<vmem>>, vector<1x32xf32>
    %5 = vector.broadcast %4 : vector<1x32xf32> to vector<64x32xf32>
    %6 = arith.addf %3, %5 : vector<64x32xf32>
    %7 = vector.shape_cast %6 : vector<64x32xf32> to vector<4x16x32xf32>
    %cst_5 = arith.constant 0.000000e+00 : f32
    %8 = vector.broadcast %cst_5 : f32 to vector<4x8x32xf32>
    %9 = tpu.concatenate %7, %8 in 1 : vector<4x16x32xf32>, vector<4x8x32xf32> -> vector<4x24x32xf32>
    %c0_6 = arith.constant 0 : index
    %c0_7 = arith.constant 0 : index
    %10 = vector.load %arg4[%c0_6, %c0_7] : memref<24x32xf32, #tpu.memory_space<vmem>>, vector<24x32xf32>
    %11 = vector.shape_cast %10 : vector<24x32xf32> to vector<1x24x32xf32>
    %12 = vector.broadcast %11 : vector<1x24x32xf32> to vector<4x24x32xf32>
    %13 = arith.addf %9, %12 : vector<4x24x32xf32>
    %14 = vector.shape_cast %13 : vector<4x24x32xf32> to vector<96x32xf32>
    %15 = tpu.iota {dimensions = array<i32: 2>} : vector<1x1x24xi32>
    %c17_i32 = arith.constant 17 : i32
    %16 = vector.broadcast %c17_i32 : i32 to vector<1x1x24xi32>
    %17 = arith.cmpi slt, %15, %16 : vector<1x1x24xi32>
    %cst_8 = arith.constant 0.000000e+00 : f32
    %cst_9 = arith.constant -1.000000e+30 : f32
    %18 = vector.broadcast %cst_8 : f32 to vector<1x1x24xf32>
    %19 = vector.broadcast %cst_9 : f32 to vector<1x1x24xf32>
    %20 = arith.select %17, %18, %19 : vector<1x1x24xi1>, vector<1x1x24xf32>
    %c0_10 = arith.constant 0 : index
    %c0_11 = arith.constant 0 : index
    %c0_12 = arith.constant 0 : index
    %21 = vector.load %arg5[%c0_10, %c0_11, %c0_12] : memref<2x1x32xf32, #tpu.memory_space<vmem>>, vector<1x1x32xf32>
    %22 = vector.shape_cast %21 : vector<1x1x32xf32> to vector<1x32xf32>
    %c0_13 = arith.constant 0 : index
    %c0_14 = arith.constant 0 : index
    %c0_15 = arith.constant 0 : index
    %23 = vector.load %arg6[%c0_13, %c0_14, %c0_15] : memref<2x1x32xf32, #tpu.memory_space<vmem>>, vector<1x1x32xf32>
    %24 = vector.shape_cast %23 : vector<1x1x32xf32> to vector<1x32xf32>
    %cst_16 = arith.constant dense<0.000000e+00> : vector<96xf32>
    %25 = vector.multi_reduction <add>, %14, %cst_16 [1] : vector<96x32xf32> to vector<96xf32>
    %26 = vector.shape_cast %25 : vector<96xf32> to vector<96x1xf32>
    %cst_17 = arith.constant 3.200000e+01 : f32
    %27 = vector.broadcast %cst_17 : f32 to vector<96x1xf32>
    %28 = arith.divf %26, %27 : vector<96x1xf32>
    %29 = vector.broadcast %28 : vector<96x1xf32> to vector<96x32xf32>
    %30 = arith.subf %14, %29 : vector<96x32xf32>
    %31 = arith.mulf %30, %30 : vector<96x32xf32>
    %cst_18 = arith.constant dense<0.000000e+00> : vector<96xf32>
    %32 = vector.multi_reduction <add>, %31, %cst_18 [1] : vector<96x32xf32> to vector<96xf32>
    %33 = vector.shape_cast %32 : vector<96xf32> to vector<96x1xf32>
    %cst_19 = arith.constant 3.200000e+01 : f32
    %34 = vector.broadcast %cst_19 : f32 to vector<96x1xf32>
    %35 = arith.divf %33, %34 : vector<96x1xf32>
    %36 = vector.broadcast %28 : vector<96x1xf32> to vector<96x32xf32>
    %37 = arith.subf %14, %36 : vector<96x32xf32>
    %cst_20 = arith.constant 9.99999997E-7 : f32
    %38 = vector.broadcast %cst_20 : f32 to vector<96x1xf32>
    %39 = arith.addf %35, %38 : vector<96x1xf32>
    %40 = math.rsqrt %39 : vector<96x1xf32>
    %41 = vector.broadcast %40 : vector<96x1xf32> to vector<96x32xf32>
    %42 = arith.mulf %37, %41 : vector<96x32xf32>
    %43 = vector.broadcast %22 : vector<1x32xf32> to vector<96x32xf32>
    %44 = arith.mulf %42, %43 : vector<96x32xf32>
    %45 = vector.broadcast %24 : vector<1x32xf32> to vector<96x32xf32>
    %46 = arith.addf %44, %45 : vector<96x32xf32>
    %c0_21 = arith.constant 0 : index
    %c0_22 = arith.constant 0 : index
    %c0_23 = arith.constant 0 : index
    %47 = vector.load %arg7[%c0_21, %c0_22, %c0_23] : memref<2x32x96xbf16, #tpu.memory_space<vmem>>, vector<1x32x96xbf16>
    %48 = vector.shape_cast %47 : vector<1x32x96xbf16> to vector<32x96xbf16>
    %49 = arith.truncf %46 : vector<96x32xf32> to vector<96x32xbf16>
    %cst_24 = arith.constant dense<0.000000e+00> : vector<96x96xf32>
    %50 = tpu.matmul %49, %48, %cst_24 {dimension_numbers = #tpu.dot_dimension_numbers<[1], [0], [0], [1], [0, 0, 1, 1], [], []>} : vector<96x32xbf16>, vector<32x96xbf16>, vector<96x96xf32> -> vector<96x96xf32>
    %c0_25 = arith.constant 0 : index
    %c0_26 = arith.constant 0 : index
    %c0_27 = arith.constant 0 : index
    %51 = vector.load %arg8[%c0_25, %c0_26, %c0_27] : memref<2x1x96xf32, #tpu.memory_space<vmem>>, vector<1x1x96xf32>
    %52 = vector.shape_cast %51 : vector<1x1x96xf32> to vector<1x96xf32>
    %53 = vector.broadcast %52 : vector<1x96xf32> to vector<96x96xf32>
    %54 = arith.addf %50, %53 : vector<96x96xf32>
    %55 = vector.shape_cast %54 : vector<96x96xf32> to vector<96x12x8xf32>
    %56 = tpu.transpose %55, [1, 0, 2] : vector<96x12x8xf32> -> vector<12x96x8xf32>
    %57 = vector.shape_cast %56 : vector<12x96x8xf32> to vector<48x24x8xf32>
    %58 = vector.extract_strided_slice %57 {offsets = [0, 0, 0], sizes = [16, 24, 8], strides = [1, 1, 1]} : vector<48x24x8xf32> to vector<16x24x8xf32>
    %59 = vector.extract_strided_slice %57 {offsets = [16, 0, 0], sizes = [16, 24, 8], strides = [1, 1, 1]} : vector<48x24x8xf32> to vector<16x24x8xf32>
    %60 = vector.extract_strided_slice %57 {offsets = [32, 0, 0], sizes = [16, 24, 8], strides = [1, 1, 1]} : vector<48x24x8xf32> to vector<16x24x8xf32>
    "tpu.trace_start"() <{level = 10 : i32, message = "gnd,gmd->gnm"}> : () -> ()
    %cst_28 = arith.constant dense<0.000000e+00> : vector<16x24x24xf32>
    %61 = tpu.matmul %58, %59, %cst_28 {dimension_numbers = #tpu.dot_dimension_numbers<[2], [2], [1], [1], [0, 0, 0, 1, 1, 1], [0], [0]>} : vector<16x24x8xf32>, vector<16x24x8xf32>, vector<16x24x24xf32> -> vector<16x24x24xf32>
    "tpu.trace_stop"() : () -> ()
    %cst_29 = arith.constant 0.353553385 : f32
    %62 = vector.broadcast %cst_29 : f32 to vector<16x24x24xf32>
    %63 = arith.mulf %61, %62 : vector<16x24x24xf32>
    %64 = vector.broadcast %20 : vector<1x1x24xf32> to vector<16x24x24xf32>
    %65 = arith.addf %63, %64 : vector<16x24x24xf32>
    %cst_30 = arith.constant dense<0xFF800000> : vector<16x24xf32>
    %66 = vector.multi_reduction <maximumf>, %65, %cst_30 [2] : vector<16x24x24xf32> to vector<16x24xf32>
    %67 = vector.shape_cast %66 : vector<16x24xf32> to vector<16x24x1xf32>
    %68 = vector.broadcast %67 : vector<16x24x1xf32> to vector<16x24x24xf32>
    %69 = arith.subf %65, %68 : vector<16x24x24xf32>
    %70 = math.exp %69 : vector<16x24x24xf32>
    %cst_31 = arith.constant dense<0.000000e+00> : vector<16x24xf32>
    %71 = vector.multi_reduction <add>, %70, %cst_31 [2] : vector<16x24x24xf32> to vector<16x24xf32>
    %72 = vector.shape_cast %71 : vector<16x24xf32> to vector<16x24x1xf32>
    %73 = tpu.reciprocal %72 {approx = true} : vector<16x24x1xf32> -> vector<16x24x1xf32>
    %74 = vector.broadcast %73 : vector<16x24x1xf32> to vector<16x24x24xf32>
    %75 = arith.mulf %70, %74 : vector<16x24x24xf32>
    "tpu.trace_start"() <{level = 10 : i32, message = "gnm,gmd->gnd"}> : () -> ()
    %cst_32 = arith.constant dense<0.000000e+00> : vector<16x24x8xf32>
    %76 = tpu.matmul %75, %60, %cst_32 {dimension_numbers = #tpu.dot_dimension_numbers<[2], [1], [1], [2], [0, 0, 0, 1, 1, 2], [0], [0]>} : vector<16x24x24xf32>, vector<16x24x8xf32>, vector<16x24x8xf32> -> vector<16x24x8xf32>
    "tpu.trace_stop"() : () -> ()
    %77 = vector.shape_cast %76 : vector<16x24x8xf32> to vector<4x96x8xf32>
    %78 = tpu.transpose %77, [1, 0, 2] : vector<4x96x8xf32> -> vector<96x4x8xf32>
    %79 = vector.shape_cast %78 : vector<96x4x8xf32> to vector<96x32xf32>
    %c0_33 = arith.constant 0 : index
    %c0_34 = arith.constant 0 : index
    %c0_35 = arith.constant 0 : index
    %80 = vector.load %arg9[%c0_33, %c0_34, %c0_35] : memref<2x32x32xbf16, #tpu.memory_space<vmem>>, vector<1x32x32xbf16>
    %81 = vector.shape_cast %80 : vector<1x32x32xbf16> to vector<32x32xbf16>
    %82 = arith.truncf %79 : vector<96x32xf32> to vector<96x32xbf16>
    %cst_36 = arith.constant dense<0.000000e+00> : vector<96x32xf32>
    %83 = tpu.matmul %82, %81, %cst_36 {dimension_numbers = #tpu.dot_dimension_numbers<[1], [0], [0], [1], [0, 0, 1, 1], [], []>} : vector<96x32xbf16>, vector<32x32xbf16>, vector<96x32xf32> -> vector<96x32xf32>
    %c0_37 = arith.constant 0 : index
    %c0_38 = arith.constant 0 : index
    %c0_39 = arith.constant 0 : index
    %84 = vector.load %arg10[%c0_37, %c0_38, %c0_39] : memref<2x1x32xf32, #tpu.memory_space<vmem>>, vector<1x1x32xf32>
    %85 = vector.shape_cast %84 : vector<1x1x32xf32> to vector<1x32xf32>
    %86 = vector.broadcast %85 : vector<1x32xf32> to vector<96x32xf32>
    %87 = arith.addf %83, %86 : vector<96x32xf32>
    %88 = arith.addf %14, %87 : vector<96x32xf32>
    %c0_40 = arith.constant 0 : index
    %c0_41 = arith.constant 0 : index
    %c0_42 = arith.constant 0 : index
    %89 = vector.load %arg11[%c0_40, %c0_41, %c0_42] : memref<2x1x32xf32, #tpu.memory_space<vmem>>, vector<1x1x32xf32>
    %90 = vector.shape_cast %89 : vector<1x1x32xf32> to vector<1x32xf32>
    %c0_43 = arith.constant 0 : index
    %c0_44 = arith.constant 0 : index
    %c0_45 = arith.constant 0 : index
    %91 = vector.load %arg12[%c0_43, %c0_44, %c0_45] : memref<2x1x32xf32, #tpu.memory_space<vmem>>, vector<1x1x32xf32>
    %92 = vector.shape_cast %91 : vector<1x1x32xf32> to vector<1x32xf32>
    %cst_46 = arith.constant dense<0.000000e+00> : vector<96xf32>
    %93 = vector.multi_reduction <add>, %88, %cst_46 [1] : vector<96x32xf32> to vector<96xf32>
    %94 = vector.shape_cast %93 : vector<96xf32> to vector<96x1xf32>
    %cst_47 = arith.constant 3.200000e+01 : f32
    %95 = vector.broadcast %cst_47 : f32 to vector<96x1xf32>
    %96 = arith.divf %94, %95 : vector<96x1xf32>
    %97 = vector.broadcast %96 : vector<96x1xf32> to vector<96x32xf32>
    %98 = arith.subf %88, %97 : vector<96x32xf32>
    %99 = arith.mulf %98, %98 : vector<96x32xf32>
    %cst_48 = arith.constant dense<0.000000e+00> : vector<96xf32>
    %100 = vector.multi_reduction <add>, %99, %cst_48 [1] : vector<96x32xf32> to vector<96xf32>
    %101 = vector.shape_cast %100 : vector<96xf32> to vector<96x1xf32>
    %cst_49 = arith.constant 3.200000e+01 : f32
    %102 = vector.broadcast %cst_49 : f32 to vector<96x1xf32>
    %103 = arith.divf %101, %102 : vector<96x1xf32>
    %104 = vector.broadcast %96 : vector<96x1xf32> to vector<96x32xf32>
    %105 = arith.subf %88, %104 : vector<96x32xf32>
    %cst_50 = arith.constant 9.99999997E-7 : f32
    %106 = vector.broadcast %cst_50 : f32 to vector<96x1xf32>
    %107 = arith.addf %103, %106 : vector<96x1xf32>
    %108 = math.rsqrt %107 : vector<96x1xf32>
    %109 = vector.broadcast %108 : vector<96x1xf32> to vector<96x32xf32>
    %110 = arith.mulf %105, %109 : vector<96x32xf32>
    %111 = vector.broadcast %90 : vector<1x32xf32> to vector<96x32xf32>
    %112 = arith.mulf %110, %111 : vector<96x32xf32>
    %113 = vector.broadcast %92 : vector<1x32xf32> to vector<96x32xf32>
    %114 = arith.addf %112, %113 : vector<96x32xf32>
    %c0_51 = arith.constant 0 : index
    %c0_52 = arith.constant 0 : index
    %c0_53 = arith.constant 0 : index
    %115 = vector.load %arg13[%c0_51, %c0_52, %c0_53] : memref<2x32x128xbf16, #tpu.memory_space<vmem>>, vector<1x32x128xbf16>
    %116 = vector.shape_cast %115 : vector<1x32x128xbf16> to vector<32x128xbf16>
    %117 = arith.truncf %114 : vector<96x32xf32> to vector<96x32xbf16>
    %cst_54 = arith.constant dense<0.000000e+00> : vector<96x128xf32>
    %118 = tpu.matmul %117, %116, %cst_54 {dimension_numbers = #tpu.dot_dimension_numbers<[1], [0], [0], [1], [0, 0, 1, 1], [], []>} : vector<96x32xbf16>, vector<32x128xbf16>, vector<96x128xf32> -> vector<96x128xf32>
    %c0_55 = arith.constant 0 : index
    %c0_56 = arith.constant 0 : index
    %c0_57 = arith.constant 0 : index
    %119 = vector.load %arg14[%c0_55, %c0_56, %c0_57] : memref<2x1x128xf32, #tpu.memory_space<vmem>>, vector<1x1x128xf32>
    %120 = vector.shape_cast %119 : vector<1x1x128xf32> to vector<1x128xf32>
    %121 = vector.broadcast %120 : vector<1x128xf32> to vector<96x128xf32>
    %122 = arith.addf %118, %121 : vector<96x128xf32>
    %cst_58 = arith.constant 5.000000e-01 : f32
    %123 = vector.broadcast %cst_58 : f32 to vector<96x128xf32>
    %124 = arith.mulf %123, %122 : vector<96x128xf32>
    %cst_59 = arith.constant 0.707106769 : f32
    %125 = vector.broadcast %cst_59 : f32 to vector<96x128xf32>
    %126 = arith.mulf %122, %125 : vector<96x128xf32>
    %127 = math.erf %126 : vector<96x128xf32>
    %cst_60 = arith.constant 1.000000e+00 : f32
    %128 = vector.broadcast %cst_60 : f32 to vector<96x128xf32>
    %129 = arith.addf %128, %127 : vector<96x128xf32>
    %130 = arith.mulf %124, %129 : vector<96x128xf32>
    %c0_61 = arith.constant 0 : index
    %c0_62 = arith.constant 0 : index
    %c0_63 = arith.constant 0 : index
    %131 = vector.load %arg15[%c0_61, %c0_62, %c0_63] : memref<2x128x32xbf16, #tpu.memory_space<vmem>>, vector<1x128x32xbf16>
    %132 = vector.shape_cast %131 : vector<1x128x32xbf16> to vector<128x32xbf16>
    %133 = arith.truncf %130 : vector<96x128xf32> to vector<96x128xbf16>
    %cst_64 = arith.constant dense<0.000000e+00> : vector<96x32xf32>
    %134 = tpu.matmul %133, %132, %cst_64 {dimension_numbers = #tpu.dot_dimension_numbers<[1], [0], [0], [1], [0, 0, 1, 1], [], []>} : vector<96x128xbf16>, vector<128x32xbf16>, vector<96x32xf32> -> vector<96x32xf32>
    %c0_65 = arith.constant 0 : index
    %c0_66 = arith.constant 0 : index
    %c0_67 = arith.constant 0 : index
    %135 = vector.load %arg16[%c0_65, %c0_66, %c0_67] : memref<2x1x32xf32, #tpu.memory_space<vmem>>, vector<1x1x32xf32>
    %136 = vector.shape_cast %135 : vector<1x1x32xf32> to vector<1x32xf32>
    %137 = vector.broadcast %136 : vector<1x32xf32> to vector<96x32xf32>
    %138 = arith.addf %134, %137 : vector<96x32xf32>
    %139 = arith.addf %88, %138 : vector<96x32xf32>
    %c1 = arith.constant 1 : index
    %c0_68 = arith.constant 0 : index
    %c0_69 = arith.constant 0 : index
    %140 = vector.load %arg5[%c1, %c0_68, %c0_69] : memref<2x1x32xf32, #tpu.memory_space<vmem>>, vector<1x1x32xf32>
    %141 = vector.shape_cast %140 : vector<1x1x32xf32> to vector<1x32xf32>
    %c1_70 = arith.constant 1 : index
    %c0_71 = arith.constant 0 : index
    %c0_72 = arith.constant 0 : index
    %142 = vector.load %arg6[%c1_70, %c0_71, %c0_72] : memref<2x1x32xf32, #tpu.memory_space<vmem>>, vector<1x1x32xf32>
    %143 = vector.shape_cast %142 : vector<1x1x32xf32> to vector<1x32xf32>
    %cst_73 = arith.constant dense<0.000000e+00> : vector<96xf32>
    %144 = vector.multi_reduction <add>, %139, %cst_73 [1] : vector<96x32xf32> to vector<96xf32>
    %145 = vector.shape_cast %144 : vector<96xf32> to vector<96x1xf32>
    %cst_74 = arith.constant 3.200000e+01 : f32
    %146 = vector.broadcast %cst_74 : f32 to vector<96x1xf32>
    %147 = arith.divf %145, %146 : vector<96x1xf32>
    %148 = vector.broadcast %147 : vector<96x1xf32> to vector<96x32xf32>
    %149 = arith.subf %139, %148 : vector<96x32xf32>
    %150 = arith.mulf %149, %149 : vector<96x32xf32>
    %cst_75 = arith.constant dense<0.000000e+00> : vector<96xf32>
    %151 = vector.multi_reduction <add>, %150, %cst_75 [1] : vector<96x32xf32> to vector<96xf32>
    %152 = vector.shape_cast %151 : vector<96xf32> to vector<96x1xf32>
    %cst_76 = arith.constant 3.200000e+01 : f32
    %153 = vector.broadcast %cst_76 : f32 to vector<96x1xf32>
    %154 = arith.divf %152, %153 : vector<96x1xf32>
    %155 = vector.broadcast %147 : vector<96x1xf32> to vector<96x32xf32>
    %156 = arith.subf %139, %155 : vector<96x32xf32>
    %cst_77 = arith.constant 9.99999997E-7 : f32
    %157 = vector.broadcast %cst_77 : f32 to vector<96x1xf32>
    %158 = arith.addf %154, %157 : vector<96x1xf32>
    %159 = math.rsqrt %158 : vector<96x1xf32>
    %160 = vector.broadcast %159 : vector<96x1xf32> to vector<96x32xf32>
    %161 = arith.mulf %156, %160 : vector<96x32xf32>
    %162 = vector.broadcast %141 : vector<1x32xf32> to vector<96x32xf32>
    %163 = arith.mulf %161, %162 : vector<96x32xf32>
    %164 = vector.broadcast %143 : vector<1x32xf32> to vector<96x32xf32>
    %165 = arith.addf %163, %164 : vector<96x32xf32>
    %c1_78 = arith.constant 1 : index
    %c0_79 = arith.constant 0 : index
    %c0_80 = arith.constant 0 : index
    %166 = vector.load %arg7[%c1_78, %c0_79, %c0_80] : memref<2x32x96xbf16, #tpu.memory_space<vmem>>, vector<1x32x96xbf16>
    %167 = vector.shape_cast %166 : vector<1x32x96xbf16> to vector<32x96xbf16>
    %168 = vector.extract_strided_slice %167 {offsets = [0, 0], sizes = [32, 32], strides = [1, 1]} : vector<32x96xbf16> to vector<32x32xbf16>
    %c1_81 = arith.constant 1 : index
    %c0_82 = arith.constant 0 : index
    %c0_83 = arith.constant 0 : index
    %169 = vector.load %arg8[%c1_81, %c0_82, %c0_83] : memref<2x1x96xf32, #tpu.memory_space<vmem>>, vector<1x1x96xf32>
    %170 = vector.shape_cast %169 : vector<1x1x96xf32> to vector<1x96xf32>
    %171 = vector.extract_strided_slice %170 {offsets = [0, 0], sizes = [1, 32], strides = [1, 1]} : vector<1x96xf32> to vector<1x32xf32>
    %172 = arith.truncf %165 : vector<96x32xf32> to vector<96x32xbf16>
    %cst_84 = arith.constant dense<0.000000e+00> : vector<96x32xf32>
    %173 = tpu.matmul %172, %168, %cst_84 {dimension_numbers = #tpu.dot_dimension_numbers<[1], [0], [0], [1], [0, 0, 1, 1], [], []>} : vector<96x32xbf16>, vector<32x32xbf16>, vector<96x32xf32> -> vector<96x32xf32>
    %174 = vector.broadcast %171 : vector<1x32xf32> to vector<96x32xf32>
    %175 = arith.addf %173, %174 : vector<96x32xf32>
    %176 = vector.shape_cast %175 : vector<96x32xf32> to vector<4x24x32xf32>
    %177 = vector.extract_strided_slice %176 {offsets = [0, 0, 0], sizes = [4, 16, 32], strides = [1, 1, 1]} : vector<4x24x32xf32> to vector<4x16x32xf32>
    %178 = vector.shape_cast %177 : vector<4x16x32xf32> to vector<64x32xf32>
    %cst_85 = arith.constant 0.000000e+00 : f32
    %179 = vector.broadcast %cst_85 : f32 to vector<64x96xf32>
    %180 = tpu.concatenate %178, %179 in 1 : vector<64x32xf32>, vector<64x96xf32> -> vector<64x128xf32>
    %c0_86 = arith.constant 0 : index
    %c0_87 = arith.constant 0 : index
    %181 = vector.load %arg17[%c0_86, %c0_87] : memref<64x128xf32, #tpu.memory_space<vmem>>, vector<64x128xf32>
    tpu.vector_store %arg17[%c0_86, %c0_87], %180 {strides = array<i32>} : memref<64x128xf32, #tpu.memory_space<vmem>>, vector<64x128xf32>,
    return
  }
  func.func @transform_0(%arg0: i32) -> (i32, i32) {
    %c0_i32 = arith.constant 0 : i32
    %c0_i32_0 = arith.constant 0 : i32
    %c0_i32_1 = arith.constant 0 : i32
    return %c0_i32, %c0_i32_0 : i32, i32
  }
  func.func @transform_1(%arg0: i32) -> (i32, i32) {
    %c0_i32 = arith.constant 0 : i32
    %c0_i32_0 = arith.constant 0 : i32
    %c0_i32_1 = arith.constant 0 : i32
    return %c0_i32, %c0_i32_0 : i32, i32
  }
  func.func @transform_2(%arg0: i32) -> (i32, i32) {
    %c0_i32 = arith.constant 0 : i32
    %c0_i32_0 = arith.constant 0 : i32
    %c0_i32_1 = arith.constant 0 : i32
    return %c0_i32, %c0_i32_0 : i32, i32
  }
  func.func @transform_3(%arg0: i32) -> (i32, i32) {
    %c0_i32 = arith.constant 0 : i32
    %c0_i32_0 = arith.constant 0 : i32
    %c0_i32_1 = arith.constant 0 : i32
    return %c0_i32, %c0_i32_0 : i32, i32
  }
  func.func @transform_4(%arg0: i32) -> (i32, i32, i32) {
    %c0_i32 = arith.constant 0 : i32
    %c0_i32_0 = arith.constant 0 : i32
    %c0_i32_1 = arith.constant 0 : i32
    %c0_i32_2 = arith.constant 0 : i32
    return %c0_i32, %c0_i32_0, %c0_i32_1 : i32, i32, i32
  }
  func.func @transform_5(%arg0: i32) -> (i32, i32, i32) {
    %c0_i32 = arith.constant 0 : i32
    %c0_i32_0 = arith.constant 0 : i32
    %c0_i32_1 = arith.constant 0 : i32
    %c0_i32_2 = arith.constant 0 : i32
    return %c0_i32, %c0_i32_0, %c0_i32_1 : i32, i32, i32
  }
  func.func @transform_6(%arg0: i32) -> (i32, i32, i32) {
    %c0_i32 = arith.constant 0 : i32
    %c0_i32_0 = arith.constant 0 : i32
    %c0_i32_1 = arith.constant 0 : i32
    %c0_i32_2 = arith.constant 0 : i32
    return %c0_i32, %c0_i32_0, %c0_i32_1 : i32, i32, i32
  }
  func.func @transform_7(%arg0: i32) -> (i32, i32, i32) {
    %c0_i32 = arith.constant 0 : i32
    %c0_i32_0 = arith.constant 0 : i32
    %c0_i32_1 = arith.constant 0 : i32
    %c0_i32_2 = arith.constant 0 : i32
    return %c0_i32, %c0_i32_0, %c0_i32_1 : i32, i32, i32
  }
  func.func @transform_8(%arg0: i32) -> (i32, i32, i32) {
    %c0_i32 = arith.constant 0 : i32
    %c0_i32_0 = arith.constant 0 : i32
    %c0_i32_1 = arith.constant 0 : i32
    %c0_i32_2 = arith.constant 0 : i32
    return %c0_i32, %c0_i32_0, %c0_i32_1 : i32, i32, i32
  }
  func.func @transform_9(%arg0: i32) -> (i32, i32, i32) {
    %c0_i32 = arith.constant 0 : i32
    %c0_i32_0 = arith.constant 0 : i32
    %c0_i32_1 = arith.constant 0 : i32
    %c0_i32_2 = arith.constant 0 : i32
    return %c0_i32, %c0_i32_0, %c0_i32_1 : i32, i32, i32
  }
  func.func @transform_10(%arg0: i32) -> (i32, i32, i32) {
    %c0_i32 = arith.constant 0 : i32
    %c0_i32_0 = arith.constant 0 : i32
    %c0_i32_1 = arith.constant 0 : i32
    %c0_i32_2 = arith.constant 0 : i32
    return %c0_i32, %c0_i32_0, %c0_i32_1 : i32, i32, i32
  }
  func.func @transform_11(%arg0: i32) -> (i32, i32, i32) {
    %c0_i32 = arith.constant 0 : i32
    %c0_i32_0 = arith.constant 0 : i32
    %c0_i32_1 = arith.constant 0 : i32
    %c0_i32_2 = arith.constant 0 : i32
    return %c0_i32, %c0_i32_0, %c0_i32_1 : i32, i32, i32
  }
  func.func @transform_12(%arg0: i32) -> (i32, i32, i32) {
    %c0_i32 = arith.constant 0 : i32
    %c0_i32_0 = arith.constant 0 : i32
    %c0_i32_1 = arith.constant 0 : i32
    %c0_i32_2 = arith.constant 0 : i32
    return %c0_i32, %c0_i32_0, %c0_i32_1 : i32, i32, i32
  }
  func.func @transform_13(%arg0: i32) -> (i32, i32, i32) {
    %c0_i32 = arith.constant 0 : i32
    %c0_i32_0 = arith.constant 0 : i32
    %c0_i32_1 = arith.constant 0 : i32
    %c0_i32_2 = arith.constant 0 : i32
    return %c0_i32, %c0_i32_0, %c0_i32_1 : i32, i32, i32
  }
  func.func @transform_14(%arg0: i32) -> (i32, i32, i32) {
    %c0_i32 = arith.constant 0 : i32
    %c0_i32_0 = arith.constant 0 : i32
    %c0_i32_1 = arith.constant 0 : i32
    %c0_i32_2 = arith.constant 0 : i32
    return %c0_i32, %c0_i32_0, %c0_i32_1 : i32, i32, i32
  }
  func.func @transform_15(%arg0: i32) -> (i32, i32, i32) {
    %c0_i32 = arith.constant 0 : i32
    %c0_i32_0 = arith.constant 0 : i32
    %c0_i32_1 = arith.constant 0 : i32
    %c0_i32_2 = arith.constant 0 : i32
    return %c0_i32, %c0_i32_0, %c0_i32_1 : i32, i32, i32
  }
  func.func @transform_16(%arg0: i32) -> (i32, i32) {
    %c0_i32 = arith.constant 0 : i32
    %c0_i32_0 = arith.constant 0 : i32
    %c0_i32_1 = arith.constant 0 : i32
    return %c0_i32, %c0_i32_0 : i32, i32
  }
}

</mosaic_0001>

<llo_original>
// kernel: dino_encoder_forward.1
$region0: #{dino_encoder_forward.1}
  #allocation0 [shape = 'u32[]', space=smem, size = 0x4, offset = 0x4, fixed_abs, tag = 'smem constant byte address 0x4 - core index']
  #allocation1 [shape = 'u32[72,128]{1,0:T(1,128)}', space=vmem, size = 0x9000, scoped, tag = 'internal scratch']
  %s0 = inlined_call_operand.vmem [shape: f32[64,256], index: 0, kind: input, shape index: {}]
  %s1 = inlined_call_operand.vmem [shape: bf16[256,32], index: 1, kind: input, shape index: {}]
  %s2 = inlined_call_operand.vmem [shape: f32[1,32], index: 2, kind: input, shape index: {}]
  %s3 = inlined_call_operand.vmem [shape: f32[24,32], index: 3, kind: input, shape index: {}]
  %s4 = inlined_call_operand.vmem [shape: f32[2,1,32], index: 4, kind: input, shape index: {}]
  %s5 = inlined_call_operand.vmem [shape: f32[2,1,32], index: 5, kind: input, shape index: {}]
  %s6 = inlined_call_operand.vmem [shape: bf16[2,32,96], index: 6, kind: input, shape index: {}]
  %s7 = inlined_call_operand.vmem [shape: f32[2,1,96], index: 7, kind: input, shape index: {}]
  %s8 = inlined_call_operand.vmem [shape: bf16[2,32,32], index: 8, kind: input, shape index: {}]
  %s9 = inlined_call_operand.vmem [shape: f32[2,1,32], index: 9, kind: input, shape index: {}]
  %s10 = inlined_call_operand.vmem [shape: f32[2,1,32], index: 10, kind: input, shape index: {}]
  %s11 = inlined_call_operand.vmem [shape: f32[2,1,32], index: 11, kind: input, shape index: {}]
  %s12 = inlined_call_operand.vmem [shape: bf16[2,32,128], index: 12, kind: input, shape index: {}]
  %s13 = inlined_call_operand.vmem [shape: f32[2,1,128], index: 13, kind: input, shape index: {}]
  %s14 = inlined_call_operand.vmem [shape: bf16[2,128,32], index: 14, kind: input, shape index: {}]
  %s15 = inlined_call_operand.vmem [shape: f32[2,1,32], index: 15, kind: input, shape index: {}]
  %s16 = inlined_call_operand.vmem [shape: f32[64,128], index: 16, kind: output, shape index: {}]
  %s17 = sld [smem:[#allocation0]]
  $region74: #{dino_encoder_forward.1} parent=0
    _
  %s19 = ssub.s32 1, %s17
  %s20 = scalar_select 0, %s19, %s17
  // Predicated region
  $region2: #{dino_encoder_forward.1} parent=0 // pred_check
    _
  $region3: #{dino_encoder_forward.1} parent=0 // pred_check_branch
    %22 = sbr.rel (0) target = $region5
  $region4: #{dino_encoder_forward.1} parent=0 // pred_region
    _
  $region5: #{dino_encoder_forward.1} parent=0 // pred_fallthru
    _
  // Predicated region
  $region6: #{dino_encoder_forward.1} parent=0 // pred_check
    _
  $region7: #{dino_encoder_forward.1} parent=0 // pred_check_branch
    %24 = sbr.rel (0) target = $region9
  $region8: #{dino_encoder_forward.1} parent=0 // pred_region
    _
  $region9: #{dino_encoder_forward.1} parent=0 // pred_fallthru
    _
  // Predicated region
  $region10: #{dino_encoder_forward.1} parent=0 // pred_check
    _
  $region11: #{dino_encoder_forward.1} parent=0 // pred_check_branch
    %26 = sbr.rel (0) target = $region13
  $region12: #{dino_encoder_forward.1} parent=0 // pred_region
    _
  $region13: #{dino_encoder_forward.1} parent=0 // pred_fallthru
    _
  // Predicated region
  $region14: #{dino_encoder_forward.1} parent=0 // pred_check
    _
  $region15: #{dino_encoder_forward.1} parent=0 // pred_check_branch
    %28 = sbr.rel (0) target = $region17
  $region16: #{dino_encoder_forward.1} parent=0 // pred_region
    _
  $region17: #{dino_encoder_forward.1} parent=0 // pred_fallthru
    _
  // Predicated region
  $region18: #{dino_encoder_forward.1} parent=0 // pred_check
    _
  $region19: #{dino_encoder_forward.1} parent=0 // pred_check_branch
    %30 = sbr.rel (0) target = $region21
  $region20: #{dino_encoder_forward.1} parent=0 // pred_region
    _
  $region21: #{dino_encoder_forward.1} parent=0 // pred_fallthru
    _
  // Predicated region
  $region22: #{dino_encoder_forward.1} parent=0 // pred_check
    _
  $region23: #{dino_encoder_forward.1} parent=0 // pred_check_branch
    %32 = sbr.rel (0) target = $region25
  $region24: #{dino_encoder_forward.1} parent=0 // pred_region
    _
  $region25: #{dino_encoder_forward.1} parent=0 // pred_fallthru
    _
  // Predicated region
  $region26: #{dino_encoder_forward.1} parent=0 // pred_check
    _
  $region27: #{dino_encoder_forward.1} parent=0 // pred_check_branch
    %34 = sbr.rel (0) target = $region29
  $region28: #{dino_encoder_forward.1} parent=0 // pred_region
    _
  $region29: #{dino_encoder_forward.1} parent=0 // pred_fallthru
    _
  // Predicated region
  $region30: #{dino_encoder_forward.1} parent=0 // pred_check
    _
  $region31: #{dino_encoder_forward.1} parent=0 // pred_check_branch
    %36 = sbr.rel (0) target = $region33
  $region32: #{dino_encoder_forward.1} parent=0 // pred_region
    _
  $region33: #{dino_encoder_forward.1} parent=0 // pred_fallthru
    _
  // Predicated region
  $region34: #{dino_encoder_forward.1} parent=0 // pred_check
    _
  $region35: #{dino_encoder_forward.1} parent=0 // pred_check_branch
    %38 = sbr.rel (0) target = $region37
  $region36: #{dino_encoder_forward.1} parent=0 // pred_region
    _
  $region37: #{dino_encoder_forward.1} parent=0 // pred_fallthru
    _
  // Predicated region
  $region38: #{dino_encoder_forward.1} parent=0 // pred_check
    _
  $region39: #{dino_encoder_forward.1} parent=0 // pred_check_branch
    %40 = sbr.rel (0) target = $region41
  $region40: #{dino_encoder_forward.1} parent=0 // pred_region
    _
  $region41: #{dino_encoder_forward.1} parent=0 // pred_fallthru
    _
  // Predicated region
  $region42: #{dino_encoder_forward.1} parent=0 // pred_check
    _
  $region43: #{dino_encoder_forward.1} parent=0 // pred_check_branch
    %42 = sbr.rel (0) target = $region45
  $region44: #{dino_encoder_forward.1} parent=0 // pred_region
    _
  $region45: #{dino_encoder_forward.1} parent=0 // pred_fallthru
    _
  // Predicated region
  $region46: #{dino_encoder_forward.1} parent=0 // pred_check
    _
  $region47: #{dino_encoder_forward.1} parent=0 // pred_check_branch
    %44 = sbr.rel (0) target = $region49
  $region48: #{dino_encoder_forward.1} parent=0 // pred_region
    _
  $region49: #{dino_encoder_forward.1} parent=0 // pred_fallthru
    _
  // Predicated region
  $region50: #{dino_encoder_forward.1} parent=0 // pred_check
    _
  $region51: #{dino_encoder_forward.1} parent=0 // pred_check_branch
    %46 = sbr.rel (0) target = $region53
  $region52: #{dino_encoder_forward.1} parent=0 // pred_region
    _
  $region53: #{dino_encoder_forward.1} parent=0 // pred_fallthru
    _
  // Predicated region
  $region54: #{dino_encoder_forward.1} parent=0 // pred_check
    _
  $region55: #{dino_encoder_forward.1} parent=0 // pred_check_branch
    %48 = sbr.rel (0) target = $region57
  $region56: #{dino_encoder_forward.1} parent=0 // pred_region
    _
  $region57: #{dino_encoder_forward.1} parent=0 // pred_fallthru
    _
  // Predicated region
  $region58: #{dino_encoder_forward.1} parent=0 // pred_check
    _
  $region59: #{dino_encoder_forward.1} parent=0 // pred_check_branch
    %50 = sbr.rel (0) target = $region61
  $region60: #{dino_encoder_forward.1} parent=0 // pred_region
    _
  $region61: #{dino_encoder_forward.1} parent=0 // pred_fallthru
    _
  // Predicated region
  $region62: #{dino_encoder_forward.1} parent=0 // pred_check
    _
  $region63: #{dino_encoder_forward.1} parent=0 // pred_check_branch
    %52 = sbr.rel (0) target = $region65
  $region64: #{dino_encoder_forward.1} parent=0 // pred_region
    _
  $region65: #{dino_encoder_forward.1} parent=0 // pred_fallthru
    _
  %v54 = vld [vmem:[%s0] sm:$0xff]
  %v55 = vld [vmem:[%s0 + $0x8] sm:$0xff]
  %v56 = vld [vmem:[%s0 + $0x10] sm:$0xff]
  %v57 = vld [vmem:[%s0 + $0x18] sm:$0xff]
  %v58 = vld [vmem:[%s0 + $0x20] sm:$0xff]
  %v59 = vld [vmem:[%s0 + $0x28] sm:$0xff]
  %v60 = vld [vmem:[%s0 + $0x30] sm:$0xff]
  %v61 = vld [vmem:[%s0 + $0x38] sm:$0xff]
  %v62 = vld [vmem:[%s0 + $0x40] sm:$0xff]
  %v63 = vld [vmem:[%s0 + $0x48] sm:$0xff]
  %v64 = vld [vmem:[%s0 + $0x50] sm:$0xff]
  %v65 = vld [vmem:[%s0 + $0x58] sm:$0xff]
  %v66 = vld [vmem:[%s0 + $0x60] sm:$0xff]
  %v67 = vld [vmem:[%s0 + $0x68] sm:$0xff]
  %v68 = vld [vmem:[%s0 + $0x70] sm:$0xff]
  %v69 = vld [vmem:[%s0 + $0x78] sm:$0xff]
  %v70 = vld [vmem:[%s1] sm:$0xf]
  %v71 = vld [vmem:[%s1 + $0x4] sm:$0xf]
  %v72 = vld [vmem:[%s1 + $0x8] sm:$0xf]
  %v73 = vld [vmem:[%s1 + $0xc] sm:$0xf]
  %v74 = vld [vmem:[%s1 + $0x10] sm:$0xf]
  %v75 = vld [vmem:[%s1 + $0x14] sm:$0xf]
  %v76 = vld [vmem:[%s1 + $0x18] sm:$0xf]
  %v77 = vld [vmem:[%s1 + $0x1c] sm:$0xf]
  %v78 = vld [vmem:[%s1 + $0x20] sm:$0xf]
  %v79 = vld [vmem:[%s1 + $0x24] sm:$0xf]
  %v80 = vld [vmem:[%s1 + $0x28] sm:$0xf]
  %v81 = vld [vmem:[%s1 + $0x2c] sm:$0xf]
  %v82 = vld [vmem:[%s1 + $0x30] sm:$0xf]
  %v83 = vld [vmem:[%s1 + $0x34] sm:$0xf]
  %v84 = vld [vmem:[%s1 + $0x38] sm:$0xf]
  %v85 = vld [vmem:[%s1 + $0x3c] sm:$0xf]
  %v86 = vld [vmem:[%s1 + $0x40] sm:$0xf]
  %v87 = vld [vmem:[%s1 + $0x44] sm:$0xf]
  %v88 = vld [vmem:[%s1 + $0x48] sm:$0xf]
  %v89 = vld [vmem:[%s1 + $0x4c] sm:$0xf]
  %v90 = vld [vmem:[%s1 + $0x50] sm:$0xf]
  %v91 = vld [vmem:[%s1 + $0x54] sm:$0xf]
  %v92 = vld [vmem:[%s1 + $0x58] sm:$0xf]
  %v93 = vld [vmem:[%s1 + $0x5c] sm:$0xf]
  %v94 = vld [vmem:[%s1 + $0x60] sm:$0xf]
  %v95 = vld [vmem:[%s1 + $0x64] sm:$0xf]
  %v96 = vld [vmem:[%s1 + $0x68] sm:$0xf]
  %v97 = vld [vmem:[%s1 + $0x6c] sm:$0xf]
  %v98 = vld [vmem:[%s1 + $0x70] sm:$0xf]
  %v99 = vld [vmem:[%s1 + $0x74] sm:$0xf]
  %v100 = vld [vmem:[%s1 + $0x78] sm:$0xf]
  %v101 = vld [vmem:[%s1 + $0x7c] sm:$0xf]
  %v102 = vpack.c.bf16 %v56, %v54
  %v103 = vpack.c.bf16 %v57, %v55
  %v104 = vpack.c.bf16 %v60, %v58
  %v105 = vpack.c.bf16 %v61, %v59
  %v106 = vpack.c.bf16 %v64, %v62
  %v107 = vpack.c.bf16 %v65, %v63
  %v108 = vpack.c.bf16 %v68, %v66
  %v109 = vpack.c.bf16 %v69, %v67
  %v110 = vld [vmem:[%s2] sm:$0x1]
  %v112 = vperm.slane %v110, 0
  %v146 = vunpack.c.l.b16 %v70
  %v147 = vunpack.c.l.b16 %v71
  %v148 = vunpack.c.l.b16 %v72
  %v149 = vunpack.c.l.b16 %v73
  %v150 = vunpack.c.l.b16 %v74
  %v151 = vunpack.c.l.b16 %v75
  %v152 = vunpack.c.l.b16 %v76
  %v153 = vunpack.c.l.b16 %v77
  %v154 = vunpack.c.l.b16 %v78
  %v155 = vunpack.c.l.b16 %v79
  %v156 = vunpack.c.l.b16 %v80
  %v157 = vunpack.c.l.b16 %v81
  %v158 = vunpack.c.l.b16 %v82
  %v159 = vunpack.c.l.b16 %v83
  %v160 = vunpack.c.l.b16 %v84
  %v161 = vunpack.c.l.b16 %v85
  %v162 = vunpack.c.l.b16 %v86
  %v163 = vunpack.c.l.b16 %v87
  %v164 = vunpack.c.l.b16 %v88
  %v165 = vunpack.c.l.b16 %v89
  %v166 = vunpack.c.l.b16 %v90
  %v167 = vunpack.c.l.b16 %v91
  %v168 = vunpack.c.l.b16 %v92
  %v169 = vunpack.c.l.b16 %v93
  %v170 = vunpack.c.l.b16 %v94
  %v171 = vunpack.c.l.b16 %v95
  %v172 = vunpack.c.l.b16 %v96
  %v173 = vunpack.c.l.b16 %v97
  %v174 = vunpack.c.l.b16 %v98
  %v175 = vunpack.c.l.b16 %v99
  %v176 = vunpack.c.l.b16 %v100
  %v177 = vunpack.c.l.b16 %v101
  %v178 = vpack.c.b16 %v147, %v146
  %v179 = vpack.c.b16 %v149, %v148
  %v180 = vpack.c.b16 %v151, %v150
  %v181 = vpack.c.b16 %v153, %v152
  %v182 = vpack.c.b16 %v155, %v154
  %v183 = vpack.c.b16 %v157, %v156
  %v184 = vpack.c.b16 %v159, %v158
  %v185 = vpack.c.b16 %v161, %v160
  %v186 = vpack.c.b16 %v163, %v162
  %v187 = vpack.c.b16 %v165, %v164
  %v188 = vpack.c.b16 %v167, %v166
  %v189 = vpack.c.b16 %v169, %v168
  %v190 = vpack.c.b16 %v171, %v170
  %v191 = vpack.c.b16 %v173, %v172
  %v192 = vpack.c.b16 %v175, %v174
  %v193 = vpack.c.b16 %v177, %v176
  %210 = vmatpush.bf16.msra.mxu0 %v185
  %211 = vmatpush.bf16.msra.mxu0 %v184
  %212 = vmatpush.bf16.msra.mxu0 %v183
  %213 = vmatpush.bf16.msra.mxu0 %v182
  %214 = vmatpush.bf16.msra.mxu0 %v181
  %215 = vmatpush.bf16.msra.mxu0 %v180
  %216 = vmatpush.bf16.msra.mxu0 %v179
  %217 = vmatpush.bf16.msra.mxu0 %v178
  %218 = vmatmul.bf16.gmra.mxu0 %v102
  %v219 = vpop.f32.mrf.mxu0
  %v220 = vadd.f32 %v112, %v219
  %v221 = vpop.f32.mrf.mxu0
  %v222 = vadd.f32 %v112, %v221
  %223 = vmatmul.bf16.gmra.mxu0 %v104
  %v224 = vpop.f32.mrf.mxu0
  %v225 = vadd.f32 %v112, %v224
  %v226 = vpop.f32.mrf.mxu0
  %v227 = vadd.f32 %v112, %v226
  %228 = vmatmul.bf16.gmra.mxu0 %v106
  %v229 = vpop.f32.mrf.mxu0
  %v230 = vadd.f32 %v112, %v229
  %v231 = vpop.f32.mrf.mxu0
  %v232 = vadd.f32 %v112, %v231
  %233 = vmatmul.bf16.gmra.mxu0 %v108
  %v234 = vpop.f32.mrf.mxu0
  %v235 = vadd.f32 %v112, %v234
  %v236 = vpop.f32.mrf.mxu0
  %v237 = vadd.f32 %v112, %v236
  %238 = vdwg.mxu0
  %239 = vmatpush.bf16.msra.mxu0 %v193
  %240 = vmatpush.bf16.msra.mxu0 %v192
  %241 = vmatpush.bf16.msra.mxu0 %v191
  %242 = vmatpush.bf16.msra.mxu0 %v190
  %243 = vmatpush.bf16.msra.mxu0 %v189
  %244 = vmatpush.bf16.msra.mxu0 %v188
  %245 = vmatpush.bf16.msra.mxu0 %v187
  %246 = vmatpush.bf16.msra.mxu0 %v186
  %247 = vmatmul.bf16.gmra.mxu0 %v103
  %v248 = vpop.f32.mrf.mxu0
  %v249 = vadd.f32 %v220, %v248
  %v250 = vpop.f32.mrf.mxu0
  %v251 = vadd.f32 %v222, %v250
  %252 = vmatmul.bf16.gmra.mxu0 %v105
  %v253 = vpop.f32.mrf.mxu0
  %v254 = vadd.f32 %v225, %v253
  %v255 = vpop.f32.mrf.mxu0
  %v256 = vadd.f32 %v227, %v255
  %257 = vmatmul.bf16.gmra.mxu0 %v107
  %v258 = vpop.f32.mrf.mxu0
  %v259 = vadd.f32 %v230, %v258
  %v260 = vpop.f32.mrf.mxu0
  %v261 = vadd.f32 %v232, %v260
  %262 = vmatmul.bf16.gmra.mxu0 %v109
  %v263 = vpop.f32.mrf.mxu0
  %v264 = vadd.f32 %v235, %v263
  %v265 = vpop.f32.mrf.mxu0
  %v266 = vadd.f32 %v237, %v265
  %267 = vdwg.mxu0
  %v268 = vld [vmem:[%s3] sm:$0xff]
  %v269 = vld [vmem:[%s3 + $0x8] sm:$0xff]
  %v270 = vld [vmem:[%s3 + $0x10] sm:$0xff]
  %v271 = vadd.f32 %v249, %v268
  %v272 = vadd.f32 %v251, %v269
  %v273 = vadd.f32 %v270, 0.0
  %v274 = vadd.f32 %v254, %v268
  %v275 = vadd.f32 %v256, %v269
  %v276 = vadd.f32 %v259, %v268
  %v277 = vadd.f32 %v261, %v269
  %v278 = vadd.f32 %v264, %v268
  %v279 = vadd.f32 %v266, %v269
  %v280 = vlaneseq
  %v281 = vand.u32 %v280, 127
  %vm282 = vcmp.lt.s32.totalorder %v281, 17
  %v283 = vsel %vm282, 0.0, -1e+30
  %v284 = vld [vmem:[%s4] sm:$0x1]
  %v285 = vld [vmem:[%s5] sm:$0x1]
  %vm286 = vcmask 261120
  %v287 = vsel %vm286, %v271, 0.0
  %288 = vadd.xlane.f32.xlu0 %v287
  %v289 = vpop.xlane.xlu0 %288
  %v290 = vsel %vm286, %v272, 0.0
  %291 = vadd.xlane.f32.xlu0 %v290
  %v292 = vpop.xlane.xlu0 %291
  %v293 = vsel %vm286, %v273, 0.0
  %294 = vadd.xlane.f32.xlu0 %v293
  %v295 = vpop.xlane.xlu0 %294
  %v296 = vsel %vm286, %v274, 0.0
  %297 = vadd.xlane.f32.xlu0 %v296
  %v298 = vpop.xlane.xlu0 %297
  %v299 = vsel %vm286, %v275, 0.0
  %300 = vadd.xlane.f32.xlu0 %v299
  %v301 = vpop.xlane.xlu0 %300
  %v302 = vsel %vm286, %v276, 0.0
  %303 = vadd.xlane.f32.xlu0 %v302
  %v304 = vpop.xlane.xlu0 %303
  %v305 = vsel %vm286, %v277, 0.0
  %306 = vadd.xlane.f32.xlu0 %v305
  %v307 = vpop.xlane.xlu0 %306
  %v308 = vsel %vm286, %v278, 0.0
  %309 = vadd.xlane.f32.xlu0 %v308
  %v310 = vpop.xlane.xlu0 %309
  %v311 = vsel %vm286, %v279, 0.0
  %312 = vadd.xlane.f32.xlu0 %v311
  %v313 = vpop.xlane.xlu0 %312
  %v314 = vrcp.pop 32.0
  %v315 = vmul.f32 32.0, %v314
  %v316 = vsub.f32 1.0, %v315
  %v317 = vmul.f32 %v314, %v316
  %v318 = vadd.f32 %v314, %v317
  %vm319 = vweird.f32 %v314
  %v320 = vsel %vm319, %v314, %v318
  %v321 = vmul.f32 %v289, %v320
  %v322 = vmul.f32 %v292, %v320
  %v323 = vmul.f32 %v295, %v320
  %v324 = vmul.f32 %v298, %v320
  %v325 = vmul.f32 %v301, %v320
  %v326 = vmul.f32 %v304, %v320
  %v327 = vmul.f32 %v307, %v320
  %v328 = vmul.f32 %v310, %v320
  %v329 = vmul.f32 %v313, %v320
  %v330 = vsub.f32 %v271, %v321
  %v331 = vsub.f32 %v272, %v322
  %v332 = vsub.f32 %v273, %v323
  %v333 = vsub.f32 %v274, %v324
  %v334 = vsub.f32 %v275, %v325
  %v335 = vsub.f32 %v276, %v326
  %v336 = vsub.f32 %v277, %v327
  %v337 = vsub.f32 %v278, %v328
  %v338 = vsub.f32 %v279, %v329
  %v339 = vmul.f32 %v330, %v330
  %v340 = vmul.f32 %v331, %v331
  %v341 = vmul.f32 %v332, %v332
  %v342 = vmul.f32 %v333, %v333
  %v343 = vmul.f32 %v334, %v334
  %v344 = vmul.f32 %v335, %v335
  %v345 = vmul.f32 %v336, %v336
  %v346 = vmul.f32 %v337, %v337
  %v347 = vmul.f32 %v338, %v338
  %v348 = vsel %vm286, %v339, 0.0
  %349 = vadd.xlane.f32.xlu0 %v348
  %v350 = vpop.xlane.xlu0 %349
  %v351 = vsel %vm286, %v340, 0.0
  %352 = vadd.xlane.f32.xlu0 %v351
  %v353 = vpop.xlane.xlu0 %352
  %v354 = vsel %vm286, %v341, 0.0
  %355 = vadd.xlane.f32.xlu0 %v354
  %v356 = vpop.xlane.xlu0 %355
  %v357 = vsel %vm286, %v342, 0.0
  %358 = vadd.xlane.f32.xlu0 %v357
  %v359 = vpop.xlane.xlu0 %358
  %v360 = vsel %vm286, %v343, 0.0
  %361 = vadd.xlane.f32.xlu0 %v360
  %v362 = vpop.xlane.xlu0 %361
  %v363 = vsel %vm286, %v344, 0.0
  %364 = vadd.xlane.f32.xlu0 %v363
  %v365 = vpop.xlane.xlu0 %364
  %v366 = vsel %vm286, %v345, 0.0
  %367 = vadd.xlane.f32.xlu0 %v366
  %v368 = vpop.xlane.xlu0 %367
  %v369 = vsel %vm286, %v346, 0.0
  %370 = vadd.xlane.f32.xlu0 %v369
  %v371 = vpop.xlane.xlu0 %370
  %v372 = vsel %vm286, %v347, 0.0
  %373 = vadd.xlane.f32.xlu0 %v372
  %v374 = vpop.xlane.xlu0 %373
  %v375 = vmul.f32 %v350, %v320
  %v376 = vmul.f32 %v353, %v320
  %v377 = vmul.f32 %v356, %v320
  %v378 = vmul.f32 %v359, %v320
  %v379 = vmul.f32 %v362, %v320
  %v380 = vmul.f32 %v365, %v320
  %v381 = vmul.f32 %v368, %v320
  %v382 = vmul.f32 %v371, %v320
  %v383 = vmul.f32 %v374, %v320
  %v384 = vadd.f32 %v375, 1e-06
  %v385 = vadd.f32 %v376, 1e-06
  %v386 = vadd.f32 %v377, 1e-06
  %v387 = vadd.f32 %v378, 1e-06
  %v388 = vadd.f32 %v379, 1e-06
  %v389 = vadd.f32 %v380, 1e-06
  %v390 = vadd.f32 %v381, 1e-06
  %v391 = vadd.f32 %v382, 1e-06
  %v392 = vadd.f32 %v383, 1e-06
  %v393 = vrsqrt.pop %v384
  %v394 = vmul.f32 %v393, %v384
  %v395 = vmul.f32 %v394, %v393
  %v396 = vmul.f32 0.5, %v395
  %v397 = vsub.f32 1.5, %v396
  %v398 = vmul.f32 %v393, %v397
  %vm399 = vweird.f32 %v384
  %vm400 = vweird.f32 %v393
  %vm401 = vmor %vm399, %vm400
  %v402 = vsel %vm401, %v393, %v398
  %v403 = vrsqrt.pop %v385
  %v404 = vmul.f32 %v403, %v385
  %v405 = vmul.f32 %v404, %v403
  %v406 = vmul.f32 0.5, %v405
  %v407 = vsub.f32 1.5, %v406
  %v408 = vmul.f32 %v403, %v407
  %vm409 = vweird.f32 %v385
  %vm410 = vweird.f32 %v403
  %vm411 = vmor %vm409, %vm410
  %v412 = vsel %vm411, %v403, %v408
  %v413 = vrsqrt.pop %v386
  %v414 = vmul.f32 %v413, %v386
  %v415 = vmul.f32 %v414, %v413
  %v416 = vmul.f32 0.5, %v415
  %v417 = vsub.f32 1.5, %v416
  %v418 = vmul.f32 %v413, %v417
  %vm419 = vweird.f32 %v386
  %vm420 = vweird.f32 %v413
  %vm421 = vmor %vm419, %vm420
  %v422 = vsel %vm421, %v413, %v418
  %v423 = vrsqrt.pop %v387
  %v424 = vmul.f32 %v423, %v387
  %v425 = vmul.f32 %v424, %v423
  %v426 = vmul.f32 0.5, %v425
  %v427 = vsub.f32 1.5, %v426
  %v428 = vmul.f32 %v423, %v427
  %vm429 = vweird.f32 %v387
  %vm430 = vweird.f32 %v423
  %vm431 = vmor %vm429, %vm430
  %v432 = vsel %vm431, %v423, %v428
  %v433 = vrsqrt.pop %v388
  %v434 = vmul.f32 %v433, %v388
  %v435 = vmul.f32 %v434, %v433
  %v436 = vmul.f32 0.5, %v435
  %v437 = vsub.f32 1.5, %v436
  %v438 = vmul.f32 %v433, %v437
  %vm439 = vweird.f32 %v388
  %vm440 = vweird.f32 %v433
  %vm441 = vmor %vm439, %vm440
  %v442 = vsel %vm441, %v433, %v438
  %v443 = vrsqrt.pop %v389
  %v444 = vmul.f32 %v443, %v389
  %v445 = vmul.f32 %v444, %v443
  %v446 = vmul.f32 0.5, %v445
  %v447 = vsub.f32 1.5, %v446
  %v448 = vmul.f32 %v443, %v447
  %vm449 = vweird.f32 %v389
  %vm450 = vweird.f32 %v443
  %vm451 = vmor %vm449, %vm450
  %v452 = vsel %vm451, %v443, %v448
  %v453 = vrsqrt.pop %v390
  %v454 = vmul.f32 %v453, %v390
  %v455 = vmul.f32 %v454, %v453
  %v456 = vmul.f32 0.5, %v455
  %v457 = vsub.f32 1.5, %v456
  %v458 = vmul.f32 %v453, %v457
  %vm459 = vweird.f32 %v390
  %vm460 = vweird.f32 %v453
  %vm461 = vmor %vm459, %vm460
  %v462 = vsel %vm461, %v453, %v458
  %v463 = vrsqrt.pop %v391
  %v464 = vmul.f32 %v463, %v391
  %v465 = vmul.f32 %v464, %v463
  %v466 = vmul.f32 0.5, %v465
  %v467 = vsub.f32 1.5, %v466
  %v468 = vmul.f32 %v463, %v467
  %vm469 = vweird.f32 %v391
  %vm470 = vweird.f32 %v463
  %vm471 = vmor %vm469, %vm470
  %v472 = vsel %vm471, %v463, %v468
  %v473 = vrsqrt.pop %v392
  %v474 = vmul.f32 %v473, %v392
  %v475 = vmul.f32 %v474, %v473
  %v476 = vmul.f32 0.5, %v475
  %v477 = vsub.f32 1.5, %v476
  %v478 = vmul.f32 %v473, %v477
  %vm479 = vweird.f32 %v392
  %vm480 = vweird.f32 %v473
  %vm481 = vmor %vm479, %vm480
  %v482 = vsel %vm481, %v473, %v478
  %v483 = vmul.f32 %v330, %v402
  %v484 = vmul.f32 %v331, %v412
  %v485 = vmul.f32 %v332, %v422
  %v486 = vmul.f32 %v333, %v432
  %v487 = vmul.f32 %v334, %v442
  %v488 = vmul.f32 %v335, %v452
  %v489 = vmul.f32 %v336, %v462
  %v490 = vmul.f32 %v337, %v472
  %v491 = vmul.f32 %v338, %v482
  %v493 = vperm.slane %v284, 0
  %v495 = vmul.f32 %v483, %v493
  %v496 = vmul.f32 %v484, %v493
  %v497 = vmul.f32 %v485, %v493
  %v498 = vmul.f32 %v486, %v493
  %v499 = vmul.f32 %v487, %v493
  %v500 = vmul.f32 %v488, %v493
  %v501 = vmul.f32 %v489, %v493
  %v502 = vmul.f32 %v490, %v493
  %v503 = vmul.f32 %v491, %v493
  %v505 = vperm.slane %v285, 0
  %v507 = vadd.f32 %v495, %v505
  %v508 = vadd.f32 %v496, %v505
  %v509 = vadd.f32 %v497, %v505
  %v510 = vadd.f32 %v498, %v505
  %v511 = vadd.f32 %v499, %v505
  %v512 = vadd.f32 %v500, %v505
  %v513 = vadd.f32 %v501, %v505
  %v514 = vadd.f32 %v502, %v505
  %v515 = vadd.f32 %v503, %v505
  %v516 = vld [vmem:[%s6] sm:$0xf]
  %v517 = vld [vmem:[%s6 + $0x4] sm:$0xf]
  %v518 = vld [vmem:[%s6 + $0x8] sm:$0xf]
  %v519 = vld [vmem:[%s6 + $0xc] sm:$0xf]
  %v520 = vpack.c.bf16 %v508, %v507
  %v521 = vpack.c.bf16 %v510, %v509
  %v522 = vpack.c.bf16 %v509, %v511
  %v523 = vpack.c.bf16 %v513, %v512
  %v524 = vpack.c.bf16 %v514, %v509
  %v525 = vpack.c.bf16 %v509, %v515
  %v526 = vld [vmem:[%s7] sm:$0x1]
  %v528 = vperm.slane %v526, 0
  %v534 = vunpack.c.l.b16 %v516
  %v535 = vunpack.c.l.b16 %v517
  %v536 = vunpack.c.l.b16 %v518
  %v537 = vunpack.c.l.b16 %v519
  %v538 = vpack.c.b16 %v535, %v534
  %v539 = vpack.c.b16 %v537, %v536
  %v543 = vsel %vm286, %v520, 0
  %v546 = vsel %vm286, %v521, 0
  %v549 = vsel %vm286, %v522, 0
  %v552 = vsel %vm286, %v523, 0
  %v555 = vsel %vm286, %v524, 0
  %v558 = vsel %vm286, %v525, 0
  %560 = vmatpush.bf16.msra.mxu0 0
  %561 = vmatpush.bf16.msra.mxu0 0
  %562 = vmatpush.bf16.msra.mxu0 0
  %563 = vmatpush.bf16.msra.mxu0 0
  %564 = vmatpush.bf16.msra.mxu0 0
  %565 = vmatpush.bf16.msra.mxu0 0
  %566 = vmatpush.bf16.msra.mxu0 %v539
  %567 = vmatpush.bf16.msra.mxu0 %v538
  %568 = vmatmul.bf16.gmra.mxu0 %v543
  %v569 = vpop.f32.mrf.mxu0
  %v570 = vadd.f32 %v528, %v569
  %v571 = vpop.f32.mrf.mxu0
  %v572 = vadd.f32 %v528, %v571
  %573 = vmatmul.bf16.gmra.mxu0 %v546
  %v574 = vpop.f32.mrf.mxu0
  %v575 = vadd.f32 %v528, %v574
  %v576 = vpop.f32.mrf.mxu0
  %v577 = vadd.f32 %v528, %v576
  %578 = vmatmul.bf16.gmra.mxu0 %v549
  %v579 = vpop.f32.mrf.mxu0
  %v580 = vadd.f32 %v528, %v579
  %v581 = vpop.f32.mrf.mxu0
  %v582 = vadd.f32 %v528, %v581
  %583 = vmatmul.bf16.gmra.mxu0 %v552
  %v584 = vpop.f32.mrf.mxu0
  %v585 = vadd.f32 %v528, %v584
  %v586 = vpop.f32.mrf.mxu0
  %v587 = vadd.f32 %v528, %v586
  %588 = vmatmul.bf16.gmra.mxu0 %v555
  %v589 = vpop.f32.mrf.mxu0
  %v590 = vadd.f32 %v528, %v589
  %v591 = vpop.f32.mrf.mxu0
  %v592 = vadd.f32 %v528, %v591
  %593 = vmatmul.bf16.gmra.mxu0 %v558
  %v594 = vpop.f32.mrf.mxu0
  %v595 = vadd.f32 %v528, %v594
  %v596 = vpop.f32.mrf.mxu0
  %v597 = vadd.f32 %v528, %v596
  %598 = vdwg.mxu0
  %611 = vrot.lane.b32.xlu0 %v570, 120
  %v612 = vpop.permute.xlu0 %611
  %613 = vrot.lane.b32.xlu0 %v572, 120
  %v614 = vpop.permute.xlu0 %613
  %615 = vrot.lane.b32.xlu0 %v575, 120
  %v616 = vpop.permute.xlu0 %615
  %617 = vrot.lane.b32.xlu0 %v577, 120
  %v618 = vpop.permute.xlu0 %617
  %619 = vrot.lane.b32.xlu0 %v580, 120
  %v620 = vpop.permute.xlu0 %619
  %621 = vrot.lane.b32.xlu0 %v582, 120
  %v622 = vpop.permute.xlu0 %621
  %623 = vrot.lane.b32.xlu0 %v585, 120
  %v624 = vpop.permute.xlu0 %623
  %625 = vrot.lane.b32.xlu0 %v587, 120
  %v626 = vpop.permute.xlu0 %625
  %627 = vrot.lane.b32.xlu0 %v590, 120
  %v628 = vpop.permute.xlu0 %627
  %629 = vrot.lane.b32.xlu0 %v592, 120
  %v630 = vpop.permute.xlu0 %629
  %631 = vrot.lane.b32.xlu0 %v595, 120
  %v632 = vpop.permute.xlu0 %631
  %633 = vrot.lane.b32.xlu0 %v597, 120
  %v634 = vpop.permute.xlu0 %633
  %647 = vrot.lane.b32.xlu0 %v570, 112
  %v648 = vpop.permute.xlu0 %647
  %649 = vrot.lane.b32.xlu0 %v572, 112
  %v650 = vpop.permute.xlu0 %649
  %651 = vrot.lane.b32.xlu0 %v575, 112
  %v652 = vpop.permute.xlu0 %651
  %653 = vrot.lane.b32.xlu0 %v577, 112
  %v654 = vpop.permute.xlu0 %653
  %655 = vrot.lane.b32.xlu0 %v580, 112
  %v656 = vpop.permute.xlu0 %655
  %657 = vrot.lane.b32.xlu0 %v582, 112
  %v658 = vpop.permute.xlu0 %657
  %659 = vrot.lane.b32.xlu0 %v585, 112
  %v660 = vpop.permute.xlu0 %659
  %661 = vrot.lane.b32.xlu0 %v587, 112
  %v662 = vpop.permute.xlu0 %661
  %663 = vrot.lane.b32.xlu0 %v590, 112
  %v664 = vpop.permute.xlu0 %663
  %665 = vrot.lane.b32.xlu0 %v592, 112
  %v666 = vpop.permute.xlu0 %665
  %667 = vrot.lane.b32.xlu0 %v595, 112
  %v668 = vpop.permute.xlu0 %667
  %669 = vrot.lane.b32.xlu0 %v597, 112
  %v670 = vpop.permute.xlu0 %669
  %683 = vrot.lane.b32.xlu0 %v570, 104
  %v684 = vpop.permute.xlu0 %683
  %685 = vrot.lane.b32.xlu0 %v572, 104
  %v686 = vpop.permute.xlu0 %685
  %687 = vrot.lane.b32.xlu0 %v575, 104
  %v688 = vpop.permute.xlu0 %687
  %689 = vrot.lane.b32.xlu0 %v577, 104
  %v690 = vpop.permute.xlu0 %689
  %691 = vrot.lane.b32.xlu0 %v580, 104
  %v692 = vpop.permute.xlu0 %691
  %693 = vrot.lane.b32.xlu0 %v582, 104
  %v694 = vpop.permute.xlu0 %693
  %695 = vrot.lane.b32.xlu0 %v585, 104
  %v696 = vpop.permute.xlu0 %695
  %697 = vrot.lane.b32.xlu0 %v587, 104
  %v698 = vpop.permute.xlu0 %697
  %699 = vrot.lane.b32.xlu0 %v590, 104
  %v700 = vpop.permute.xlu0 %699
  %701 = vrot.lane.b32.xlu0 %v592, 104
  %v702 = vpop.permute.xlu0 %701
  %703 = vrot.lane.b32.xlu0 %v595, 104
  %v704 = vpop.permute.xlu0 %703
  %705 = vrot.lane.b32.xlu0 %v597, 104
  %v706 = vpop.permute.xlu0 %705
  %719 = vrot.lane.b32.xlu0 %v570, 96
  %v720 = vpop.permute.xlu0 %719
  %721 = vrot.lane.b32.xlu0 %v572, 96
  %v722 = vpop.permute.xlu0 %721
  %723 = vrot.lane.b32.xlu0 %v575, 96
  %v724 = vpop.permute.xlu0 %723
  %725 = vrot.lane.b32.xlu0 %v577, 96
  %v726 = vpop.permute.xlu0 %725
  %727 = vrot.lane.b32.xlu0 %v580, 96
  %v728 = vpop.permute.xlu0 %727
  %729 = vrot.lane.b32.xlu0 %v582, 96
  %v730 = vpop.permute.xlu0 %729
  %731 = vrot.lane.b32.xlu0 %v585, 96
  %v732 = vpop.permute.xlu0 %731
  %733 = vrot.lane.b32.xlu0 %v587, 96
  %v734 = vpop.permute.xlu0 %733
  %735 = vrot.lane.b32.xlu0 %v590, 96
  %v736 = vpop.permute.xlu0 %735
  %737 = vrot.lane.b32.xlu0 %v592, 96
  %v738 = vpop.permute.xlu0 %737
  %739 = vrot.lane.b32.xlu0 %v595, 96
  %v740 = vpop.permute.xlu0 %739
  %741 = vrot.lane.b32.xlu0 %v597, 96
  %v742 = vpop.permute.xlu0 %741
  %755 = vrot.lane.b32.xlu0 %v570, 88
  %v756 = vpop.permute.xlu0 %755
  %757 = vrot.lane.b32.xlu0 %v572, 88
  %v758 = vpop.permute.xlu0 %757
  %759 = vrot.lane.b32.xlu0 %v575, 88
  %v760 = vpop.permute.xlu0 %759
  %761 = vrot.lane.b32.xlu0 %v577, 88
  %v762 = vpop.permute.xlu0 %761
  %763 = vrot.lane.b32.xlu0 %v580, 88
  %v764 = vpop.permute.xlu0 %763
  %765 = vrot.lane.b32.xlu0 %v582, 88
  %v766 = vpop.permute.xlu0 %765
  %767 = vrot.lane.b32.xlu0 %v585, 88
  %v768 = vpop.permute.xlu0 %767
  %769 = vrot.lane.b32.xlu0 %v587, 88
  %v770 = vpop.permute.xlu0 %769
  %771 = vrot.lane.b32.xlu0 %v590, 88
  %v772 = vpop.permute.xlu0 %771
  %773 = vrot.lane.b32.xlu0 %v592, 88
  %v774 = vpop.permute.xlu0 %773
  %775 = vrot.lane.b32.xlu0 %v595, 88
  %v776 = vpop.permute.xlu0 %775
  %777 = vrot.lane.b32.xlu0 %v597, 88
  %v778 = vpop.permute.xlu0 %777
  %791 = vrot.lane.b32.xlu0 %v570, 80
  %v792 = vpop.permute.xlu0 %791
  %793 = vrot.lane.b32.xlu0 %v572, 80
  %v794 = vpop.permute.xlu0 %793
  %795 = vrot.lane.b32.xlu0 %v575, 80
  %v796 = vpop.permute.xlu0 %795
  %797 = vrot.lane.b32.xlu0 %v577, 80
  %v798 = vpop.permute.xlu0 %797
  %799 = vrot.lane.b32.xlu0 %v580, 80
  %v800 = vpop.permute.xlu0 %799
  %801 = vrot.lane.b32.xlu0 %v582, 80
  %v802 = vpop.permute.xlu0 %801
  %803 = vrot.lane.b32.xlu0 %v585, 80
  %v804 = vpop.permute.xlu0 %803
  %805 = vrot.lane.b32.xlu0 %v587, 80
  %v806 = vpop.permute.xlu0 %805
  %807 = vrot.lane.b32.xlu0 %v590, 80
  %v808 = vpop.permute.xlu0 %807
  %809 = vrot.lane.b32.xlu0 %v592, 80
  %v810 = vpop.permute.xlu0 %809
  %811 = vrot.lane.b32.xlu0 %v595, 80
  %v812 = vpop.permute.xlu0 %811
  %813 = vrot.lane.b32.xlu0 %v597, 80
  %v814 = vpop.permute.xlu0 %813
  %827 = vrot.lane.b32.xlu0 %v570, 72
  %v828 = vpop.permute.xlu0 %827
  %829 = vrot.lane.b32.xlu0 %v572, 72
  %v830 = vpop.permute.xlu0 %829
  %831 = vrot.lane.b32.xlu0 %v575, 72
  %v832 = vpop.permute.xlu0 %831
  %833 = vrot.lane.b32.xlu0 %v577, 72
  %v834 = vpop.permute.xlu0 %833
  %835 = vrot.lane.b32.xlu0 %v580, 72
  %v836 = vpop.permute.xlu0 %835
  %837 = vrot.lane.b32.xlu0 %v582, 72
  %v838 = vpop.permute.xlu0 %837
  %839 = vrot.lane.b32.xlu0 %v585, 72
  %v840 = vpop.permute.xlu0 %839
  %841 = vrot.lane.b32.xlu0 %v587, 72
  %v842 = vpop.permute.xlu0 %841
  %843 = vrot.lane.b32.xlu0 %v590, 72
  %v844 = vpop.permute.xlu0 %843
  %845 = vrot.lane.b32.xlu0 %v592, 72
  %v846 = vpop.permute.xlu0 %845
  %847 = vrot.lane.b32.xlu0 %v595, 72
  %v848 = vpop.permute.xlu0 %847
  %849 = vrot.lane.b32.xlu0 %v597, 72
  %v850 = vpop.permute.xlu0 %849
  %863 = vrot.lane.b32.xlu0 %v570, 64
  %v864 = vpop.permute.xlu0 %863
  %865 = vrot.lane.b32.xlu0 %v572, 64
  %v866 = vpop.permute.xlu0 %865
  %867 = vrot.lane.b32.xlu0 %v575, 64
  %v868 = vpop.permute.xlu0 %867
  %869 = vrot.lane.b32.xlu0 %v577, 64
  %v870 = vpop.permute.xlu0 %869
  %871 = vrot.lane.b32.xlu0 %v580, 64
  %v872 = vpop.permute.xlu0 %871
  %873 = vrot.lane.b32.xlu0 %v582, 64
  %v874 = vpop.permute.xlu0 %873
  %875 = vrot.lane.b32.xlu0 %v585, 64
  %v876 = vpop.permute.xlu0 %875
  %877 = vrot.lane.b32.xlu0 %v587, 64
  %v878 = vpop.permute.xlu0 %877
  %879 = vrot.lane.b32.xlu0 %v590, 64
  %v880 = vpop.permute.xlu0 %879
  %881 = vrot.lane.b32.xlu0 %v592, 64
  %v882 = vpop.permute.xlu0 %881
  %883 = vrot.lane.b32.xlu0 %v595, 64
  %v884 = vpop.permute.xlu0 %883
  %885 = vrot.lane.b32.xlu0 %v597, 64
  %v886 = vpop.permute.xlu0 %885
  %899 = vrot.lane.b32.xlu0 %v570, 56
  %v900 = vpop.permute.xlu0 %899
  %901 = vrot.lane.b32.xlu0 %v572, 56
  %v902 = vpop.permute.xlu0 %901
  %903 = vrot.lane.b32.xlu0 %v575, 56
  %v904 = vpop.permute.xlu0 %903
  %905 = vrot.lane.b32.xlu0 %v577, 56
  %v906 = vpop.permute.xlu0 %905
  %907 = vrot.lane.b32.xlu0 %v580, 56
  %v908 = vpop.permute.xlu0 %907
  %909 = vrot.lane.b32.xlu0 %v582, 56
  %v910 = vpop.permute.xlu0 %909
  %911 = vrot.lane.b32.xlu0 %v585, 56
  %v912 = vpop.permute.xlu0 %911
  %913 = vrot.lane.b32.xlu0 %v587, 56
  %v914 = vpop.permute.xlu0 %913
  %915 = vrot.lane.b32.xlu0 %v590, 56
  %v916 = vpop.permute.xlu0 %915
  %917 = vrot.lane.b32.xlu0 %v592, 56
  %v918 = vpop.permute.xlu0 %917
  %919 = vrot.lane.b32.xlu0 %v595, 56
  %v920 = vpop.permute.xlu0 %919
  %921 = vrot.lane.b32.xlu0 %v597, 56
  %v922 = vpop.permute.xlu0 %921
  %935 = vrot.lane.b32.xlu0 %v570, 48
  %v936 = vpop.permute.xlu0 %935
  %937 = vrot.lane.b32.xlu0 %v572, 48
  %v938 = vpop.permute.xlu0 %937
  %939 = vrot.lane.b32.xlu0 %v575, 48
  %v940 = vpop.permute.xlu0 %939
  %941 = vrot.lane.b32.xlu0 %v577, 48
  %v942 = vpop.permute.xlu0 %941
  %943 = vrot.lane.b32.xlu0 %v580, 48
  %v944 = vpop.permute.xlu0 %943
  %945 = vrot.lane.b32.xlu0 %v582, 48
  %v946 = vpop.permute.xlu0 %945
  %947 = vrot.lane.b32.xlu0 %v585, 48
  %v948 = vpop.permute.xlu0 %947
  %949 = vrot.lane.b32.xlu0 %v587, 48
  %v950 = vpop.permute.xlu0 %949
  %951 = vrot.lane.b32.xlu0 %v590, 48
  %v952 = vpop.permute.xlu0 %951
  %953 = vrot.lane.b32.xlu0 %v592, 48
  %v954 = vpop.permute.xlu0 %953
  %955 = vrot.lane.b32.xlu0 %v595, 48
  %v956 = vpop.permute.xlu0 %955
  %957 = vrot.lane.b32.xlu0 %v597, 48
  %v958 = vpop.permute.xlu0 %957
  %971 = vrot.lane.b32.xlu0 %v570, 40
  %v972 = vpop.permute.xlu0 %971
  %973 = vrot.lane.b32.xlu0 %v572, 40
  %v974 = vpop.permute.xlu0 %973
  %975 = vrot.lane.b32.xlu0 %v575, 40
  %v976 = vpop.permute.xlu0 %975
  %977 = vrot.lane.b32.xlu0 %v577, 40
  %v978 = vpop.permute.xlu0 %977
  %979 = vrot.lane.b32.xlu0 %v580, 40
  %v980 = vpop.permute.xlu0 %979
  %981 = vrot.lane.b32.xlu0 %v582, 40
  %v982 = vpop.permute.xlu0 %981
  %983 = vrot.lane.b32.xlu0 %v585, 40
  %v984 = vpop.permute.xlu0 %983
  %985 = vrot.lane.b32.xlu0 %v587, 40
  %v986 = vpop.permute.xlu0 %985
  %987 = vrot.lane.b32.xlu0 %v590, 40
  %v988 = vpop.permute.xlu0 %987
  %989 = vrot.lane.b32.xlu0 %v592, 40
  %v990 = vpop.permute.xlu0 %989
  %991 = vrot.lane.b32.xlu0 %v595, 40
  %v992 = vpop.permute.xlu0 %991
  %993 = vrot.lane.b32.xlu0 %v597, 40
  %v994 = vpop.permute.xlu0 %993
  %v1007 = vrot.slane %v648, 4
  %vm1008 = vcmask 1047556
  %v1009 = vsel %vm1008, %v1007, %v570
  %v1010 = vrot.slane %v570, 4
  %v1011 = vsel %vm1008, %v648, %v1010
  %v1013 = vunpack.c.l.s4 1983009808
  %v1014 = vunpack.c.0.s8 %v1013
  %v1015 = vperm.slane %v1009, %v1014
  %v1017 = vunpack.c.l.s4 1983009808
  %v1018 = vunpack.c.0.s8 %v1017
  %v1019 = vperm.slane %v1011, %v1018
  %v1020 = vrot.slane %v684, 4
  %v1021 = vsel %vm1008, %v1020, %v612
  %v1022 = vrot.slane %v612, 4
  %v1023 = vsel %vm1008, %v684, %v1022
  %v1025 = vunpack.c.l.s4 1983009808
  %v1026 = vunpack.c.0.s8 %v1025
  %v1027 = vperm.slane %v1021, %v1026
  %v1029 = vunpack.c.l.s4 1983009808
  %v1030 = vunpack.c.0.s8 %v1029
  %v1031 = vperm.slane %v1023, %v1030
  %v1032 = vrot.slane %v792, 4
  %v1033 = vsel %vm1008, %v1032, %v720
  %v1034 = vrot.slane %v720, 4
  %v1035 = vsel %vm1008, %v792, %v1034
  %v1037 = vunpack.c.l.s4 1983009808
  %v1038 = vunpack.c.0.s8 %v1037
  %v1039 = vperm.slane %v1033, %v1038
  %v1041 = vunpack.c.l.s4 1983009808
  %v1042 = vunpack.c.0.s8 %v1041
  %v1043 = vperm.slane %v1035, %v1042
  %v1044 = vrot.slane %v828, 4
  %v1045 = vsel %vm1008, %v1044, %v756
  %v1046 = vrot.slane %v756, 4
  %v1047 = vsel %vm1008, %v828, %v1046
  %v1049 = vunpack.c.l.s4 1983009808
  %v1050 = vunpack.c.0.s8 %v1049
  %v1051 = vperm.slane %v1045, %v1050
  %v1053 = vunpack.c.l.s4 1983009808
  %v1054 = vunpack.c.0.s8 %v1053
  %v1055 = vperm.slane %v1047, %v1054
  %v1056 = vrot.slane %v1027, 4
  %v1057 = vsel %vm1008, %v1056, %v1015
  %v1058 = vrot.slane %v1015, 4
  %v1059 = vsel %vm1008, %v1027, %v1058
  %v1061 = vunpack.c.l.s4 1934713408
  %v1062 = vunpack.c.0.s8 %v1061
  %v1063 = vperm.slane %v1057, %v1062
  %v1065 = vunpack.c.l.s4 1934713408
  %v1066 = vunpack.c.0.s8 %v1065
  %v1067 = vperm.slane %v1059, %v1066
  %v1068 = vrot.slane %v1031, 4
  %v1069 = vsel %vm1008, %v1068, %v1019
  %v1070 = vrot.slane %v1019, 4
  %v1071 = vsel %vm1008, %v1031, %v1070
  %v1073 = vunpack.c.l.s4 1934713408
  %v1074 = vunpack.c.0.s8 %v1073
  %v1075 = vperm.slane %v1069, %v1074
  %v1077 = vunpack.c.l.s4 1934713408
  %v1078 = vunpack.c.0.s8 %v1077
  %v1079 = vperm.slane %v1071, %v1078
  %v1080 = vrot.slane %v1051, 4
  %v1081 = vsel %vm1008, %v1080, %v1039
  %v1082 = vrot.slane %v1039, 4
  %v1083 = vsel %vm1008, %v1051, %v1082
  %v1085 = vunpack.c.l.s4 1934713408
  %v1086 = vunpack.c.0.s8 %v1085
  %v1087 = vperm.slane %v1081, %v1086
  %v1089 = vunpack.c.l.s4 1934713408
  %v1090 = vunpack.c.0.s8 %v1089
  %v1091 = vperm.slane %v1083, %v1090
  %v1092 = vrot.slane %v1055, 4
  %v1093 = vsel %vm1008, %v1092, %v1043
  %v1094 = vrot.slane %v1043, 4
  %v1095 = vsel %vm1008, %v1055, %v1094
  %v1097 = vunpack.c.l.s4 1934713408
  %v1098 = vunpack.c.0.s8 %v1097
  %v1099 = vperm.slane %v1093, %v1098
  %v1101 = vunpack.c.l.s4 1934713408
  %v1102 = vunpack.c.0.s8 %v1101
  %v1103 = vperm.slane %v1095, %v1102
  %v1104 = vrot.slane %v1087, 4
  %v1105 = vsel %vm1008, %v1104, %v1063
  %v1106 = vrot.slane %v1063, 4
  %v1107 = vsel %vm1008, %v1087, %v1106
  %v1108 = vrot.slane %v1091, 4
  %v1109 = vsel %vm1008, %v1108, %v1067
  %v1110 = vrot.slane %v1067, 4
  %v1111 = vsel %vm1008, %v1091, %v1110
  %v1112 = vrot.slane %v1099, 4
  %v1113 = vsel %vm1008, %v1112, %v1075
  %v1114 = vrot.slane %v1075, 4
  %v1115 = vsel %vm1008, %v1099, %v1114
  %v1116 = vrot.slane %v1103, 4
  %v1117 = vsel %vm1008, %v1116, %v1079
  %v1118 = vrot.slane %v1079, 4
  %v1119 = vsel %vm1008, %v1103, %v1118
  %v1120 = vrot.slane %v936, 4
  %v1121 = vsel %vm1008, %v1120, %v864
  %v1122 = vrot.slane %v864, 4
  %v1123 = vsel %vm1008, %v936, %v1122
  %v1125 = vunpack.c.l.s4 1983009808
  %v1126 = vunpack.c.0.s8 %v1125
  %v1127 = vperm.slane %v1121, %v1126
  %v1129 = vunpack.c.l.s4 1983009808
  %v1130 = vunpack.c.0.s8 %v1129
  %v1131 = vperm.slane %v1123, %v1130
  %v1132 = vrot.slane %v972, 4
  %v1133 = vsel %vm1008, %v1132, %v900
  %v1134 = vrot.slane %v900, 4
  %v1135 = vsel %vm1008, %v972, %v1134
  %v1137 = vunpack.c.l.s4 1983009808
  %v1138 = vunpack.c.0.s8 %v1137
  %v1139 = vperm.slane %v1133, %v1138
  %v1141 = vunpack.c.l.s4 1983009808
  %v1142 = vunpack.c.0.s8 %v1141
  %v1143 = vperm.slane %v1135, %v1142
  %v1144 = vrot.slane %v1139, 4
  %v1145 = vsel %vm1008, %v1144, %v1127
  %v1146 = vrot.slane %v1127, 4
  %v1147 = vsel %vm1008, %v1139, %v1146
  %v1149 = vunpack.c.l.s4 1934713408
  %v1150 = vunpack.c.0.s8 %v1149
  %v1151 = vperm.slane %v1145, %v1150
  %v1153 = vunpack.c.l.s4 1934713408
  %v1154 = vunpack.c.0.s8 %v1153
  %v1155 = vperm.slane %v1147, %v1154
  %v1156 = vrot.slane %v1143, 4
  %v1157 = vsel %vm1008, %v1156, %v1131
  %v1158 = vrot.slane %v1131, 4
  %v1159 = vsel %vm1008, %v1143, %v1158
  %v1161 = vunpack.c.l.s4 1934713408
  %v1162 = vunpack.c.0.s8 %v1161
  %v1163 = vperm.slane %v1157, %v1162
  %v1165 = vunpack.c.l.s4 1934713408
  %v1166 = vunpack.c.0.s8 %v1165
  %v1167 = vperm.slane %v1159, %v1166
  %v1168 = vrot.slane %v1151, 4
  %v1169 = vsel %vm1008, 0.0, %v1168
  %v1170 = vrot.slane %v1155, 4
  %v1171 = vsel %vm1008, 0.0, %v1170
  %v1172 = vrot.slane %v1163, 4
  %v1173 = vsel %vm1008, 0.0, %v1172
  %v1174 = vrot.slane %v1167, 4
  %v1175 = vsel %vm1008, 0.0, %v1174
  %v1176 = vrot.slane %v650, 4
  %v1177 = vsel %vm1008, %v1176, %v572
  %v1178 = vrot.slane %v572, 4
  %v1179 = vsel %vm1008, %v650, %v1178
  %v1181 = vunpack.c.l.s4 1983009808
  %v1182 = vunpack.c.0.s8 %v1181
  %v1183 = vperm.slane %v1177, %v1182
  %v1185 = vunpack.c.l.s4 1983009808
  %v1186 = vunpack.c.0.s8 %v1185
  %v1187 = vperm.slane %v1179, %v1186
  %v1188 = vrot.slane %v686, 4
  %v1189 = vsel %vm1008, %v1188, %v614
  %v1190 = vrot.slane %v614, 4
  %v1191 = vsel %vm1008, %v686, %v1190
  %v1193 = vunpack.c.l.s4 1983009808
  %v1194 = vunpack.c.0.s8 %v1193
  %v1195 = vperm.slane %v1189, %v1194
  %v1197 = vunpack.c.l.s4 1983009808
  %v1198 = vunpack.c.0.s8 %v1197
  %v1199 = vperm.slane %v1191, %v1198
  %v1200 = vrot.slane %v794, 4
  %v1201 = vsel %vm1008, %v1200, %v722
  %v1202 = vrot.slane %v722, 4
  %v1203 = vsel %vm1008, %v794, %v1202
  %v1205 = vunpack.c.l.s4 1983009808
  %v1206 = vunpack.c.0.s8 %v1205
  %v1207 = vperm.slane %v1201, %v1206
  %v1209 = vunpack.c.l.s4 1983009808
  %v1210 = vunpack.c.0.s8 %v1209
  %v1211 = vperm.slane %v1203, %v1210
  %v1212 = vrot.slane %v830, 4
  %v1213 = vsel %vm1008, %v1212, %v758
  %v1214 = vrot.slane %v758, 4
  %v1215 = vsel %vm1008, %v830, %v1214
  %v1217 = vunpack.c.l.s4 1983009808
  %v1218 = vunpack.c.0.s8 %v1217
  %v1219 = vperm.slane %v1213, %v1218
  %v1221 = vunpack.c.l.s4 1983009808
  %v1222 = vunpack.c.0.s8 %v1221
  %v1223 = vperm.slane %v1215, %v1222
  %v1224 = vrot.slane %v1195, 4
  %v1225 = vsel %vm1008, %v1224, %v1183
  %v1226 = vrot.slane %v1183, 4
  %v1227 = vsel %vm1008, %v1195, %v1226
  %v1229 = vunpack.c.l.s4 1934713408
  %v1230 = vunpack.c.0.s8 %v1229
  %v1231 = vperm.slane %v1225, %v1230
  %v1233 = vunpack.c.l.s4 1934713408
  %v1234 = vunpack.c.0.s8 %v1233
  %v1235 = vperm.slane %v1227, %v1234
  %v1236 = vrot.slane %v1199, 4
  %v1237 = vsel %vm1008, %v1236, %v1187
  %v1238 = vrot.slane %v1187, 4
  %v1239 = vsel %vm1008, %v1199, %v1238
  %v1241 = vunpack.c.l.s4 1934713408
  %v1242 = vunpack.c.0.s8 %v1241
  %v1243 = vperm.slane %v1237, %v1242
  %v1245 = vunpack.c.l.s4 1934713408
  %v1246 = vunpack.c.0.s8 %v1245
  %v1247 = vperm.slane %v1239, %v1246
  %v1248 = vrot.slane %v1219, 4
  %v1249 = vsel %vm1008, %v1248, %v1207
  %v1250 = vrot.slane %v1207, 4
  %v1251 = vsel %vm1008, %v1219, %v1250
  %v1253 = vunpack.c.l.s4 1934713408
  %v1254 = vunpack.c.0.s8 %v1253
  %v1255 = vperm.slane %v1249, %v1254
  %v1257 = vunpack.c.l.s4 1934713408
  %v1258 = vunpack.c.0.s8 %v1257
  %v1259 = vperm.slane %v1251, %v1258
  %v1260 = vrot.slane %v1223, 4
  %v1261 = vsel %vm1008, %v1260, %v1211
  %v1262 = vrot.slane %v1211, 4
  %v1263 = vsel %vm1008, %v1223, %v1262
  %v1265 = vunpack.c.l.s4 1934713408
  %v1266 = vunpack.c.0.s8 %v1265
  %v1267 = vperm.slane %v1261, %v1266
  %v1269 = vunpack.c.l.s4 1934713408
  %v1270 = vunpack.c.0.s8 %v1269
  %v1271 = vperm.slane %v1263, %v1270
  %v1272 = vrot.slane %v1255, 4
  %v1273 = vsel %vm1008, %v1272, %v1231
  %v1274 = vrot.slane %v1231, 4
  %v1275 = vsel %vm1008, %v1255, %v1274
  %v1276 = vrot.slane %v1259, 4
  %v1277 = vsel %vm1008, %v1276, %v1235
  %v1278 = vrot.slane %v1235, 4
  %v1279 = vsel %vm1008, %v1259, %v1278
  %v1280 = vrot.slane %v1267, 4
  %v1281 = vsel %vm1008, %v1280, %v1243
  %v1282 = vrot.slane %v1243, 4
  %v1283 = vsel %vm1008, %v1267, %v1282
  %v1284 = vrot.slane %v1271, 4
  %v1285 = vsel %vm1008, %v1284, %v1247
  %v1286 = vrot.slane %v1247, 4
  %v1287 = vsel %vm1008, %v1271, %v1286
  %v1288 = vrot.slane %v938, 4
  %v1289 = vsel %vm1008, %v1288, %v866
  %v1290 = vrot.slane %v866, 4
  %v1291 = vsel %vm1008, %v938, %v1290
  %v1293 = vunpack.c.l.s4 1983009808
  %v1294 = vunpack.c.0.s8 %v1293
  %v1295 = vperm.slane %v1289, %v1294
  %v1297 = vunpack.c.l.s4 1983009808
  %v1298 = vunpack.c.0.s8 %v1297
  %v1299 = vperm.slane %v1291, %v1298
  %v1300 = vrot.slane %v974, 4
  %v1301 = vsel %vm1008, %v1300, %v902
  %v1302 = vrot.slane %v902, 4
  %v1303 = vsel %vm1008, %v974, %v1302
  %v1305 = vunpack.c.l.s4 1983009808
  %v1306 = vunpack.c.0.s8 %v1305
  %v1307 = vperm.slane %v1301, %v1306
  %v1309 = vunpack.c.l.s4 1983009808
  %v1310 = vunpack.c.0.s8 %v1309
  %v1311 = vperm.slane %v1303, %v1310
  %v1312 = vrot.slane %v1307, 4
  %v1313 = vsel %vm1008, %v1312, %v1295
  %v1314 = vrot.slane %v1295, 4
  %v1315 = vsel %vm1008, %v1307, %v1314
  %v1317 = vunpack.c.l.s4 1934713408
  %v1318 = vunpack.c.0.s8 %v1317
  %v1319 = vperm.slane %v1313, %v1318
  %v1321 = vunpack.c.l.s4 1934713408
  %v1322 = vunpack.c.0.s8 %v1321
  %v1323 = vperm.slane %v1315, %v1322
  %v1324 = vrot.slane %v1311, 4
  %v1325 = vsel %vm1008, %v1324, %v1299
  %v1326 = vrot.slane %v1299, 4
  %v1327 = vsel %vm1008, %v1311, %v1326
  %v1329 = vunpack.c.l.s4 1934713408
  %v1330 = vunpack.c.0.s8 %v1329
  %v1331 = vperm.slane %v1325, %v1330
  %v1333 = vunpack.c.l.s4 1934713408
  %v1334 = vunpack.c.0.s8 %v1333
  %v1335 = vperm.slane %v1327, %v1334
  %v1336 = vrot.slane %v1319, 4
  %v1337 = vsel %vm1008, 0.0, %v1336
  %v1338 = vrot.slane %v1323, 4
  %v1339 = vsel %vm1008, 0.0, %v1338
  %v1340 = vrot.slane %v1331, 4
  %v1341 = vsel %vm1008, 0.0, %v1340
  %v1342 = vrot.slane %v1335, 4
  %v1343 = vsel %vm1008, 0.0, %v1342
  %v1344 = vrot.slane %v652, 4
  %v1345 = vsel %vm1008, %v1344, %v575
  %v1346 = vrot.slane %v575, 4
  %v1347 = vsel %vm1008, %v652, %v1346
  %v1349 = vunpack.c.l.s4 1983009808
  %v1350 = vunpack.c.0.s8 %v1349
  %v1351 = vperm.slane %v1345, %v1350
  %v1353 = vunpack.c.l.s4 1983009808
  %v1354 = vunpack.c.0.s8 %v1353
  %v1355 = vperm.slane %v1347, %v1354
  %v1356 = vrot.slane %v688, 4
  %v1357 = vsel %vm1008, %v1356, %v616
  %v1358 = vrot.slane %v616, 4
  %v1359 = vsel %vm1008, %v688, %v1358
  %v1361 = vunpack.c.l.s4 1983009808
  %v1362 = vunpack.c.0.s8 %v1361
  %v1363 = vperm.slane %v1357, %v1362
  %v1365 = vunpack.c.l.s4 1983009808
  %v1366 = vunpack.c.0.s8 %v1365
  %v1367 = vperm.slane %v1359, %v1366
  %v1368 = vrot.slane %v796, 4
  %v1369 = vsel %vm1008, %v1368, %v724
  %v1370 = vrot.slane %v724, 4
  %v1371 = vsel %vm1008, %v796, %v1370
  %v1373 = vunpack.c.l.s4 1983009808
  %v1374 = vunpack.c.0.s8 %v1373
  %v1375 = vperm.slane %v1369, %v1374
  %v1377 = vunpack.c.l.s4 1983009808
  %v1378 = vunpack.c.0.s8 %v1377
  %v1379 = vperm.slane %v1371, %v1378
  %v1380 = vrot.slane %v832, 4
  %v1381 = vsel %vm1008, %v1380, %v760
  %v1382 = vrot.slane %v760, 4
  %v1383 = vsel %vm1008, %v832, %v1382
  %v1385 = vunpack.c.l.s4 1983009808
  %v1386 = vunpack.c.0.s8 %v1385
  %v1387 = vperm.slane %v1381, %v1386
  %v1389 = vunpack.c.l.s4 1983009808
  %v1390 = vunpack.c.0.s8 %v1389
  %v1391 = vperm.slane %v1383, %v1390
  %v1392 = vrot.slane %v1363, 4
  %v1393 = vsel %vm1008, %v1392, %v1351
  %v1394 = vrot.slane %v1351, 4
  %v1395 = vsel %vm1008, %v1363, %v1394
  %v1397 = vunpack.c.l.s4 1934713408
  %v1398 = vunpack.c.0.s8 %v1397
  %v1399 = vperm.slane %v1393, %v1398
  %v1401 = vunpack.c.l.s4 1934713408
  %v1402 = vunpack.c.0.s8 %v1401
  %v1403 = vperm.slane %v1395, %v1402
  %v1404 = vrot.slane %v1367, 4
  %v1405 = vsel %vm1008, %v1404, %v1355
  %v1406 = vrot.slane %v1355, 4
  %v1407 = vsel %vm1008, %v1367, %v1406
  %v1409 = vunpack.c.l.s4 1934713408
  %v1410 = vunpack.c.0.s8 %v1409
  %v1411 = vperm.slane %v1405, %v1410
  %v1413 = vunpack.c.l.s4 1934713408
  %v1414 = vunpack.c.0.s8 %v1413
  %v1415 = vperm.slane %v1407, %v1414
  %v1416 = vrot.slane %v1387, 4
  %v1417 = vsel %vm1008, %v1416, %v1375
  %v1418 = vrot.slane %v1375, 4
  %v1419 = vsel %vm1008, %v1387, %v1418
  %v1421 = vunpack.c.l.s4 1934713408
  %v1422 = vunpack.c.0.s8 %v1421
  %v1423 = vperm.slane %v1417, %v1422
  %v1425 = vunpack.c.l.s4 1934713408
  %v1426 = vunpack.c.0.s8 %v1425
  %v1427 = vperm.slane %v1419, %v1426
  %v1428 = vrot.slane %v1391, 4
  %v1429 = vsel %vm1008, %v1428, %v1379
  %v1430 = vrot.slane %v1379, 4
  %v1431 = vsel %vm1008, %v1391, %v1430
  %v1433 = vunpack.c.l.s4 1934713408
  %v1434 = vunpack.c.0.s8 %v1433
  %v1435 = vperm.slane %v1429, %v1434
  %v1437 = vunpack.c.l.s4 1934713408
  %v1438 = vunpack.c.0.s8 %v1437
  %v1439 = vperm.slane %v1431, %v1438
  %v1440 = vrot.slane %v1423, 4
  %v1441 = vsel %vm1008, %v1440, %v1399
  %v1442 = vrot.slane %v1399, 4
  %v1443 = vsel %vm1008, %v1423, %v1442
  %v1444 = vrot.slane %v1427, 4
  %v1445 = vsel %vm1008, %v1444, %v1403
  %v1446 = vrot.slane %v1403, 4
  %v1447 = vsel %vm1008, %v1427, %v1446
  %v1448 = vrot.slane %v1435, 4
  %v1449 = vsel %vm1008, %v1448, %v1411
  %v1450 = vrot.slane %v1411, 4
  %v1451 = vsel %vm1008, %v1435, %v1450
  %v1452 = vrot.slane %v1439, 4
  %v1453 = vsel %vm1008, %v1452, %v1415
  %v1454 = vrot.slane %v1415, 4
  %v1455 = vsel %vm1008, %v1439, %v1454
  %v1456 = vrot.slane %v940, 4
  %v1457 = vsel %vm1008, %v1456, %v868
  %v1458 = vrot.slane %v868, 4
  %v1459 = vsel %vm1008, %v940, %v1458
  %v1461 = vunpack.c.l.s4 1983009808
  %v1462 = vunpack.c.0.s8 %v1461
  %v1463 = vperm.slane %v1457, %v1462
  %v1465 = vunpack.c.l.s4 1983009808
  %v1466 = vunpack.c.0.s8 %v1465
  %v1467 = vperm.slane %v1459, %v1466
  %v1468 = vrot.slane %v976, 4
  %v1469 = vsel %vm1008, %v1468, %v904
  %v1470 = vrot.slane %v904, 4
  %v1471 = vsel %vm1008, %v976, %v1470
  %v1473 = vunpack.c.l.s4 1983009808
  %v1474 = vunpack.c.0.s8 %v1473
  %v1475 = vperm.slane %v1469, %v1474
  %v1477 = vunpack.c.l.s4 1983009808
  %v1478 = vunpack.c.0.s8 %v1477
  %v1479 = vperm.slane %v1471, %v1478
  %v1480 = vrot.slane %v1475, 4
  %v1481 = vsel %vm1008, %v1480, %v1463
  %v1482 = vrot.slane %v1463, 4
  %v1483 = vsel %vm1008, %v1475, %v1482
  %v1485 = vunpack.c.l.s4 1934713408
  %v1486 = vunpack.c.0.s8 %v1485
  %v1487 = vperm.slane %v1481, %v1486
  %v1489 = vunpack.c.l.s4 1934713408
  %v1490 = vunpack.c.0.s8 %v1489
  %v1491 = vperm.slane %v1483, %v1490
  %v1492 = vrot.slane %v1479, 4
  %v1493 = vsel %vm1008, %v1492, %v1467
  %v1494 = vrot.slane %v1467, 4
  %v1495 = vsel %vm1008, %v1479, %v1494
  %v1497 = vunpack.c.l.s4 1934713408
  %v1498 = vunpack.c.0.s8 %v1497
  %v1499 = vperm.slane %v1493, %v1498
  %v1501 = vunpack.c.l.s4 1934713408
  %v1502 = vunpack.c.0.s8 %v1501
  %v1503 = vperm.slane %v1495, %v1502
  %v1504 = vrot.slane %v1487, 4
  %v1505 = vsel %vm1008, 0.0, %v1504
  %v1506 = vrot.slane %v1491, 4
  %v1507 = vsel %vm1008, 0.0, %v1506
  %v1508 = vrot.slane %v1499, 4
  %v1509 = vsel %vm1008, 0.0, %v1508
  %v1510 = vrot.slane %v1503, 4
  %v1511 = vsel %vm1008, 0.0, %v1510
  %v1512 = vrot.slane %v654, 4
  %v1513 = vsel %vm1008, %v1512, %v577
  %v1514 = vrot.slane %v577, 4
  %v1515 = vsel %vm1008, %v654, %v1514
  %v1517 = vunpack.c.l.s4 1983009808
  %v1518 = vunpack.c.0.s8 %v1517
  %v1519 = vperm.slane %v1513, %v1518
  %v1521 = vunpack.c.l.s4 1983009808
  %v1522 = vunpack.c.0.s8 %v1521
  %v1523 = vperm.slane %v1515, %v1522
  %v1524 = vrot.slane %v690, 4
  %v1525 = vsel %vm1008, %v1524, %v618
  %v1526 = vrot.slane %v618, 4
  %v1527 = vsel %vm1008, %v690, %v1526
  %v1529 = vunpack.c.l.s4 1983009808
  %v1530 = vunpack.c.0.s8 %v1529
  %v1531 = vperm.slane %v1525, %v1530
  %v1533 = vunpack.c.l.s4 1983009808
  %v1534 = vunpack.c.0.s8 %v1533
  %v1535 = vperm.slane %v1527, %v1534
  %v1536 = vrot.slane %v798, 4
  %v1537 = vsel %vm1008, %v1536, %v726
  %v1538 = vrot.slane %v726, 4
  %v1539 = vsel %vm1008, %v798, %v1538
  %v1541 = vunpack.c.l.s4 1983009808
  %v1542 = vunpack.c.0.s8 %v1541
  %v1543 = vperm.slane %v1537, %v1542
  %v1545 = vunpack.c.l.s4 1983009808
  %v1546 = vunpack.c.0.s8 %v1545
  %v1547 = vperm.slane %v1539, %v1546
  %v1548 = vrot.slane %v834, 4
  %v1549 = vsel %vm1008, %v1548, %v762
  %v1550 = vrot.slane %v762, 4
  %v1551 = vsel %vm1008, %v834, %v1550
  %v1553 = vunpack.c.l.s4 1983009808
  %v1554 = vunpack.c.0.s8 %v1553
  %v1555 = vperm.slane %v1549, %v1554
  %v1557 = vunpack.c.l.s4 1983009808
  %v1558 = vunpack.c.0.s8 %v1557
  %v1559 = vperm.slane %v1551, %v1558
  %v1560 = vrot.slane %v1531, 4
  %v1561 = vsel %vm1008, %v1560, %v1519
  %v1562 = vrot.slane %v1519, 4
  %v1563 = vsel %vm1008, %v1531, %v1562
  %v1565 = vunpack.c.l.s4 1934713408
  %v1566 = vunpack.c.0.s8 %v1565
  %v1567 = vperm.slane %v1561, %v1566
  %v1569 = vunpack.c.l.s4 1934713408
  %v1570 = vunpack.c.0.s8 %v1569
  %v1571 = vperm.slane %v1563, %v1570
  %v1572 = vrot.slane %v1535, 4
  %v1573 = vsel %vm1008, %v1572, %v1523
  %v1574 = vrot.slane %v1523, 4
  %v1575 = vsel %vm1008, %v1535, %v1574
  %v1577 = vunpack.c.l.s4 1934713408
  %v1578 = vunpack.c.0.s8 %v1577
  %v1579 = vperm.slane %v1573, %v1578
  %v1581 = vunpack.c.l.s4 1934713408
  %v1582 = vunpack.c.0.s8 %v1581
  %v1583 = vperm.slane %v1575, %v1582
  %v1584 = vrot.slane %v1555, 4
  %v1585 = vsel %vm1008, %v1584, %v1543
  %v1586 = vrot.slane %v1543, 4
  %v1587 = vsel %vm1008, %v1555, %v1586
  %v1589 = vunpack.c.l.s4 1934713408
  %v1590 = vunpack.c.0.s8 %v1589
  %v1591 = vperm.slane %v1585, %v1590
  %v1593 = vunpack.c.l.s4 1934713408
  %v1594 = vunpack.c.0.s8 %v1593
  %v1595 = vperm.slane %v1587, %v1594
  %v1596 = vrot.slane %v1559, 4
  %v1597 = vsel %vm1008, %v1596, %v1547
  %v1598 = vrot.slane %v1547, 4
  %v1599 = vsel %vm1008, %v1559, %v1598
  %v1601 = vunpack.c.l.s4 1934713408
  %v1602 = vunpack.c.0.s8 %v1601
  %v1603 = vperm.slane %v1597, %v1602
  %v1605 = vunpack.c.l.s4 1934713408
  %v1606 = vunpack.c.0.s8 %v1605
  %v1607 = vperm.slane %v1599, %v1606
  %v1608 = vrot.slane %v1591, 4
  %v1609 = vsel %vm1008, %v1608, %v1567
  %v1610 = vrot.slane %v1567, 4
  %v1611 = vsel %vm1008, %v1591, %v1610
  %v1612 = vrot.slane %v1595, 4
  %v1613 = vsel %vm1008, %v1612, %v1571
  %v1614 = vrot.slane %v1571, 4
  %v1615 = vsel %vm1008, %v1595, %v1614
  %v1616 = vrot.slane %v1603, 4
  %v1617 = vsel %vm1008, %v1616, %v1579
  %v1618 = vrot.slane %v1579, 4
  %v1619 = vsel %vm1008, %v1603, %v1618
  %v1620 = vrot.slane %v1607, 4
  %v1621 = vsel %vm1008, %v1620, %v1583
  %v1622 = vrot.slane %v1583, 4
  %v1623 = vsel %vm1008, %v1607, %v1622
  %v1624 = vrot.slane %v942, 4
  %v1625 = vsel %vm1008, %v1624, %v870
  %v1626 = vrot.slane %v870, 4
  %v1627 = vsel %vm1008, %v942, %v1626
  %v1629 = vunpack.c.l.s4 1983009808
  %v1630 = vunpack.c.0.s8 %v1629
  %v1631 = vperm.slane %v1625, %v1630
  %v1633 = vunpack.c.l.s4 1983009808
  %v1634 = vunpack.c.0.s8 %v1633
  %v1635 = vperm.slane %v1627, %v1634
  %v1636 = vrot.slane %v978, 4
  %v1637 = vsel %vm1008, %v1636, %v906
  %v1638 = vrot.slane %v906, 4
  %v1639 = vsel %vm1008, %v978, %v1638
  %v1641 = vunpack.c.l.s4 1983009808
  %v1642 = vunpack.c.0.s8 %v1641
  %v1643 = vperm.slane %v1637, %v1642
  %v1645 = vunpack.c.l.s4 1983009808
  %v1646 = vunpack.c.0.s8 %v1645
  %v1647 = vperm.slane %v1639, %v1646
  %v1648 = vrot.slane %v1643, 4
  %v1649 = vsel %vm1008, %v1648, %v1631
  %v1650 = vrot.slane %v1631, 4
  %v1651 = vsel %vm1008, %v1643, %v1650
  %v1653 = vunpack.c.l.s4 1934713408
  %v1654 = vunpack.c.0.s8 %v1653
  %v1655 = vperm.slane %v1649, %v1654
  %v1657 = vunpack.c.l.s4 1934713408
  %v1658 = vunpack.c.0.s8 %v1657
  %v1659 = vperm.slane %v1651, %v1658
  %v1660 = vrot.slane %v1647, 4
  %v1661 = vsel %vm1008, %v1660, %v1635
  %v1662 = vrot.slane %v1635, 4
  %v1663 = vsel %vm1008, %v1647, %v1662
  %v1665 = vunpack.c.l.s4 1934713408
  %v1666 = vunpack.c.0.s8 %v1665
  %v1667 = vperm.slane %v1661, %v1666
  %v1669 = vunpack.c.l.s4 1934713408
  %v1670 = vunpack.c.0.s8 %v1669
  %v1671 = vperm.slane %v1663, %v1670
  %v1672 = vrot.slane %v1655, 4
  %v1673 = vsel %vm1008, 0.0, %v1672
  %v1674 = vrot.slane %v1659, 4
  %v1675 = vsel %vm1008, 0.0, %v1674
  %v1676 = vrot.slane %v1667, 4
  %v1677 = vsel %vm1008, 0.0, %v1676
  %v1678 = vrot.slane %v1671, 4
  %v1679 = vsel %vm1008, 0.0, %v1678
  %v1680 = vrot.slane %v656, 4
  %v1681 = vsel %vm1008, %v1680, %v580
  %v1682 = vrot.slane %v580, 4
  %v1683 = vsel %vm1008, %v656, %v1682
  %v1685 = vunpack.c.l.s4 1983009808
  %v1686 = vunpack.c.0.s8 %v1685
  %v1687 = vperm.slane %v1681, %v1686
  %v1689 = vunpack.c.l.s4 1983009808
  %v1690 = vunpack.c.0.s8 %v1689
  %v1691 = vperm.slane %v1683, %v1690
  %v1692 = vrot.slane %v692, 4
  %v1693 = vsel %vm1008, %v1692, %v620
  %v1694 = vrot.slane %v620, 4
  %v1695 = vsel %vm1008, %v692, %v1694
  %v1697 = vunpack.c.l.s4 1983009808
  %v1698 = vunpack.c.0.s8 %v1697
  %v1699 = vperm.slane %v1693, %v1698
  %v1701 = vunpack.c.l.s4 1983009808
  %v1702 = vunpack.c.0.s8 %v1701
  %v1703 = vperm.slane %v1695, %v1702
  %v1704 = vrot.slane %v800, 4
  %v1705 = vsel %vm1008, %v1704, %v728
  %v1706 = vrot.slane %v728, 4
  %v1707 = vsel %vm1008, %v800, %v1706
  %v1709 = vunpack.c.l.s4 1983009808
  %v1710 = vunpack.c.0.s8 %v1709
  %v1711 = vperm.slane %v1705, %v1710
  %v1713 = vunpack.c.l.s4 1983009808
  %v1714 = vunpack.c.0.s8 %v1713
  %v1715 = vperm.slane %v1707, %v1714
  %v1716 = vrot.slane %v836, 4
  %v1717 = vsel %vm1008, %v1716, %v764
  %v1718 = vrot.slane %v764, 4
  %v1719 = vsel %vm1008, %v836, %v1718
  %v1721 = vunpack.c.l.s4 1983009808
  %v1722 = vunpack.c.0.s8 %v1721
  %v1723 = vperm.slane %v1717, %v1722
  %v1725 = vunpack.c.l.s4 1983009808
  %v1726 = vunpack.c.0.s8 %v1725
  %v1727 = vperm.slane %v1719, %v1726
  %v1728 = vrot.slane %v1699, 4
  %v1729 = vsel %vm1008, %v1728, %v1687
  %v1730 = vrot.slane %v1687, 4
  %v1731 = vsel %vm1008, %v1699, %v1730
  %v1733 = vunpack.c.l.s4 1934713408
  %v1734 = vunpack.c.0.s8 %v1733
  %v1735 = vperm.slane %v1729, %v1734
  %v1737 = vunpack.c.l.s4 1934713408
  %v1738 = vunpack.c.0.s8 %v1737
  %v1739 = vperm.slane %v1731, %v1738
  %v1740 = vrot.slane %v1703, 4
  %v1741 = vsel %vm1008, %v1740, %v1691
  %v1742 = vrot.slane %v1691, 4
  %v1743 = vsel %vm1008, %v1703, %v1742
  %v1745 = vunpack.c.l.s4 1934713408
  %v1746 = vunpack.c.0.s8 %v1745
  %v1747 = vperm.slane %v1741, %v1746
  %v1749 = vunpack.c.l.s4 1934713408
  %v1750 = vunpack.c.0.s8 %v1749
  %v1751 = vperm.slane %v1743, %v1750
  %v1752 = vrot.slane %v1723, 4
  %v1753 = vsel %vm1008, %v1752, %v1711
  %v1754 = vrot.slane %v1711, 4
  %v1755 = vsel %vm1008, %v1723, %v1754
  %v1757 = vunpack.c.l.s4 1934713408
  %v1758 = vunpack.c.0.s8 %v1757
  %v1759 = vperm.slane %v1753, %v1758
  %v1761 = vunpack.c.l.s4 1934713408
  %v1762 = vunpack.c.0.s8 %v1761
  %v1763 = vperm.slane %v1755, %v1762
  %v1764 = vrot.slane %v1727, 4
  %v1765 = vsel %vm1008, %v1764, %v1715
  %v1766 = vrot.slane %v1715, 4
  %v1767 = vsel %vm1008, %v1727, %v1766
  %v1769 = vunpack.c.l.s4 1934713408
  %v1770 = vunpack.c.0.s8 %v1769
  %v1771 = vperm.slane %v1765, %v1770
  %v1773 = vunpack.c.l.s4 1934713408
  %v1774 = vunpack.c.0.s8 %v1773
  %v1775 = vperm.slane %v1767, %v1774
  %v1776 = vrot.slane %v1759, 4
  %v1777 = vsel %vm1008, %v1776, %v1735
  %v1778 = vrot.slane %v1735, 4
  %v1779 = vsel %vm1008, %v1759, %v1778
  %v1780 = vrot.slane %v1763, 4
  %v1781 = vsel %vm1008, %v1780, %v1739
  %v1782 = vrot.slane %v1739, 4
  %v1783 = vsel %vm1008, %v1763, %v1782
  %v1784 = vrot.slane %v1771, 4
  %v1785 = vsel %vm1008, %v1784, %v1747
  %v1786 = vrot.slane %v1747, 4
  %v1787 = vsel %vm1008, %v1771, %v1786
  %v1788 = vrot.slane %v1775, 4
  %v1789 = vsel %vm1008, %v1788, %v1751
  %v1790 = vrot.slane %v1751, 4
  %v1791 = vsel %vm1008, %v1775, %v1790
  %v1792 = vrot.slane %v944, 4
  %v1793 = vsel %vm1008, %v1792, %v872
  %v1794 = vrot.slane %v872, 4
  %v1795 = vsel %vm1008, %v944, %v1794
  %v1797 = vunpack.c.l.s4 1983009808
  %v1798 = vunpack.c.0.s8 %v1797
  %v1799 = vperm.slane %v1793, %v1798
  %v1801 = vunpack.c.l.s4 1983009808
  %v1802 = vunpack.c.0.s8 %v1801
  %v1803 = vperm.slane %v1795, %v1802
  %v1804 = vrot.slane %v980, 4
  %v1805 = vsel %vm1008, %v1804, %v908
  %v1806 = vrot.slane %v908, 4
  %v1807 = vsel %vm1008, %v980, %v1806
  %v1809 = vunpack.c.l.s4 1983009808
  %v1810 = vunpack.c.0.s8 %v1809
  %v1811 = vperm.slane %v1805, %v1810
  %v1813 = vunpack.c.l.s4 1983009808
  %v1814 = vunpack.c.0.s8 %v1813
  %v1815 = vperm.slane %v1807, %v1814
  %v1816 = vrot.slane %v1811, 4
  %v1817 = vsel %vm1008, %v1816, %v1799
  %v1818 = vrot.slane %v1799, 4
  %v1819 = vsel %vm1008, %v1811, %v1818
  %v1821 = vunpack.c.l.s4 1934713408
  %v1822 = vunpack.c.0.s8 %v1821
  %v1823 = vperm.slane %v1817, %v1822
  %v1825 = vunpack.c.l.s4 1934713408
  %v1826 = vunpack.c.0.s8 %v1825
  %v1827 = vperm.slane %v1819, %v1826
  %v1828 = vrot.slane %v1815, 4
  %v1829 = vsel %vm1008, %v1828, %v1803
  %v1830 = vrot.slane %v1803, 4
  %v1831 = vsel %vm1008, %v1815, %v1830
  %v1833 = vunpack.c.l.s4 1934713408
  %v1834 = vunpack.c.0.s8 %v1833
  %v1835 = vperm.slane %v1829, %v1834
  %v1837 = vunpack.c.l.s4 1934713408
  %v1838 = vunpack.c.0.s8 %v1837
  %v1839 = vperm.slane %v1831, %v1838
  %v1840 = vrot.slane %v1823, 4
  %v1841 = vsel %vm1008, 0.0, %v1840
  %v1842 = vrot.slane %v1827, 4
  %v1843 = vsel %vm1008, 0.0, %v1842
  %v1844 = vrot.slane %v1835, 4
  %v1845 = vsel %vm1008, 0.0, %v1844
  %v1846 = vrot.slane %v1839, 4
  %v1847 = vsel %vm1008, 0.0, %v1846
  %v1848 = vrot.slane %v658, 4
  %v1849 = vsel %vm1008, %v1848, %v582
  %v1850 = vrot.slane %v582, 4
  %v1851 = vsel %vm1008, %v658, %v1850
  %v1853 = vunpack.c.l.s4 1983009808
  %v1854 = vunpack.c.0.s8 %v1853
  %v1855 = vperm.slane %v1849, %v1854
  %v1857 = vunpack.c.l.s4 1983009808
  %v1858 = vunpack.c.0.s8 %v1857
  %v1859 = vperm.slane %v1851, %v1858
  %v1860 = vrot.slane %v694, 4
  %v1861 = vsel %vm1008, %v1860, %v622
  %v1862 = vrot.slane %v622, 4
  %v1863 = vsel %vm1008, %v694, %v1862
  %v1865 = vunpack.c.l.s4 1983009808
  %v1866 = vunpack.c.0.s8 %v1865
  %v1867 = vperm.slane %v1861, %v1866
  %v1869 = vunpack.c.l.s4 1983009808
  %v1870 = vunpack.c.0.s8 %v1869
  %v1871 = vperm.slane %v1863, %v1870
  %v1872 = vrot.slane %v802, 4
  %v1873 = vsel %vm1008, %v1872, %v730
  %v1874 = vrot.slane %v730, 4
  %v1875 = vsel %vm1008, %v802, %v1874
  %v1877 = vunpack.c.l.s4 1983009808
  %v1878 = vunpack.c.0.s8 %v1877
  %v1879 = vperm.slane %v1873, %v1878
  %v1881 = vunpack.c.l.s4 1983009808
  %v1882 = vunpack.c.0.s8 %v1881
  %v1883 = vperm.slane %v1875, %v1882
  %v1884 = vrot.slane %v838, 4
  %v1885 = vsel %vm1008, %v1884, %v766
  %v1886 = vrot.slane %v766, 4
  %v1887 = vsel %vm1008, %v838, %v1886
  %v1889 = vunpack.c.l.s4 1983009808
  %v1890 = vunpack.c.0.s8 %v1889
  %v1891 = vperm.slane %v1885, %v1890
  %v1893 = vunpack.c.l.s4 1983009808
  %v1894 = vunpack.c.0.s8 %v1893
  %v1895 = vperm.slane %v1887, %v1894
  %v1896 = vrot.slane %v1867, 4
  %v1897 = vsel %vm1008, %v1896, %v1855
  %v1898 = vrot.slane %v1855, 4
  %v1899 = vsel %vm1008, %v1867, %v1898
  %v1901 = vunpack.c.l.s4 1934713408
  %v1902 = vunpack.c.0.s8 %v1901
  %v1903 = vperm.slane %v1897, %v1902
  %v1905 = vunpack.c.l.s4 1934713408
  %v1906 = vunpack.c.0.s8 %v1905
  %v1907 = vperm.slane %v1899, %v1906
  %v1908 = vrot.slane %v1871, 4
  %v1909 = vsel %vm1008, %v1908, %v1859
  %v1910 = vrot.slane %v1859, 4
  %v1911 = vsel %vm1008, %v1871, %v1910
  %v1913 = vunpack.c.l.s4 1934713408
  %v1914 = vunpack.c.0.s8 %v1913
  %v1915 = vperm.slane %v1909, %v1914
  %v1917 = vunpack.c.l.s4 1934713408
  %v1918 = vunpack.c.0.s8 %v1917
  %v1919 = vperm.slane %v1911, %v1918
  %v1920 = vrot.slane %v1891, 4
  %v1921 = vsel %vm1008, %v1920, %v1879
  %v1922 = vrot.slane %v1879, 4
  %v1923 = vsel %vm1008, %v1891, %v1922
  %v1925 = vunpack.c.l.s4 1934713408
  %v1926 = vunpack.c.0.s8 %v1925
  %v1927 = vperm.slane %v1921, %v1926
  %v1929 = vunpack.c.l.s4 1934713408
  %v1930 = vunpack.c.0.s8 %v1929
  %v1931 = vperm.slane %v1923, %v1930
  %v1932 = vrot.slane %v1895, 4
  %v1933 = vsel %vm1008, %v1932, %v1883
  %v1934 = vrot.slane %v1883, 4
  %v1935 = vsel %vm1008, %v1895, %v1934
  %v1937 = vunpack.c.l.s4 1934713408
  %v1938 = vunpack.c.0.s8 %v1937
  %v1939 = vperm.slane %v1933, %v1938
  %v1941 = vunpack.c.l.s4 1934713408
  %v1942 = vunpack.c.0.s8 %v1941
  %v1943 = vperm.slane %v1935, %v1942
  %v1944 = vrot.slane %v1927, 4
  %v1945 = vsel %vm1008, %v1944, %v1903
  %v1946 = vrot.slane %v1903, 4
  %v1947 = vsel %vm1008, %v1927, %v1946
  %v1948 = vrot.slane %v1931, 4
  %v1949 = vsel %vm1008, %v1948, %v1907
  %v1950 = vrot.slane %v1907, 4
  %v1951 = vsel %vm1008, %v1931, %v1950
  %v1952 = vrot.slane %v1939, 4
  %v1953 = vsel %vm1008, %v1952, %v1915
  %v1954 = vrot.slane %v1915, 4
  %v1955 = vsel %vm1008, %v1939, %v1954
  %v1956 = vrot.slane %v1943, 4
  %v1957 = vsel %vm1008, %v1956, %v1919
  %v1958 = vrot.slane %v1919, 4
  %v1959 = vsel %vm1008, %v1943, %v1958
  %v1960 = vrot.slane %v946, 4
  %v1961 = vsel %vm1008, %v1960, %v874
  %v1962 = vrot.slane %v874, 4
  %v1963 = vsel %vm1008, %v946, %v1962
  %v1965 = vunpack.c.l.s4 1983009808
  %v1966 = vunpack.c.0.s8 %v1965
  %v1967 = vperm.slane %v1961, %v1966
  %v1969 = vunpack.c.l.s4 1983009808
  %v1970 = vunpack.c.0.s8 %v1969
  %v1971 = vperm.slane %v1963, %v1970
  %v1972 = vrot.slane %v982, 4
  %v1973 = vsel %vm1008, %v1972, %v910
  %v1974 = vrot.slane %v910, 4
  %v1975 = vsel %vm1008, %v982, %v1974
  %v1977 = vunpack.c.l.s4 1983009808
  %v1978 = vunpack.c.0.s8 %v1977
  %v1979 = vperm.slane %v1973, %v1978
  %v1981 = vunpack.c.l.s4 1983009808
  %v1982 = vunpack.c.0.s8 %v1981
  %v1983 = vperm.slane %v1975, %v1982
  %v1984 = vrot.slane %v1979, 4
  %v1985 = vsel %vm1008, %v1984, %v1967
  %v1986 = vrot.slane %v1967, 4
  %v1987 = vsel %vm1008, %v1979, %v1986
  %v1989 = vunpack.c.l.s4 1934713408
  %v1990 = vunpack.c.0.s8 %v1989
  %v1991 = vperm.slane %v1985, %v1990
  %v1993 = vunpack.c.l.s4 1934713408
  %v1994 = vunpack.c.0.s8 %v1993
  %v1995 = vperm.slane %v1987, %v1994
  %v1996 = vrot.slane %v1983, 4
  %v1997 = vsel %vm1008, %v1996, %v1971
  %v1998 = vrot.slane %v1971, 4
  %v1999 = vsel %vm1008, %v1983, %v1998
  %v2001 = vunpack.c.l.s4 1934713408
  %v2002 = vunpack.c.0.s8 %v2001
  %v2003 = vperm.slane %v1997, %v2002
  %v2005 = vunpack.c.l.s4 1934713408
  %v2006 = vunpack.c.0.s8 %v2005
  %v2007 = vperm.slane %v1999, %v2006
  %v2008 = vrot.slane %v1991, 4
  %v2009 = vsel %vm1008, 0.0, %v2008
  %v2010 = vrot.slane %v1995, 4
  %v2011 = vsel %vm1008, 0.0, %v2010
  %v2012 = vrot.slane %v2003, 4
  %v2013 = vsel %vm1008, 0.0, %v2012
  %v2014 = vrot.slane %v2007, 4
  %v2015 = vsel %vm1008, 0.0, %v2014
  %v2016 = vrot.slane %v660, 4
  %v2017 = vsel %vm1008, %v2016, %v585
  %v2018 = vrot.slane %v585, 4
  %v2019 = vsel %vm1008, %v660, %v2018
  %v2021 = vunpack.c.l.s4 1983009808
  %v2022 = vunpack.c.0.s8 %v2021
  %v2023 = vperm.slane %v2017, %v2022
  %v2025 = vunpack.c.l.s4 1983009808
  %v2026 = vunpack.c.0.s8 %v2025
  %v2027 = vperm.slane %v2019, %v2026
  %v2028 = vrot.slane %v696, 4
  %v2029 = vsel %vm1008, %v2028, %v624
  %v2030 = vrot.slane %v624, 4
  %v2031 = vsel %vm1008, %v696, %v2030
  %v2033 = vunpack.c.l.s4 1983009808
  %v2034 = vunpack.c.0.s8 %v2033
  %v2035 = vperm.slane %v2029, %v2034
  %v2037 = vunpack.c.l.s4 1983009808
  %v2038 = vunpack.c.0.s8 %v2037
  %v2039 = vperm.slane %v2031, %v2038
  %v2040 = vrot.slane %v804, 4
  %v2041 = vsel %vm1008, %v2040, %v732
  %v2042 = vrot.slane %v732, 4
  %v2043 = vsel %vm1008, %v804, %v2042
  %v2045 = vunpack.c.l.s4 1983009808
  %v2046 = vunpack.c.0.s8 %v2045
  %v2047 = vperm.slane %v2041, %v2046
  %v2049 = vunpack.c.l.s4 1983009808
  %v2050 = vunpack.c.0.s8 %v2049
  %v2051 = vperm.slane %v2043, %v2050
  %v2052 = vrot.slane %v840, 4
  %v2053 = vsel %vm1008, %v2052, %v768
  %v2054 = vrot.slane %v768, 4
  %v2055 = vsel %vm1008, %v840, %v2054
  %v2057 = vunpack.c.l.s4 1983009808
  %v2058 = vunpack.c.0.s8 %v2057
  %v2059 = vperm.slane %v2053, %v2058
  %v2061 = vunpack.c.l.s4 1983009808
  %v2062 = vunpack.c.0.s8 %v2061
  %v2063 = vperm.slane %v2055, %v2062
  %v2064 = vrot.slane %v2035, 4
  %v2065 = vsel %vm1008, %v2064, %v2023
  %v2066 = vrot.slane %v2023, 4
  %v2067 = vsel %vm1008, %v2035, %v2066
  %v2069 = vunpack.c.l.s4 1934713408
  %v2070 = vunpack.c.0.s8 %v2069
  %v2071 = vperm.slane %v2065, %v2070
  %v2073 = vunpack.c.l.s4 1934713408
  %v2074 = vunpack.c.0.s8 %v2073
  %v2075 = vperm.slane %v2067, %v2074
  %v2076 = vrot.slane %v2039, 4
  %v2077 = vsel %vm1008, %v2076, %v2027
  %v2078 = vrot.slane %v2027, 4
  %v2079 = vsel %vm1008, %v2039, %v2078
  %v2081 = vunpack.c.l.s4 1934713408
  %v2082 = vunpack.c.0.s8 %v2081
  %v2083 = vperm.slane %v2077, %v2082
  %v2085 = vunpack.c.l.s4 1934713408
  %v2086 = vunpack.c.0.s8 %v2085
  %v2087 = vperm.slane %v2079, %v2086
  %v2088 = vrot.slane %v2059, 4
  %v2089 = vsel %vm1008, %v2088, %v2047
  %v2090 = vrot.slane %v2047, 4
  %v2091 = vsel %vm1008, %v2059, %v2090
  %v2093 = vunpack.c.l.s4 1934713408
  %v2094 = vunpack.c.0.s8 %v2093
  %v2095 = vperm.slane %v2089, %v2094
  %v2097 = vunpack.c.l.s4 1934713408
  %v2098 = vunpack.c.0.s8 %v2097
  %v2099 = vperm.slane %v2091, %v2098
  %v2100 = vrot.slane %v2063, 4
  %v2101 = vsel %vm1008, %v2100, %v2051
  %v2102 = vrot.slane %v2051, 4
  %v2103 = vsel %vm1008, %v2063, %v2102
  %v2105 = vunpack.c.l.s4 1934713408
  %v2106 = vunpack.c.0.s8 %v2105
  %v2107 = vperm.slane %v2101, %v2106
  %v2109 = vunpack.c.l.s4 1934713408
  %v2110 = vunpack.c.0.s8 %v2109
  %v2111 = vperm.slane %v2103, %v2110
  %v2112 = vrot.slane %v2095, 4
  %v2113 = vsel %vm1008, %v2112, %v2071
  %v2114 = vrot.slane %v2071, 4
  %v2115 = vsel %vm1008, %v2095, %v2114
  %v2116 = vrot.slane %v2099, 4
  %v2117 = vsel %vm1008, %v2116, %v2075
  %v2118 = vrot.slane %v2075, 4
  %v2119 = vsel %vm1008, %v2099, %v2118
  %v2120 = vrot.slane %v2107, 4
  %v2121 = vsel %vm1008, %v2120, %v2083
  %v2122 = vrot.slane %v2083, 4
  %v2123 = vsel %vm1008, %v2107, %v2122
  %v2124 = vrot.slane %v2111, 4
  %v2125 = vsel %vm1008, %v2124, %v2087
  %v2126 = vrot.slane %v2087, 4
  %v2127 = vsel %vm1008, %v2111, %v2126
  %v2128 = vrot.slane %v948, 4
  %v2129 = vsel %vm1008, %v2128, %v876
  %v2130 = vrot.slane %v876, 4
  %v2131 = vsel %vm1008, %v948, %v2130
  %v2133 = vunpack.c.l.s4 1983009808
  %v2134 = vunpack.c.0.s8 %v2133
  %v2135 = vperm.slane %v2129, %v2134
  %v2137 = vunpack.c.l.s4 1983009808
  %v2138 = vunpack.c.0.s8 %v2137
  %v2139 = vperm.slane %v2131, %v2138
  %v2140 = vrot.slane %v984, 4
  %v2141 = vsel %vm1008, %v2140, %v912
  %v2142 = vrot.slane %v912, 4
  %v2143 = vsel %vm1008, %v984, %v2142
  %v2145 = vunpack.c.l.s4 1983009808
  %v2146 = vunpack.c.0.s8 %v2145
  %v2147 = vperm.slane %v2141, %v2146
  %v2149 = vunpack.c.l.s4 1983009808
  %v2150 = vunpack.c.0.s8 %v2149
  %v2151 = vperm.slane %v2143, %v2150
  %v2152 = vrot.slane %v2147, 4
  %v2153 = vsel %vm1008, %v2152, %v2135
  %v2154 = vrot.slane %v2135, 4
  %v2155 = vsel %vm1008, %v2147, %v2154
  %v2157 = vunpack.c.l.s4 1934713408
  %v2158 = vunpack.c.0.s8 %v2157
  %v2159 = vperm.slane %v2153, %v2158
  %v2161 = vunpack.c.l.s4 1934713408
  %v2162 = vunpack.c.0.s8 %v2161
  %v2163 = vperm.slane %v2155, %v2162
  %v2164 = vrot.slane %v2151, 4
  %v2165 = vsel %vm1008, %v2164, %v2139
  %v2166 = vrot.slane %v2139, 4
  %v2167 = vsel %vm1008, %v2151, %v2166
  %v2169 = vunpack.c.l.s4 1934713408
  %v2170 = vunpack.c.0.s8 %v2169
  %v2171 = vperm.slane %v2165, %v2170
  %v2173 = vunpack.c.l.s4 1934713408
  %v2174 = vunpack.c.0.s8 %v2173
  %v2175 = vperm.slane %v2167, %v2174
  %v2176 = vrot.slane %v2159, 4
  %v2177 = vsel %vm1008, 0.0, %v2176
  %v2178 = vrot.slane %v2163, 4
  %v2179 = vsel %vm1008, 0.0, %v2178
  %v2180 = vrot.slane %v2171, 4
  %v2181 = vsel %vm1008, 0.0, %v2180
  %v2182 = vrot.slane %v2175, 4
  %v2183 = vsel %vm1008, 0.0, %v2182
  %v2184 = vrot.slane %v662, 4
  %v2185 = vsel %vm1008, %v2184, %v587
  %v2186 = vrot.slane %v587, 4
  %v2187 = vsel %vm1008, %v662, %v2186
  %v2189 = vunpack.c.l.s4 1983009808
  %v2190 = vunpack.c.0.s8 %v2189
  %v2191 = vperm.slane %v2185, %v2190
  %v2193 = vunpack.c.l.s4 1983009808
  %v2194 = vunpack.c.0.s8 %v2193
  %v2195 = vperm.slane %v2187, %v2194
  %v2196 = vrot.slane %v698, 4
  %v2197 = vsel %vm1008, %v2196, %v626
  %v2198 = vrot.slane %v626, 4
  %v2199 = vsel %vm1008, %v698, %v2198
  %v2201 = vunpack.c.l.s4 1983009808
  %v2202 = vunpack.c.0.s8 %v2201
  %v2203 = vperm.slane %v2197, %v2202
  %v2205 = vunpack.c.l.s4 1983009808
  %v2206 = vunpack.c.0.s8 %v2205
  %v2207 = vperm.slane %v2199, %v2206
  %v2208 = vrot.slane %v806, 4
  %v2209 = vsel %vm1008, %v2208, %v734
  %v2210 = vrot.slane %v734, 4
  %v2211 = vsel %vm1008, %v806, %v2210
  %v2213 = vunpack.c.l.s4 1983009808
  %v2214 = vunpack.c.0.s8 %v2213
  %v2215 = vperm.slane %v2209, %v2214
  %v2217 = vunpack.c.l.s4 1983009808
  %v2218 = vunpack.c.0.s8 %v2217
  %v2219 = vperm.slane %v2211, %v2218
  %v2220 = vrot.slane %v842, 4
  %v2221 = vsel %vm1008, %v2220, %v770
  %v2222 = vrot.slane %v770, 4
  %v2223 = vsel %vm1008, %v842, %v2222
  %v2225 = vunpack.c.l.s4 1983009808
  %v2226 = vunpack.c.0.s8 %v2225
  %v2227 = vperm.slane %v2221, %v2226
  %v2229 = vunpack.c.l.s4 1983009808
  %v2230 = vunpack.c.0.s8 %v2229
  %v2231 = vperm.slane %v2223, %v2230
  %v2232 = vrot.slane %v2203, 4
  %v2233 = vsel %vm1008, %v2232, %v2191
  %v2234 = vrot.slane %v2191, 4
  %v2235 = vsel %vm1008, %v2203, %v2234
  %v2237 = vunpack.c.l.s4 1934713408
  %v2238 = vunpack.c.0.s8 %v2237
  %v2239 = vperm.slane %v2233, %v2238
  %v2241 = vunpack.c.l.s4 1934713408
  %v2242 = vunpack.c.0.s8 %v2241
  %v2243 = vperm.slane %v2235, %v2242
  %v2244 = vrot.slane %v2207, 4
  %v2245 = vsel %vm1008, %v2244, %v2195
  %v2246 = vrot.slane %v2195, 4
  %v2247 = vsel %vm1008, %v2207, %v2246
  %v2249 = vunpack.c.l.s4 1934713408
  %v2250 = vunpack.c.0.s8 %v2249
  %v2251 = vperm.slane %v2245, %v2250
  %v2253 = vunpack.c.l.s4 1934713408
  %v2254 = vunpack.c.0.s8 %v2253
  %v2255 = vperm.slane %v2247, %v2254
  %v2256 = vrot.slane %v2227, 4
  %v2257 = vsel %vm1008, %v2256, %v2215
  %v2258 = vrot.slane %v2215, 4
  %v2259 = vsel %vm1008, %v2227, %v2258
  %v2261 = vunpack.c.l.s4 1934713408
  %v2262 = vunpack.c.0.s8 %v2261
  %v2263 = vperm.slane %v2257, %v2262
  %v2265 = vunpack.c.l.s4 1934713408
  %v2266 = vunpack.c.0.s8 %v2265
  %v2267 = vperm.slane %v2259, %v2266
  %v2268 = vrot.slane %v2231, 4
  %v2269 = vsel %vm1008, %v2268, %v2219
  %v2270 = vrot.slane %v2219, 4
  %v2271 = vsel %vm1008, %v2231, %v2270
  %v2273 = vunpack.c.l.s4 1934713408
  %v2274 = vunpack.c.0.s8 %v2273
  %v2275 = vperm.slane %v2269, %v2274
  %v2277 = vunpack.c.l.s4 1934713408
  %v2278 = vunpack.c.0.s8 %v2277
  %v2279 = vperm.slane %v2271, %v2278
  %v2280 = vrot.slane %v2263, 4
  %v2281 = vsel %vm1008, %v2280, %v2239
  %v2282 = vrot.slane %v2239, 4
  %v2283 = vsel %vm1008, %v2263, %v2282
  %v2284 = vrot.slane %v2267, 4
  %v2285 = vsel %vm1008, %v2284, %v2243
  %v2286 = vrot.slane %v2243, 4
  %v2287 = vsel %vm1008, %v2267, %v2286
  %v2288 = vrot.slane %v2275, 4
  %v2289 = vsel %vm1008, %v2288, %v2251
  %v2290 = vrot.slane %v2251, 4
  %v2291 = vsel %vm1008, %v2275, %v2290
  %v2292 = vrot.slane %v2279, 4
  %v2293 = vsel %vm1008, %v2292, %v2255
  %v2294 = vrot.slane %v2255, 4
  %v2295 = vsel %vm1008, %v2279, %v2294
  %v2296 = vrot.slane %v950, 4
  %v2297 = vsel %vm1008, %v2296, %v878
  %v2298 = vrot.slane %v878, 4
  %v2299 = vsel %vm1008, %v950, %v2298
  %v2301 = vunpack.c.l.s4 1983009808
  %v2302 = vunpack.c.0.s8 %v2301
  %v2303 = vperm.slane %v2297, %v2302
  %v2305 = vunpack.c.l.s4 1983009808
  %v2306 = vunpack.c.0.s8 %v2305
  %v2307 = vperm.slane %v2299, %v2306
  %v2308 = vrot.slane %v986, 4
  %v2309 = vsel %vm1008, %v2308, %v914
  %v2310 = vrot.slane %v914, 4
  %v2311 = vsel %vm1008, %v986, %v2310
  %v2313 = vunpack.c.l.s4 1983009808
  %v2314 = vunpack.c.0.s8 %v2313
  %v2315 = vperm.slane %v2309, %v2314
  %v2317 = vunpack.c.l.s4 1983009808
  %v2318 = vunpack.c.0.s8 %v2317
  %v2319 = vperm.slane %v2311, %v2318
  %v2320 = vrot.slane %v2315, 4
  %v2321 = vsel %vm1008, %v2320, %v2303
  %v2322 = vrot.slane %v2303, 4
  %v2323 = vsel %vm1008, %v2315, %v2322
  %v2325 = vunpack.c.l.s4 1934713408
  %v2326 = vunpack.c.0.s8 %v2325
  %v2327 = vperm.slane %v2321, %v2326
  %v2329 = vunpack.c.l.s4 1934713408
  %v2330 = vunpack.c.0.s8 %v2329
  %v2331 = vperm.slane %v2323, %v2330
  %v2332 = vrot.slane %v2319, 4
  %v2333 = vsel %vm1008, %v2332, %v2307
  %v2334 = vrot.slane %v2307, 4
  %v2335 = vsel %vm1008, %v2319, %v2334
  %v2337 = vunpack.c.l.s4 1934713408
  %v2338 = vunpack.c.0.s8 %v2337
  %v2339 = vperm.slane %v2333, %v2338
  %v2341 = vunpack.c.l.s4 1934713408
  %v2342 = vunpack.c.0.s8 %v2341
  %v2343 = vperm.slane %v2335, %v2342
  %v2344 = vrot.slane %v2327, 4
  %v2345 = vsel %vm1008, 0.0, %v2344
  %v2346 = vrot.slane %v2331, 4
  %v2347 = vsel %vm1008, 0.0, %v2346
  %v2348 = vrot.slane %v2339, 4
  %v2349 = vsel %vm1008, 0.0, %v2348
  %v2350 = vrot.slane %v2343, 4
  %v2351 = vsel %vm1008, 0.0, %v2350
  %v2352 = vrot.slane %v664, 4
  %v2353 = vsel %vm1008, %v2352, %v590
  %v2354 = vrot.slane %v590, 4
  %v2355 = vsel %vm1008, %v664, %v2354
  %v2357 = vunpack.c.l.s4 1983009808
  %v2358 = vunpack.c.0.s8 %v2357
  %v2359 = vperm.slane %v2353, %v2358
  %v2361 = vunpack.c.l.s4 1983009808
  %v2362 = vunpack.c.0.s8 %v2361
  %v2363 = vperm.slane %v2355, %v2362
  %v2364 = vrot.slane %v700, 4
  %v2365 = vsel %vm1008, %v2364, %v628
  %v2366 = vrot.slane %v628, 4
  %v2367 = vsel %vm1008, %v700, %v2366
  %v2369 = vunpack.c.l.s4 1983009808
  %v2370 = vunpack.c.0.s8 %v2369
  %v2371 = vperm.slane %v2365, %v2370
  %v2373 = vunpack.c.l.s4 1983009808
  %v2374 = vunpack.c.0.s8 %v2373
  %v2375 = vperm.slane %v2367, %v2374
  %v2376 = vrot.slane %v808, 4
  %v2377 = vsel %vm1008, %v2376, %v736
  %v2378 = vrot.slane %v736, 4
  %v2379 = vsel %vm1008, %v808, %v2378
  %v2381 = vunpack.c.l.s4 1983009808
  %v2382 = vunpack.c.0.s8 %v2381
  %v2383 = vperm.slane %v2377, %v2382
  %v2385 = vunpack.c.l.s4 1983009808
  %v2386 = vunpack.c.0.s8 %v2385
  %v2387 = vperm.slane %v2379, %v2386
  %v2388 = vrot.slane %v844, 4
  %v2389 = vsel %vm1008, %v2388, %v772
  %v2390 = vrot.slane %v772, 4
  %v2391 = vsel %vm1008, %v844, %v2390
  %v2393 = vunpack.c.l.s4 1983009808
  %v2394 = vunpack.c.0.s8 %v2393
  %v2395 = vperm.slane %v2389, %v2394
  %v2397 = vunpack.c.l.s4 1983009808
  %v2398 = vunpack.c.0.s8 %v2397
  %v2399 = vperm.slane %v2391, %v2398
  %v2400 = vrot.slane %v2371, 4
  %v2401 = vsel %vm1008, %v2400, %v2359
  %v2402 = vrot.slane %v2359, 4
  %v2403 = vsel %vm1008, %v2371, %v2402
  %v2405 = vunpack.c.l.s4 1934713408
  %v2406 = vunpack.c.0.s8 %v2405
  %v2407 = vperm.slane %v2401, %v2406
  %v2409 = vunpack.c.l.s4 1934713408
  %v2410 = vunpack.c.0.s8 %v2409
  %v2411 = vperm.slane %v2403, %v2410
  %v2412 = vrot.slane %v2375, 4
  %v2413 = vsel %vm1008, %v2412, %v2363
  %v2414 = vrot.slane %v2363, 4
  %v2415 = vsel %vm1008, %v2375, %v2414
  %v2417 = vunpack.c.l.s4 1934713408
  %v2418 = vunpack.c.0.s8 %v2417
  %v2419 = vperm.slane %v2413, %v2418
  %v2421 = vunpack.c.l.s4 1934713408
  %v2422 = vunpack.c.0.s8 %v2421
  %v2423 = vperm.slane %v2415, %v2422
  %v2424 = vrot.slane %v2395, 4
  %v2425 = vsel %vm1008, %v2424, %v2383
  %v2426 = vrot.slane %v2383, 4
  %v2427 = vsel %vm1008, %v2395, %v2426
  %v2429 = vunpack.c.l.s4 1934713408
  %v2430 = vunpack.c.0.s8 %v2429
  %v2431 = vperm.slane %v2425, %v2430
  %v2433 = vunpack.c.l.s4 1934713408
  %v2434 = vunpack.c.0.s8 %v2433
  %v2435 = vperm.slane %v2427, %v2434
  %v2436 = vrot.slane %v2399, 4
  %v2437 = vsel %vm1008, %v2436, %v2387
  %v2438 = vrot.slane %v2387, 4
  %v2439 = vsel %vm1008, %v2399, %v2438
  %v2441 = vunpack.c.l.s4 1934713408
  %v2442 = vunpack.c.0.s8 %v2441
  %v2443 = vperm.slane %v2437, %v2442
  %v2445 = vunpack.c.l.s4 1934713408
  %v2446 = vunpack.c.0.s8 %v2445
  %v2447 = vperm.slane %v2439, %v2446
  %v2448 = vrot.slane %v2431, 4
  %v2449 = vsel %vm1008, %v2448, %v2407
  %v2450 = vrot.slane %v2407, 4
  %v2451 = vsel %vm1008, %v2431, %v2450
  %v2452 = vrot.slane %v2435, 4
  %v2453 = vsel %vm1008, %v2452, %v2411
  %v2454 = vrot.slane %v2411, 4
  %v2455 = vsel %vm1008, %v2435, %v2454
  %v2456 = vrot.slane %v2443, 4
  %v2457 = vsel %vm1008, %v2456, %v2419
  %v2458 = vrot.slane %v2419, 4
  %v2459 = vsel %vm1008, %v2443, %v2458
  %v2460 = vrot.slane %v2447, 4
  %v2461 = vsel %vm1008, %v2460, %v2423
  %v2462 = vrot.slane %v2423, 4
  %v2463 = vsel %vm1008, %v2447, %v2462
  %v2464 = vrot.slane %v952, 4
  %v2465 = vsel %vm1008, %v2464, %v880
  %v2466 = vrot.slane %v880, 4
  %v2467 = vsel %vm1008, %v952, %v2466
  %v2469 = vunpack.c.l.s4 1983009808
  %v2470 = vunpack.c.0.s8 %v2469
  %v2471 = vperm.slane %v2465, %v2470
  %v2473 = vunpack.c.l.s4 1983009808
  %v2474 = vunpack.c.0.s8 %v2473
  %v2475 = vperm.slane %v2467, %v2474
  %v2476 = vrot.slane %v988, 4
  %v2477 = vsel %vm1008, %v2476, %v916
  %v2478 = vrot.slane %v916, 4
  %v2479 = vsel %vm1008, %v988, %v2478
  %v2481 = vunpack.c.l.s4 1983009808
  %v2482 = vunpack.c.0.s8 %v2481
  %v2483 = vperm.slane %v2477, %v2482
  %v2485 = vunpack.c.l.s4 1983009808
  %v2486 = vunpack.c.0.s8 %v2485
  %v2487 = vperm.slane %v2479, %v2486
  %v2488 = vrot.slane %v2483, 4
  %v2489 = vsel %vm1008, %v2488, %v2471
  %v2490 = vrot.slane %v2471, 4
  %v2491 = vsel %vm1008, %v2483, %v2490
  %v2493 = vunpack.c.l.s4 1934713408
  %v2494 = vunpack.c.0.s8 %v2493
  %v2495 = vperm.slane %v2489, %v2494
  %v2497 = vunpack.c.l.s4 1934713408
  %v2498 = vunpack.c.0.s8 %v2497
  %v2499 = vperm.slane %v2491, %v2498
  %v2500 = vrot.slane %v2487, 4
  %v2501 = vsel %vm1008, %v2500, %v2475
  %v2502 = vrot.slane %v2475, 4
  %v2503 = vsel %vm1008, %v2487, %v2502
  %v2505 = vunpack.c.l.s4 1934713408
  %v2506 = vunpack.c.0.s8 %v2505
  %v2507 = vperm.slane %v2501, %v2506
  %v2509 = vunpack.c.l.s4 1934713408
  %v2510 = vunpack.c.0.s8 %v2509
  %v2511 = vperm.slane %v2503, %v2510
  %v2512 = vrot.slane %v2495, 4
  %v2513 = vsel %vm1008, 0.0, %v2512
  %v2514 = vrot.slane %v2499, 4
  %v2515 = vsel %vm1008, 0.0, %v2514
  %v2516 = vrot.slane %v2507, 4
  %v2517 = vsel %vm1008, 0.0, %v2516
  %v2518 = vrot.slane %v2511, 4
  %v2519 = vsel %vm1008, 0.0, %v2518
  %v2520 = vrot.slane %v666, 4
  %v2521 = vsel %vm1008, %v2520, %v592
  %v2522 = vrot.slane %v592, 4
  %v2523 = vsel %vm1008, %v666, %v2522
  %v2525 = vunpack.c.l.s4 1983009808
  %v2526 = vunpack.c.0.s8 %v2525
  %v2527 = vperm.slane %v2521, %v2526
  %v2529 = vunpack.c.l.s4 1983009808
  %v2530 = vunpack.c.0.s8 %v2529
  %v2531 = vperm.slane %v2523, %v2530
  %v2532 = vrot.slane %v702, 4
  %v2533 = vsel %vm1008, %v2532, %v630
  %v2534 = vrot.slane %v630, 4
  %v2535 = vsel %vm1008, %v702, %v2534
  %v2537 = vunpack.c.l.s4 1983009808
  %v2538 = vunpack.c.0.s8 %v2537
  %v2539 = vperm.slane %v2533, %v2538
  %v2541 = vunpack.c.l.s4 1983009808
  %v2542 = vunpack.c.0.s8 %v2541
  %v2543 = vperm.slane %v2535, %v2542
  %v2544 = vrot.slane %v810, 4
  %v2545 = vsel %vm1008, %v2544, %v738
  %v2546 = vrot.slane %v738, 4
  %v2547 = vsel %vm1008, %v810, %v2546
  %v2549 = vunpack.c.l.s4 1983009808
  %v2550 = vunpack.c.0.s8 %v2549
  %v2551 = vperm.slane %v2545, %v2550
  %v2553 = vunpack.c.l.s4 1983009808
  %v2554 = vunpack.c.0.s8 %v2553
  %v2555 = vperm.slane %v2547, %v2554
  %v2556 = vrot.slane %v846, 4
  %v2557 = vsel %vm1008, %v2556, %v774
  %v2558 = vrot.slane %v774, 4
  %v2559 = vsel %vm1008, %v846, %v2558
  %v2561 = vunpack.c.l.s4 1983009808
  %v2562 = vunpack.c.0.s8 %v2561
  %v2563 = vperm.slane %v2557, %v2562
  %v2565 = vunpack.c.l.s4 1983009808
  %v2566 = vunpack.c.0.s8 %v2565
  %v2567 = vperm.slane %v2559, %v2566
  %v2568 = vrot.slane %v2539, 4
  %v2569 = vsel %vm1008, %v2568, %v2527
  %v2570 = vrot.slane %v2527, 4
  %v2571 = vsel %vm1008, %v2539, %v2570
  %v2573 = vunpack.c.l.s4 1934713408
  %v2574 = vunpack.c.0.s8 %v2573
  %v2575 = vperm.slane %v2569, %v2574
  %v2577 = vunpack.c.l.s4 1934713408
  %v2578 = vunpack.c.0.s8 %v2577
  %v2579 = vperm.slane %v2571, %v2578
  %v2580 = vrot.slane %v2543, 4
  %v2581 = vsel %vm1008, %v2580, %v2531
  %v2582 = vrot.slane %v2531, 4
  %v2583 = vsel %vm1008, %v2543, %v2582
  %v2585 = vunpack.c.l.s4 1934713408
  %v2586 = vunpack.c.0.s8 %v2585
  %v2587 = vperm.slane %v2581, %v2586
  %v2589 = vunpack.c.l.s4 1934713408
  %v2590 = vunpack.c.0.s8 %v2589
  %v2591 = vperm.slane %v2583, %v2590
  %v2592 = vrot.slane %v2563, 4
  %v2593 = vsel %vm1008, %v2592, %v2551
  %v2594 = vrot.slane %v2551, 4
  %v2595 = vsel %vm1008, %v2563, %v2594
  %v2597 = vunpack.c.l.s4 1934713408
  %v2598 = vunpack.c.0.s8 %v2597
  %v2599 = vperm.slane %v2593, %v2598
  %v2601 = vunpack.c.l.s4 1934713408
  %v2602 = vunpack.c.0.s8 %v2601
  %v2603 = vperm.slane %v2595, %v2602
  %v2604 = vrot.slane %v2567, 4
  %v2605 = vsel %vm1008, %v2604, %v2555
  %v2606 = vrot.slane %v2555, 4
  %v2607 = vsel %vm1008, %v2567, %v2606
  %v2609 = vunpack.c.l.s4 1934713408
  %v2610 = vunpack.c.0.s8 %v2609
  %v2611 = vperm.slane %v2605, %v2610
  %v2613 = vunpack.c.l.s4 1934713408
  %v2614 = vunpack.c.0.s8 %v2613
  %v2615 = vperm.slane %v2607, %v2614
  %v2616 = vrot.slane %v2599, 4
  %v2617 = vsel %vm1008, %v2616, %v2575
  %v2618 = vrot.slane %v2575, 4
  %v2619 = vsel %vm1008, %v2599, %v2618
  %v2620 = vrot.slane %v2603, 4
  %v2621 = vsel %vm1008, %v2620, %v2579
  %v2622 = vrot.slane %v2579, 4
  %v2623 = vsel %vm1008, %v2603, %v2622
  %v2624 = vrot.slane %v2611, 4
  %v2625 = vsel %vm1008, %v2624, %v2587
  %v2626 = vrot.slane %v2587, 4
  %v2627 = vsel %vm1008, %v2611, %v2626
  %v2628 = vrot.slane %v2615, 4
  %v2629 = vsel %vm1008, %v2628, %v2591
  %v2630 = vrot.slane %v2591, 4
  %v2631 = vsel %vm1008, %v2615, %v2630
  %v2632 = vrot.slane %v954, 4
  %v2633 = vsel %vm1008, %v2632, %v882
  %v2634 = vrot.slane %v882, 4
  %v2635 = vsel %vm1008, %v954, %v2634
  %v2637 = vunpack.c.l.s4 1983009808
  %v2638 = vunpack.c.0.s8 %v2637
  %v2639 = vperm.slane %v2633, %v2638
  %v2641 = vunpack.c.l.s4 1983009808
  %v2642 = vunpack.c.0.s8 %v2641
  %v2643 = vperm.slane %v2635, %v2642
  %v2644 = vrot.slane %v990, 4
  %v2645 = vsel %vm1008, %v2644, %v918
  %v2646 = vrot.slane %v918, 4
  %v2647 = vsel %vm1008, %v990, %v2646
  %v2649 = vunpack.c.l.s4 1983009808
  %v2650 = vunpack.c.0.s8 %v2649
  %v2651 = vperm.slane %v2645, %v2650
  %v2653 = vunpack.c.l.s4 1983009808
  %v2654 = vunpack.c.0.s8 %v2653
  %v2655 = vperm.slane %v2647, %v2654
  %v2656 = vrot.slane %v2651, 4
  %v2657 = vsel %vm1008, %v2656, %v2639
  %v2658 = vrot.slane %v2639, 4
  %v2659 = vsel %vm1008, %v2651, %v2658
  %v2661 = vunpack.c.l.s4 1934713408
  %v2662 = vunpack.c.0.s8 %v2661
  %v2663 = vperm.slane %v2657, %v2662
  %v2665 = vunpack.c.l.s4 1934713408
  %v2666 = vunpack.c.0.s8 %v2665
  %v2667 = vperm.slane %v2659, %v2666
  %v2668 = vrot.slane %v2655, 4
  %v2669 = vsel %vm1008, %v2668, %v2643
  %v2670 = vrot.slane %v2643, 4
  %v2671 = vsel %vm1008, %v2655, %v2670
  %v2673 = vunpack.c.l.s4 1934713408
  %v2674 = vunpack.c.0.s8 %v2673
  %v2675 = vperm.slane %v2669, %v2674
  %v2677 = vunpack.c.l.s4 1934713408
  %v2678 = vunpack.c.0.s8 %v2677
  %v2679 = vperm.slane %v2671, %v2678
  %v2680 = vrot.slane %v2663, 4
  %v2681 = vsel %vm1008, 0.0, %v2680
  %v2682 = vrot.slane %v2667, 4
  %v2683 = vsel %vm1008, 0.0, %v2682
  %v2684 = vrot.slane %v2675, 4
  %v2685 = vsel %vm1008, 0.0, %v2684
  %v2686 = vrot.slane %v2679, 4
  %v2687 = vsel %vm1008, 0.0, %v2686
  %v2688 = vrot.slane %v668, 4
  %v2689 = vsel %vm1008, %v2688, %v595
  %v2690 = vrot.slane %v595, 4
  %v2691 = vsel %vm1008, %v668, %v2690
  %v2693 = vunpack.c.l.s4 1983009808
  %v2694 = vunpack.c.0.s8 %v2693
  %v2695 = vperm.slane %v2689, %v2694
  %v2697 = vunpack.c.l.s4 1983009808
  %v2698 = vunpack.c.0.s8 %v2697
  %v2699 = vperm.slane %v2691, %v2698
  %v2700 = vrot.slane %v704, 4
  %v2701 = vsel %vm1008, %v2700, %v632
  %v2702 = vrot.slane %v632, 4
  %v2703 = vsel %vm1008, %v704, %v2702
  %v2705 = vunpack.c.l.s4 1983009808
  %v2706 = vunpack.c.0.s8 %v2705
  %v2707 = vperm.slane %v2701, %v2706
  %v2709 = vunpack.c.l.s4 1983009808
  %v2710 = vunpack.c.0.s8 %v2709
  %v2711 = vperm.slane %v2703, %v2710
  %v2712 = vrot.slane %v812, 4
  %v2713 = vsel %vm1008, %v2712, %v740
  %v2714 = vrot.slane %v740, 4
  %v2715 = vsel %vm1008, %v812, %v2714
  %v2717 = vunpack.c.l.s4 1983009808
  %v2718 = vunpack.c.0.s8 %v2717
  %v2719 = vperm.slane %v2713, %v2718
  %v2721 = vunpack.c.l.s4 1983009808
  %v2722 = vunpack.c.0.s8 %v2721
  %v2723 = vperm.slane %v2715, %v2722
  %v2724 = vrot.slane %v848, 4
  %v2725 = vsel %vm1008, %v2724, %v776
  %v2726 = vrot.slane %v776, 4
  %v2727 = vsel %vm1008, %v848, %v2726
  %v2729 = vunpack.c.l.s4 1983009808
  %v2730 = vunpack.c.0.s8 %v2729
  %v2731 = vperm.slane %v2725, %v2730
  %v2733 = vunpack.c.l.s4 1983009808
  %v2734 = vunpack.c.0.s8 %v2733
  %v2735 = vperm.slane %v2727, %v2734
  %v2736 = vrot.slane %v2707, 4
  %v2737 = vsel %vm1008, %v2736, %v2695
  %v2738 = vrot.slane %v2695, 4
  %v2739 = vsel %vm1008, %v2707, %v2738
  %v2741 = vunpack.c.l.s4 1934713408
  %v2742 = vunpack.c.0.s8 %v2741
  %v2743 = vperm.slane %v2737, %v2742
  %v2745 = vunpack.c.l.s4 1934713408
  %v2746 = vunpack.c.0.s8 %v2745
  %v2747 = vperm.slane %v2739, %v2746
  %v2748 = vrot.slane %v2711, 4
  %v2749 = vsel %vm1008, %v2748, %v2699
  %v2750 = vrot.slane %v2699, 4
  %v2751 = vsel %vm1008, %v2711, %v2750
  %v2753 = vunpack.c.l.s4 1934713408
  %v2754 = vunpack.c.0.s8 %v2753
  %v2755 = vperm.slane %v2749, %v2754
  %v2757 = vunpack.c.l.s4 1934713408
  %v2758 = vunpack.c.0.s8 %v2757
  %v2759 = vperm.slane %v2751, %v2758
  %v2760 = vrot.slane %v2731, 4
  %v2761 = vsel %vm1008, %v2760, %v2719
  %v2762 = vrot.slane %v2719, 4
  %v2763 = vsel %vm1008, %v2731, %v2762
  %v2765 = vunpack.c.l.s4 1934713408
  %v2766 = vunpack.c.0.s8 %v2765
  %v2767 = vperm.slane %v2761, %v2766
  %v2769 = vunpack.c.l.s4 1934713408
  %v2770 = vunpack.c.0.s8 %v2769
  %v2771 = vperm.slane %v2763, %v2770
  %v2772 = vrot.slane %v2735, 4
  %v2773 = vsel %vm1008, %v2772, %v2723
  %v2774 = vrot.slane %v2723, 4
  %v2775 = vsel %vm1008, %v2735, %v2774
  %v2777 = vunpack.c.l.s4 1934713408
  %v2778 = vunpack.c.0.s8 %v2777
  %v2779 = vperm.slane %v2773, %v2778
  %v2781 = vunpack.c.l.s4 1934713408
  %v2782 = vunpack.c.0.s8 %v2781
  %v2783 = vperm.slane %v2775, %v2782
  %v2784 = vrot.slane %v2767, 4
  %v2785 = vsel %vm1008, %v2784, %v2743
  %v2786 = vrot.slane %v2743, 4
  %v2787 = vsel %vm1008, %v2767, %v2786
  %v2788 = vrot.slane %v2771, 4
  %v2789 = vsel %vm1008, %v2788, %v2747
  %v2790 = vrot.slane %v2747, 4
  %v2791 = vsel %vm1008, %v2771, %v2790
  %v2792 = vrot.slane %v2779, 4
  %v2793 = vsel %vm1008, %v2792, %v2755
  %v2794 = vrot.slane %v2755, 4
  %v2795 = vsel %vm1008, %v2779, %v2794
  %v2796 = vrot.slane %v2783, 4
  %v2797 = vsel %vm1008, %v2796, %v2759
  %v2798 = vrot.slane %v2759, 4
  %v2799 = vsel %vm1008, %v2783, %v2798
  %v2800 = vrot.slane %v956, 4
  %v2801 = vsel %vm1008, %v2800, %v884
  %v2802 = vrot.slane %v884, 4
  %v2803 = vsel %vm1008, %v956, %v2802
  %v2805 = vunpack.c.l.s4 1983009808
  %v2806 = vunpack.c.0.s8 %v2805
  %v2807 = vperm.slane %v2801, %v2806
  %v2809 = vunpack.c.l.s4 1983009808
  %v2810 = vunpack.c.0.s8 %v2809
  %v2811 = vperm.slane %v2803, %v2810
  %v2812 = vrot.slane %v992, 4
  %v2813 = vsel %vm1008, %v2812, %v920
  %v2814 = vrot.slane %v920, 4
  %v2815 = vsel %vm1008, %v992, %v2814
  %v2817 = vunpack.c.l.s4 1983009808
  %v2818 = vunpack.c.0.s8 %v2817
  %v2819 = vperm.slane %v2813, %v2818
  %v2821 = vunpack.c.l.s4 1983009808
  %v2822 = vunpack.c.0.s8 %v2821
  %v2823 = vperm.slane %v2815, %v2822
  %v2824 = vrot.slane %v2819, 4
  %v2825 = vsel %vm1008, %v2824, %v2807
  %v2826 = vrot.slane %v2807, 4
  %v2827 = vsel %vm1008, %v2819, %v2826
  %v2829 = vunpack.c.l.s4 1934713408
  %v2830 = vunpack.c.0.s8 %v2829
  %v2831 = vperm.slane %v2825, %v2830
  %v2833 = vunpack.c.l.s4 1934713408
  %v2834 = vunpack.c.0.s8 %v2833
  %v2835 = vperm.slane %v2827, %v2834
  %v2836 = vrot.slane %v2823, 4
  %v2837 = vsel %vm1008, %v2836, %v2811
  %v2838 = vrot.slane %v2811, 4
  %v2839 = vsel %vm1008, %v2823, %v2838
  %v2841 = vunpack.c.l.s4 1934713408
  %v2842 = vunpack.c.0.s8 %v2841
  %v2843 = vperm.slane %v2837, %v2842
  %v2845 = vunpack.c.l.s4 1934713408
  %v2846 = vunpack.c.0.s8 %v2845
  %v2847 = vperm.slane %v2839, %v2846
  %v2848 = vrot.slane %v2831, 4
  %v2849 = vsel %vm1008, 0.0, %v2848
  %v2850 = vrot.slane %v2835, 4
  %v2851 = vsel %vm1008, 0.0, %v2850
  %v2852 = vrot.slane %v2843, 4
  %v2853 = vsel %vm1008, 0.0, %v2852
  %v2854 = vrot.slane %v2847, 4
  %v2855 = vsel %vm1008, 0.0, %v2854
  %v2856 = vrot.slane %v670, 4
  %v2857 = vsel %vm1008, %v2856, %v597
  %v2858 = vrot.slane %v597, 4
  %v2859 = vsel %vm1008, %v670, %v2858
  %v2861 = vunpack.c.l.s4 1983009808
  %v2862 = vunpack.c.0.s8 %v2861
  %v2863 = vperm.slane %v2857, %v2862
  %v2865 = vunpack.c.l.s4 1983009808
  %v2866 = vunpack.c.0.s8 %v2865
  %v2867 = vperm.slane %v2859, %v2866
  %v2868 = vrot.slane %v706, 4
  %v2869 = vsel %vm1008, %v2868, %v634
  %v2870 = vrot.slane %v634, 4
  %v2871 = vsel %vm1008, %v706, %v2870
  %v2873 = vunpack.c.l.s4 1983009808
  %v2874 = vunpack.c.0.s8 %v2873
  %v2875 = vperm.slane %v2869, %v2874
  %v2877 = vunpack.c.l.s4 1983009808
  %v2878 = vunpack.c.0.s8 %v2877
  %v2879 = vperm.slane %v2871, %v2878
  %v2880 = vrot.slane %v814, 4
  %v2881 = vsel %vm1008, %v2880, %v742
  %v2882 = vrot.slane %v742, 4
  %v2883 = vsel %vm1008, %v814, %v2882
  %v2885 = vunpack.c.l.s4 1983009808
  %v2886 = vunpack.c.0.s8 %v2885
  %v2887 = vperm.slane %v2881, %v2886
  %v2889 = vunpack.c.l.s4 1983009808
  %v2890 = vunpack.c.0.s8 %v2889
  %v2891 = vperm.slane %v2883, %v2890
  %v2892 = vrot.slane %v850, 4
  %v2893 = vsel %vm1008, %v2892, %v778
  %v2894 = vrot.slane %v778, 4
  %v2895 = vsel %vm1008, %v850, %v2894
  %v2897 = vunpack.c.l.s4 1983009808
  %v2898 = vunpack.c.0.s8 %v2897
  %v2899 = vperm.slane %v2893, %v2898
  %v2901 = vunpack.c.l.s4 1983009808
  %v2902 = vunpack.c.0.s8 %v2901
  %v2903 = vperm.slane %v2895, %v2902
  %v2904 = vrot.slane %v2875, 4
  %v2905 = vsel %vm1008, %v2904, %v2863
  %v2906 = vrot.slane %v2863, 4
  %v2907 = vsel %vm1008, %v2875, %v2906
  %v2909 = vunpack.c.l.s4 1934713408
  %v2910 = vunpack.c.0.s8 %v2909
  %v2911 = vperm.slane %v2905, %v2910
  %v2913 = vunpack.c.l.s4 1934713408
  %v2914 = vunpack.c.0.s8 %v2913
  %v2915 = vperm.slane %v2907, %v2914
  %v2916 = vrot.slane %v2879, 4
  %v2917 = vsel %vm1008, %v2916, %v2867
  %v2918 = vrot.slane %v2867, 4
  %v2919 = vsel %vm1008, %v2879, %v2918
  %v2921 = vunpack.c.l.s4 1934713408
  %v2922 = vunpack.c.0.s8 %v2921
  %v2923 = vperm.slane %v2917, %v2922
  %v2925 = vunpack.c.l.s4 1934713408
  %v2926 = vunpack.c.0.s8 %v2925
  %v2927 = vperm.slane %v2919, %v2926
  %v2928 = vrot.slane %v2899, 4
  %v2929 = vsel %vm1008, %v2928, %v2887
  %v2930 = vrot.slane %v2887, 4
  %v2931 = vsel %vm1008, %v2899, %v2930
  %v2933 = vunpack.c.l.s4 1934713408
  %v2934 = vunpack.c.0.s8 %v2933
  %v2935 = vperm.slane %v2929, %v2934
  %v2937 = vunpack.c.l.s4 1934713408
  %v2938 = vunpack.c.0.s8 %v2937
  %v2939 = vperm.slane %v2931, %v2938
  %v2940 = vrot.slane %v2903, 4
  %v2941 = vsel %vm1008, %v2940, %v2891
  %v2942 = vrot.slane %v2891, 4
  %v2943 = vsel %vm1008, %v2903, %v2942
  %v2945 = vunpack.c.l.s4 1934713408
  %v2946 = vunpack.c.0.s8 %v2945
  %v2947 = vperm.slane %v2941, %v2946
  %v2949 = vunpack.c.l.s4 1934713408
  %v2950 = vunpack.c.0.s8 %v2949
  %v2951 = vperm.slane %v2943, %v2950
  %v2952 = vrot.slane %v2935, 4
  %v2953 = vsel %vm1008, %v2952, %v2911
  %v2954 = vrot.slane %v2911, 4
  %v2955 = vsel %vm1008, %v2935, %v2954
  %v2956 = vrot.slane %v2939, 4
  %v2957 = vsel %vm1008, %v2956, %v2915
  %v2958 = vrot.slane %v2915, 4
  %v2959 = vsel %vm1008, %v2939, %v2958
  %v2960 = vrot.slane %v2947, 4
  %v2961 = vsel %vm1008, %v2960, %v2923
  %v2962 = vrot.slane %v2923, 4
  %v2963 = vsel %vm1008, %v2947, %v2962
  %v2964 = vrot.slane %v2951, 4
  %v2965 = vsel %vm1008, %v2964, %v2927
  %v2966 = vrot.slane %v2927, 4
  %v2967 = vsel %vm1008, %v2951, %v2966
  %v2968 = vrot.slane %v958, 4
  %v2969 = vsel %vm1008, %v2968, %v886
  %v2970 = vrot.slane %v886, 4
  %v2971 = vsel %vm1008, %v958, %v2970
  %v2973 = vunpack.c.l.s4 1983009808
  %v2974 = vunpack.c.0.s8 %v2973
  %v2975 = vperm.slane %v2969, %v2974
  %v2977 = vunpack.c.l.s4 1983009808
  %v2978 = vunpack.c.0.s8 %v2977
  %v2979 = vperm.slane %v2971, %v2978
  %v2980 = vrot.slane %v994, 4
  %v2981 = vsel %vm1008, %v2980, %v922
  %v2982 = vrot.slane %v922, 4
  %v2983 = vsel %vm1008, %v994, %v2982
  %v2985 = vunpack.c.l.s4 1983009808
  %v2986 = vunpack.c.0.s8 %v2985
  %v2987 = vperm.slane %v2981, %v2986
  %v2989 = vunpack.c.l.s4 1983009808
  %v2990 = vunpack.c.0.s8 %v2989
  %v2991 = vperm.slane %v2983, %v2990
  %v2992 = vrot.slane %v2987, 4
  %v2993 = vsel %vm1008, %v2992, %v2975
  %v2994 = vrot.slane %v2975, 4
  %v2995 = vsel %vm1008, %v2987, %v2994
  %v2997 = vunpack.c.l.s4 1934713408
  %v2998 = vunpack.c.0.s8 %v2997
  %v2999 = vperm.slane %v2993, %v2998
  %v3001 = vunpack.c.l.s4 1934713408
  %v3002 = vunpack.c.0.s8 %v3001
  %v3003 = vperm.slane %v2995, %v3002
  %v3004 = vrot.slane %v2991, 4
  %v3005 = vsel %vm1008, %v3004, %v2979
  %v3006 = vrot.slane %v2979, 4
  %v3007 = vsel %vm1008, %v2991, %v3006
  %v3009 = vunpack.c.l.s4 1934713408
  %v3010 = vunpack.c.0.s8 %v3009
  %v3011 = vperm.slane %v3005, %v3010
  %v3013 = vunpack.c.l.s4 1934713408
  %v3014 = vunpack.c.0.s8 %v3013
  %v3015 = vperm.slane %v3007, %v3014
  %v3016 = vrot.slane %v2999, 4
  %v3017 = vsel %vm1008, 0.0, %v3016
  %v3018 = vrot.slane %v3003, 4
  %v3019 = vsel %vm1008, 0.0, %v3018
  %v3020 = vrot.slane %v3011, 4
  %v3021 = vsel %vm1008, 0.0, %v3020
  %v3022 = vrot.slane %v3015, 4
  %v3023 = vsel %vm1008, 0.0, %v3022
  %v3024 = vrot.slane %v1109, 4
  %v3025 = vsel %vm1008, %v3024, %v1105
  %v3026 = vrot.slane %v1105, 4
  %v3027 = vsel %vm1008, %v1109, %v3026
  %v3029 = vunpack.c.l.s4 1983009808
  %v3030 = vunpack.c.0.s8 %v3029
  %v3031 = vperm.slane %v3025, %v3030
  %v3033 = vunpack.c.l.s4 1983009808
  %v3034 = vunpack.c.0.s8 %v3033
  %v3035 = vperm.slane %v3027, %v3034
  %v3036 = vrot.slane %v1111, 4
  %v3037 = vsel %vm1008, %v3036, %v1107
  %v3038 = vrot.slane %v1107, 4
  %v3039 = vsel %vm1008, %v1111, %v3038
  %v3041 = vunpack.c.l.s4 1983009808
  %v3042 = vunpack.c.0.s8 %v3041
  %v3043 = vperm.slane %v3037, %v3042
  %v3045 = vunpack.c.l.s4 1983009808
  %v3046 = vunpack.c.0.s8 %v3045
  %v3047 = vperm.slane %v3039, %v3046
  %v3048 = vrot.slane %v1117, 4
  %v3049 = vsel %vm1008, %v3048, %v1113
  %v3050 = vrot.slane %v1113, 4
  %v3051 = vsel %vm1008, %v1117, %v3050
  %v3053 = vunpack.c.l.s4 1983009808
  %v3054 = vunpack.c.0.s8 %v3053
  %v3055 = vperm.slane %v3049, %v3054
  %v3057 = vunpack.c.l.s4 1983009808
  %v3058 = vunpack.c.0.s8 %v3057
  %v3059 = vperm.slane %v3051, %v3058
  %v3060 = vrot.slane %v1119, 4
  %v3061 = vsel %vm1008, %v3060, %v1115
  %v3062 = vrot.slane %v1115, 4
  %v3063 = vsel %vm1008, %v1119, %v3062
  %v3065 = vunpack.c.l.s4 1983009808
  %v3066 = vunpack.c.0.s8 %v3065
  %v3067 = vperm.slane %v3061, %v3066
  %v3069 = vunpack.c.l.s4 1983009808
  %v3070 = vunpack.c.0.s8 %v3069
  %v3071 = vperm.slane %v3063, %v3070
  %v3072 = vrot.slane %v3043, 4
  %v3073 = vsel %vm1008, %v3072, %v3031
  %v3074 = vrot.slane %v3031, 4
  %v3075 = vsel %vm1008, %v3043, %v3074
  %v3077 = vunpack.c.l.s4 1934713408
  %v3078 = vunpack.c.0.s8 %v3077
  %v3079 = vperm.slane %v3073, %v3078
  %v3081 = vunpack.c.l.s4 1934713408
  %v3082 = vunpack.c.0.s8 %v3081
  %v3083 = vperm.slane %v3075, %v3082
  %v3084 = vrot.slane %v3047, 4
  %v3085 = vsel %vm1008, %v3084, %v3035
  %v3086 = vrot.slane %v3035, 4
  %v3087 = vsel %vm1008, %v3047, %v3086
  %v3089 = vunpack.c.l.s4 1934713408
  %v3090 = vunpack.c.0.s8 %v3089
  %v3091 = vperm.slane %v3085, %v3090
  %v3093 = vunpack.c.l.s4 1934713408
  %v3094 = vunpack.c.0.s8 %v3093
  %v3095 = vperm.slane %v3087, %v3094
  %v3096 = vrot.slane %v3067, 4
  %v3097 = vsel %vm1008, %v3096, %v3055
  %v3098 = vrot.slane %v3055, 4
  %v3099 = vsel %vm1008, %v3067, %v3098
  %v3101 = vunpack.c.l.s4 1934713408
  %v3102 = vunpack.c.0.s8 %v3101
  %v3103 = vperm.slane %v3097, %v3102
  %v3105 = vunpack.c.l.s4 1934713408
  %v3106 = vunpack.c.0.s8 %v3105
  %v3107 = vperm.slane %v3099, %v3106
  %v3108 = vrot.slane %v3071, 4
  %v3109 = vsel %vm1008, %v3108, %v3059
  %v3110 = vrot.slane %v3059, 4
  %v3111 = vsel %vm1008, %v3071, %v3110
  %v3113 = vunpack.c.l.s4 1934713408
  %v3114 = vunpack.c.0.s8 %v3113
  %v3115 = vperm.slane %v3109, %v3114
  %v3117 = vunpack.c.l.s4 1934713408
  %v3118 = vunpack.c.0.s8 %v3117
  %v3119 = vperm.slane %v3111, %v3118
  %v3120 = vrot.slane %v3103, 4
  %v3121 = vsel %vm1008, %v3120, %v3079
  %v3122 = vrot.slane %v3079, 4
  %v3123 = vsel %vm1008, %v3103, %v3122
  %v3124 = vrot.slane %v3107, 4
  %v3125 = vsel %vm1008, %v3124, %v3083
  %v3126 = vrot.slane %v3083, 4
  %v3127 = vsel %vm1008, %v3107, %v3126
  %v3128 = vrot.slane %v3115, 4
  %v3129 = vsel %vm1008, %v3128, %v3091
  %v3130 = vrot.slane %v3091, 4
  %v3131 = vsel %vm1008, %v3115, %v3130
  %v3132 = vrot.slane %v3119, 4
  %v3133 = vsel %vm1008, %v3132, %v3095
  %v3134 = vrot.slane %v3095, 4
  %v3135 = vsel %vm1008, %v3119, %v3134
  %v3136 = vrot.slane %v1277, 4
  %v3137 = vsel %vm1008, %v3136, %v1273
  %v3138 = vrot.slane %v1273, 4
  %v3139 = vsel %vm1008, %v1277, %v3138
  %v3141 = vunpack.c.l.s4 1983009808
  %v3142 = vunpack.c.0.s8 %v3141
  %v3143 = vperm.slane %v3137, %v3142
  %v3145 = vunpack.c.l.s4 1983009808
  %v3146 = vunpack.c.0.s8 %v3145
  %v3147 = vperm.slane %v3139, %v3146
  %v3148 = vrot.slane %v1279, 4
  %v3149 = vsel %vm1008, %v3148, %v1275
  %v3150 = vrot.slane %v1275, 4
  %v3151 = vsel %vm1008, %v1279, %v3150
  %v3153 = vunpack.c.l.s4 1983009808
  %v3154 = vunpack.c.0.s8 %v3153
  %v3155 = vperm.slane %v3149, %v3154
  %v3157 = vunpack.c.l.s4 1983009808
  %v3158 = vunpack.c.0.s8 %v3157
  %v3159 = vperm.slane %v3151, %v3158
  %v3160 = vrot.slane %v1285, 4
  %v3161 = vsel %vm1008, %v3160, %v1281
  %v3162 = vrot.slane %v1281, 4
  %v3163 = vsel %vm1008, %v1285, %v3162
  %v3165 = vunpack.c.l.s4 1983009808
  %v3166 = vunpack.c.0.s8 %v3165
  %v3167 = vperm.slane %v3161, %v3166
  %v3169 = vunpack.c.l.s4 1983009808
  %v3170 = vunpack.c.0.s8 %v3169
  %v3171 = vperm.slane %v3163, %v3170
  %v3172 = vrot.slane %v1287, 4
  %v3173 = vsel %vm1008, %v3172, %v1283
  %v3174 = vrot.slane %v1283, 4
  %v3175 = vsel %vm1008, %v1287, %v3174
  %v3177 = vunpack.c.l.s4 1983009808
  %v3178 = vunpack.c.0.s8 %v3177
  %v3179 = vperm.slane %v3173, %v3178
  %v3181 = vunpack.c.l.s4 1983009808
  %v3182 = vunpack.c.0.s8 %v3181
  %v3183 = vperm.slane %v3175, %v3182
  %v3184 = vrot.slane %v3155, 4
  %v3185 = vsel %vm1008, %v3184, %v3143
  %v3186 = vrot.slane %v3143, 4
  %v3187 = vsel %vm1008, %v3155, %v3186
  %v3189 = vunpack.c.l.s4 1934713408
  %v3190 = vunpack.c.0.s8 %v3189
  %v3191 = vperm.slane %v3185, %v3190
  %v3193 = vunpack.c.l.s4 1934713408
  %v3194 = vunpack.c.0.s8 %v3193
  %v3195 = vperm.slane %v3187, %v3194
  %v3196 = vrot.slane %v3159, 4
  %v3197 = vsel %vm1008, %v3196, %v3147
  %v3198 = vrot.slane %v3147, 4
  %v3199 = vsel %vm1008, %v3159, %v3198
  %v3201 = vunpack.c.l.s4 1934713408
  %v3202 = vunpack.c.0.s8 %v3201
  %v3203 = vperm.slane %v3197, %v3202
  %v3205 = vunpack.c.l.s4 1934713408
  %v3206 = vunpack.c.0.s8 %v3205
  %v3207 = vperm.slane %v3199, %v3206
  %v3208 = vrot.slane %v3179, 4
  %v3209 = vsel %vm1008, %v3208, %v3167
  %v3210 = vrot.slane %v3167, 4
  %v3211 = vsel %vm1008, %v3179, %v3210
  %v3213 = vunpack.c.l.s4 1934713408
  %v3214 = vunpack.c.0.s8 %v3213
  %v3215 = vperm.slane %v3209, %v3214
  %v3217 = vunpack.c.l.s4 1934713408
  %v3218 = vunpack.c.0.s8 %v3217
  %v3219 = vperm.slane %v3211, %v3218
  %v3220 = vrot.slane %v3183, 4
  %v3221 = vsel %vm1008, %v3220, %v3171
  %v3222 = vrot.slane %v3171, 4
  %v3223 = vsel %vm1008, %v3183, %v3222
  %v3225 = vunpack.c.l.s4 1934713408
  %v3226 = vunpack.c.0.s8 %v3225
  %v3227 = vperm.slane %v3221, %v3226
  %v3229 = vunpack.c.l.s4 1934713408
  %v3230 = vunpack.c.0.s8 %v3229
  %v3231 = vperm.slane %v3223, %v3230
  %v3232 = vrot.slane %v3215, 4
  %v3233 = vsel %vm1008, %v3232, %v3191
  %v3234 = vrot.slane %v3191, 4
  %v3235 = vsel %vm1008, %v3215, %v3234
  %v3236 = vrot.slane %v3219, 4
  %v3237 = vsel %vm1008, %v3236, %v3195
  %v3238 = vrot.slane %v3195, 4
  %v3239 = vsel %vm1008, %v3219, %v3238
  %v3240 = vrot.slane %v3227, 4
  %v3241 = vsel %vm1008, %v3240, %v3203
  %v3242 = vrot.slane %v3203, 4
  %v3243 = vsel %vm1008, %v3227, %v3242
  %v3244 = vrot.slane %v3231, 4
  %v3245 = vsel %vm1008, %v3244, %v3207
  %v3246 = vrot.slane %v3207, 4
  %v3247 = vsel %vm1008, %v3231, %v3246
  %v3248 = vrot.slane %v1445, 4
  %v3249 = vsel %vm1008, %v3248, %v1441
  %v3250 = vrot.slane %v1441, 4
  %v3251 = vsel %vm1008, %v1445, %v3250
  %v3253 = vunpack.c.l.s4 1983009808
  %v3254 = vunpack.c.0.s8 %v3253
  %v3255 = vperm.slane %v3249, %v3254
  %v3257 = vunpack.c.l.s4 1983009808
  %v3258 = vunpack.c.0.s8 %v3257
  %v3259 = vperm.slane %v3251, %v3258
  %v3260 = vrot.slane %v1447, 4
  %v3261 = vsel %vm1008, %v3260, %v1443
  %v3262 = vrot.slane %v1443, 4
  %v3263 = vsel %vm1008, %v1447, %v3262
  %v3265 = vunpack.c.l.s4 1983009808
  %v3266 = vunpack.c.0.s8 %v3265
  %v3267 = vperm.slane %v3261, %v3266
  %v3269 = vunpack.c.l.s4 1983009808
  %v3270 = vunpack.c.0.s8 %v3269
  %v3271 = vperm.slane %v3263, %v3270
  %v3272 = vrot.slane %v1453, 4
  %v3273 = vsel %vm1008, %v3272, %v1449
  %v3274 = vrot.slane %v1449, 4
  %v3275 = vsel %vm1008, %v1453, %v3274
  %v3277 = vunpack.c.l.s4 1983009808
  %v3278 = vunpack.c.0.s8 %v3277
  %v3279 = vperm.slane %v3273, %v3278
  %v3281 = vunpack.c.l.s4 1983009808
  %v3282 = vunpack.c.0.s8 %v3281
  %v3283 = vperm.slane %v3275, %v3282
  %v3284 = vrot.slane %v1455, 4
  %v3285 = vsel %vm1008, %v3284, %v1451
  %v3286 = vrot.slane %v1451, 4
  %v3287 = vsel %vm1008, %v1455, %v3286
  %v3289 = vunpack.c.l.s4 1983009808
  %v3290 = vunpack.c.0.s8 %v3289
  %v3291 = vperm.slane %v3285, %v3290
  %v3293 = vunpack.c.l.s4 1983009808
  %v3294 = vunpack.c.0.s8 %v3293
  %v3295 = vperm.slane %v3287, %v3294
  %v3296 = vrot.slane %v3267, 4
  %v3297 = vsel %vm1008, %v3296, %v3255
  %v3298 = vrot.slane %v3255, 4
  %v3299 = vsel %vm1008, %v3267, %v3298
  %v3301 = vunpack.c.l.s4 1934713408
  %v3302 = vunpack.c.0.s8 %v3301
  %v3303 = vperm.slane %v3297, %v3302
  %v3305 = vunpack.c.l.s4 1934713408
  %v3306 = vunpack.c.0.s8 %v3305
  %v3307 = vperm.slane %v3299, %v3306
  %v3308 = vrot.slane %v3271, 4
  %v3309 = vsel %vm1008, %v3308, %v3259
  %v3310 = vrot.slane %v3259, 4
  %v3311 = vsel %vm1008, %v3271, %v3310
  %v3313 = vunpack.c.l.s4 1934713408
  %v3314 = vunpack.c.0.s8 %v3313
  %v3315 = vperm.slane %v3309, %v3314
  %v3317 = vunpack.c.l.s4 1934713408
  %v3318 = vunpack.c.0.s8 %v3317
  %v3319 = vperm.slane %v3311, %v3318
  %v3320 = vrot.slane %v3291, 4
  %v3321 = vsel %vm1008, %v3320, %v3279
  %v3322 = vrot.slane %v3279, 4
  %v3323 = vsel %vm1008, %v3291, %v3322
  %v3325 = vunpack.c.l.s4 1934713408
  %v3326 = vunpack.c.0.s8 %v3325
  %v3327 = vperm.slane %v3321, %v3326
  %v3329 = vunpack.c.l.s4 1934713408
  %v3330 = vunpack.c.0.s8 %v3329
  %v3331 = vperm.slane %v3323, %v3330
  %v3332 = vrot.slane %v3295, 4
  %v3333 = vsel %vm1008, %v3332, %v3283
  %v3334 = vrot.slane %v3283, 4
  %v3335 = vsel %vm1008, %v3295, %v3334
  %v3337 = vunpack.c.l.s4 1934713408
  %v3338 = vunpack.c.0.s8 %v3337
  %v3339 = vperm.slane %v3333, %v3338
  %v3341 = vunpack.c.l.s4 1934713408
  %v3342 = vunpack.c.0.s8 %v3341
  %v3343 = vperm.slane %v3335, %v3342
  %v3344 = vrot.slane %v3327, 4
  %v3345 = vsel %vm1008, %v3344, %v3303
  %v3346 = vrot.slane %v3303, 4
  %v3347 = vsel %vm1008, %v3327, %v3346
  %v3348 = vrot.slane %v3331, 4
  %v3349 = vsel %vm1008, %v3348, %v3307
  %v3350 = vrot.slane %v3307, 4
  %v3351 = vsel %vm1008, %v3331, %v3350
  %v3352 = vrot.slane %v3339, 4
  %v3353 = vsel %vm1008, %v3352, %v3315
  %v3354 = vrot.slane %v3315, 4
  %v3355 = vsel %vm1008, %v3339, %v3354
  %v3356 = vrot.slane %v3343, 4
  %v3357 = vsel %vm1008, %v3356, %v3319
  %v3358 = vrot.slane %v3319, 4
  %v3359 = vsel %vm1008, %v3343, %v3358
  %v3360 = vrot.slane %v1613, 4
  %v3361 = vsel %vm1008, %v3360, %v1609
  %v3362 = vrot.slane %v1609, 4
  %v3363 = vsel %vm1008, %v1613, %v3362
  %v3365 = vunpack.c.l.s4 1983009808
  %v3366 = vunpack.c.0.s8 %v3365
  %v3367 = vperm.slane %v3361, %v3366
  %v3369 = vunpack.c.l.s4 1983009808
  %v3370 = vunpack.c.0.s8 %v3369
  %v3371 = vperm.slane %v3363, %v3370
  %v3372 = vrot.slane %v1615, 4
  %v3373 = vsel %vm1008, %v3372, %v1611
  %v3374 = vrot.slane %v1611, 4
  %v3375 = vsel %vm1008, %v1615, %v3374
  %v3377 = vunpack.c.l.s4 1983009808
  %v3378 = vunpack.c.0.s8 %v3377
  %v3379 = vperm.slane %v3373, %v3378
  %v3381 = vunpack.c.l.s4 1983009808
  %v3382 = vunpack.c.0.s8 %v3381
  %v3383 = vperm.slane %v3375, %v3382
  %v3384 = vrot.slane %v1621, 4
  %v3385 = vsel %vm1008, %v3384, %v1617
  %v3386 = vrot.slane %v1617, 4
  %v3387 = vsel %vm1008, %v1621, %v3386
  %v3389 = vunpack.c.l.s4 1983009808
  %v3390 = vunpack.c.0.s8 %v3389
  %v3391 = vperm.slane %v3385, %v3390
  %v3393 = vunpack.c.l.s4 1983009808
  %v3394 = vunpack.c.0.s8 %v3393
  %v3395 = vperm.slane %v3387, %v3394
  %v3396 = vrot.slane %v1623, 4
  %v3397 = vsel %vm1008, %v3396, %v1619
  %v3398 = vrot.slane %v1619, 4
  %v3399 = vsel %vm1008, %v1623, %v3398
  %v3401 = vunpack.c.l.s4 1983009808
  %v3402 = vunpack.c.0.s8 %v3401
  %v3403 = vperm.slane %v3397, %v3402
  %v3405 = vunpack.c.l.s4 1983009808
  %v3406 = vunpack.c.0.s8 %v3405
  %v3407 = vperm.slane %v3399, %v3406
  %v3408 = vrot.slane %v3379, 4
  %v3409 = vsel %vm1008, %v3408, %v3367
  %v3410 = vrot.slane %v3367, 4
  %v3411 = vsel %vm1008, %v3379, %v3410
  %v3413 = vunpack.c.l.s4 1934713408
  %v3414 = vunpack.c.0.s8 %v3413
  %v3415 = vperm.slane %v3409, %v3414
  %v3417 = vunpack.c.l.s4 1934713408
  %v3418 = vunpack.c.0.s8 %v3417
  %v3419 = vperm.slane %v3411, %v3418
  %v3420 = vrot.slane %v3383, 4
  %v3421 = vsel %vm1008, %v3420, %v3371
  %v3422 = vrot.slane %v3371, 4
  %v3423 = vsel %vm1008, %v3383, %v3422
  %v3425 = vunpack.c.l.s4 1934713408
  %v3426 = vunpack.c.0.s8 %v3425
  %v3427 = vperm.slane %v3421, %v3426
  %v3429 = vunpack.c.l.s4 1934713408
  %v3430 = vunpack.c.0.s8 %v3429
  %v3431 = vperm.slane %v3423, %v3430
  %v3432 = vrot.slane %v3403, 4
  %v3433 = vsel %vm1008, %v3432, %v3391
  %v3434 = vrot.slane %v3391, 4
  %v3435 = vsel %vm1008, %v3403, %v3434
  %v3437 = vunpack.c.l.s4 1934713408
  %v3438 = vunpack.c.0.s8 %v3437
  %v3439 = vperm.slane %v3433, %v3438
  %v3441 = vunpack.c.l.s4 1934713408
  %v3442 = vunpack.c.0.s8 %v3441
  %v3443 = vperm.slane %v3435, %v3442
  %v3444 = vrot.slane %v3407, 4
  %v3445 = vsel %vm1008, %v3444, %v3395
  %v3446 = vrot.slane %v3395, 4
  %v3447 = vsel %vm1008, %v3407, %v3446
  %v3449 = vunpack.c.l.s4 1934713408
  %v3450 = vunpack.c.0.s8 %v3449
  %v3451 = vperm.slane %v3445, %v3450
  %v3453 = vunpack.c.l.s4 1934713408
  %v3454 = vunpack.c.0.s8 %v3453
  %v3455 = vperm.slane %v3447, %v3454
  %v3456 = vrot.slane %v3439, 4
  %v3457 = vsel %vm1008, %v3456, %v3415
  %v3458 = vrot.slane %v3415, 4
  %v3459 = vsel %vm1008, %v3439, %v3458
  %v3460 = vrot.slane %v3443, 4
  %v3461 = vsel %vm1008, %v3460, %v3419
  %v3462 = vrot.slane %v3419, 4
  %v3463 = vsel %vm1008, %v3443, %v3462
  %v3464 = vrot.slane %v3451, 4
  %v3465 = vsel %vm1008, %v3464, %v3427
  %v3466 = vrot.slane %v3427, 4
  %v3467 = vsel %vm1008, %v3451, %v3466
  %v3468 = vrot.slane %v3455, 4
  %v3469 = vsel %vm1008, %v3468, %v3431
  %v3470 = vrot.slane %v3431, 4
  %v3471 = vsel %vm1008, %v3455, %v3470
  %v3472 = vrot.slane %v1781, 4
  %v3473 = vsel %vm1008, %v3472, %v1777
  %v3474 = vrot.slane %v1777, 4
  %v3475 = vsel %vm1008, %v1781, %v3474
  %v3477 = vunpack.c.l.s4 1983009808
  %v3478 = vunpack.c.0.s8 %v3477
  %v3479 = vperm.slane %v3473, %v3478
  %v3481 = vunpack.c.l.s4 1983009808
  %v3482 = vunpack.c.0.s8 %v3481
  %v3483 = vperm.slane %v3475, %v3482
  %v3484 = vrot.slane %v1783, 4
  %v3485 = vsel %vm1008, %v3484, %v1779
  %v3486 = vrot.slane %v1779, 4
  %v3487 = vsel %vm1008, %v1783, %v3486
  %v3489 = vunpack.c.l.s4 1983009808
  %v3490 = vunpack.c.0.s8 %v3489
  %v3491 = vperm.slane %v3485, %v3490
  %v3493 = vunpack.c.l.s4 1983009808
  %v3494 = vunpack.c.0.s8 %v3493
  %v3495 = vperm.slane %v3487, %v3494
  %v3496 = vrot.slane %v1789, 4
  %v3497 = vsel %vm1008, %v3496, %v1785
  %v3498 = vrot.slane %v1785, 4
  %v3499 = vsel %vm1008, %v1789, %v3498
  %v3501 = vunpack.c.l.s4 1983009808
  %v3502 = vunpack.c.0.s8 %v3501
  %v3503 = vperm.slane %v3497, %v3502
  %v3505 = vunpack.c.l.s4 1983009808
  %v3506 = vunpack.c.0.s8 %v3505
  %v3507 = vperm.slane %v3499, %v3506
  %v3508 = vrot.slane %v1791, 4
  %v3509 = vsel %vm1008, %v3508, %v1787
  %v3510 = vrot.slane %v1787, 4
  %v3511 = vsel %vm1008, %v1791, %v3510
  %v3513 = vunpack.c.l.s4 1983009808
  %v3514 = vunpack.c.0.s8 %v3513
  %v3515 = vperm.slane %v3509, %v3514
  %v3517 = vunpack.c.l.s4 1983009808
  %v3518 = vunpack.c.0.s8 %v3517
  %v3519 = vperm.slane %v3511, %v3518
  %v3520 = vrot.slane %v3491, 4
  %v3521 = vsel %vm1008, %v3520, %v3479
  %v3522 = vrot.slane %v3479, 4
  %v3523 = vsel %vm1008, %v3491, %v3522
  %v3525 = vunpack.c.l.s4 1934713408
  %v3526 = vunpack.c.0.s8 %v3525
  %v3527 = vperm.slane %v3521, %v3526
  %v3529 = vunpack.c.l.s4 1934713408
  %v3530 = vunpack.c.0.s8 %v3529
  %v3531 = vperm.slane %v3523, %v3530
  %v3532 = vrot.slane %v3495, 4
  %v3533 = vsel %vm1008, %v3532, %v3483
  %v3534 = vrot.slane %v3483, 4
  %v3535 = vsel %vm1008, %v3495, %v3534
  %v3537 = vunpack.c.l.s4 1934713408
  %v3538 = vunpack.c.0.s8 %v3537
  %v3539 = vperm.slane %v3533, %v3538
  %v3541 = vunpack.c.l.s4 1934713408
  %v3542 = vunpack.c.0.s8 %v3541
  %v3543 = vperm.slane %v3535, %v3542
  %v3544 = vrot.slane %v3515, 4
  %v3545 = vsel %vm1008, %v3544, %v3503
  %v3546 = vrot.slane %v3503, 4
  %v3547 = vsel %vm1008, %v3515, %v3546
  %v3549 = vunpack.c.l.s4 1934713408
  %v3550 = vunpack.c.0.s8 %v3549
  %v3551 = vperm.slane %v3545, %v3550
  %v3553 = vunpack.c.l.s4 1934713408
  %v3554 = vunpack.c.0.s8 %v3553
  %v3555 = vperm.slane %v3547, %v3554
  %v3556 = vrot.slane %v3519, 4
  %v3557 = vsel %vm1008, %v3556, %v3507
  %v3558 = vrot.slane %v3507, 4
  %v3559 = vsel %vm1008, %v3519, %v3558
  %v3561 = vunpack.c.l.s4 1934713408
  %v3562 = vunpack.c.0.s8 %v3561
  %v3563 = vperm.slane %v3557, %v3562
  %v3565 = vunpack.c.l.s4 1934713408
  %v3566 = vunpack.c.0.s8 %v3565
  %v3567 = vperm.slane %v3559, %v3566
  %v3568 = vrot.slane %v3551, 4
  %v3569 = vsel %vm1008, %v3568, %v3527
  %v3570 = vrot.slane %v3527, 4
  %v3571 = vsel %vm1008, %v3551, %v3570
  %v3572 = vrot.slane %v3555, 4
  %v3573 = vsel %vm1008, %v3572, %v3531
  %v3574 = vrot.slane %v3531, 4
  %v3575 = vsel %vm1008, %v3555, %v3574
  %v3576 = vrot.slane %v3563, 4
  %v3577 = vsel %vm1008, %v3576, %v3539
  %v3578 = vrot.slane %v3539, 4
  %v3579 = vsel %vm1008, %v3563, %v3578
  %v3580 = vrot.slane %v3567, 4
  %v3581 = vsel %vm1008, %v3580, %v3543
  %v3582 = vrot.slane %v3543, 4
  %v3583 = vsel %vm1008, %v3567, %v3582
  %v3584 = vrot.slane %v1949, 4
  %v3585 = vsel %vm1008, %v3584, %v1945
  %v3586 = vrot.slane %v1945, 4
  %v3587 = vsel %vm1008, %v1949, %v3586
  %v3589 = vunpack.c.l.s4 1983009808
  %v3590 = vunpack.c.0.s8 %v3589
  %v3591 = vperm.slane %v3585, %v3590
  %v3593 = vunpack.c.l.s4 1983009808
  %v3594 = vunpack.c.0.s8 %v3593
  %v3595 = vperm.slane %v3587, %v3594
  %v3596 = vrot.slane %v1951, 4
  %v3597 = vsel %vm1008, %v3596, %v1947
  %v3598 = vrot.slane %v1947, 4
  %v3599 = vsel %vm1008, %v1951, %v3598
  %v3601 = vunpack.c.l.s4 1983009808
  %v3602 = vunpack.c.0.s8 %v3601
  %v3603 = vperm.slane %v3597, %v3602
  %v3605 = vunpack.c.l.s4 1983009808
  %v3606 = vunpack.c.0.s8 %v3605
  %v3607 = vperm.slane %v3599, %v3606
  %v3608 = vrot.slane %v1957, 4
  %v3609 = vsel %vm1008, %v3608, %v1953
  %v3610 = vrot.slane %v1953, 4
  %v3611 = vsel %vm1008, %v1957, %v3610
  %v3613 = vunpack.c.l.s4 1983009808
  %v3614 = vunpack.c.0.s8 %v3613
  %v3615 = vperm.slane %v3609, %v3614
  %v3617 = vunpack.c.l.s4 1983009808
  %v3618 = vunpack.c.0.s8 %v3617
  %v3619 = vperm.slane %v3611, %v3618
  %v3620 = vrot.slane %v1959, 4
  %v3621 = vsel %vm1008, %v3620, %v1955
  %v3622 = vrot.slane %v1955, 4
  %v3623 = vsel %vm1008, %v1959, %v3622
  %v3625 = vunpack.c.l.s4 1983009808
  %v3626 = vunpack.c.0.s8 %v3625
  %v3627 = vperm.slane %v3621, %v3626
  %v3629 = vunpack.c.l.s4 1983009808
  %v3630 = vunpack.c.0.s8 %v3629
  %v3631 = vperm.slane %v3623, %v3630
  %v3632 = vrot.slane %v3603, 4
  %v3633 = vsel %vm1008, %v3632, %v3591
  %v3634 = vrot.slane %v3591, 4
  %v3635 = vsel %vm1008, %v3603, %v3634
  %v3637 = vunpack.c.l.s4 1934713408
  %v3638 = vunpack.c.0.s8 %v3637
  %v3639 = vperm.slane %v3633, %v3638
  %v3641 = vunpack.c.l.s4 1934713408
  %v3642 = vunpack.c.0.s8 %v3641
  %v3643 = vperm.slane %v3635, %v3642
  %v3644 = vrot.slane %v3607, 4
  %v3645 = vsel %vm1008, %v3644, %v3595
  %v3646 = vrot.slane %v3595, 4
  %v3647 = vsel %vm1008, %v3607, %v3646
  %v3649 = vunpack.c.l.s4 1934713408
  %v3650 = vunpack.c.0.s8 %v3649
  %v3651 = vperm.slane %v3645, %v3650
  %v3653 = vunpack.c.l.s4 1934713408
  %v3654 = vunpack.c.0.s8 %v3653
  %v3655 = vperm.slane %v3647, %v3654
  %v3656 = vrot.slane %v3627, 4
  %v3657 = vsel %vm1008, %v3656, %v3615
  %v3658 = vrot.slane %v3615, 4
  %v3659 = vsel %vm1008, %v3627, %v3658
  %v3661 = vunpack.c.l.s4 1934713408
  %v3662 = vunpack.c.0.s8 %v3661
  %v3663 = vperm.slane %v3657, %v3662
  %v3665 = vunpack.c.l.s4 1934713408
  %v3666 = vunpack.c.0.s8 %v3665
  %v3667 = vperm.slane %v3659, %v3666
  %v3668 = vrot.slane %v3631, 4
  %v3669 = vsel %vm1008, %v3668, %v3619
  %v3670 = vrot.slane %v3619, 4
  %v3671 = vsel %vm1008, %v3631, %v3670
  %v3673 = vunpack.c.l.s4 1934713408
  %v3674 = vunpack.c.0.s8 %v3673
  %v3675 = vperm.slane %v3669, %v3674
  %v3677 = vunpack.c.l.s4 1934713408
  %v3678 = vunpack.c.0.s8 %v3677
  %v3679 = vperm.slane %v3671, %v3678
  %v3680 = vrot.slane %v3663, 4
  %v3681 = vsel %vm1008, %v3680, %v3639
  %v3682 = vrot.slane %v3639, 4
  %v3683 = vsel %vm1008, %v3663, %v3682
  %v3684 = vrot.slane %v3667, 4
  %v3685 = vsel %vm1008, %v3684, %v3643
  %v3686 = vrot.slane %v3643, 4
  %v3687 = vsel %vm1008, %v3667, %v3686
  %v3688 = vrot.slane %v3675, 4
  %v3689 = vsel %vm1008, %v3688, %v3651
  %v3690 = vrot.slane %v3651, 4
  %v3691 = vsel %vm1008, %v3675, %v3690
  %v3692 = vrot.slane %v3679, 4
  %v3693 = vsel %vm1008, %v3692, %v3655
  %v3694 = vrot.slane %v3655, 4
  %v3695 = vsel %vm1008, %v3679, %v3694
  %v3696 = vrot.slane %v2117, 4
  %v3697 = vsel %vm1008, %v3696, %v2113
  %v3698 = vrot.slane %v2113, 4
  %v3699 = vsel %vm1008, %v2117, %v3698
  %v3701 = vunpack.c.l.s4 1983009808
  %v3702 = vunpack.c.0.s8 %v3701
  %v3703 = vperm.slane %v3697, %v3702
  %v3705 = vunpack.c.l.s4 1983009808
  %v3706 = vunpack.c.0.s8 %v3705
  %v3707 = vperm.slane %v3699, %v3706
  %v3708 = vrot.slane %v2119, 4
  %v3709 = vsel %vm1008, %v3708, %v2115
  %v3710 = vrot.slane %v2115, 4
  %v3711 = vsel %vm1008, %v2119, %v3710
  %v3713 = vunpack.c.l.s4 1983009808
  %v3714 = vunpack.c.0.s8 %v3713
  %v3715 = vperm.slane %v3709, %v3714
  %v3717 = vunpack.c.l.s4 1983009808
  %v3718 = vunpack.c.0.s8 %v3717
  %v3719 = vperm.slane %v3711, %v3718
  %v3720 = vrot.slane %v2125, 4
  %v3721 = vsel %vm1008, %v3720, %v2121
  %v3722 = vrot.slane %v2121, 4
  %v3723 = vsel %vm1008, %v2125, %v3722
  %v3725 = vunpack.c.l.s4 1983009808
  %v3726 = vunpack.c.0.s8 %v3725
  %v3727 = vperm.slane %v3721, %v3726
  %v3729 = vunpack.c.l.s4 1983009808
  %v3730 = vunpack.c.0.s8 %v3729
  %v3731 = vperm.slane %v3723, %v3730
  %v3732 = vrot.slane %v2127, 4
  %v3733 = vsel %vm1008, %v3732, %v2123
  %v3734 = vrot.slane %v2123, 4
  %v3735 = vsel %vm1008, %v2127, %v3734
  %v3737 = vunpack.c.l.s4 1983009808
  %v3738 = vunpack.c.0.s8 %v3737
  %v3739 = vperm.slane %v3733, %v3738
  %v3741 = vunpack.c.l.s4 1983009808
  %v3742 = vunpack.c.0.s8 %v3741
  %v3743 = vperm.slane %v3735, %v3742
  %v3744 = vrot.slane %v3715, 4
  %v3745 = vsel %vm1008, %v3744, %v3703
  %v3746 = vrot.slane %v3703, 4
  %v3747 = vsel %vm1008, %v3715, %v3746
  %v3749 = vunpack.c.l.s4 1934713408
  %v3750 = vunpack.c.0.s8 %v3749
  %v3751 = vperm.slane %v3745, %v3750
  %v3753 = vunpack.c.l.s4 1934713408
  %v3754 = vunpack.c.0.s8 %v3753
  %v3755 = vperm.slane %v3747, %v3754
  %v3756 = vrot.slane %v3719, 4
  %v3757 = vsel %vm1008, %v3756, %v3707
  %v3758 = vrot.slane %v3707, 4
  %v3759 = vsel %vm1008, %v3719, %v3758
  %v3761 = vunpack.c.l.s4 1934713408
  %v3762 = vunpack.c.0.s8 %v3761
  %v3763 = vperm.slane %v3757, %v3762
  %v3765 = vunpack.c.l.s4 1934713408
  %v3766 = vunpack.c.0.s8 %v3765
  %v3767 = vperm.slane %v3759, %v3766
  %v3768 = vrot.slane %v3739, 4
  %v3769 = vsel %vm1008, %v3768, %v3727
  %v3770 = vrot.slane %v3727, 4
  %v3771 = vsel %vm1008, %v3739, %v3770
  %v3773 = vunpack.c.l.s4 1934713408
  %v3774 = vunpack.c.0.s8 %v3773
  %v3775 = vperm.slane %v3769, %v3774
  %v3777 = vunpack.c.l.s4 1934713408
  %v3778 = vunpack.c.0.s8 %v3777
  %v3779 = vperm.slane %v3771, %v3778
  %v3780 = vrot.slane %v3743, 4
  %v3781 = vsel %vm1008, %v3780, %v3731
  %v3782 = vrot.slane %v3731, 4
  %v3783 = vsel %vm1008, %v3743, %v3782
  %v3785 = vunpack.c.l.s4 1934713408
  %v3786 = vunpack.c.0.s8 %v3785
  %v3787 = vperm.slane %v3781, %v3786
  %v3789 = vunpack.c.l.s4 1934713408
  %v3790 = vunpack.c.0.s8 %v3789
  %v3791 = vperm.slane %v3783, %v3790
  %v3792 = vrot.slane %v3775, 4
  %v3793 = vsel %vm1008, %v3792, %v3751
  %v3794 = vrot.slane %v3751, 4
  %v3795 = vsel %vm1008, %v3775, %v3794
  %v3796 = vrot.slane %v3779, 4
  %v3797 = vsel %vm1008, %v3796, %v3755
  %v3798 = vrot.slane %v3755, 4
  %v3799 = vsel %vm1008, %v3779, %v3798
  %v3800 = vrot.slane %v3787, 4
  %v3801 = vsel %vm1008, %v3800, %v3763
  %v3802 = vrot.slane %v3763, 4
  %v3803 = vsel %vm1008, %v3787, %v3802
  %v3804 = vrot.slane %v3791, 4
  %v3805 = vsel %vm1008, %v3804, %v3767
  %v3806 = vrot.slane %v3767, 4
  %v3807 = vsel %vm1008, %v3791, %v3806
  %v3808 = vrot.slane %v2285, 4
  %v3809 = vsel %vm1008, %v3808, %v2281
  %v3810 = vrot.slane %v2281, 4
  %v3811 = vsel %vm1008, %v2285, %v3810
  %v3813 = vunpack.c.l.s4 1983009808
  %v3814 = vunpack.c.0.s8 %v3813
  %v3815 = vperm.slane %v3809, %v3814
  %v3817 = vunpack.c.l.s4 1983009808
  %v3818 = vunpack.c.0.s8 %v3817
  %v3819 = vperm.slane %v3811, %v3818
  %v3820 = vrot.slane %v2287, 4
  %v3821 = vsel %vm1008, %v3820, %v2283
  %v3822 = vrot.slane %v2283, 4
  %v3823 = vsel %vm1008, %v2287, %v3822
  %v3825 = vunpack.c.l.s4 1983009808
  %v3826 = vunpack.c.0.s8 %v3825
  %v3827 = vperm.slane %v3821, %v3826
  %v3829 = vunpack.c.l.s4 1983009808
  %v3830 = vunpack.c.0.s8 %v3829
  %v3831 = vperm.slane %v3823, %v3830
  %v3832 = vrot.slane %v2293, 4
  %v3833 = vsel %vm1008, %v3832, %v2289
  %v3834 = vrot.slane %v2289, 4
  %v3835 = vsel %vm1008, %v2293, %v3834
  %v3837 = vunpack.c.l.s4 1983009808
  %v3838 = vunpack.c.0.s8 %v3837
  %v3839 = vperm.slane %v3833, %v3838
  %v3841 = vunpack.c.l.s4 1983009808
  %v3842 = vunpack.c.0.s8 %v3841
  %v3843 = vperm.slane %v3835, %v3842
  %v3844 = vrot.slane %v2295, 4
  %v3845 = vsel %vm1008, %v3844, %v2291
  %v3846 = vrot.slane %v2291, 4
  %v3847 = vsel %vm1008, %v2295, %v3846
  %v3849 = vunpack.c.l.s4 1983009808
  %v3850 = vunpack.c.0.s8 %v3849
  %v3851 = vperm.slane %v3845, %v3850
  %v3853 = vunpack.c.l.s4 1983009808
  %v3854 = vunpack.c.0.s8 %v3853
  %v3855 = vperm.slane %v3847, %v3854
  %v3856 = vrot.slane %v3827, 4
  %v3857 = vsel %vm1008, %v3856, %v3815
  %v3858 = vrot.slane %v3815, 4
  %v3859 = vsel %vm1008, %v3827, %v3858
  %v3861 = vunpack.c.l.s4 1934713408
  %v3862 = vunpack.c.0.s8 %v3861
  %v3863 = vperm.slane %v3857, %v3862
  %v3865 = vunpack.c.l.s4 1934713408
  %v3866 = vunpack.c.0.s8 %v3865
  %v3867 = vperm.slane %v3859, %v3866
  %v3868 = vrot.slane %v3831, 4
  %v3869 = vsel %vm1008, %v3868, %v3819
  %v3870 = vrot.slane %v3819, 4
  %v3871 = vsel %vm1008, %v3831, %v3870
  %v3873 = vunpack.c.l.s4 1934713408
  %v3874 = vunpack.c.0.s8 %v3873
  %v3875 = vperm.slane %v3869, %v3874
  %v3877 = vunpack.c.l.s4 1934713408
  %v3878 = vunpack.c.0.s8 %v3877
  %v3879 = vperm.slane %v3871, %v3878
  %v3880 = vrot.slane %v3851, 4
  %v3881 = vsel %vm1008, %v3880, %v3839
  %v3882 = vrot.slane %v3839, 4
  %v3883 = vsel %vm1008, %v3851, %v3882
  %v3885 = vunpack.c.l.s4 1934713408
  %v3886 = vunpack.c.0.s8 %v3885
  %v3887 = vperm.slane %v3881, %v3886
  %v3889 = vunpack.c.l.s4 1934713408
  %v3890 = vunpack.c.0.s8 %v3889
  %v3891 = vperm.slane %v3883, %v3890
  %v3892 = vrot.slane %v3855, 4
  %v3893 = vsel %vm1008, %v3892, %v3843
  %v3894 = vrot.slane %v3843, 4
  %v3895 = vsel %vm1008, %v3855, %v3894
  %v3897 = vunpack.c.l.s4 1934713408
  %v3898 = vunpack.c.0.s8 %v3897
  %v3899 = vperm.slane %v3893, %v3898
  %v3901 = vunpack.c.l.s4 1934713408
  %v3902 = vunpack.c.0.s8 %v3901
  %v3903 = vperm.slane %v3895, %v3902
  %v3904 = vrot.slane %v3887, 4
  %v3905 = vsel %vm1008, %v3904, %v3863
  %v3906 = vrot.slane %v3863, 4
  %v3907 = vsel %vm1008, %v3887, %v3906
  %v3908 = vrot.slane %v3891, 4
  %v3909 = vsel %vm1008, %v3908, %v3867
  %v3910 = vrot.slane %v3867, 4
  %v3911 = vsel %vm1008, %v3891, %v3910
  %v3912 = vrot.slane %v3899, 4
  %v3913 = vsel %vm1008, %v3912, %v3875
  %v3914 = vrot.slane %v3875, 4
  %v3915 = vsel %vm1008, %v3899, %v3914
  %v3916 = vrot.slane %v3903, 4
  %v3917 = vsel %vm1008, %v3916, %v3879
  %v3918 = vrot.slane %v3879, 4
  %v3919 = vsel %vm1008, %v3903, %v3918
  %v3920 = vrot.slane %v2453, 4
  %v3921 = vsel %vm1008, %v3920, %v2449
  %v3922 = vrot.slane %v2449, 4
  %v3923 = vsel %vm1008, %v2453, %v3922
  %v3925 = vunpack.c.l.s4 1983009808
  %v3926 = vunpack.c.0.s8 %v3925
  %v3927 = vperm.slane %v3921, %v3926
  %v3929 = vunpack.c.l.s4 1983009808
  %v3930 = vunpack.c.0.s8 %v3929
  %v3931 = vperm.slane %v3923, %v3930
  %v3932 = vrot.slane %v2455, 4
  %v3933 = vsel %vm1008, %v3932, %v2451
  %v3934 = vrot.slane %v2451, 4
  %v3935 = vsel %vm1008, %v2455, %v3934
  %v3937 = vunpack.c.l.s4 1983009808
  %v3938 = vunpack.c.0.s8 %v3937
  %v3939 = vperm.slane %v3933, %v3938
  %v3941 = vunpack.c.l.s4 1983009808
  %v3942 = vunpack.c.0.s8 %v3941
  %v3943 = vperm.slane %v3935, %v3942
  %v3944 = vrot.slane %v2461, 4
  %v3945 = vsel %vm1008, %v3944, %v2457
  %v3946 = vrot.slane %v2457, 4
  %v3947 = vsel %vm1008, %v2461, %v3946
  %v3949 = vunpack.c.l.s4 1983009808
  %v3950 = vunpack.c.0.s8 %v3949
  %v3951 = vperm.slane %v3945, %v3950
  %v3953 = vunpack.c.l.s4 1983009808
  %v3954 = vunpack.c.0.s8 %v3953
  %v3955 = vperm.slane %v3947, %v3954
  %v3956 = vrot.slane %v2463, 4
  %v3957 = vsel %vm1008, %v3956, %v2459
  %v3958 = vrot.slane %v2459, 4
  %v3959 = vsel %vm1008, %v2463, %v3958
  %v3961 = vunpack.c.l.s4 1983009808
  %v3962 = vunpack.c.0.s8 %v3961
  %v3963 = vperm.slane %v3957, %v3962
  %v3965 = vunpack.c.l.s4 1983009808
  %v3966 = vunpack.c.0.s8 %v3965
  %v3967 = vperm.slane %v3959, %v3966
  %v3968 = vrot.slane %v3939, 4
  %v3969 = vsel %vm1008, %v3968, %v3927
  %v3970 = vrot.slane %v3927, 4
  %v3971 = vsel %vm1008, %v3939, %v3970
  %v3973 = vunpack.c.l.s4 1934713408
  %v3974 = vunpack.c.0.s8 %v3973
  %v3975 = vperm.slane %v3969, %v3974
  %v3977 = vunpack.c.l.s4 1934713408
  %v3978 = vunpack.c.0.s8 %v3977
  %v3979 = vperm.slane %v3971, %v3978
  %v3980 = vrot.slane %v3943, 4
  %v3981 = vsel %vm1008, %v3980, %v3931
  %v3982 = vrot.slane %v3931, 4
  %v3983 = vsel %vm1008, %v3943, %v3982
  %v3985 = vunpack.c.l.s4 1934713408
  %v3986 = vunpack.c.0.s8 %v3985
  %v3987 = vperm.slane %v3981, %v3986
  %v3989 = vunpack.c.l.s4 1934713408
  %v3990 = vunpack.c.0.s8 %v3989
  %v3991 = vperm.slane %v3983, %v3990
  %v3992 = vrot.slane %v3963, 4
  %v3993 = vsel %vm1008, %v3992, %v3951
  %v3994 = vrot.slane %v3951, 4
  %v3995 = vsel %vm1008, %v3963, %v3994
  %v3997 = vunpack.c.l.s4 1934713408
  %v3998 = vunpack.c.0.s8 %v3997
  %v3999 = vperm.slane %v3993, %v3998
  %v4001 = vunpack.c.l.s4 1934713408
  %v4002 = vunpack.c.0.s8 %v4001
  %v4003 = vperm.slane %v3995, %v4002
  %v4004 = vrot.slane %v3967, 4
  %v4005 = vsel %vm1008, %v4004, %v3955
  %v4006 = vrot.slane %v3955, 4
  %v4007 = vsel %vm1008, %v3967, %v4006
  %v4009 = vunpack.c.l.s4 1934713408
  %v4010 = vunpack.c.0.s8 %v4009
  %v4011 = vperm.slane %v4005, %v4010
  %v4013 = vunpack.c.l.s4 1934713408
  %v4014 = vunpack.c.0.s8 %v4013
  %v4015 = vperm.slane %v4007, %v4014
  %v4016 = vrot.slane %v3999, 4
  %v4017 = vsel %vm1008, %v4016, %v3975
  %v4018 = vrot.slane %v3975, 4
  %v4019 = vsel %vm1008, %v3999, %v4018
  %v4020 = vrot.slane %v4003, 4
  %v4021 = vsel %vm1008, %v4020, %v3979
  %v4022 = vrot.slane %v3979, 4
  %v4023 = vsel %vm1008, %v4003, %v4022
  %v4024 = vrot.slane %v4011, 4
  %v4025 = vsel %vm1008, %v4024, %v3987
  %v4026 = vrot.slane %v3987, 4
  %v4027 = vsel %vm1008, %v4011, %v4026
  %v4028 = vrot.slane %v4015, 4
  %v4029 = vsel %vm1008, %v4028, %v3991
  %v4030 = vrot.slane %v3991, 4
  %v4031 = vsel %vm1008, %v4015, %v4030
  %v4032 = vrot.slane %v2621, 4
  %v4033 = vsel %vm1008, %v4032, %v2617
  %v4034 = vrot.slane %v2617, 4
  %v4035 = vsel %vm1008, %v2621, %v4034
  %v4037 = vunpack.c.l.s4 1983009808
  %v4038 = vunpack.c.0.s8 %v4037
  %v4039 = vperm.slane %v4033, %v4038
  %v4041 = vunpack.c.l.s4 1983009808
  %v4042 = vunpack.c.0.s8 %v4041
  %v4043 = vperm.slane %v4035, %v4042
  %v4044 = vrot.slane %v2623, 4
  %v4045 = vsel %vm1008, %v4044, %v2619
  %v4046 = vrot.slane %v2619, 4
  %v4047 = vsel %vm1008, %v2623, %v4046
  %v4049 = vunpack.c.l.s4 1983009808
  %v4050 = vunpack.c.0.s8 %v4049
  %v4051 = vperm.slane %v4045, %v4050
  %v4053 = vunpack.c.l.s4 1983009808
  %v4054 = vunpack.c.0.s8 %v4053
  %v4055 = vperm.slane %v4047, %v4054
  %v4056 = vrot.slane %v2629, 4
  %v4057 = vsel %vm1008, %v4056, %v2625
  %v4058 = vrot.slane %v2625, 4
  %v4059 = vsel %vm1008, %v2629, %v4058
  %v4061 = vunpack.c.l.s4 1983009808
  %v4062 = vunpack.c.0.s8 %v4061
  %v4063 = vperm.slane %v4057, %v4062
  %v4065 = vunpack.c.l.s4 1983009808
  %v4066 = vunpack.c.0.s8 %v4065
  %v4067 = vperm.slane %v4059, %v4066
  %v4068 = vrot.slane %v2631, 4
  %v4069 = vsel %vm1008, %v4068, %v2627
  %v4070 = vrot.slane %v2627, 4
  %v4071 = vsel %vm1008, %v2631, %v4070
  %v4073 = vunpack.c.l.s4 1983009808
  %v4074 = vunpack.c.0.s8 %v4073
  %v4075 = vperm.slane %v4069, %v4074
  %v4077 = vunpack.c.l.s4 1983009808
  %v4078 = vunpack.c.0.s8 %v4077
  %v4079 = vperm.slane %v4071, %v4078
  %v4080 = vrot.slane %v4051, 4
  %v4081 = vsel %vm1008, %v4080, %v4039
  %v4082 = vrot.slane %v4039, 4
  %v4083 = vsel %vm1008, %v4051, %v4082
  %v4085 = vunpack.c.l.s4 1934713408
  %v4086 = vunpack.c.0.s8 %v4085
  %v4087 = vperm.slane %v4081, %v4086
  %v4089 = vunpack.c.l.s4 1934713408
  %v4090 = vunpack.c.0.s8 %v4089
  %v4091 = vperm.slane %v4083, %v4090
  %v4092 = vrot.slane %v4055, 4
  %v4093 = vsel %vm1008, %v4092, %v4043
  %v4094 = vrot.slane %v4043, 4
  %v4095 = vsel %vm1008, %v4055, %v4094
  %v4097 = vunpack.c.l.s4 1934713408
  %v4098 = vunpack.c.0.s8 %v4097
  %v4099 = vperm.slane %v4093, %v4098
  %v4101 = vunpack.c.l.s4 1934713408
  %v4102 = vunpack.c.0.s8 %v4101
  %v4103 = vperm.slane %v4095, %v4102
  %v4104 = vrot.slane %v4075, 4
  %v4105 = vsel %vm1008, %v4104, %v4063
  %v4106 = vrot.slane %v4063, 4
  %v4107 = vsel %vm1008, %v4075, %v4106
  %v4109 = vunpack.c.l.s4 1934713408
  %v4110 = vunpack.c.0.s8 %v4109
  %v4111 = vperm.slane %v4105, %v4110
  %v4113 = vunpack.c.l.s4 1934713408
  %v4114 = vunpack.c.0.s8 %v4113
  %v4115 = vperm.slane %v4107, %v4114
  %v4116 = vrot.slane %v4079, 4
  %v4117 = vsel %vm1008, %v4116, %v4067
  %v4118 = vrot.slane %v4067, 4
  %v4119 = vsel %vm1008, %v4079, %v4118
  %v4121 = vunpack.c.l.s4 1934713408
  %v4122 = vunpack.c.0.s8 %v4121
  %v4123 = vperm.slane %v4117, %v4122
  %v4125 = vunpack.c.l.s4 1934713408
  %v4126 = vunpack.c.0.s8 %v4125
  %v4127 = vperm.slane %v4119, %v4126
  %v4128 = vrot.slane %v4111, 4
  %v4129 = vsel %vm1008, %v4128, %v4087
  %v4130 = vrot.slane %v4087, 4
  %v4131 = vsel %vm1008, %v4111, %v4130
  %v4132 = vrot.slane %v4115, 4
  %v4133 = vsel %vm1008, %v4132, %v4091
  %v4134 = vrot.slane %v4091, 4
  %v4135 = vsel %vm1008, %v4115, %v4134
  %v4136 = vrot.slane %v4123, 4
  %v4137 = vsel %vm1008, %v4136, %v4099
  %v4138 = vrot.slane %v4099, 4
  %v4139 = vsel %vm1008, %v4123, %v4138
  %v4140 = vrot.slane %v4127, 4
  %v4141 = vsel %vm1008, %v4140, %v4103
  %v4142 = vrot.slane %v4103, 4
  %v4143 = vsel %vm1008, %v4127, %v4142
  %v4144 = vrot.slane %v2789, 4
  %v4145 = vsel %vm1008, %v4144, %v2785
  %v4146 = vrot.slane %v2785, 4
  %v4147 = vsel %vm1008, %v2789, %v4146
  %v4149 = vunpack.c.l.s4 1983009808
  %v4150 = vunpack.c.0.s8 %v4149
  %v4151 = vperm.slane %v4145, %v4150
  %v4153 = vunpack.c.l.s4 1983009808
  %v4154 = vunpack.c.0.s8 %v4153
  %v4155 = vperm.slane %v4147, %v4154
  %v4156 = vrot.slane %v2791, 4
  %v4157 = vsel %vm1008, %v4156, %v2787
  %v4158 = vrot.slane %v2787, 4
  %v4159 = vsel %vm1008, %v2791, %v4158
  %v4161 = vunpack.c.l.s4 1983009808
  %v4162 = vunpack.c.0.s8 %v4161
  %v4163 = vperm.slane %v4157, %v4162
  %v4165 = vunpack.c.l.s4 1983009808
  %v4166 = vunpack.c.0.s8 %v4165
  %v4167 = vperm.slane %v4159, %v4166
  %v4168 = vrot.slane %v2797, 4
  %v4169 = vsel %vm1008, %v4168, %v2793
  %v4170 = vrot.slane %v2793, 4
  %v4171 = vsel %vm1008, %v2797, %v4170
  %v4173 = vunpack.c.l.s4 1983009808
  %v4174 = vunpack.c.0.s8 %v4173
  %v4175 = vperm.slane %v4169, %v4174
  %v4177 = vunpack.c.l.s4 1983009808
  %v4178 = vunpack.c.0.s8 %v4177
  %v4179 = vperm.slane %v4171, %v4178
  %v4180 = vrot.slane %v2799, 4
  %v4181 = vsel %vm1008, %v4180, %v2795
  %v4182 = vrot.slane %v2795, 4
  %v4183 = vsel %vm1008, %v2799, %v4182
  %v4185 = vunpack.c.l.s4 1983009808
  %v4186 = vunpack.c.0.s8 %v4185
  %v4187 = vperm.slane %v4181, %v4186
  %v4189 = vunpack.c.l.s4 1983009808
  %v4190 = vunpack.c.0.s8 %v4189
  %v4191 = vperm.slane %v4183, %v4190
  %v4192 = vrot.slane %v4163, 4
  %v4193 = vsel %vm1008, %v4192, %v4151
  %v4194 = vrot.slane %v4151, 4
  %v4195 = vsel %vm1008, %v4163, %v4194
  %v4197 = vunpack.c.l.s4 1934713408
  %v4198 = vunpack.c.0.s8 %v4197
  %v4199 = vperm.slane %v4193, %v4198
  %v4201 = vunpack.c.l.s4 1934713408
  %v4202 = vunpack.c.0.s8 %v4201
  %v4203 = vperm.slane %v4195, %v4202
  %v4204 = vrot.slane %v4167, 4
  %v4205 = vsel %vm1008, %v4204, %v4155
  %v4206 = vrot.slane %v4155, 4
  %v4207 = vsel %vm1008, %v4167, %v4206
  %v4209 = vunpack.c.l.s4 1934713408
  %v4210 = vunpack.c.0.s8 %v4209
  %v4211 = vperm.slane %v4205, %v4210
  %v4213 = vunpack.c.l.s4 1934713408
  %v4214 = vunpack.c.0.s8 %v4213
  %v4215 = vperm.slane %v4207, %v4214
  %v4216 = vrot.slane %v4187, 4
  %v4217 = vsel %vm1008, %v4216, %v4175
  %v4218 = vrot.slane %v4175, 4
  %v4219 = vsel %vm1008, %v4187, %v4218
  %v4221 = vunpack.c.l.s4 1934713408
  %v4222 = vunpack.c.0.s8 %v4221
  %v4223 = vperm.slane %v4217, %v4222
  %v4225 = vunpack.c.l.s4 1934713408
  %v4226 = vunpack.c.0.s8 %v4225
  %v4227 = vperm.slane %v4219, %v4226
  %v4228 = vrot.slane %v4191, 4
  %v4229 = vsel %vm1008, %v4228, %v4179
  %v4230 = vrot.slane %v4179, 4
  %v4231 = vsel %vm1008, %v4191, %v4230
  %v4233 = vunpack.c.l.s4 1934713408
  %v4234 = vunpack.c.0.s8 %v4233
  %v4235 = vperm.slane %v4229, %v4234
  %v4237 = vunpack.c.l.s4 1934713408
  %v4238 = vunpack.c.0.s8 %v4237
  %v4239 = vperm.slane %v4231, %v4238
  %v4240 = vrot.slane %v4223, 4
  %v4241 = vsel %vm1008, %v4240, %v4199
  %v4242 = vrot.slane %v4199, 4
  %v4243 = vsel %vm1008, %v4223, %v4242
  %v4244 = vrot.slane %v4227, 4
  %v4245 = vsel %vm1008, %v4244, %v4203
  %v4246 = vrot.slane %v4203, 4
  %v4247 = vsel %vm1008, %v4227, %v4246
  %v4248 = vrot.slane %v4235, 4
  %v4249 = vsel %vm1008, %v4248, %v4211
  %v4250 = vrot.slane %v4211, 4
  %v4251 = vsel %vm1008, %v4235, %v4250
  %v4252 = vrot.slane %v4239, 4
  %v4253 = vsel %vm1008, %v4252, %v4215
  %v4254 = vrot.slane %v4215, 4
  %v4255 = vsel %vm1008, %v4239, %v4254
  %v4256 = vrot.slane %v2957, 4
  %v4257 = vsel %vm1008, %v4256, %v2953
  %v4258 = vrot.slane %v2953, 4
  %v4259 = vsel %vm1008, %v2957, %v4258
  %v4261 = vunpack.c.l.s4 1983009808
  %v4262 = vunpack.c.0.s8 %v4261
  %v4263 = vperm.slane %v4257, %v4262
  %v4265 = vunpack.c.l.s4 1983009808
  %v4266 = vunpack.c.0.s8 %v4265
  %v4267 = vperm.slane %v4259, %v4266
  %v4268 = vrot.slane %v2959, 4
  %v4269 = vsel %vm1008, %v4268, %v2955
  %v4270 = vrot.slane %v2955, 4
  %v4271 = vsel %vm1008, %v2959, %v4270
  %v4273 = vunpack.c.l.s4 1983009808
  %v4274 = vunpack.c.0.s8 %v4273
  %v4275 = vperm.slane %v4269, %v4274
  %v4277 = vunpack.c.l.s4 1983009808
  %v4278 = vunpack.c.0.s8 %v4277
  %v4279 = vperm.slane %v4271, %v4278
  %v4280 = vrot.slane %v2965, 4
  %v4281 = vsel %vm1008, %v4280, %v2961
  %v4282 = vrot.slane %v2961, 4
  %v4283 = vsel %vm1008, %v2965, %v4282
  %v4285 = vunpack.c.l.s4 1983009808
  %v4286 = vunpack.c.0.s8 %v4285
  %v4287 = vperm.slane %v4281, %v4286
  %v4289 = vunpack.c.l.s4 1983009808
  %v4290 = vunpack.c.0.s8 %v4289
  %v4291 = vperm.slane %v4283, %v4290
  %v4292 = vrot.slane %v2967, 4
  %v4293 = vsel %vm1008, %v4292, %v2963
  %v4294 = vrot.slane %v2963, 4
  %v4295 = vsel %vm1008, %v2967, %v4294
  %v4297 = vunpack.c.l.s4 1983009808
  %v4298 = vunpack.c.0.s8 %v4297
  %v4299 = vperm.slane %v4293, %v4298
  %v4301 = vunpack.c.l.s4 1983009808
  %v4302 = vunpack.c.0.s8 %v4301
  %v4303 = vperm.slane %v4295, %v4302
  %v4304 = vrot.slane %v4275, 4
  %v4305 = vsel %vm1008, %v4304, %v4263
  %v4306 = vrot.slane %v4263, 4
  %v4307 = vsel %vm1008, %v4275, %v4306
  %v4309 = vunpack.c.l.s4 1934713408
  %v4310 = vunpack.c.0.s8 %v4309
  %v4311 = vperm.slane %v4305, %v4310
  %v4313 = vunpack.c.l.s4 1934713408
  %v4314 = vunpack.c.0.s8 %v4313
  %v4315 = vperm.slane %v4307, %v4314
  %v4316 = vrot.slane %v4279, 4
  %v4317 = vsel %vm1008, %v4316, %v4267
  %v4318 = vrot.slane %v4267, 4
  %v4319 = vsel %vm1008, %v4279, %v4318
  %v4321 = vunpack.c.l.s4 1934713408
  %v4322 = vunpack.c.0.s8 %v4321
  %v4323 = vperm.slane %v4317, %v4322
  %v4325 = vunpack.c.l.s4 1934713408
  %v4326 = vunpack.c.0.s8 %v4325
  %v4327 = vperm.slane %v4319, %v4326
  %v4328 = vrot.slane %v4299, 4
  %v4329 = vsel %vm1008, %v4328, %v4287
  %v4330 = vrot.slane %v4287, 4
  %v4331 = vsel %vm1008, %v4299, %v4330
  %v4333 = vunpack.c.l.s4 1934713408
  %v4334 = vunpack.c.0.s8 %v4333
  %v4335 = vperm.slane %v4329, %v4334
  %v4337 = vunpack.c.l.s4 1934713408
  %v4338 = vunpack.c.0.s8 %v4337
  %v4339 = vperm.slane %v4331, %v4338
  %v4340 = vrot.slane %v4303, 4
  %v4341 = vsel %vm1008, %v4340, %v4291
  %v4342 = vrot.slane %v4291, 4
  %v4343 = vsel %vm1008, %v4303, %v4342
  %v4345 = vunpack.c.l.s4 1934713408
  %v4346 = vunpack.c.0.s8 %v4345
  %v4347 = vperm.slane %v4341, %v4346
  %v4349 = vunpack.c.l.s4 1934713408
  %v4350 = vunpack.c.0.s8 %v4349
  %v4351 = vperm.slane %v4343, %v4350
  %v4352 = vrot.slane %v4335, 4
  %v4353 = vsel %vm1008, %v4352, %v4311
  %v4354 = vrot.slane %v4311, 4
  %v4355 = vsel %vm1008, %v4335, %v4354
  %v4356 = vrot.slane %v4339, 4
  %v4357 = vsel %vm1008, %v4356, %v4315
  %v4358 = vrot.slane %v4315, 4
  %v4359 = vsel %vm1008, %v4339, %v4358
  %v4360 = vrot.slane %v4347, 4
  %v4361 = vsel %vm1008, %v4360, %v4323
  %v4362 = vrot.slane %v4323, 4
  %v4363 = vsel %vm1008, %v4347, %v4362
  %v4364 = vrot.slane %v4351, 4
  %v4365 = vsel %vm1008, %v4364, %v4327
  %v4366 = vrot.slane %v4327, 4
  %v4367 = vsel %vm1008, %v4351, %v4366
  %v4368 = vsel %vm1008, %v1170, %v1151
  %v4370 = vunpack.c.l.s4 1983009808
  %v4371 = vunpack.c.0.s8 %v4370
  %v4372 = vperm.slane %v4368, %v4371
  %v4373 = vrot.slane %v1171, 4
  %v4374 = vsel %vm1008, %v4373, %v1169
  %v4376 = vunpack.c.l.s4 1983009808
  %v4377 = vunpack.c.0.s8 %v4376
  %v4378 = vperm.slane %v4374, %v4377
  %v4379 = vsel %vm1008, %v1174, %v1163
  %v4381 = vunpack.c.l.s4 1983009808
  %v4382 = vunpack.c.0.s8 %v4381
  %v4383 = vperm.slane %v4379, %v4382
  %v4384 = vrot.slane %v1175, 4
  %v4385 = vsel %vm1008, %v4384, %v1173
  %v4387 = vunpack.c.l.s4 1983009808
  %v4388 = vunpack.c.0.s8 %v4387
  %v4389 = vperm.slane %v4385, %v4388
  %v4390 = vrot.slane %v4378, 4
  %v4391 = vsel %vm1008, %v4390, %v4372
  %v4392 = vrot.slane %v4372, 4
  %v4393 = vsel %vm1008, %v4378, %v4392
  %v4395 = vunpack.c.l.s4 1934713408
  %v4396 = vunpack.c.0.s8 %v4395
  %v4397 = vperm.slane %v4391, %v4396
  %v4399 = vunpack.c.l.s4 1934713408
  %v4400 = vunpack.c.0.s8 %v4399
  %v4401 = vperm.slane %v4393, %v4400
  %v4402 = vrot.slane %v4389, 4
  %v4403 = vsel %vm1008, %v4402, %v4383
  %v4404 = vrot.slane %v4383, 4
  %v4405 = vsel %vm1008, %v4389, %v4404
  %v4407 = vunpack.c.l.s4 1934713408
  %v4408 = vunpack.c.0.s8 %v4407
  %v4409 = vperm.slane %v4403, %v4408
  %v4411 = vunpack.c.l.s4 1934713408
  %v4412 = vunpack.c.0.s8 %v4411
  %v4413 = vperm.slane %v4405, %v4412
  %v4414 = vrot.slane %v4409, 4
  %v4415 = vsel %vm1008, %v4414, %v4397
  %v4416 = vrot.slane %v4397, 4
  %v4417 = vsel %vm1008, %v4409, %v4416
  %v4418 = vrot.slane %v4413, 4
  %v4419 = vsel %vm1008, %v4418, %v4401
  %v4420 = vrot.slane %v4401, 4
  %v4421 = vsel %vm1008, %v4413, %v4420
  %v4422 = vsel %vm1008, %v1338, %v1319
  %v4424 = vunpack.c.l.s4 1983009808
  %v4425 = vunpack.c.0.s8 %v4424
  %v4426 = vperm.slane %v4422, %v4425
  %v4427 = vrot.slane %v1339, 4
  %v4428 = vsel %vm1008, %v4427, %v1337
  %v4430 = vunpack.c.l.s4 1983009808
  %v4431 = vunpack.c.0.s8 %v4430
  %v4432 = vperm.slane %v4428, %v4431
  %v4433 = vsel %vm1008, %v1342, %v1331
  %v4435 = vunpack.c.l.s4 1983009808
  %v4436 = vunpack.c.0.s8 %v4435
  %v4437 = vperm.slane %v4433, %v4436
  %v4438 = vrot.slane %v1343, 4
  %v4439 = vsel %vm1008, %v4438, %v1341
  %v4441 = vunpack.c.l.s4 1983009808
  %v4442 = vunpack.c.0.s8 %v4441
  %v4443 = vperm.slane %v4439, %v4442
  %v4444 = vrot.slane %v4432, 4
  %v4445 = vsel %vm1008, %v4444, %v4426
  %v4446 = vrot.slane %v4426, 4
  %v4447 = vsel %vm1008, %v4432, %v4446
  %v4449 = vunpack.c.l.s4 1934713408
  %v4450 = vunpack.c.0.s8 %v4449
  %v4451 = vperm.slane %v4445, %v4450
  %v4453 = vunpack.c.l.s4 1934713408
  %v4454 = vunpack.c.0.s8 %v4453
  %v4455 = vperm.slane %v4447, %v4454
  %v4456 = vrot.slane %v4443, 4
  %v4457 = vsel %vm1008, %v4456, %v4437
  %v4458 = vrot.slane %v4437, 4
  %v4459 = vsel %vm1008, %v4443, %v4458
  %v4461 = vunpack.c.l.s4 1934713408
  %v4462 = vunpack.c.0.s8 %v4461
  %v4463 = vperm.slane %v4457, %v4462
  %v4465 = vunpack.c.l.s4 1934713408
  %v4466 = vunpack.c.0.s8 %v4465
  %v4467 = vperm.slane %v4459, %v4466
  %v4468 = vrot.slane %v4463, 4
  %v4469 = vsel %vm1008, %v4468, %v4451
  %v4470 = vrot.slane %v4451, 4
  %v4471 = vsel %vm1008, %v4463, %v4470
  %v4472 = vrot.slane %v4467, 4
  %v4473 = vsel %vm1008, %v4472, %v4455
  %v4474 = vrot.slane %v4455, 4
  %v4475 = vsel %vm1008, %v4467, %v4474
  %v4476 = vsel %vm1008, %v1506, %v1487
  %v4478 = vunpack.c.l.s4 1983009808
  %v4479 = vunpack.c.0.s8 %v4478
  %v4480 = vperm.slane %v4476, %v4479
  %v4481 = vrot.slane %v1507, 4
  %v4482 = vsel %vm1008, %v4481, %v1505
  %v4484 = vunpack.c.l.s4 1983009808
  %v4485 = vunpack.c.0.s8 %v4484
  %v4486 = vperm.slane %v4482, %v4485
  %v4487 = vsel %vm1008, %v1510, %v1499
  %v4489 = vunpack.c.l.s4 1983009808
  %v4490 = vunpack.c.0.s8 %v4489
  %v4491 = vperm.slane %v4487, %v4490
  %v4492 = vrot.slane %v1511, 4
  %v4493 = vsel %vm1008, %v4492, %v1509
  %v4495 = vunpack.c.l.s4 1983009808
  %v4496 = vunpack.c.0.s8 %v4495
  %v4497 = vperm.slane %v4493, %v4496
  %v4498 = vrot.slane %v4486, 4
  %v4499 = vsel %vm1008, %v4498, %v4480
  %v4500 = vrot.slane %v4480, 4
  %v4501 = vsel %vm1008, %v4486, %v4500
  %v4503 = vunpack.c.l.s4 1934713408
  %v4504 = vunpack.c.0.s8 %v4503
  %v4505 = vperm.slane %v4499, %v4504
  %v4507 = vunpack.c.l.s4 1934713408
  %v4508 = vunpack.c.0.s8 %v4507
  %v4509 = vperm.slane %v4501, %v4508
  %v4510 = vrot.slane %v4497, 4
  %v4511 = vsel %vm1008, %v4510, %v4491
  %v4512 = vrot.slane %v4491, 4
  %v4513 = vsel %vm1008, %v4497, %v4512
  %v4515 = vunpack.c.l.s4 1934713408
  %v4516 = vunpack.c.0.s8 %v4515
  %v4517 = vperm.slane %v4511, %v4516
  %v4519 = vunpack.c.l.s4 1934713408
  %v4520 = vunpack.c.0.s8 %v4519
  %v4521 = vperm.slane %v4513, %v4520
  %v4522 = vrot.slane %v4517, 4
  %v4523 = vsel %vm1008, %v4522, %v4505
  %v4524 = vrot.slane %v4505, 4
  %v4525 = vsel %vm1008, %v4517, %v4524
  %v4526 = vrot.slane %v4521, 4
  %v4527 = vsel %vm1008, %v4526, %v4509
  %v4528 = vrot.slane %v4509, 4
  %v4529 = vsel %vm1008, %v4521, %v4528
  %v4530 = vsel %vm1008, %v1674, %v1655
  %v4532 = vunpack.c.l.s4 1983009808
  %v4533 = vunpack.c.0.s8 %v4532
  %v4534 = vperm.slane %v4530, %v4533
  %v4535 = vrot.slane %v1675, 4
  %v4536 = vsel %vm1008, %v4535, %v1673
  %v4538 = vunpack.c.l.s4 1983009808
  %v4539 = vunpack.c.0.s8 %v4538
  %v4540 = vperm.slane %v4536, %v4539
  %v4541 = vsel %vm1008, %v1678, %v1667
  %v4543 = vunpack.c.l.s4 1983009808
  %v4544 = vunpack.c.0.s8 %v4543
  %v4545 = vperm.slane %v4541, %v4544
  %v4546 = vrot.slane %v1679, 4
  %v4547 = vsel %vm1008, %v4546, %v1677
  %v4549 = vunpack.c.l.s4 1983009808
  %v4550 = vunpack.c.0.s8 %v4549
  %v4551 = vperm.slane %v4547, %v4550
  %v4552 = vrot.slane %v4540, 4
  %v4553 = vsel %vm1008, %v4552, %v4534
  %v4554 = vrot.slane %v4534, 4
  %v4555 = vsel %vm1008, %v4540, %v4554
  %v4557 = vunpack.c.l.s4 1934713408
  %v4558 = vunpack.c.0.s8 %v4557
  %v4559 = vperm.slane %v4553, %v4558
  %v4561 = vunpack.c.l.s4 1934713408
  %v4562 = vunpack.c.0.s8 %v4561
  %v4563 = vperm.slane %v4555, %v4562
  %v4564 = vrot.slane %v4551, 4
  %v4565 = vsel %vm1008, %v4564, %v4545
  %v4566 = vrot.slane %v4545, 4
  %v4567 = vsel %vm1008, %v4551, %v4566
  %v4569 = vunpack.c.l.s4 1934713408
  %v4570 = vunpack.c.0.s8 %v4569
  %v4571 = vperm.slane %v4565, %v4570
  %v4573 = vunpack.c.l.s4 1934713408
  %v4574 = vunpack.c.0.s8 %v4573
  %v4575 = vperm.slane %v4567, %v4574
  %v4576 = vrot.slane %v4571, 4
  %v4577 = vsel %vm1008, %v4576, %v4559
  %v4578 = vrot.slane %v4559, 4
  %v4579 = vsel %vm1008, %v4571, %v4578
  %v4580 = vrot.slane %v4575, 4
  %v4581 = vsel %vm1008, %v4580, %v4563
  %v4582 = vrot.slane %v4563, 4
  %v4583 = vsel %vm1008, %v4575, %v4582
  %v4584 = vsel %vm1008, %v1842, %v1823
  %v4586 = vunpack.c.l.s4 1983009808
  %v4587 = vunpack.c.0.s8 %v4586
  %v4588 = vperm.slane %v4584, %v4587
  %v4589 = vrot.slane %v1843, 4
  %v4590 = vsel %vm1008, %v4589, %v1841
  %v4592 = vunpack.c.l.s4 1983009808
  %v4593 = vunpack.c.0.s8 %v4592
  %v4594 = vperm.slane %v4590, %v4593
  %v4595 = vsel %vm1008, %v1846, %v1835
  %v4597 = vunpack.c.l.s4 1983009808
  %v4598 = vunpack.c.0.s8 %v4597
  %v4599 = vperm.slane %v4595, %v4598
  %v4600 = vrot.slane %v1847, 4
  %v4601 = vsel %vm1008, %v4600, %v1845
  %v4603 = vunpack.c.l.s4 1983009808
  %v4604 = vunpack.c.0.s8 %v4603
  %v4605 = vperm.slane %v4601, %v4604
  %v4606 = vrot.slane %v4594, 4
  %v4607 = vsel %vm1008, %v4606, %v4588
  %v4608 = vrot.slane %v4588, 4
  %v4609 = vsel %vm1008, %v4594, %v4608
  %v4611 = vunpack.c.l.s4 1934713408
  %v4612 = vunpack.c.0.s8 %v4611
  %v4613 = vperm.slane %v4607, %v4612
  %v4615 = vunpack.c.l.s4 1934713408
  %v4616 = vunpack.c.0.s8 %v4615
  %v4617 = vperm.slane %v4609, %v4616
  %v4618 = vrot.slane %v4605, 4
  %v4619 = vsel %vm1008, %v4618, %v4599
  %v4620 = vrot.slane %v4599, 4
  %v4621 = vsel %vm1008, %v4605, %v4620
  %v4623 = vunpack.c.l.s4 1934713408
  %v4624 = vunpack.c.0.s8 %v4623
  %v4625 = vperm.slane %v4619, %v4624
  %v4627 = vunpack.c.l.s4 1934713408
  %v4628 = vunpack.c.0.s8 %v4627
  %v4629 = vperm.slane %v4621, %v4628
  %v4630 = vrot.slane %v4625, 4
  %v4631 = vsel %vm1008, %v4630, %v4613
  %v4632 = vrot.slane %v4613, 4
  %v4633 = vsel %vm1008, %v4625, %v4632
  %v4634 = vrot.slane %v4629, 4
  %v4635 = vsel %vm1008, %v4634, %v4617
  %v4636 = vrot.slane %v4617, 4
  %v4637 = vsel %vm1008, %v4629, %v4636
  %v4638 = vsel %vm1008, %v2010, %v1991
  %v4640 = vunpack.c.l.s4 1983009808
  %v4641 = vunpack.c.0.s8 %v4640
  %v4642 = vperm.slane %v4638, %v4641
  %v4643 = vrot.slane %v2011, 4
  %v4644 = vsel %vm1008, %v4643, %v2009
  %v4646 = vunpack.c.l.s4 1983009808
  %v4647 = vunpack.c.0.s8 %v4646
  %v4648 = vperm.slane %v4644, %v4647
  %v4649 = vsel %vm1008, %v2014, %v2003
  %v4651 = vunpack.c.l.s4 1983009808
  %v4652 = vunpack.c.0.s8 %v4651
  %v4653 = vperm.slane %v4649, %v4652
  %v4654 = vrot.slane %v2015, 4
  %v4655 = vsel %vm1008, %v4654, %v2013
  %v4657 = vunpack.c.l.s4 1983009808
  %v4658 = vunpack.c.0.s8 %v4657
  %v4659 = vperm.slane %v4655, %v4658
  %v4660 = vrot.slane %v4648, 4
  %v4661 = vsel %vm1008, %v4660, %v4642
  %v4662 = vrot.slane %v4642, 4
  %v4663 = vsel %vm1008, %v4648, %v4662
  %v4665 = vunpack.c.l.s4 1934713408
  %v4666 = vunpack.c.0.s8 %v4665
  %v4667 = vperm.slane %v4661, %v4666
  %v4669 = vunpack.c.l.s4 1934713408
  %v4670 = vunpack.c.0.s8 %v4669
  %v4671 = vperm.slane %v4663, %v4670
  %v4672 = vrot.slane %v4659, 4
  %v4673 = vsel %vm1008, %v4672, %v4653
  %v4674 = vrot.slane %v4653, 4
  %v4675 = vsel %vm1008, %v4659, %v4674
  %v4677 = vunpack.c.l.s4 1934713408
  %v4678 = vunpack.c.0.s8 %v4677
  %v4679 = vperm.slane %v4673, %v4678
  %v4681 = vunpack.c.l.s4 1934713408
  %v4682 = vunpack.c.0.s8 %v4681
  %v4683 = vperm.slane %v4675, %v4682
  %v4684 = vrot.slane %v4679, 4
  %v4685 = vsel %vm1008, %v4684, %v4667
  %v4686 = vrot.slane %v4667, 4
  %v4687 = vsel %vm1008, %v4679, %v4686
  %v4688 = vrot.slane %v4683, 4
  %v4689 = vsel %vm1008, %v4688, %v4671
  %v4690 = vrot.slane %v4671, 4
  %v4691 = vsel %vm1008, %v4683, %v4690
  %v4692 = vsel %vm1008, %v2178, %v2159
  %v4694 = vunpack.c.l.s4 1983009808
  %v4695 = vunpack.c.0.s8 %v4694
  %v4696 = vperm.slane %v4692, %v4695
  %v4697 = vrot.slane %v2179, 4
  %v4698 = vsel %vm1008, %v4697, %v2177
  %v4700 = vunpack.c.l.s4 1983009808
  %v4701 = vunpack.c.0.s8 %v4700
  %v4702 = vperm.slane %v4698, %v4701
  %v4703 = vsel %vm1008, %v2182, %v2171
  %v4705 = vunpack.c.l.s4 1983009808
  %v4706 = vunpack.c.0.s8 %v4705
  %v4707 = vperm.slane %v4703, %v4706
  %v4708 = vrot.slane %v2183, 4
  %v4709 = vsel %vm1008, %v4708, %v2181
  %v4711 = vunpack.c.l.s4 1983009808
  %v4712 = vunpack.c.0.s8 %v4711
  %v4713 = vperm.slane %v4709, %v4712
  %v4714 = vrot.slane %v4702, 4
  %v4715 = vsel %vm1008, %v4714, %v4696
  %v4716 = vrot.slane %v4696, 4
  %v4717 = vsel %vm1008, %v4702, %v4716
  %v4719 = vunpack.c.l.s4 1934713408
  %v4720 = vunpack.c.0.s8 %v4719
  %v4721 = vperm.slane %v4715, %v4720
  %v4723 = vunpack.c.l.s4 1934713408
  %v4724 = vunpack.c.0.s8 %v4723
  %v4725 = vperm.slane %v4717, %v4724
  %v4726 = vrot.slane %v4713, 4
  %v4727 = vsel %vm1008, %v4726, %v4707
  %v4728 = vrot.slane %v4707, 4
  %v4729 = vsel %vm1008, %v4713, %v4728
  %v4731 = vunpack.c.l.s4 1934713408
  %v4732 = vunpack.c.0.s8 %v4731
  %v4733 = vperm.slane %v4727, %v4732
  %v4735 = vunpack.c.l.s4 1934713408
  %v4736 = vunpack.c.0.s8 %v4735
  %v4737 = vperm.slane %v4729, %v4736
  %v4738 = vrot.slane %v4733, 4
  %v4739 = vsel %vm1008, %v4738, %v4721
  %v4740 = vrot.slane %v4721, 4
  %v4741 = vsel %vm1008, %v4733, %v4740
  %v4742 = vrot.slane %v4737, 4
  %v4743 = vsel %vm1008, %v4742, %v4725
  %v4744 = vrot.slane %v4725, 4
  %v4745 = vsel %vm1008, %v4737, %v4744
  %v4746 = vsel %vm1008, %v2346, %v2327
  %v4748 = vunpack.c.l.s4 1983009808
  %v4749 = vunpack.c.0.s8 %v4748
  %v4750 = vperm.slane %v4746, %v4749
  %v4751 = vrot.slane %v2347, 4
  %v4752 = vsel %vm1008, %v4751, %v2345
  %v4754 = vunpack.c.l.s4 1983009808
  %v4755 = vunpack.c.0.s8 %v4754
  %v4756 = vperm.slane %v4752, %v4755
  %v4757 = vsel %vm1008, %v2350, %v2339
  %v4759 = vunpack.c.l.s4 1983009808
  %v4760 = vunpack.c.0.s8 %v4759
  %v4761 = vperm.slane %v4757, %v4760
  %v4762 = vrot.slane %v2351, 4
  %v4763 = vsel %vm1008, %v4762, %v2349
  %v4765 = vunpack.c.l.s4 1983009808
  %v4766 = vunpack.c.0.s8 %v4765
  %v4767 = vperm.slane %v4763, %v4766
  %v4768 = vrot.slane %v4756, 4
  %v4769 = vsel %vm1008, %v4768, %v4750
  %v4770 = vrot.slane %v4750, 4
  %v4771 = vsel %vm1008, %v4756, %v4770
  %v4773 = vunpack.c.l.s4 1934713408
  %v4774 = vunpack.c.0.s8 %v4773
  %v4775 = vperm.slane %v4769, %v4774
  %v4777 = vunpack.c.l.s4 1934713408
  %v4778 = vunpack.c.0.s8 %v4777
  %v4779 = vperm.slane %v4771, %v4778
  %v4780 = vrot.slane %v4767, 4
  %v4781 = vsel %vm1008, %v4780, %v4761
  %v4782 = vrot.slane %v4761, 4
  %v4783 = vsel %vm1008, %v4767, %v4782
  %v4785 = vunpack.c.l.s4 1934713408
  %v4786 = vunpack.c.0.s8 %v4785
  %v4787 = vperm.slane %v4781, %v4786
  %v4789 = vunpack.c.l.s4 1934713408
  %v4790 = vunpack.c.0.s8 %v4789
  %v4791 = vperm.slane %v4783, %v4790
  %v4792 = vrot.slane %v4787, 4
  %v4793 = vsel %vm1008, %v4792, %v4775
  %v4794 = vrot.slane %v4775, 4
  %v4795 = vsel %vm1008, %v4787, %v4794
  %v4796 = vrot.slane %v4791, 4
  %v4797 = vsel %vm1008, %v4796, %v4779
  %v4798 = vrot.slane %v4779, 4
  %v4799 = vsel %vm1008, %v4791, %v4798
  %v4800 = vsel %vm1008, %v2514, %v2495
  %v4802 = vunpack.c.l.s4 1983009808
  %v4803 = vunpack.c.0.s8 %v4802
  %v4804 = vperm.slane %v4800, %v4803
  %v4805 = vrot.slane %v2515, 4
  %v4806 = vsel %vm1008, %v4805, %v2513
  %v4808 = vunpack.c.l.s4 1983009808
  %v4809 = vunpack.c.0.s8 %v4808
  %v4810 = vperm.slane %v4806, %v4809
  %v4811 = vsel %vm1008, %v2518, %v2507
  %v4813 = vunpack.c.l.s4 1983009808
  %v4814 = vunpack.c.0.s8 %v4813
  %v4815 = vperm.slane %v4811, %v4814
  %v4816 = vrot.slane %v2519, 4
  %v4817 = vsel %vm1008, %v4816, %v2517
  %v4819 = vunpack.c.l.s4 1983009808
  %v4820 = vunpack.c.0.s8 %v4819
  %v4821 = vperm.slane %v4817, %v4820
  %v4822 = vrot.slane %v4810, 4
  %v4823 = vsel %vm1008, %v4822, %v4804
  %v4824 = vrot.slane %v4804, 4
  %v4825 = vsel %vm1008, %v4810, %v4824
  %v4827 = vunpack.c.l.s4 1934713408
  %v4828 = vunpack.c.0.s8 %v4827
  %v4829 = vperm.slane %v4823, %v4828
  %v4831 = vunpack.c.l.s4 1934713408
  %v4832 = vunpack.c.0.s8 %v4831
  %v4833 = vperm.slane %v4825, %v4832
  %v4834 = vrot.slane %v4821, 4
  %v4835 = vsel %vm1008, %v4834, %v4815
  %v4836 = vrot.slane %v4815, 4
  %v4837 = vsel %vm1008, %v4821, %v4836
  %v4839 = vunpack.c.l.s4 1934713408
  %v4840 = vunpack.c.0.s8 %v4839
  %v4841 = vperm.slane %v4835, %v4840
  %v4843 = vunpack.c.l.s4 1934713408
  %v4844 = vunpack.c.0.s8 %v4843
  %v4845 = vperm.slane %v4837, %v4844
  %v4846 = vrot.slane %v4841, 4
  %v4847 = vsel %vm1008, %v4846, %v4829
  %v4848 = vrot.slane %v4829, 4
  %v4849 = vsel %vm1008, %v4841, %v4848
  %v4850 = vrot.slane %v4845, 4
  %v4851 = vsel %vm1008, %v4850, %v4833
  %v4852 = vrot.slane %v4833, 4
  %v4853 = vsel %vm1008, %v4845, %v4852
  %v4854 = vsel %vm1008, %v2682, %v2663
  %v4856 = vunpack.c.l.s4 1983009808
  %v4857 = vunpack.c.0.s8 %v4856
  %v4858 = vperm.slane %v4854, %v4857
  %v4859 = vrot.slane %v2683, 4
  %v4860 = vsel %vm1008, %v4859, %v2681
  %v4862 = vunpack.c.l.s4 1983009808
  %v4863 = vunpack.c.0.s8 %v4862
  %v4864 = vperm.slane %v4860, %v4863
  %v4865 = vsel %vm1008, %v2686, %v2675
  %v4867 = vunpack.c.l.s4 1983009808
  %v4868 = vunpack.c.0.s8 %v4867
  %v4869 = vperm.slane %v4865, %v4868
  %v4870 = vrot.slane %v2687, 4
  %v4871 = vsel %vm1008, %v4870, %v2685
  %v4873 = vunpack.c.l.s4 1983009808
  %v4874 = vunpack.c.0.s8 %v4873
  %v4875 = vperm.slane %v4871, %v4874
  %v4876 = vrot.slane %v4864, 4
  %v4877 = vsel %vm1008, %v4876, %v4858
  %v4878 = vrot.slane %v4858, 4
  %v4879 = vsel %vm1008, %v4864, %v4878
  %v4881 = vunpack.c.l.s4 1934713408
  %v4882 = vunpack.c.0.s8 %v4881
  %v4883 = vperm.slane %v4877, %v4882
  %v4885 = vunpack.c.l.s4 1934713408
  %v4886 = vunpack.c.0.s8 %v4885
  %v4887 = vperm.slane %v4879, %v4886
  %v4888 = vrot.slane %v4875, 4
  %v4889 = vsel %vm1008, %v4888, %v4869
  %v4890 = vrot.slane %v4869, 4
  %v4891 = vsel %vm1008, %v4875, %v4890
  %v4893 = vunpack.c.l.s4 1934713408
  %v4894 = vunpack.c.0.s8 %v4893
  %v4895 = vperm.slane %v4889, %v4894
  %v4897 = vunpack.c.l.s4 1934713408
  %v4898 = vunpack.c.0.s8 %v4897
  %v4899 = vperm.slane %v4891, %v4898
  %v4900 = vrot.slane %v4895, 4
  %v4901 = vsel %vm1008, %v4900, %v4883
  %v4902 = vrot.slane %v4883, 4
  %v4903 = vsel %vm1008, %v4895, %v4902
  %v4904 = vrot.slane %v4899, 4
  %v4905 = vsel %vm1008, %v4904, %v4887
  %v4906 = vrot.slane %v4887, 4
  %v4907 = vsel %vm1008, %v4899, %v4906
  %v4908 = vsel %vm1008, %v2850, %v2831
  %v4910 = vunpack.c.l.s4 1983009808
  %v4911 = vunpack.c.0.s8 %v4910
  %v4912 = vperm.slane %v4908, %v4911
  %v4913 = vrot.slane %v2851, 4
  %v4914 = vsel %vm1008, %v4913, %v2849
  %v4916 = vunpack.c.l.s4 1983009808
  %v4917 = vunpack.c.0.s8 %v4916
  %v4918 = vperm.slane %v4914, %v4917
  %v4919 = vsel %vm1008, %v2854, %v2843
  %v4921 = vunpack.c.l.s4 1983009808
  %v4922 = vunpack.c.0.s8 %v4921
  %v4923 = vperm.slane %v4919, %v4922
  %v4924 = vrot.slane %v2855, 4
  %v4925 = vsel %vm1008, %v4924, %v2853
  %v4927 = vunpack.c.l.s4 1983009808
  %v4928 = vunpack.c.0.s8 %v4927
  %v4929 = vperm.slane %v4925, %v4928
  %v4930 = vrot.slane %v4918, 4
  %v4931 = vsel %vm1008, %v4930, %v4912
  %v4932 = vrot.slane %v4912, 4
  %v4933 = vsel %vm1008, %v4918, %v4932
  %v4935 = vunpack.c.l.s4 1934713408
  %v4936 = vunpack.c.0.s8 %v4935
  %v4937 = vperm.slane %v4931, %v4936
  %v4939 = vunpack.c.l.s4 1934713408
  %v4940 = vunpack.c.0.s8 %v4939
  %v4941 = vperm.slane %v4933, %v4940
  %v4942 = vrot.slane %v4929, 4
  %v4943 = vsel %vm1008, %v4942, %v4923
  %v4944 = vrot.slane %v4923, 4
  %v4945 = vsel %vm1008, %v4929, %v4944
  %v4947 = vunpack.c.l.s4 1934713408
  %v4948 = vunpack.c.0.s8 %v4947
  %v4949 = vperm.slane %v4943, %v4948
  %v4951 = vunpack.c.l.s4 1934713408
  %v4952 = vunpack.c.0.s8 %v4951
  %v4953 = vperm.slane %v4945, %v4952
  %v4954 = vrot.slane %v4949, 4
  %v4955 = vsel %vm1008, %v4954, %v4937
  %v4956 = vrot.slane %v4937, 4
  %v4957 = vsel %vm1008, %v4949, %v4956
  %v4958 = vrot.slane %v4953, 4
  %v4959 = vsel %vm1008, %v4958, %v4941
  %v4960 = vrot.slane %v4941, 4
  %v4961 = vsel %vm1008, %v4953, %v4960
  %v4962 = vsel %vm1008, %v3018, %v2999
  %v4964 = vunpack.c.l.s4 1983009808
  %v4965 = vunpack.c.0.s8 %v4964
  %v4966 = vperm.slane %v4962, %v4965
  %v4967 = vrot.slane %v3019, 4
  %v4968 = vsel %vm1008, %v4967, %v3017
  %v4970 = vunpack.c.l.s4 1983009808
  %v4971 = vunpack.c.0.s8 %v4970
  %v4972 = vperm.slane %v4968, %v4971
  %v4973 = vsel %vm1008, %v3022, %v3011
  %v4975 = vunpack.c.l.s4 1983009808
  %v4976 = vunpack.c.0.s8 %v4975
  %v4977 = vperm.slane %v4973, %v4976
  %v4978 = vrot.slane %v3023, 4
  %v4979 = vsel %vm1008, %v4978, %v3021
  %v4981 = vunpack.c.l.s4 1983009808
  %v4982 = vunpack.c.0.s8 %v4981
  %v4983 = vperm.slane %v4979, %v4982
  %v4984 = vrot.slane %v4972, 4
  %v4985 = vsel %vm1008, %v4984, %v4966
  %v4986 = vrot.slane %v4966, 4
  %v4987 = vsel %vm1008, %v4972, %v4986
  %v4989 = vunpack.c.l.s4 1934713408
  %v4990 = vunpack.c.0.s8 %v4989
  %v4991 = vperm.slane %v4985, %v4990
  %v4993 = vunpack.c.l.s4 1934713408
  %v4994 = vunpack.c.0.s8 %v4993
  %v4995 = vperm.slane %v4987, %v4994
  %v4996 = vrot.slane %v4983, 4
  %v4997 = vsel %vm1008, %v4996, %v4977
  %v4998 = vrot.slane %v4977, 4
  %v4999 = vsel %vm1008, %v4983, %v4998
  %v5001 = vunpack.c.l.s4 1934713408
  %v5002 = vunpack.c.0.s8 %v5001
  %v5003 = vperm.slane %v4997, %v5002
  %v5005 = vunpack.c.l.s4 1934713408
  %v5006 = vunpack.c.0.s8 %v5005
  %v5007 = vperm.slane %v4999, %v5006
  %v5008 = vrot.slane %v5003, 4
  %v5009 = vsel %vm1008, %v5008, %v4991
  %v5010 = vrot.slane %v4991, 4
  %v5011 = vsel %vm1008, %v5003, %v5010
  %v5012 = vrot.slane %v5007, 4
  %v5013 = vsel %vm1008, %v5012, %v4995
  %v5014 = vrot.slane %v4995, 4
  %v5015 = vsel %vm1008, %v5007, %v5014
  %vm5016 = vcmask 64512
  %v5018 = vsel %vm5016, %v3121, 0
  %v5021 = vsel %vm5016, %v3233, 0
  %v5024 = vsel %vm5016, %v3345, 0
  %v5027 = vsel %vm5016, %v3129, 0
  %v5030 = vsel %vm5016, %v3241, 0
  %v5033 = vsel %vm5016, %v3353, 0
  %5035 = vmatpush.xpose.msra.mxu0 0.0
  %5036 = vmatpush.xpose.msra.mxu0 0.0
  %5037 = vmatpush.xpose.msra.mxu0 0.0
  %5038 = vmatpush.xpose.msra.mxu0 0.0
  %5039 = vmatpush.xpose.msra.mxu0 0.0
  %5040 = vmatpush.xpose.msra.mxu0 0.0
  %5041 = vmatpush.xpose.msra.mxu0 0.0
  %5042 = vmatpush.xpose.msra.mxu0 0.0
  %5043 = vmatpush.xpose.msra.mxu0 0.0
  %5044 = vmatpush.xpose.msra.mxu0 0.0
  %5045 = vmatpush.xpose.msra.mxu0 0.0
  %5046 = vmatpush.xpose.msra.mxu0 0.0
  %5047 = vmatpush.xpose.msra.mxu0 0.0
  %5048 = vmatpush.xpose.msra.mxu0 %v5033
  %5049 = vmatpush.xpose.msra.mxu0 %v5030
  %5050 = vmatpush.xpose.msra.mxu0 %v5027
  %5051 = vmatmul.f32.gmra.mxu0 %v5018
  %v5052 = vpop.f32.mrf.mxu0
  %v5053 = vadd.f32 0.0, %v5052
  %5054 = vmatmul.f32.gmra.mxu0 %v5021
  %v5055 = vpop.f32.mrf.mxu0
  %v5056 = vadd.f32 0.0, %v5055
  %5057 = vmatmul.f32.gmra.mxu0 %v5024
  %v5058 = vpop.f32.mrf.mxu0
  %v5059 = vadd.f32 0.0, %v5058
  %5060 = vdwg.mxu0
  %v5062 = vsel %vm5016, %v3457, 0
  %v5065 = vsel %vm5016, %v3569, 0
  %v5068 = vsel %vm5016, %v3681, 0
  %v5071 = vsel %vm5016, %v3465, 0
  %v5074 = vsel %vm5016, %v3577, 0
  %v5077 = vsel %vm5016, %v3689, 0
  %5079 = vmatpush.xpose.msra.mxu0 0.0
  %5080 = vmatpush.xpose.msra.mxu0 0.0
  %5081 = vmatpush.xpose.msra.mxu0 0.0
  %5082 = vmatpush.xpose.msra.mxu0 0.0
  %5083 = vmatpush.xpose.msra.mxu0 0.0
  %5084 = vmatpush.xpose.msra.mxu0 0.0
  %5085 = vmatpush.xpose.msra.mxu0 0.0
  %5086 = vmatpush.xpose.msra.mxu0 0.0
  %5087 = vmatpush.xpose.msra.mxu0 0.0
  %5088 = vmatpush.xpose.msra.mxu0 0.0
  %5089 = vmatpush.xpose.msra.mxu0 0.0
  %5090 = vmatpush.xpose.msra.mxu0 0.0
  %5091 = vmatpush.xpose.msra.mxu0 0.0
  %5092 = vmatpush.xpose.msra.mxu0 %v5077
  %5093 = vmatpush.xpose.msra.mxu0 %v5074
  %5094 = vmatpush.xpose.msra.mxu0 %v5071
  %5095 = vmatmul.f32.gmra.mxu0 %v5062
  %v5096 = vpop.f32.mrf.mxu0
  %v5097 = vadd.f32 0.0, %v5096
  %5098 = vmatmul.f32.gmra.mxu0 %v5065
  %v5099 = vpop.f32.mrf.mxu0
  %v5100 = vadd.f32 0.0, %v5099
  %5101 = vmatmul.f32.gmra.mxu0 %v5068
  %v5102 = vpop.f32.mrf.mxu0
  %v5103 = vadd.f32 0.0, %v5102
  %5104 = vdwg.mxu0
  %v5106 = vsel %vm5016, %v3793, 0
  %v5109 = vsel %vm5016, %v3905, 0
  %v5112 = vsel %vm5016, %v4017, 0
  %v5115 = vsel %vm5016, %v3801, 0
  %v5118 = vsel %vm5016, %v3913, 0
  %v5121 = vsel %vm5016, %v4025, 0
  %5123 = vmatpush.xpose.msra.mxu0 0.0
  %5124 = vmatpush.xpose.msra.mxu0 0.0
  %5125 = vmatpush.xpose.msra.mxu0 0.0
  %5126 = vmatpush.xpose.msra.mxu0 0.0
  %5127 = vmatpush.xpose.msra.mxu0 0.0
  %5128 = vmatpush.xpose.msra.mxu0 0.0
  %5129 = vmatpush.xpose.msra.mxu0 0.0
  %5130 = vmatpush.xpose.msra.mxu0 0.0
  %5131 = vmatpush.xpose.msra.mxu0 0.0
  %5132 = vmatpush.xpose.msra.mxu0 0.0
  %5133 = vmatpush.xpose.msra.mxu0 0.0
  %5134 = vmatpush.xpose.msra.mxu0 0.0
  %5135 = vmatpush.xpose.msra.mxu0 0.0
  %5136 = vmatpush.xpose.msra.mxu0 %v5121
  %5137 = vmatpush.xpose.msra.mxu0 %v5118
  %5138 = vmatpush.xpose.msra.mxu0 %v5115
  %5139 = vmatmul.f32.gmra.mxu0 %v5106
  %v5140 = vpop.f32.mrf.mxu0
  %v5141 = vadd.f32 0.0, %v5140
  %5142 = vmatmul.f32.gmra.mxu0 %v5109
  %v5143 = vpop.f32.mrf.mxu0
  %v5144 = vadd.f32 0.0, %v5143
  %5145 = vmatmul.f32.gmra.mxu0 %v5112
  %v5146 = vpop.f32.mrf.mxu0
  %v5147 = vadd.f32 0.0, %v5146
  %5148 = vdwg.mxu0
  %v5150 = vsel %vm5016, %v4129, 0
  %v5153 = vsel %vm5016, %v4241, 0
  %v5156 = vsel %vm5016, %v4353, 0
  %v5159 = vsel %vm5016, %v4137, 0
  %v5162 = vsel %vm5016, %v4249, 0
  %v5165 = vsel %vm5016, %v4361, 0
  %5167 = vmatpush.xpose.msra.mxu0 0.0
  %5168 = vmatpush.xpose.msra.mxu0 0.0
  %5169 = vmatpush.xpose.msra.mxu0 0.0
  %5170 = vmatpush.xpose.msra.mxu0 0.0
  %5171 = vmatpush.xpose.msra.mxu0 0.0
  %5172 = vmatpush.xpose.msra.mxu0 0.0
  %5173 = vmatpush.xpose.msra.mxu0 0.0
  %5174 = vmatpush.xpose.msra.mxu0 0.0
  %5175 = vmatpush.xpose.msra.mxu0 0.0
  %5176 = vmatpush.xpose.msra.mxu0 0.0
  %5177 = vmatpush.xpose.msra.mxu0 0.0
  %5178 = vmatpush.xpose.msra.mxu0 0.0
  %5179 = vmatpush.xpose.msra.mxu0 0.0
  %5180 = vmatpush.xpose.msra.mxu0 %v5165
  %5181 = vmatpush.xpose.msra.mxu0 %v5162
  %5182 = vmatpush.xpose.msra.mxu0 %v5159
  %5183 = vmatmul.f32.gmra.mxu0 %v5150
  %v5184 = vpop.f32.mrf.mxu0
  %v5185 = vadd.f32 0.0, %v5184
  %5186 = vmatmul.f32.gmra.mxu0 %v5153
  %v5187 = vpop.f32.mrf.mxu0
  %v5188 = vadd.f32 0.0, %v5187
  %5189 = vmatmul.f32.gmra.mxu0 %v5156
  %v5190 = vpop.f32.mrf.mxu0
  %v5191 = vadd.f32 0.0, %v5190
  %5192 = vdwg.mxu0
  %v5194 = vsel %vm5016, %v3123, 0
  %v5197 = vsel %vm5016, %v3235, 0
  %v5200 = vsel %vm5016, %v3347, 0
  %v5203 = vsel %vm5016, %v3131, 0
  %v5206 = vsel %vm5016, %v3243, 0
  %v5209 = vsel %vm5016, %v3355, 0
  %5211 = vmatpush.xpose.msra.mxu0 0.0
  %5212 = vmatpush.xpose.msra.mxu0 0.0
  %5213 = vmatpush.xpose.msra.mxu0 0.0
  %5214 = vmatpush.xpose.msra.mxu0 0.0
  %5215 = vmatpush.xpose.msra.mxu0 0.0
  %5216 = vmatpush.xpose.msra.mxu0 0.0
  %5217 = vmatpush.xpose.msra.mxu0 0.0
  %5218 = vmatpush.xpose.msra.mxu0 0.0
  %5219 = vmatpush.xpose.msra.mxu0 0.0
  %5220 = vmatpush.xpose.msra.mxu0 0.0
  %5221 = vmatpush.xpose.msra.mxu0 0.0
  %5222 = vmatpush.xpose.msra.mxu0 0.0
  %5223 = vmatpush.xpose.msra.mxu0 0.0
  %5224 = vmatpush.xpose.msra.mxu0 %v5209
  %5225 = vmatpush.xpose.msra.mxu0 %v5206
  %5226 = vmatpush.xpose.msra.mxu0 %v5203
  %5227 = vmatmul.f32.gmra.mxu0 %v5194
  %v5228 = vpop.f32.mrf.mxu0
  %v5229 = vadd.f32 0.0, %v5228
  %5230 = vmatmul.f32.gmra.mxu0 %v5197
  %v5231 = vpop.f32.mrf.mxu0
  %v5232 = vadd.f32 0.0, %v5231
  %5233 = vmatmul.f32.gmra.mxu0 %v5200
  %v5234 = vpop.f32.mrf.mxu0
  %v5235 = vadd.f32 0.0, %v5234
  %5236 = vdwg.mxu0
  %v5238 = vsel %vm5016, %v3459, 0
  %v5241 = vsel %vm5016, %v3571, 0
  %v5244 = vsel %vm5016, %v3683, 0
  %v5247 = vsel %vm5016, %v3467, 0
  %v5250 = vsel %vm5016, %v3579, 0
  %v5253 = vsel %vm5016, %v3691, 0
  %5255 = vmatpush.xpose.msra.mxu0 0.0
  %5256 = vmatpush.xpose.msra.mxu0 0.0
  %5257 = vmatpush.xpose.msra.mxu0 0.0
  %5258 = vmatpush.xpose.msra.mxu0 0.0
  %5259 = vmatpush.xpose.msra.mxu0 0.0
  %5260 = vmatpush.xpose.msra.mxu0 0.0
  %5261 = vmatpush.xpose.msra.mxu0 0.0
  %5262 = vmatpush.xpose.msra.mxu0 0.0
  %5263 = vmatpush.xpose.msra.mxu0 0.0
  %5264 = vmatpush.xpose.msra.mxu0 0.0
  %5265 = vmatpush.xpose.msra.mxu0 0.0
  %5266 = vmatpush.xpose.msra.mxu0 0.0
  %5267 = vmatpush.xpose.msra.mxu0 0.0
  %5268 = vmatpush.xpose.msra.mxu0 %v5253
  %5269 = vmatpush.xpose.msra.mxu0 %v5250
  %5270 = vmatpush.xpose.msra.mxu0 %v5247
  %5271 = vmatmul.f32.gmra.mxu0 %v5238
  %v5272 = vpop.f32.mrf.mxu0
  %v5273 = vadd.f32 0.0, %v5272
  %5274 = vmatmul.f32.gmra.mxu0 %v5241
  %v5275 = vpop.f32.mrf.mxu0
  %v5276 = vadd.f32 0.0, %v5275
  %5277 = vmatmul.f32.gmra.mxu0 %v5244
  %v5278 = vpop.f32.mrf.mxu0
  %v5279 = vadd.f32 0.0, %v5278
  %5280 = vdwg.mxu0
  %v5282 = vsel %vm5016, %v3795, 0
  %v5285 = vsel %vm5016, %v3907, 0
  %v5288 = vsel %vm5016, %v4019, 0
  %v5291 = vsel %vm5016, %v3803, 0
  %v5294 = vsel %vm5016, %v3915, 0
  %v5297 = vsel %vm5016, %v4027, 0
  %5299 = vmatpush.xpose.msra.mxu0 0.0
  %5300 = vmatpush.xpose.msra.mxu0 0.0
  %5301 = vmatpush.xpose.msra.mxu0 0.0
  %5302 = vmatpush.xpose.msra.mxu0 0.0
  %5303 = vmatpush.xpose.msra.mxu0 0.0
  %5304 = vmatpush.xpose.msra.mxu0 0.0
  %5305 = vmatpush.xpose.msra.mxu0 0.0
  %5306 = vmatpush.xpose.msra.mxu0 0.0
  %5307 = vmatpush.xpose.msra.mxu0 0.0
  %5308 = vmatpush.xpose.msra.mxu0 0.0
  %5309 = vmatpush.xpose.msra.mxu0 0.0
  %5310 = vmatpush.xpose.msra.mxu0 0.0
  %5311 = vmatpush.xpose.msra.mxu0 0.0
  %5312 = vmatpush.xpose.msra.mxu0 %v5297
  %5313 = vmatpush.xpose.msra.mxu0 %v5294
  %5314 = vmatpush.xpose.msra.mxu0 %v5291
  %5315 = vmatmul.f32.gmra.mxu0 %v5282
  %v5316 = vpop.f32.mrf.mxu0
  %v5317 = vadd.f32 0.0, %v5316
  %5318 = vmatmul.f32.gmra.mxu0 %v5285
  %v5319 = vpop.f32.mrf.mxu0
  %v5320 = vadd.f32 0.0, %v5319
  %5321 = vmatmul.f32.gmra.mxu0 %v5288
  %v5322 = vpop.f32.mrf.mxu0
  %v5323 = vadd.f32 0.0, %v5322
  %5324 = vdwg.mxu0
  %v5326 = vsel %vm5016, %v4131, 0
  %v5329 = vsel %vm5016, %v4243, 0
  %v5332 = vsel %vm5016, %v4355, 0
  %v5335 = vsel %vm5016, %v4139, 0
  %v5338 = vsel %vm5016, %v4251, 0
  %v5341 = vsel %vm5016, %v4363, 0
  %5343 = vmatpush.xpose.msra.mxu0 0.0
  %5344 = vmatpush.xpose.msra.mxu0 0.0
  %5345 = vmatpush.xpose.msra.mxu0 0.0
  %5346 = vmatpush.xpose.msra.mxu0 0.0
  %5347 = vmatpush.xpose.msra.mxu0 0.0
  %5348 = vmatpush.xpose.msra.mxu0 0.0
  %5349 = vmatpush.xpose.msra.mxu0 0.0
  %5350 = vmatpush.xpose.msra.mxu0 0.0
  %5351 = vmatpush.xpose.msra.mxu0 0.0
  %5352 = vmatpush.xpose.msra.mxu0 0.0
  %5353 = vmatpush.xpose.msra.mxu0 0.0
  %5354 = vmatpush.xpose.msra.mxu0 0.0
  %5355 = vmatpush.xpose.msra.mxu0 0.0
  %5356 = vmatpush.xpose.msra.mxu0 %v5341
  %5357 = vmatpush.xpose.msra.mxu0 %v5338
  %5358 = vmatpush.xpose.msra.mxu0 %v5335
  %5359 = vmatmul.f32.gmra.mxu0 %v5326
  %v5360 = vpop.f32.mrf.mxu0
  %v5361 = vadd.f32 0.0, %v5360
  %5362 = vmatmul.f32.gmra.mxu0 %v5329
  %v5363 = vpop.f32.mrf.mxu0
  %v5364 = vadd.f32 0.0, %v5363
  %5365 = vmatmul.f32.gmra.mxu0 %v5332
  %v5366 = vpop.f32.mrf.mxu0
  %v5367 = vadd.f32 0.0, %v5366
  %5368 = vdwg.mxu0
  %v5370 = vsel %vm5016, %v3125, 0
  %v5373 = vsel %vm5016, %v3237, 0
  %v5376 = vsel %vm5016, %v3349, 0
  %v5379 = vsel %vm5016, %v3133, 0
  %v5382 = vsel %vm5016, %v3245, 0
  %v5385 = vsel %vm5016, %v3357, 0
  %5387 = vmatpush.xpose.msra.mxu0 0.0
  %5388 = vmatpush.xpose.msra.mxu0 0.0
  %5389 = vmatpush.xpose.msra.mxu0 0.0
  %5390 = vmatpush.xpose.msra.mxu0 0.0
  %5391 = vmatpush.xpose.msra.mxu0 0.0
  %5392 = vmatpush.xpose.msra.mxu0 0.0
  %5393 = vmatpush.xpose.msra.mxu0 0.0
  %5394 = vmatpush.xpose.msra.mxu0 0.0
  %5395 = vmatpush.xpose.msra.mxu0 0.0
  %5396 = vmatpush.xpose.msra.mxu0 0.0
  %5397 = vmatpush.xpose.msra.mxu0 0.0
  %5398 = vmatpush.xpose.msra.mxu0 0.0
  %5399 = vmatpush.xpose.msra.mxu0 0.0
  %5400 = vmatpush.xpose.msra.mxu0 %v5385
  %5401 = vmatpush.xpose.msra.mxu0 %v5382
  %5402 = vmatpush.xpose.msra.mxu0 %v5379
  %5403 = vmatmul.f32.gmra.mxu0 %v5370
  %v5404 = vpop.f32.mrf.mxu0
  %v5405 = vadd.f32 0.0, %v5404
  %5406 = vmatmul.f32.gmra.mxu0 %v5373
  %v5407 = vpop.f32.mrf.mxu0
  %v5408 = vadd.f32 0.0, %v5407
  %5409 = vmatmul.f32.gmra.mxu0 %v5376
  %v5410 = vpop.f32.mrf.mxu0
  %v5411 = vadd.f32 0.0, %v5410
  %5412 = vdwg.mxu0
  %v5414 = vsel %vm5016, %v3461, 0
  %v5417 = vsel %vm5016, %v3573, 0
  %v5420 = vsel %vm5016, %v3685, 0
  %v5423 = vsel %vm5016, %v3469, 0
  %v5426 = vsel %vm5016, %v3581, 0
  %v5429 = vsel %vm5016, %v3693, 0
  %5431 = vmatpush.xpose.msra.mxu0 0.0
  %5432 = vmatpush.xpose.msra.mxu0 0.0
  %5433 = vmatpush.xpose.msra.mxu0 0.0
  %5434 = vmatpush.xpose.msra.mxu0 0.0
  %5435 = vmatpush.xpose.msra.mxu0 0.0
  %5436 = vmatpush.xpose.msra.mxu0 0.0
  %5437 = vmatpush.xpose.msra.mxu0 0.0
  %5438 = vmatpush.xpose.msra.mxu0 0.0
  %5439 = vmatpush.xpose.msra.mxu0 0.0
  %5440 = vmatpush.xpose.msra.mxu0 0.0
  %5441 = vmatpush.xpose.msra.mxu0 0.0
  %5442 = vmatpush.xpose.msra.mxu0 0.0
  %5443 = vmatpush.xpose.msra.mxu0 0.0
  %5444 = vmatpush.xpose.msra.mxu0 %v5429
  %5445 = vmatpush.xpose.msra.mxu0 %v5426
  %5446 = vmatpush.xpose.msra.mxu0 %v5423
  %5447 = vmatmul.f32.gmra.mxu0 %v5414
  %v5448 = vpop.f32.mrf.mxu0
  %v5449 = vadd.f32 0.0, %v5448
  %5450 = vmatmul.f32.gmra.mxu0 %v5417
  %v5451 = vpop.f32.mrf.mxu0
  %v5452 = vadd.f32 0.0, %v5451
  %5453 = vmatmul.f32.gmra.mxu0 %v5420
  %v5454 = vpop.f32.mrf.mxu0
  %v5455 = vadd.f32 0.0, %v5454
  %5456 = vdwg.mxu0
  %v5458 = vsel %vm5016, %v3797, 0
  %v5461 = vsel %vm5016, %v3909, 0
  %v5464 = vsel %vm5016, %v4021, 0
  %v5467 = vsel %vm5016, %v3805, 0
  %v5470 = vsel %vm5016, %v3917, 0
  %v5473 = vsel %vm5016, %v4029, 0
  %5475 = vmatpush.xpose.msra.mxu0 0.0
  %5476 = vmatpush.xpose.msra.mxu0 0.0
  %5477 = vmatpush.xpose.msra.mxu0 0.0
  %5478 = vmatpush.xpose.msra.mxu0 0.0
  %5479 = vmatpush.xpose.msra.mxu0 0.0
  %5480 = vmatpush.xpose.msra.mxu0 0.0
  %5481 = vmatpush.xpose.msra.mxu0 0.0
  %5482 = vmatpush.xpose.msra.mxu0 0.0
  %5483 = vmatpush.xpose.msra.mxu0 0.0
  %5484 = vmatpush.xpose.msra.mxu0 0.0
  %5485 = vmatpush.xpose.msra.mxu0 0.0
  %5486 = vmatpush.xpose.msra.mxu0 0.0
  %5487 = vmatpush.xpose.msra.mxu0 0.0
  %5488 = vmatpush.xpose.msra.mxu0 %v5473
  %5489 = vmatpush.xpose.msra.mxu0 %v5470
  %5490 = vmatpush.xpose.msra.mxu0 %v5467
  %5491 = vmatmul.f32.gmra.mxu0 %v5458
  %v5492 = vpop.f32.mrf.mxu0
  %v5493 = vadd.f32 0.0, %v5492
  %5494 = vmatmul.f32.gmra.mxu0 %v5461
  %v5495 = vpop.f32.mrf.mxu0
  %v5496 = vadd.f32 0.0, %v5495
  %5497 = vmatmul.f32.gmra.mxu0 %v5464
  %v5498 = vpop.f32.mrf.mxu0
  %v5499 = vadd.f32 0.0, %v5498
  %5500 = vdwg.mxu0
  %v5502 = vsel %vm5016, %v4133, 0
  %v5505 = vsel %vm5016, %v4245, 0
  %v5508 = vsel %vm5016, %v4357, 0
  %v5511 = vsel %vm5016, %v4141, 0
  %v5514 = vsel %vm5016, %v4253, 0
  %v5517 = vsel %vm5016, %v4365, 0
  %5519 = vmatpush.xpose.msra.mxu0 0.0
  %5520 = vmatpush.xpose.msra.mxu0 0.0
  %5521 = vmatpush.xpose.msra.mxu0 0.0
  %5522 = vmatpush.xpose.msra.mxu0 0.0
  %5523 = vmatpush.xpose.msra.mxu0 0.0
  %5524 = vmatpush.xpose.msra.mxu0 0.0
  %5525 = vmatpush.xpose.msra.mxu0 0.0
  %5526 = vmatpush.xpose.msra.mxu0 0.0
  %5527 = vmatpush.xpose.msra.mxu0 0.0
  %5528 = vmatpush.xpose.msra.mxu0 0.0
  %5529 = vmatpush.xpose.msra.mxu0 0.0
  %5530 = vmatpush.xpose.msra.mxu0 0.0
  %5531 = vmatpush.xpose.msra.mxu0 0.0
  %5532 = vmatpush.xpose.msra.mxu0 %v5517
  %5533 = vmatpush.xpose.msra.mxu0 %v5514
  %5534 = vmatpush.xpose.msra.mxu0 %v5511
  %5535 = vmatmul.f32.gmra.mxu0 %v5502
  %v5536 = vpop.f32.mrf.mxu0
  %v5537 = vadd.f32 0.0, %v5536
  %5538 = vmatmul.f32.gmra.mxu0 %v5505
  %v5539 = vpop.f32.mrf.mxu0
  %v5540 = vadd.f32 0.0, %v5539
  %5541 = vmatmul.f32.gmra.mxu0 %v5508
  %v5542 = vpop.f32.mrf.mxu0
  %v5543 = vadd.f32 0.0, %v5542
  %5544 = vdwg.mxu0
  %v5546 = vsel %vm5016, %v3127, 0
  %v5549 = vsel %vm5016, %v3239, 0
  %v5552 = vsel %vm5016, %v3351, 0
  %v5555 = vsel %vm5016, %v3135, 0
  %v5558 = vsel %vm5016, %v3247, 0
  %v5561 = vsel %vm5016, %v3359, 0
  %5563 = vmatpush.xpose.msra.mxu0 0.0
  %5564 = vmatpush.xpose.msra.mxu0 0.0
  %5565 = vmatpush.xpose.msra.mxu0 0.0
  %5566 = vmatpush.xpose.msra.mxu0 0.0
  %5567 = vmatpush.xpose.msra.mxu0 0.0
  %5568 = vmatpush.xpose.msra.mxu0 0.0
  %5569 = vmatpush.xpose.msra.mxu0 0.0
  %5570 = vmatpush.xpose.msra.mxu0 0.0
  %5571 = vmatpush.xpose.msra.mxu0 0.0
  %5572 = vmatpush.xpose.msra.mxu0 0.0
  %5573 = vmatpush.xpose.msra.mxu0 0.0
  %5574 = vmatpush.xpose.msra.mxu0 0.0
  %5575 = vmatpush.xpose.msra.mxu0 0.0
  %5576 = vmatpush.xpose.msra.mxu0 %v5561
  %5577 = vmatpush.xpose.msra.mxu0 %v5558
  %5578 = vmatpush.xpose.msra.mxu0 %v5555
  %5579 = vmatmul.f32.gmra.mxu0 %v5546
  %v5580 = vpop.f32.mrf.mxu0
  %v5581 = vadd.f32 0.0, %v5580
  %5582 = vmatmul.f32.gmra.mxu0 %v5549
  %v5583 = vpop.f32.mrf.mxu0
  %v5584 = vadd.f32 0.0, %v5583
  %5585 = vmatmul.f32.gmra.mxu0 %v5552
  %v5586 = vpop.f32.mrf.mxu0
  %v5587 = vadd.f32 0.0, %v5586
  %5588 = vdwg.mxu0
  %v5590 = vsel %vm5016, %v3463, 0
  %v5593 = vsel %vm5016, %v3575, 0
  %v5596 = vsel %vm5016, %v3687, 0
  %v5599 = vsel %vm5016, %v3471, 0
  %v5602 = vsel %vm5016, %v3583, 0
  %v5605 = vsel %vm5016, %v3695, 0
  %5607 = vmatpush.xpose.msra.mxu0 0.0
  %5608 = vmatpush.xpose.msra.mxu0 0.0
  %5609 = vmatpush.xpose.msra.mxu0 0.0
  %5610 = vmatpush.xpose.msra.mxu0 0.0
  %5611 = vmatpush.xpose.msra.mxu0 0.0
  %5612 = vmatpush.xpose.msra.mxu0 0.0
  %5613 = vmatpush.xpose.msra.mxu0 0.0
  %5614 = vmatpush.xpose.msra.mxu0 0.0
  %5615 = vmatpush.xpose.msra.mxu0 0.0
  %5616 = vmatpush.xpose.msra.mxu0 0.0
  %5617 = vmatpush.xpose.msra.mxu0 0.0
  %5618 = vmatpush.xpose.msra.mxu0 0.0
  %5619 = vmatpush.xpose.msra.mxu0 0.0
  %5620 = vmatpush.xpose.msra.mxu0 %v5605
  %5621 = vmatpush.xpose.msra.mxu0 %v5602
  %5622 = vmatpush.xpose.msra.mxu0 %v5599
  %5623 = vmatmul.f32.gmra.mxu0 %v5590
  %v5624 = vpop.f32.mrf.mxu0
  %v5625 = vadd.f32 0.0, %v5624
  %5626 = vmatmul.f32.gmra.mxu0 %v5593
  %v5627 = vpop.f32.mrf.mxu0
  %v5628 = vadd.f32 0.0, %v5627
  %5629 = vmatmul.f32.gmra.mxu0 %v5596
  %v5630 = vpop.f32.mrf.mxu0
  %v5631 = vadd.f32 0.0, %v5630
  %5632 = vdwg.mxu0
  %v5634 = vsel %vm5016, %v3799, 0
  %v5637 = vsel %vm5016, %v3911, 0
  %v5640 = vsel %vm5016, %v4023, 0
  %v5643 = vsel %vm5016, %v3807, 0
  %v5646 = vsel %vm5016, %v3919, 0
  %v5649 = vsel %vm5016, %v4031, 0
  %5651 = vmatpush.xpose.msra.mxu0 0.0
  %5652 = vmatpush.xpose.msra.mxu0 0.0
  %5653 = vmatpush.xpose.msra.mxu0 0.0
  %5654 = vmatpush.xpose.msra.mxu0 0.0
  %5655 = vmatpush.xpose.msra.mxu0 0.0
  %5656 = vmatpush.xpose.msra.mxu0 0.0
  %5657 = vmatpush.xpose.msra.mxu0 0.0
  %5658 = vmatpush.xpose.msra.mxu0 0.0
  %5659 = vmatpush.xpose.msra.mxu0 0.0
  %5660 = vmatpush.xpose.msra.mxu0 0.0
  %5661 = vmatpush.xpose.msra.mxu0 0.0
  %5662 = vmatpush.xpose.msra.mxu0 0.0
  %5663 = vmatpush.xpose.msra.mxu0 0.0
  %5664 = vmatpush.xpose.msra.mxu0 %v5649
  %5665 = vmatpush.xpose.msra.mxu0 %v5646
  %5666 = vmatpush.xpose.msra.mxu0 %v5643
  %5667 = vmatmul.f32.gmra.mxu0 %v5634
  %v5668 = vpop.f32.mrf.mxu0
  %v5669 = vadd.f32 0.0, %v5668
  %5670 = vmatmul.f32.gmra.mxu0 %v5637
  %v5671 = vpop.f32.mrf.mxu0
  %v5672 = vadd.f32 0.0, %v5671
  %5673 = vmatmul.f32.gmra.mxu0 %v5640
  %v5674 = vpop.f32.mrf.mxu0
  %v5675 = vadd.f32 0.0, %v5674
  %5676 = vdwg.mxu0
  %v5678 = vsel %vm5016, %v4135, 0
  %v5681 = vsel %vm5016, %v4247, 0
  %v5684 = vsel %vm5016, %v4359, 0
  %v5687 = vsel %vm5016, %v4143, 0
  %v5690 = vsel %vm5016, %v4255, 0
  %v5693 = vsel %vm5016, %v4367, 0
  %5695 = vmatpush.xpose.msra.mxu0 0.0
  %5696 = vmatpush.xpose.msra.mxu0 0.0
  %5697 = vmatpush.xpose.msra.mxu0 0.0
  %5698 = vmatpush.xpose.msra.mxu0 0.0
  %5699 = vmatpush.xpose.msra.mxu0 0.0
  %5700 = vmatpush.xpose.msra.mxu0 0.0
  %5701 = vmatpush.xpose.msra.mxu0 0.0
  %5702 = vmatpush.xpose.msra.mxu0 0.0
  %5703 = vmatpush.xpose.msra.mxu0 0.0
  %5704 = vmatpush.xpose.msra.mxu0 0.0
  %5705 = vmatpush.xpose.msra.mxu0 0.0
  %5706 = vmatpush.xpose.msra.mxu0 0.0
  %5707 = vmatpush.xpose.msra.mxu0 0.0
  %5708 = vmatpush.xpose.msra.mxu0 %v5693
  %5709 = vmatpush.xpose.msra.mxu0 %v5690
  %5710 = vmatpush.xpose.msra.mxu0 %v5687
  %5711 = vmatmul.f32.gmra.mxu0 %v5678
  %v5712 = vpop.f32.mrf.mxu0
  %v5713 = vadd.f32 0.0, %v5712
  %5714 = vmatmul.f32.gmra.mxu0 %v5681
  %v5715 = vpop.f32.mrf.mxu0
  %v5716 = vadd.f32 0.0, %v5715
  %5717 = vmatmul.f32.gmra.mxu0 %v5684
  %v5718 = vpop.f32.mrf.mxu0
  %v5719 = vadd.f32 0.0, %v5718
  %5720 = vdwg.mxu0
  %v5721 = vmul.f32 %v5053, 0.35355338
  %v5722 = vmul.f32 %v5056, 0.35355338
  %v5723 = vmul.f32 %v5059, 0.35355338
  %v5724 = vmul.f32 %v5097, 0.35355338
  %v5725 = vmul.f32 %v5100, 0.35355338
  %v5726 = vmul.f32 %v5103, 0.35355338
  %v5727 = vmul.f32 %v5141, 0.35355338
  %v5728 = vmul.f32 %v5144, 0.35355338
  %v5729 = vmul.f32 %v5147, 0.35355338
  %v5730 = vmul.f32 %v5185, 0.35355338
  %v5731 = vmul.f32 %v5188, 0.35355338
  %v5732 = vmul.f32 %v5191, 0.35355338
  %v5733 = vmul.f32 %v5229, 0.35355338
  %v5734 = vmul.f32 %v5232, 0.35355338
  %v5735 = vmul.f32 %v5235, 0.35355338
  %v5736 = vmul.f32 %v5273, 0.35355338
  %v5737 = vmul.f32 %v5276, 0.35355338
  %v5738 = vmul.f32 %v5279, 0.35355338
  %v5739 = vmul.f32 %v5317, 0.35355338
  %v5740 = vmul.f32 %v5320, 0.35355338
  %v5741 = vmul.f32 %v5323, 0.35355338
  %v5742 = vmul.f32 %v5361, 0.35355338
  %v5743 = vmul.f32 %v5364, 0.35355338
  %v5744 = vmul.f32 %v5367, 0.35355338
  %v5745 = vmul.f32 %v5405, 0.35355338
  %v5746 = vmul.f32 %v5408, 0.35355338
  %v5747 = vmul.f32 %v5411, 0.35355338
  %v5748 = vmul.f32 %v5449, 0.35355338
  %v5749 = vmul.f32 %v5452, 0.35355338
  %v5750 = vmul.f32 %v5455, 0.35355338
  %v5751 = vmul.f32 %v5493, 0.35355338
  %v5752 = vmul.f32 %v5496, 0.35355338
  %v5753 = vmul.f32 %v5499, 0.35355338
  %v5754 = vmul.f32 %v5537, 0.35355338
  %v5755 = vmul.f32 %v5540, 0.35355338
  %v5756 = vmul.f32 %v5543, 0.35355338
  %v5757 = vmul.f32 %v5581, 0.35355338
  %v5758 = vmul.f32 %v5584, 0.35355338
  %v5759 = vmul.f32 %v5587, 0.35355338
  %v5760 = vmul.f32 %v5625, 0.35355338
  %v5761 = vmul.f32 %v5628, 0.35355338
  %v5762 = vmul.f32 %v5631, 0.35355338
  %v5763 = vmul.f32 %v5669, 0.35355338
  %v5764 = vmul.f32 %v5672, 0.35355338
  %v5765 = vmul.f32 %v5675, 0.35355338
  %v5766 = vmul.f32 %v5713, 0.35355338
  %v5767 = vmul.f32 %v5716, 0.35355338
  %v5768 = vmul.f32 %v5719, 0.35355338
  %v5769 = vadd.f32 %v5721, %v283
  %v5770 = vadd.f32 %v5722, %v283
  %v5771 = vadd.f32 %v5723, %v283
  %v5772 = vadd.f32 %v5724, %v283
  %v5773 = vadd.f32 %v5725, %v283
  %v5774 = vadd.f32 %v5726, %v283
  %v5775 = vadd.f32 %v5727, %v283
  %v5776 = vadd.f32 %v5728, %v283
  %v5777 = vadd.f32 %v5729, %v283
  %v5778 = vadd.f32 %v5730, %v283
  %v5779 = vadd.f32 %v5731, %v283
  %v5780 = vadd.f32 %v5732, %v283
  %v5781 = vadd.f32 %v5733, %v283
  %v5782 = vadd.f32 %v5734, %v283
  %v5783 = vadd.f32 %v5735, %v283
  %v5784 = vadd.f32 %v5736, %v283
  %v5785 = vadd.f32 %v5737, %v283
  %v5786 = vadd.f32 %v5738, %v283
  %v5787 = vadd.f32 %v5739, %v283
  %v5788 = vadd.f32 %v5740, %v283
  %v5789 = vadd.f32 %v5741, %v283
  %v5790 = vadd.f32 %v5742, %v283
  %v5791 = vadd.f32 %v5743, %v283
  %v5792 = vadd.f32 %v5744, %v283
  %v5793 = vadd.f32 %v5745, %v283
  %v5794 = vadd.f32 %v5746, %v283
  %v5795 = vadd.f32 %v5747, %v283
  %v5796 = vadd.f32 %v5748, %v283
  %v5797 = vadd.f32 %v5749, %v283
  %v5798 = vadd.f32 %v5750, %v283
  %v5799 = vadd.f32 %v5751, %v283
  %v5800 = vadd.f32 %v5752, %v283
  %v5801 = vadd.f32 %v5753, %v283
  %v5802 = vadd.f32 %v5754, %v283
  %v5803 = vadd.f32 %v5755, %v283
  %v5804 = vadd.f32 %v5756, %v283
  %v5805 = vadd.f32 %v5757, %v283
  %v5806 = vadd.f32 %v5758, %v283
  %v5807 = vadd.f32 %v5759, %v283
  %v5808 = vadd.f32 %v5760, %v283
  %v5809 = vadd.f32 %v5761, %v283
  %v5810 = vadd.f32 %v5762, %v283
  %v5811 = vadd.f32 %v5763, %v283
  %v5812 = vadd.f32 %v5764, %v283
  %v5813 = vadd.f32 %v5765, %v283
  %v5814 = vadd.f32 %v5766, %v283
  %v5815 = vadd.f32 %v5767, %v283
  %v5816 = vadd.f32 %v5768, %v283
  %vm5817 = vcmask 195584
  %v5818 = vsel %vm5817, %v5769, -inf
  %5819 = vmax.xlane.f32.xlu0 %v5818
  %v5820 = vpop.xlane.xlu0 %5819
  %v5821 = vsel %vm5817, %v5770, -inf
  %5822 = vmax.xlane.f32.xlu0 %v5821
  %v5823 = vpop.xlane.xlu0 %5822
  %v5824 = vsel %vm5817, %v5771, -inf
  %5825 = vmax.xlane.f32.xlu0 %v5824
  %v5826 = vpop.xlane.xlu0 %5825
  %v5827 = vsel %vm5817, %v5772, -inf
  %5828 = vmax.xlane.f32.xlu0 %v5827
  %v5829 = vpop.xlane.xlu0 %5828
  %v5830 = vsel %vm5817, %v5773, -inf
  %5831 = vmax.xlane.f32.xlu0 %v5830
  %v5832 = vpop.xlane.xlu0 %5831
  %v5833 = vsel %vm5817, %v5774, -inf
  %5834 = vmax.xlane.f32.xlu0 %v5833
  %v5835 = vpop.xlane.xlu0 %5834
  %v5836 = vsel %vm5817, %v5775, -inf
  %5837 = vmax.xlane.f32.xlu0 %v5836
  %v5838 = vpop.xlane.xlu0 %5837
  %v5839 = vsel %vm5817, %v5776, -inf
  %5840 = vmax.xlane.f32.xlu0 %v5839
  %v5841 = vpop.xlane.xlu0 %5840
  %v5842 = vsel %vm5817, %v5777, -inf
  %5843 = vmax.xlane.f32.xlu0 %v5842
  %v5844 = vpop.xlane.xlu0 %5843
  %v5845 = vsel %vm5817, %v5778, -inf
  %5846 = vmax.xlane.f32.xlu0 %v5845
  %v5847 = vpop.xlane.xlu0 %5846
  %v5848 = vsel %vm5817, %v5779, -inf
  %5849 = vmax.xlane.f32.xlu0 %v5848
  %v5850 = vpop.xlane.xlu0 %5849
  %v5851 = vsel %vm5817, %v5780, -inf
  %5852 = vmax.xlane.f32.xlu0 %v5851
  %v5853 = vpop.xlane.xlu0 %5852
  %v5854 = vsel %vm5817, %v5781, -inf
  %5855 = vmax.xlane.f32.xlu0 %v5854
  %v5856 = vpop.xlane.xlu0 %5855
  %v5857 = vsel %vm5817, %v5782, -inf
  %5858 = vmax.xlane.f32.xlu0 %v5857
  %v5859 = vpop.xlane.xlu0 %5858
  %v5860 = vsel %vm5817, %v5783, -inf
  %5861 = vmax.xlane.f32.xlu0 %v5860
  %v5862 = vpop.xlane.xlu0 %5861
  %v5863 = vsel %vm5817, %v5784, -inf
  %5864 = vmax.xlane.f32.xlu0 %v5863
  %v5865 = vpop.xlane.xlu0 %5864
  %v5866 = vsel %vm5817, %v5785, -inf
  %5867 = vmax.xlane.f32.xlu0 %v5866
  %v5868 = vpop.xlane.xlu0 %5867
  %v5869 = vsel %vm5817, %v5786, -inf
  %5870 = vmax.xlane.f32.xlu0 %v5869
  %v5871 = vpop.xlane.xlu0 %5870
  %v5872 = vsel %vm5817, %v5787, -inf
  %5873 = vmax.xlane.f32.xlu0 %v5872
  %v5874 = vpop.xlane.xlu0 %5873
  %v5875 = vsel %vm5817, %v5788, -inf
  %5876 = vmax.xlane.f32.xlu0 %v5875
  %v5877 = vpop.xlane.xlu0 %5876
  %v5878 = vsel %vm5817, %v5789, -inf
  %5879 = vmax.xlane.f32.xlu0 %v5878
  %v5880 = vpop.xlane.xlu0 %5879
  %v5881 = vsel %vm5817, %v5790, -inf
  %5882 = vmax.xlane.f32.xlu0 %v5881
  %v5883 = vpop.xlane.xlu0 %5882
  %v5884 = vsel %vm5817, %v5791, -inf
  %5885 = vmax.xlane.f32.xlu0 %v5884
  %v5886 = vpop.xlane.xlu0 %5885
  %v5887 = vsel %vm5817, %v5792, -inf
  %5888 = vmax.xlane.f32.xlu0 %v5887
  %v5889 = vpop.xlane.xlu0 %5888
  %v5890 = vsel %vm5817, %v5793, -inf
  %5891 = vmax.xlane.f32.xlu0 %v5890
  %v5892 = vpop.xlane.xlu0 %5891
  %v5893 = vsel %vm5817, %v5794, -inf
  %5894 = vmax.xlane.f32.xlu0 %v5893
  %v5895 = vpop.xlane.xlu0 %5894
  %v5896 = vsel %vm5817, %v5795, -inf
  %5897 = vmax.xlane.f32.xlu0 %v5896
  %v5898 = vpop.xlane.xlu0 %5897
  %v5899 = vsel %vm5817, %v5796, -inf
  %5900 = vmax.xlane.f32.xlu0 %v5899
  %v5901 = vpop.xlane.xlu0 %5900
  %v5902 = vsel %vm5817, %v5797, -inf
  %5903 = vmax.xlane.f32.xlu0 %v5902
  %v5904 = vpop.xlane.xlu0 %5903
  %v5905 = vsel %vm5817, %v5798, -inf
  %5906 = vmax.xlane.f32.xlu0 %v5905
  %v5907 = vpop.xlane.xlu0 %5906
  %v5908 = vsel %vm5817, %v5799, -inf
  %5909 = vmax.xlane.f32.xlu0 %v5908
  %v5910 = vpop.xlane.xlu0 %5909
  %v5911 = vsel %vm5817, %v5800, -inf
  %5912 = vmax.xlane.f32.xlu0 %v5911
  %v5913 = vpop.xlane.xlu0 %5912
  %v5914 = vsel %vm5817, %v5801, -inf
  %5915 = vmax.xlane.f32.xlu0 %v5914
  %v5916 = vpop.xlane.xlu0 %5915
  %v5917 = vsel %vm5817, %v5802, -inf
  %5918 = vmax.xlane.f32.xlu0 %v5917
  %v5919 = vpop.xlane.xlu0 %5918
  %v5920 = vsel %vm5817, %v5803, -inf
  %5921 = vmax.xlane.f32.xlu0 %v5920
  %v5922 = vpop.xlane.xlu0 %5921
  %v5923 = vsel %vm5817, %v5804, -inf
  %5924 = vmax.xlane.f32.xlu0 %v5923
  %v5925 = vpop.xlane.xlu0 %5924
  %v5926 = vsel %vm5817, %v5805, -inf
  %5927 = vmax.xlane.f32.xlu0 %v5926
  %v5928 = vpop.xlane.xlu0 %5927
  %v5929 = vsel %vm5817, %v5806, -inf
  %5930 = vmax.xlane.f32.xlu0 %v5929
  %v5931 = vpop.xlane.xlu0 %5930
  %v5932 = vsel %vm5817, %v5807, -inf
  %5933 = vmax.xlane.f32.xlu0 %v5932
  %v5934 = vpop.xlane.xlu0 %5933
  %v5935 = vsel %vm5817, %v5808, -inf
  %5936 = vmax.xlane.f32.xlu0 %v5935
  %v5937 = vpop.xlane.xlu0 %5936
  %v5938 = vsel %vm5817, %v5809, -inf
  %5939 = vmax.xlane.f32.xlu0 %v5938
  %v5940 = vpop.xlane.xlu0 %5939
  %v5941 = vsel %vm5817, %v5810, -inf
  %5942 = vmax.xlane.f32.xlu0 %v5941
  %v5943 = vpop.xlane.xlu0 %5942
  %v5944 = vsel %vm5817, %v5811, -inf
  %5945 = vmax.xlane.f32.xlu0 %v5944
  %v5946 = vpop.xlane.xlu0 %5945
  %v5947 = vsel %vm5817, %v5812, -inf
  %5948 = vmax.xlane.f32.xlu0 %v5947
  %v5949 = vpop.xlane.xlu0 %5948
  %v5950 = vsel %vm5817, %v5813, -inf
  %5951 = vmax.xlane.f32.xlu0 %v5950
  %v5952 = vpop.xlane.xlu0 %5951
  %v5953 = vsel %vm5817, %v5814, -inf
  %5954 = vmax.xlane.f32.xlu0 %v5953
  %v5955 = vpop.xlane.xlu0 %5954
  %v5956 = vsel %vm5817, %v5815, -inf
  %5957 = vmax.xlane.f32.xlu0 %v5956
  %v5958 = vpop.xlane.xlu0 %5957
  %v5959 = vsel %vm5817, %v5816, -inf
  %5960 = vmax.xlane.f32.xlu0 %v5959
  %v5961 = vpop.xlane.xlu0 %5960
  %v5962 = vsub.f32 %v5769, %v5820
  %v5963 = vsub.f32 %v5770, %v5823
  %v5964 = vsub.f32 %v5771, %v5826
  %v5965 = vsub.f32 %v5772, %v5829
  %v5966 = vsub.f32 %v5773, %v5832
  %v5967 = vsub.f32 %v5774, %v5835
  %v5968 = vsub.f32 %v5775, %v5838
  %v5969 = vsub.f32 %v5776, %v5841
  %v5970 = vsub.f32 %v5777, %v5844
  %v5971 = vsub.f32 %v5778, %v5847
  %v5972 = vsub.f32 %v5779, %v5850
  %v5973 = vsub.f32 %v5780, %v5853
  %v5974 = vsub.f32 %v5781, %v5856
  %v5975 = vsub.f32 %v5782, %v5859
  %v5976 = vsub.f32 %v5783, %v5862
  %v5977 = vsub.f32 %v5784, %v5865
  %v5978 = vsub.f32 %v5785, %v5868
  %v5979 = vsub.f32 %v5786, %v5871
  %v5980 = vsub.f32 %v5787, %v5874
  %v5981 = vsub.f32 %v5788, %v5877
  %v5982 = vsub.f32 %v5789, %v5880
  %v5983 = vsub.f32 %v5790, %v5883
  %v5984 = vsub.f32 %v5791, %v5886
  %v5985 = vsub.f32 %v5792, %v5889
  %v5986 = vsub.f32 %v5793, %v5892
  %v5987 = vsub.f32 %v5794, %v5895
  %v5988 = vsub.f32 %v5795, %v5898
  %v5989 = vsub.f32 %v5796, %v5901
  %v5990 = vsub.f32 %v5797, %v5904
  %v5991 = vsub.f32 %v5798, %v5907
  %v5992 = vsub.f32 %v5799, %v5910
  %v5993 = vsub.f32 %v5800, %v5913
  %v5994 = vsub.f32 %v5801, %v5916
  %v5995 = vsub.f32 %v5802, %v5919
  %v5996 = vsub.f32 %v5803, %v5922
  %v5997 = vsub.f32 %v5804, %v5925
  %v5998 = vsub.f32 %v5805, %v5928
  %v5999 = vsub.f32 %v5806, %v5931
  %v6000 = vsub.f32 %v5807, %v5934
  %v6001 = vsub.f32 %v5808, %v5937
  %v6002 = vsub.f32 %v5809, %v5940
  %v6003 = vsub.f32 %v5810, %v5943
  %v6004 = vsub.f32 %v5811, %v5946
  %v6005 = vsub.f32 %v5812, %v5949
  %v6006 = vsub.f32 %v5813, %v5952
  %v6007 = vsub.f32 %v5814, %v5955
  %v6008 = vsub.f32 %v5815, %v5958
  %v6009 = vsub.f32 %v5816, %v5961
  %v6010 = vmul.f32 %v5962, 1.442695
  %v6011 = vpow.pop %v6010
  %v6012 = vmul.f32 %v5963, 1.442695
  %v6013 = vpow.pop %v6012
  %v6014 = vmul.f32 %v5964, 1.442695
  %v6015 = vpow.pop %v6014
  %v6016 = vmul.f32 %v5965, 1.442695
  %v6017 = vpow.pop %v6016
  %v6018 = vmul.f32 %v5966, 1.442695
  %v6019 = vpow.pop %v6018
  %v6020 = vmul.f32 %v5967, 1.442695
  %v6021 = vpow.pop %v6020
  %v6022 = vmul.f32 %v5968, 1.442695
  %v6023 = vpow.pop %v6022
  %v6024 = vmul.f32 %v5969, 1.442695
  %v6025 = vpow.pop %v6024
  %v6026 = vmul.f32 %v5970, 1.442695
  %v6027 = vpow.pop %v6026
  %v6028 = vmul.f32 %v5971, 1.442695
  %v6029 = vpow.pop %v6028
  %v6030 = vmul.f32 %v5972, 1.442695
  %v6031 = vpow.pop %v6030
  %v6032 = vmul.f32 %v5973, 1.442695
  %v6033 = vpow.pop %v6032
  %v6034 = vmul.f32 %v5974, 1.442695
  %v6035 = vpow.pop %v6034
  %v6036 = vmul.f32 %v5975, 1.442695
  %v6037 = vpow.pop %v6036
  %v6038 = vmul.f32 %v5976, 1.442695
  %v6039 = vpow.pop %v6038
  %v6040 = vmul.f32 %v5977, 1.442695
  %v6041 = vpow.pop %v6040
  %v6042 = vmul.f32 %v5978, 1.442695
  %v6043 = vpow.pop %v6042
  %v6044 = vmul.f32 %v5979, 1.442695
  %v6045 = vpow.pop %v6044
  %v6046 = vmul.f32 %v5980, 1.442695
  %v6047 = vpow.pop %v6046
  %v6048 = vmul.f32 %v5981, 1.442695
  %v6049 = vpow.pop %v6048
  %v6050 = vmul.f32 %v5982, 1.442695
  %v6051 = vpow.pop %v6050
  %v6052 = vmul.f32 %v5983, 1.442695
  %v6053 = vpow.pop %v6052
  %v6054 = vmul.f32 %v5984, 1.442695
  %v6055 = vpow.pop %v6054
  %v6056 = vmul.f32 %v5985, 1.442695
  %v6057 = vpow.pop %v6056
  %v6058 = vmul.f32 %v5986, 1.442695
  %v6059 = vpow.pop %v6058
  %v6060 = vmul.f32 %v5987, 1.442695
  %v6061 = vpow.pop %v6060
  %v6062 = vmul.f32 %v5988, 1.442695
  %v6063 = vpow.pop %v6062
  %v6064 = vmul.f32 %v5989, 1.442695
  %v6065 = vpow.pop %v6064
  %v6066 = vmul.f32 %v5990, 1.442695
  %v6067 = vpow.pop %v6066
  %v6068 = vmul.f32 %v5991, 1.442695
  %v6069 = vpow.pop %v6068
  %v6070 = vmul.f32 %v5992, 1.442695
  %v6071 = vpow.pop %v6070
  %v6072 = vmul.f32 %v5993, 1.442695
  %v6073 = vpow.pop %v6072
  %v6074 = vmul.f32 %v5994, 1.442695
  %v6075 = vpow.pop %v6074
  %v6076 = vmul.f32 %v5995, 1.442695
  %v6077 = vpow.pop %v6076
  %v6078 = vmul.f32 %v5996, 1.442695
  %v6079 = vpow.pop %v6078
  %v6080 = vmul.f32 %v5997, 1.442695
  %v6081 = vpow.pop %v6080
  %v6082 = vmul.f32 %v5998, 1.442695
  %v6083 = vpow.pop %v6082
  %v6084 = vmul.f32 %v5999, 1.442695
  %v6085 = vpow.pop %v6084
  %v6086 = vmul.f32 %v6000, 1.442695
  %v6087 = vpow.pop %v6086
  %v6088 = vmul.f32 %v6001, 1.442695
  %v6089 = vpow.pop %v6088
  %v6090 = vmul.f32 %v6002, 1.442695
  %v6091 = vpow.pop %v6090
  %v6092 = vmul.f32 %v6003, 1.442695
  %v6093 = vpow.pop %v6092
  %v6094 = vmul.f32 %v6004, 1.442695
  %v6095 = vpow.pop %v6094
  %v6096 = vmul.f32 %v6005, 1.442695
  %v6097 = vpow.pop %v6096
  %v6098 = vmul.f32 %v6006, 1.442695
  %v6099 = vpow.pop %v6098
  %v6100 = vmul.f32 %v6007, 1.442695
  %v6101 = vpow.pop %v6100
  %v6102 = vmul.f32 %v6008, 1.442695
  %v6103 = vpow.pop %v6102
  %v6104 = vmul.f32 %v6009, 1.442695
  %v6105 = vpow.pop %v6104
  %v6106 = vsel %vm5817, %v6011, 0.0
  %6107 = vadd.xlane.f32.xlu0 %v6106
  %v6108 = vpop.xlane.xlu0 %6107
  %v6109 = vsel %vm5817, %v6013, 0.0
  %6110 = vadd.xlane.f32.xlu0 %v6109
  %v6111 = vpop.xlane.xlu0 %6110
  %v6112 = vsel %vm5817, %v6015, 0.0
  %6113 = vadd.xlane.f32.xlu0 %v6112
  %v6114 = vpop.xlane.xlu0 %6113
  %v6115 = vsel %vm5817, %v6017, 0.0
  %6116 = vadd.xlane.f32.xlu0 %v6115
  %v6117 = vpop.xlane.xlu0 %6116
  %v6118 = vsel %vm5817, %v6019, 0.0
  %6119 = vadd.xlane.f32.xlu0 %v6118
  %v6120 = vpop.xlane.xlu0 %6119
  %v6121 = vsel %vm5817, %v6021, 0.0
  %6122 = vadd.xlane.f32.xlu0 %v6121
  %v6123 = vpop.xlane.xlu0 %6122
  %v6124 = vsel %vm5817, %v6023, 0.0
  %6125 = vadd.xlane.f32.xlu0 %v6124
  %v6126 = vpop.xlane.xlu0 %6125
  %v6127 = vsel %vm5817, %v6025, 0.0
  %6128 = vadd.xlane.f32.xlu0 %v6127
  %v6129 = vpop.xlane.xlu0 %6128
  %v6130 = vsel %vm5817, %v6027, 0.0
  %6131 = vadd.xlane.f32.xlu0 %v6130
  %v6132 = vpop.xlane.xlu0 %6131
  %v6133 = vsel %vm5817, %v6029, 0.0
  %6134 = vadd.xlane.f32.xlu0 %v6133
  %v6135 = vpop.xlane.xlu0 %6134
  %v6136 = vsel %vm5817, %v6031, 0.0
  %6137 = vadd.xlane.f32.xlu0 %v6136
  %v6138 = vpop.xlane.xlu0 %6137
  %v6139 = vsel %vm5817, %v6033, 0.0
  %6140 = vadd.xlane.f32.xlu0 %v6139
  %v6141 = vpop.xlane.xlu0 %6140
  %v6142 = vsel %vm5817, %v6035, 0.0
  %6143 = vadd.xlane.f32.xlu0 %v6142
  %v6144 = vpop.xlane.xlu0 %6143
  %v6145 = vsel %vm5817, %v6037, 0.0
  %6146 = vadd.xlane.f32.xlu0 %v6145
  %v6147 = vpop.xlane.xlu0 %6146
  %v6148 = vsel %vm5817, %v6039, 0.0
  %6149 = vadd.xlane.f32.xlu0 %v6148
  %v6150 = vpop.xlane.xlu0 %6149
  %v6151 = vsel %vm5817, %v6041, 0.0
  %6152 = vadd.xlane.f32.xlu0 %v6151
  %v6153 = vpop.xlane.xlu0 %6152
  %v6154 = vsel %vm5817, %v6043, 0.0
  %6155 = vadd.xlane.f32.xlu0 %v6154
  %v6156 = vpop.xlane.xlu0 %6155
  %v6157 = vsel %vm5817, %v6045, 0.0
  %6158 = vadd.xlane.f32.xlu0 %v6157
  %v6159 = vpop.xlane.xlu0 %6158
  %v6160 = vsel %vm5817, %v6047, 0.0
  %6161 = vadd.xlane.f32.xlu0 %v6160
  %v6162 = vpop.xlane.xlu0 %6161
  %v6163 = vsel %vm5817, %v6049, 0.0
  %6164 = vadd.xlane.f32.xlu0 %v6163
  %v6165 = vpop.xlane.xlu0 %6164
  %v6166 = vsel %vm5817, %v6051, 0.0
  %6167 = vadd.xlane.f32.xlu0 %v6166
  %v6168 = vpop.xlane.xlu0 %6167
  %v6169 = vsel %vm5817, %v6053, 0.0
  %6170 = vadd.xlane.f32.xlu0 %v6169
  %v6171 = vpop.xlane.xlu0 %6170
  %v6172 = vsel %vm5817, %v6055, 0.0
  %6173 = vadd.xlane.f32.xlu0 %v6172
  %v6174 = vpop.xlane.xlu0 %6173
  %v6175 = vsel %vm5817, %v6057, 0.0
  %6176 = vadd.xlane.f32.xlu0 %v6175
  %v6177 = vpop.xlane.xlu0 %6176
  %v6178 = vsel %vm5817, %v6059, 0.0
  %6179 = vadd.xlane.f32.xlu0 %v6178
  %v6180 = vpop.xlane.xlu0 %6179
  %v6181 = vsel %vm5817, %v6061, 0.0
  %6182 = vadd.xlane.f32.xlu0 %v6181
  %v6183 = vpop.xlane.xlu0 %6182
  %v6184 = vsel %vm5817, %v6063, 0.0
  %6185 = vadd.xlane.f32.xlu0 %v6184
  %v6186 = vpop.xlane.xlu0 %6185
  %v6187 = vsel %vm5817, %v6065, 0.0
  %6188 = vadd.xlane.f32.xlu0 %v6187
  %v6189 = vpop.xlane.xlu0 %6188
  %v6190 = vsel %vm5817, %v6067, 0.0
  %6191 = vadd.xlane.f32.xlu0 %v6190
  %v6192 = vpop.xlane.xlu0 %6191
  %v6193 = vsel %vm5817, %v6069, 0.0
  %6194 = vadd.xlane.f32.xlu0 %v6193
  %v6195 = vpop.xlane.xlu0 %6194
  %v6196 = vsel %vm5817, %v6071, 0.0
  %6197 = vadd.xlane.f32.xlu0 %v6196
  %v6198 = vpop.xlane.xlu0 %6197
  %v6199 = vsel %vm5817, %v6073, 0.0
  %6200 = vadd.xlane.f32.xlu0 %v6199
  %v6201 = vpop.xlane.xlu0 %6200
  %v6202 = vsel %vm5817, %v6075, 0.0
  %6203 = vadd.xlane.f32.xlu0 %v6202
  %v6204 = vpop.xlane.xlu0 %6203
  %v6205 = vsel %vm5817, %v6077, 0.0
  %6206 = vadd.xlane.f32.xlu0 %v6205
  %v6207 = vpop.xlane.xlu0 %6206
  %v6208 = vsel %vm5817, %v6079, 0.0
  %6209 = vadd.xlane.f32.xlu0 %v6208
  %v6210 = vpop.xlane.xlu0 %6209
  %v6211 = vsel %vm5817, %v6081, 0.0
  %6212 = vadd.xlane.f32.xlu0 %v6211
  %v6213 = vpop.xlane.xlu0 %6212
  %v6214 = vsel %vm5817, %v6083, 0.0
  %6215 = vadd.xlane.f32.xlu0 %v6214
  %v6216 = vpop.xlane.xlu0 %6215
  %v6217 = vsel %vm5817, %v6085, 0.0
  %6218 = vadd.xlane.f32.xlu0 %v6217
  %v6219 = vpop.xlane.xlu0 %6218
  %v6220 = vsel %vm5817, %v6087, 0.0
  %6221 = vadd.xlane.f32.xlu0 %v6220
  %v6222 = vpop.xlane.xlu0 %6221
  %v6223 = vsel %vm5817, %v6089, 0.0
  %6224 = vadd.xlane.f32.xlu0 %v6223
  %v6225 = vpop.xlane.xlu0 %6224
  %v6226 = vsel %vm5817, %v6091, 0.0
  %6227 = vadd.xlane.f32.xlu0 %v6226
  %v6228 = vpop.xlane.xlu0 %6227
  %v6229 = vsel %vm5817, %v6093, 0.0
  %6230 = vadd.xlane.f32.xlu0 %v6229
  %v6231 = vpop.xlane.xlu0 %6230
  %v6232 = vsel %vm5817, %v6095, 0.0
  %6233 = vadd.xlane.f32.xlu0 %v6232
  %v6234 = vpop.xlane.xlu0 %6233
  %v6235 = vsel %vm5817, %v6097, 0.0
  %6236 = vadd.xlane.f32.xlu0 %v6235
  %v6237 = vpop.xlane.xlu0 %6236
  %v6238 = vsel %vm5817, %v6099, 0.0
  %6239 = vadd.xlane.f32.xlu0 %v6238
  %v6240 = vpop.xlane.xlu0 %6239
  %v6241 = vsel %vm5817, %v6101, 0.0
  %6242 = vadd.xlane.f32.xlu0 %v6241
  %v6243 = vpop.xlane.xlu0 %6242
  %v6244 = vsel %vm5817, %v6103, 0.0
  %6245 = vadd.xlane.f32.xlu0 %v6244
  %v6246 = vpop.xlane.xlu0 %6245
  %v6247 = vsel %vm5817, %v6105, 0.0
  %6248 = vadd.xlane.f32.xlu0 %v6247
  %v6249 = vpop.xlane.xlu0 %6248
  %v6250 = vrcp.pop %v6108
  %v6251 = vrcp.pop %v6111
  %v6252 = vrcp.pop %v6114
  %v6253 = vrcp.pop %v6117
  %v6254 = vrcp.pop %v6120
  %v6255 = vrcp.pop %v6123
  %v6256 = vrcp.pop %v6126
  %v6257 = vrcp.pop %v6129
  %v6258 = vrcp.pop %v6132
  %v6259 = vrcp.pop %v6135
  %v6260 = vrcp.pop %v6138
  %v6261 = vrcp.pop %v6141
  %v6262 = vrcp.pop %v6144
  %v6263 = vrcp.pop %v6147
  %v6264 = vrcp.pop %v6150
  %v6265 = vrcp.pop %v6153
  %v6266 = vrcp.pop %v6156
  %v6267 = vrcp.pop %v6159
  %v6268 = vrcp.pop %v6162
  %v6269 = vrcp.pop %v6165
  %v6270 = vrcp.pop %v6168
  %v6271 = vrcp.pop %v6171
  %v6272 = vrcp.pop %v6174
  %v6273 = vrcp.pop %v6177
  %v6274 = vrcp.pop %v6180
  %v6275 = vrcp.pop %v6183
  %v6276 = vrcp.pop %v6186
  %v6277 = vrcp.pop %v6189
  %v6278 = vrcp.pop %v6192
  %v6279 = vrcp.pop %v6195
  %v6280 = vrcp.pop %v6198
  %v6281 = vrcp.pop %v6201
  %v6282 = vrcp.pop %v6204
  %v6283 = vrcp.pop %v6207
  %v6284 = vrcp.pop %v6210
  %v6285 = vrcp.pop %v6213
  %v6286 = vrcp.pop %v6216
  %v6287 = vrcp.pop %v6219
  %v6288 = vrcp.pop %v6222
  %v6289 = vrcp.pop %v6225
  %v6290 = vrcp.pop %v6228
  %v6291 = vrcp.pop %v6231
  %v6292 = vrcp.pop %v6234
  %v6293 = vrcp.pop %v6237
  %v6294 = vrcp.pop %v6240
  %v6295 = vrcp.pop %v6243
  %v6296 = vrcp.pop %v6246
  %v6297 = vrcp.pop %v6249
  %v6298 = vmul.f32 %v6011, %v6250
  %v6299 = vmul.f32 %v6013, %v6251
  %v6300 = vmul.f32 %v6015, %v6252
  %v6301 = vmul.f32 %v6017, %v6253
  %v6302 = vmul.f32 %v6019, %v6254
  %v6303 = vmul.f32 %v6021, %v6255
  %v6304 = vmul.f32 %v6023, %v6256
  %v6305 = vmul.f32 %v6025, %v6257
  %v6306 = vmul.f32 %v6027, %v6258
  %v6307 = vmul.f32 %v6029, %v6259
  %v6308 = vmul.f32 %v6031, %v6260
  %v6309 = vmul.f32 %v6033, %v6261
  %v6310 = vmul.f32 %v6035, %v6262
  %v6311 = vmul.f32 %v6037, %v6263
  %v6312 = vmul.f32 %v6039, %v6264
  %v6313 = vmul.f32 %v6041, %v6265
  %v6314 = vmul.f32 %v6043, %v6266
  %v6315 = vmul.f32 %v6045, %v6267
  %v6316 = vmul.f32 %v6047, %v6268
  %v6317 = vmul.f32 %v6049, %v6269
  %v6318 = vmul.f32 %v6051, %v6270
  %v6319 = vmul.f32 %v6053, %v6271
  %v6320 = vmul.f32 %v6055, %v6272
  %v6321 = vmul.f32 %v6057, %v6273
  %v6322 = vmul.f32 %v6059, %v6274
  %v6323 = vmul.f32 %v6061, %v6275
  %v6324 = vmul.f32 %v6063, %v6276
  %v6325 = vmul.f32 %v6065, %v6277
  %v6326 = vmul.f32 %v6067, %v6278
  %v6327 = vmul.f32 %v6069, %v6279
  %v6328 = vmul.f32 %v6071, %v6280
  %v6329 = vmul.f32 %v6073, %v6281
  %v6330 = vmul.f32 %v6075, %v6282
  %v6331 = vmul.f32 %v6077, %v6283
  %v6332 = vmul.f32 %v6079, %v6284
  %v6333 = vmul.f32 %v6081, %v6285
  %v6334 = vmul.f32 %v6083, %v6286
  %v6335 = vmul.f32 %v6085, %v6287
  %v6336 = vmul.f32 %v6087, %v6288
  %v6337 = vmul.f32 %v6089, %v6289
  %v6338 = vmul.f32 %v6091, %v6290
  %v6339 = vmul.f32 %v6093, %v6291
  %v6340 = vmul.f32 %v6095, %v6292
  %v6341 = vmul.f32 %v6097, %v6293
  %v6342 = vmul.f32 %v6099, %v6294
  %v6343 = vmul.f32 %v6101, %v6295
  %v6344 = vmul.f32 %v6103, %v6296
  %v6345 = vmul.f32 %v6105, %v6297
  %v6347 = vsel %vm5817, %v6298, 0
  %v6350 = vsel %vm5817, %v6299, 0
  %v6353 = vsel %vm5817, %v6300, 0
  %6355 = vmatpush.msra.mxu0 0.0
  %6356 = vmatpush.msra.mxu0 0.0
  %6357 = vmatpush.msra.mxu0 0.0
  %6358 = vmatpush.msra.mxu0 0.0
  %6359 = vmatpush.msra.mxu0 0.0
  %6360 = vmatpush.msra.mxu0 0.0
  %6361 = vmatpush.msra.mxu0 0.0
  %6362 = vmatpush.msra.mxu0 0.0
  %6363 = vmatpush.msra.mxu0 0.0
  %6364 = vmatpush.msra.mxu0 0.0
  %6365 = vmatpush.msra.mxu0 0.0
  %6366 = vmatpush.msra.mxu0 0.0
  %6367 = vmatpush.msra.mxu0 0.0
  %6368 = vmatpush.msra.mxu0 %v4523
  %6369 = vmatpush.msra.mxu0 %v4469
  %6370 = vmatpush.msra.mxu0 %v4415
  %6371 = vmatmul.f32.gmra.mxu0 %v6347
  %v6372 = vpop.f32.mrf.mxu0
  %v6373 = vadd.f32 0.0, %v6372
  %6374 = vmatmul.f32.gmra.mxu0 %v6350
  %v6375 = vpop.f32.mrf.mxu0
  %v6376 = vadd.f32 0.0, %v6375
  %6377 = vmatmul.f32.gmra.mxu0 %v6353
  %v6378 = vpop.f32.mrf.mxu0
  %v6379 = vadd.f32 0.0, %v6378
  %6380 = vdwg.mxu0
  %v6382 = vsel %vm5817, %v6301, 0
  %v6385 = vsel %vm5817, %v6302, 0
  %v6388 = vsel %vm5817, %v6303, 0
  %6390 = vmatpush.msra.mxu0 0.0
  %6391 = vmatpush.msra.mxu0 0.0
  %6392 = vmatpush.msra.mxu0 0.0
  %6393 = vmatpush.msra.mxu0 0.0
  %6394 = vmatpush.msra.mxu0 0.0
  %6395 = vmatpush.msra.mxu0 0.0
  %6396 = vmatpush.msra.mxu0 0.0
  %6397 = vmatpush.msra.mxu0 0.0
  %6398 = vmatpush.msra.mxu0 0.0
  %6399 = vmatpush.msra.mxu0 0.0
  %6400 = vmatpush.msra.mxu0 0.0
  %6401 = vmatpush.msra.mxu0 0.0
  %6402 = vmatpush.msra.mxu0 0.0
  %6403 = vmatpush.msra.mxu0 %v4685
  %6404 = vmatpush.msra.mxu0 %v4631
  %6405 = vmatpush.msra.mxu0 %v4577
  %6406 = vmatmul.f32.gmra.mxu0 %v6382
  %v6407 = vpop.f32.mrf.mxu0
  %v6408 = vadd.f32 0.0, %v6407
  %6409 = vmatmul.f32.gmra.mxu0 %v6385
  %v6410 = vpop.f32.mrf.mxu0
  %v6411 = vadd.f32 0.0, %v6410
  %6412 = vmatmul.f32.gmra.mxu0 %v6388
  %v6413 = vpop.f32.mrf.mxu0
  %v6414 = vadd.f32 0.0, %v6413
  %6415 = vdwg.mxu0
  %v6417 = vsel %vm5817, %v6304, 0
  %v6420 = vsel %vm5817, %v6305, 0
  %v6423 = vsel %vm5817, %v6306, 0
  %6425 = vmatpush.msra.mxu0 0.0
  %6426 = vmatpush.msra.mxu0 0.0
  %6427 = vmatpush.msra.mxu0 0.0
  %6428 = vmatpush.msra.mxu0 0.0
  %6429 = vmatpush.msra.mxu0 0.0
  %6430 = vmatpush.msra.mxu0 0.0
  %6431 = vmatpush.msra.mxu0 0.0
  %6432 = vmatpush.msra.mxu0 0.0
  %6433 = vmatpush.msra.mxu0 0.0
  %6434 = vmatpush.msra.mxu0 0.0
  %6435 = vmatpush.msra.mxu0 0.0
  %6436 = vmatpush.msra.mxu0 0.0
  %6437 = vmatpush.msra.mxu0 0.0
  %6438 = vmatpush.msra.mxu0 %v4847
  %6439 = vmatpush.msra.mxu0 %v4793
  %6440 = vmatpush.msra.mxu0 %v4739
  %6441 = vmatmul.f32.gmra.mxu0 %v6417
  %v6442 = vpop.f32.mrf.mxu0
  %v6443 = vadd.f32 0.0, %v6442
  %6444 = vmatmul.f32.gmra.mxu0 %v6420
  %v6445 = vpop.f32.mrf.mxu0
  %v6446 = vadd.f32 0.0, %v6445
  %6447 = vmatmul.f32.gmra.mxu0 %v6423
  %v6448 = vpop.f32.mrf.mxu0
  %v6449 = vadd.f32 0.0, %v6448
  %6450 = vdwg.mxu0
  %v6452 = vsel %vm5817, %v6307, 0
  %v6455 = vsel %vm5817, %v6308, 0
  %v6458 = vsel %vm5817, %v6309, 0
  %6460 = vmatpush.msra.mxu0 0.0
  %6461 = vmatpush.msra.mxu0 0.0
  %6462 = vmatpush.msra.mxu0 0.0
  %6463 = vmatpush.msra.mxu0 0.0
  %6464 = vmatpush.msra.mxu0 0.0
  %6465 = vmatpush.msra.mxu0 0.0
  %6466 = vmatpush.msra.mxu0 0.0
  %6467 = vmatpush.msra.mxu0 0.0
  %6468 = vmatpush.msra.mxu0 0.0
  %6469 = vmatpush.msra.mxu0 0.0
  %6470 = vmatpush.msra.mxu0 0.0
  %6471 = vmatpush.msra.mxu0 0.0
  %6472 = vmatpush.msra.mxu0 0.0
  %6473 = vmatpush.msra.mxu0 %v5009
  %6474 = vmatpush.msra.mxu0 %v4955
  %6475 = vmatpush.msra.mxu0 %v4901
  %6476 = vmatmul.f32.gmra.mxu0 %v6452
  %v6477 = vpop.f32.mrf.mxu0
  %v6478 = vadd.f32 0.0, %v6477
  %6479 = vmatmul.f32.gmra.mxu0 %v6455
  %v6480 = vpop.f32.mrf.mxu0
  %v6481 = vadd.f32 0.0, %v6480
  %6482 = vmatmul.f32.gmra.mxu0 %v6458
  %v6483 = vpop.f32.mrf.mxu0
  %v6484 = vadd.f32 0.0, %v6483
  %6485 = vdwg.mxu0
  %v6487 = vsel %vm5817, %v6310, 0
  %v6490 = vsel %vm5817, %v6311, 0
  %v6493 = vsel %vm5817, %v6312, 0
  %6495 = vmatpush.msra.mxu0 0.0
  %6496 = vmatpush.msra.mxu0 0.0
  %6497 = vmatpush.msra.mxu0 0.0
  %6498 = vmatpush.msra.mxu0 0.0
  %6499 = vmatpush.msra.mxu0 0.0
  %6500 = vmatpush.msra.mxu0 0.0
  %6501 = vmatpush.msra.mxu0 0.0
  %6502 = vmatpush.msra.mxu0 0.0
  %6503 = vmatpush.msra.mxu0 0.0
  %6504 = vmatpush.msra.mxu0 0.0
  %6505 = vmatpush.msra.mxu0 0.0
  %6506 = vmatpush.msra.mxu0 0.0
  %6507 = vmatpush.msra.mxu0 0.0
  %6508 = vmatpush.msra.mxu0 %v4525
  %6509 = vmatpush.msra.mxu0 %v4471
  %6510 = vmatpush.msra.mxu0 %v4417
  %6511 = vmatmul.f32.gmra.mxu0 %v6487
  %v6512 = vpop.f32.mrf.mxu0
  %v6513 = vadd.f32 0.0, %v6512
  %6514 = vmatmul.f32.gmra.mxu0 %v6490
  %v6515 = vpop.f32.mrf.mxu0
  %v6516 = vadd.f32 0.0, %v6515
  %6517 = vmatmul.f32.gmra.mxu0 %v6493
  %v6518 = vpop.f32.mrf.mxu0
  %v6519 = vadd.f32 0.0, %v6518
  %6520 = vdwg.mxu0
  %v6522 = vsel %vm5817, %v6313, 0
  %v6525 = vsel %vm5817, %v6314, 0
  %v6528 = vsel %vm5817, %v6315, 0
  %6530 = vmatpush.msra.mxu0 0.0
  %6531 = vmatpush.msra.mxu0 0.0
  %6532 = vmatpush.msra.mxu0 0.0
  %6533 = vmatpush.msra.mxu0 0.0
  %6534 = vmatpush.msra.mxu0 0.0
  %6535 = vmatpush.msra.mxu0 0.0
  %6536 = vmatpush.msra.mxu0 0.0
  %6537 = vmatpush.msra.mxu0 0.0
  %6538 = vmatpush.msra.mxu0 0.0
  %6539 = vmatpush.msra.mxu0 0.0
  %6540 = vmatpush.msra.mxu0 0.0
  %6541 = vmatpush.msra.mxu0 0.0
  %6542 = vmatpush.msra.mxu0 0.0
  %6543 = vmatpush.msra.mxu0 %v4687
  %6544 = vmatpush.msra.mxu0 %v4633
  %6545 = vmatpush.msra.mxu0 %v4579
  %6546 = vmatmul.f32.gmra.mxu0 %v6522
  %v6547 = vpop.f32.mrf.mxu0
  %v6548 = vadd.f32 0.0, %v6547
  %6549 = vmatmul.f32.gmra.mxu0 %v6525
  %v6550 = vpop.f32.mrf.mxu0
  %v6551 = vadd.f32 0.0, %v6550
  %6552 = vmatmul.f32.gmra.mxu0 %v6528
  %v6553 = vpop.f32.mrf.mxu0
  %v6554 = vadd.f32 0.0, %v6553
  %6555 = vdwg.mxu0
  %v6557 = vsel %vm5817, %v6316, 0
  %v6560 = vsel %vm5817, %v6317, 0
  %v6563 = vsel %vm5817, %v6318, 0
  %6565 = vmatpush.msra.mxu0 0.0
  %6566 = vmatpush.msra.mxu0 0.0
  %6567 = vmatpush.msra.mxu0 0.0
  %6568 = vmatpush.msra.mxu0 0.0
  %6569 = vmatpush.msra.mxu0 0.0
  %6570 = vmatpush.msra.mxu0 0.0
  %6571 = vmatpush.msra.mxu0 0.0
  %6572 = vmatpush.msra.mxu0 0.0
  %6573 = vmatpush.msra.mxu0 0.0
  %6574 = vmatpush.msra.mxu0 0.0
  %6575 = vmatpush.msra.mxu0 0.0
  %6576 = vmatpush.msra.mxu0 0.0
  %6577 = vmatpush.msra.mxu0 0.0
  %6578 = vmatpush.msra.mxu0 %v4849
  %6579 = vmatpush.msra.mxu0 %v4795
  %6580 = vmatpush.msra.mxu0 %v4741
  %6581 = vmatmul.f32.gmra.mxu0 %v6557
  %v6582 = vpop.f32.mrf.mxu0
  %v6583 = vadd.f32 0.0, %v6582
  %6584 = vmatmul.f32.gmra.mxu0 %v6560
  %v6585 = vpop.f32.mrf.mxu0
  %v6586 = vadd.f32 0.0, %v6585
  %6587 = vmatmul.f32.gmra.mxu0 %v6563
  %v6588 = vpop.f32.mrf.mxu0
  %v6589 = vadd.f32 0.0, %v6588
  %6590 = vdwg.mxu0
  %v6592 = vsel %vm5817, %v6319, 0
  %v6595 = vsel %vm5817, %v6320, 0
  %v6598 = vsel %vm5817, %v6321, 0
  %6600 = vmatpush.msra.mxu0 0.0
  %6601 = vmatpush.msra.mxu0 0.0
  %6602 = vmatpush.msra.mxu0 0.0
  %6603 = vmatpush.msra.mxu0 0.0
  %6604 = vmatpush.msra.mxu0 0.0
  %6605 = vmatpush.msra.mxu0 0.0
  %6606 = vmatpush.msra.mxu0 0.0
  %6607 = vmatpush.msra.mxu0 0.0
  %6608 = vmatpush.msra.mxu0 0.0
  %6609 = vmatpush.msra.mxu0 0.0
  %6610 = vmatpush.msra.mxu0 0.0
  %6611 = vmatpush.msra.mxu0 0.0
  %6612 = vmatpush.msra.mxu0 0.0
  %6613 = vmatpush.msra.mxu0 %v5011
  %6614 = vmatpush.msra.mxu0 %v4957
  %6615 = vmatpush.msra.mxu0 %v4903
  %6616 = vmatmul.f32.gmra.mxu0 %v6592
  %v6617 = vpop.f32.mrf.mxu0
  %v6618 = vadd.f32 0.0, %v6617
  %6619 = vmatmul.f32.gmra.mxu0 %v6595
  %v6620 = vpop.f32.mrf.mxu0
  %v6621 = vadd.f32 0.0, %v6620
  %6622 = vmatmul.f32.gmra.mxu0 %v6598
  %v6623 = vpop.f32.mrf.mxu0
  %v6624 = vadd.f32 0.0, %v6623
  %6625 = vdwg.mxu0
  %v6627 = vsel %vm5817, %v6322, 0
  %v6630 = vsel %vm5817, %v6323, 0
  %v6633 = vsel %vm5817, %v6324, 0
  %6635 = vmatpush.msra.mxu0 0.0
  %6636 = vmatpush.msra.mxu0 0.0
  %6637 = vmatpush.msra.mxu0 0.0
  %6638 = vmatpush.msra.mxu0 0.0
  %6639 = vmatpush.msra.mxu0 0.0
  %6640 = vmatpush.msra.mxu0 0.0
  %6641 = vmatpush.msra.mxu0 0.0
  %6642 = vmatpush.msra.mxu0 0.0
  %6643 = vmatpush.msra.mxu0 0.0
  %6644 = vmatpush.msra.mxu0 0.0
  %6645 = vmatpush.msra.mxu0 0.0
  %6646 = vmatpush.msra.mxu0 0.0
  %6647 = vmatpush.msra.mxu0 0.0
  %6648 = vmatpush.msra.mxu0 %v4527
  %6649 = vmatpush.msra.mxu0 %v4473
  %6650 = vmatpush.msra.mxu0 %v4419
  %6651 = vmatmul.f32.gmra.mxu0 %v6627
  %v6652 = vpop.f32.mrf.mxu0
  %v6653 = vadd.f32 0.0, %v6652
  %6654 = vmatmul.f32.gmra.mxu0 %v6630
  %v6655 = vpop.f32.mrf.mxu0
  %v6656 = vadd.f32 0.0, %v6655
  %6657 = vmatmul.f32.gmra.mxu0 %v6633
  %v6658 = vpop.f32.mrf.mxu0
  %v6659 = vadd.f32 0.0, %v6658
  %6660 = vdwg.mxu0
  %v6662 = vsel %vm5817, %v6325, 0
  %v6665 = vsel %vm5817, %v6326, 0
  %v6668 = vsel %vm5817, %v6327, 0
  %6670 = vmatpush.msra.mxu0 0.0
  %6671 = vmatpush.msra.mxu0 0.0
  %6672 = vmatpush.msra.mxu0 0.0
  %6673 = vmatpush.msra.mxu0 0.0
  %6674 = vmatpush.msra.mxu0 0.0
  %6675 = vmatpush.msra.mxu0 0.0
  %6676 = vmatpush.msra.mxu0 0.0
  %6677 = vmatpush.msra.mxu0 0.0
  %6678 = vmatpush.msra.mxu0 0.0
  %6679 = vmatpush.msra.mxu0 0.0
  %6680 = vmatpush.msra.mxu0 0.0
  %6681 = vmatpush.msra.mxu0 0.0
  %6682 = vmatpush.msra.mxu0 0.0
  %6683 = vmatpush.msra.mxu0 %v4689
  %6684 = vmatpush.msra.mxu0 %v4635
  %6685 = vmatpush.msra.mxu0 %v4581
  %6686 = vmatmul.f32.gmra.mxu0 %v6662
  %v6687 = vpop.f32.mrf.mxu0
  %v6688 = vadd.f32 0.0, %v6687
  %6689 = vmatmul.f32.gmra.mxu0 %v6665
  %v6690 = vpop.f32.mrf.mxu0
  %v6691 = vadd.f32 0.0, %v6690
  %6692 = vmatmul.f32.gmra.mxu0 %v6668
  %v6693 = vpop.f32.mrf.mxu0
  %v6694 = vadd.f32 0.0, %v6693
  %6695 = vdwg.mxu0
  %v6697 = vsel %vm5817, %v6328, 0
  %v6700 = vsel %vm5817, %v6329, 0
  %v6703 = vsel %vm5817, %v6330, 0
  %6705 = vmatpush.msra.mxu0 0.0
  %6706 = vmatpush.msra.mxu0 0.0
  %6707 = vmatpush.msra.mxu0 0.0
  %6708 = vmatpush.msra.mxu0 0.0
  %6709 = vmatpush.msra.mxu0 0.0
  %6710 = vmatpush.msra.mxu0 0.0
  %6711 = vmatpush.msra.mxu0 0.0
  %6712 = vmatpush.msra.mxu0 0.0
  %6713 = vmatpush.msra.mxu0 0.0
  %6714 = vmatpush.msra.mxu0 0.0
  %6715 = vmatpush.msra.mxu0 0.0
  %6716 = vmatpush.msra.mxu0 0.0
  %6717 = vmatpush.msra.mxu0 0.0
  %6718 = vmatpush.msra.mxu0 %v4851
  %6719 = vmatpush.msra.mxu0 %v4797
  %6720 = vmatpush.msra.mxu0 %v4743
  %6721 = vmatmul.f32.gmra.mxu0 %v6697
  %v6722 = vpop.f32.mrf.mxu0
  %v6723 = vadd.f32 0.0, %v6722
  %6724 = vmatmul.f32.gmra.mxu0 %v6700
  %v6725 = vpop.f32.mrf.mxu0
  %v6726 = vadd.f32 0.0, %v6725
  %6727 = vmatmul.f32.gmra.mxu0 %v6703
  %v6728 = vpop.f32.mrf.mxu0
  %v6729 = vadd.f32 0.0, %v6728
  %6730 = vdwg.mxu0
  %v6732 = vsel %vm5817, %v6331, 0
  %v6735 = vsel %vm5817, %v6332, 0
  %v6738 = vsel %vm5817, %v6333, 0
  %6740 = vmatpush.msra.mxu0 0.0
  %6741 = vmatpush.msra.mxu0 0.0
  %6742 = vmatpush.msra.mxu0 0.0
  %6743 = vmatpush.msra.mxu0 0.0
  %6744 = vmatpush.msra.mxu0 0.0
  %6745 = vmatpush.msra.mxu0 0.0
  %6746 = vmatpush.msra.mxu0 0.0
  %6747 = vmatpush.msra.mxu0 0.0
  %6748 = vmatpush.msra.mxu0 0.0
  %6749 = vmatpush.msra.mxu0 0.0
  %6750 = vmatpush.msra.mxu0 0.0
  %6751 = vmatpush.msra.mxu0 0.0
  %6752 = vmatpush.msra.mxu0 0.0
  %6753 = vmatpush.msra.mxu0 %v5013
  %6754 = vmatpush.msra.mxu0 %v4959
  %6755 = vmatpush.msra.mxu0 %v4905
  %6756 = vmatmul.f32.gmra.mxu0 %v6732
  %v6757 = vpop.f32.mrf.mxu0
  %v6758 = vadd.f32 0.0, %v6757
  %6759 = vmatmul.f32.gmra.mxu0 %v6735
  %v6760 = vpop.f32.mrf.mxu0
  %v6761 = vadd.f32 0.0, %v6760
  %6762 = vmatmul.f32.gmra.mxu0 %v6738
  %v6763 = vpop.f32.mrf.mxu0
  %v6764 = vadd.f32 0.0, %v6763
  %6765 = vdwg.mxu0
  %v6767 = vsel %vm5817, %v6334, 0
  %v6770 = vsel %vm5817, %v6335, 0
  %v6773 = vsel %vm5817, %v6336, 0
  %6775 = vmatpush.msra.mxu0 0.0
  %6776 = vmatpush.msra.mxu0 0.0
  %6777 = vmatpush.msra.mxu0 0.0
  %6778 = vmatpush.msra.mxu0 0.0
  %6779 = vmatpush.msra.mxu0 0.0
  %6780 = vmatpush.msra.mxu0 0.0
  %6781 = vmatpush.msra.mxu0 0.0
  %6782 = vmatpush.msra.mxu0 0.0
  %6783 = vmatpush.msra.mxu0 0.0
  %6784 = vmatpush.msra.mxu0 0.0
  %6785 = vmatpush.msra.mxu0 0.0
  %6786 = vmatpush.msra.mxu0 0.0
  %6787 = vmatpush.msra.mxu0 0.0
  %6788 = vmatpush.msra.mxu0 %v4529
  %6789 = vmatpush.msra.mxu0 %v4475
  %6790 = vmatpush.msra.mxu0 %v4421
  %6791 = vmatmul.f32.gmra.mxu0 %v6767
  %v6792 = vpop.f32.mrf.mxu0
  %v6793 = vadd.f32 0.0, %v6792
  %6794 = vmatmul.f32.gmra.mxu0 %v6770
  %v6795 = vpop.f32.mrf.mxu0
  %v6796 = vadd.f32 0.0, %v6795
  %6797 = vmatmul.f32.gmra.mxu0 %v6773
  %v6798 = vpop.f32.mrf.mxu0
  %v6799 = vadd.f32 0.0, %v6798
  %6800 = vdwg.mxu0
  %v6802 = vsel %vm5817, %v6337, 0
  %v6805 = vsel %vm5817, %v6338, 0
  %v6808 = vsel %vm5817, %v6339, 0
  %6810 = vmatpush.msra.mxu0 0.0
  %6811 = vmatpush.msra.mxu0 0.0
  %6812 = vmatpush.msra.mxu0 0.0
  %6813 = vmatpush.msra.mxu0 0.0
  %6814 = vmatpush.msra.mxu0 0.0
  %6815 = vmatpush.msra.mxu0 0.0
  %6816 = vmatpush.msra.mxu0 0.0
  %6817 = vmatpush.msra.mxu0 0.0
  %6818 = vmatpush.msra.mxu0 0.0
  %6819 = vmatpush.msra.mxu0 0.0
  %6820 = vmatpush.msra.mxu0 0.0
  %6821 = vmatpush.msra.mxu0 0.0
  %6822 = vmatpush.msra.mxu0 0.0
  %6823 = vmatpush.msra.mxu0 %v4691
  %6824 = vmatpush.msra.mxu0 %v4637
  %6825 = vmatpush.msra.mxu0 %v4583
  %6826 = vmatmul.f32.gmra.mxu0 %v6802
  %v6827 = vpop.f32.mrf.mxu0
  %v6828 = vadd.f32 0.0, %v6827
  %6829 = vmatmul.f32.gmra.mxu0 %v6805
  %v6830 = vpop.f32.mrf.mxu0
  %v6831 = vadd.f32 0.0, %v6830
  %6832 = vmatmul.f32.gmra.mxu0 %v6808
  %v6833 = vpop.f32.mrf.mxu0
  %v6834 = vadd.f32 0.0, %v6833
  %6835 = vdwg.mxu0
  %v6837 = vsel %vm5817, %v6340, 0
  %v6840 = vsel %vm5817, %v6341, 0
  %v6843 = vsel %vm5817, %v6342, 0
  %6845 = vmatpush.msra.mxu0 0.0
  %6846 = vmatpush.msra.mxu0 0.0
  %6847 = vmatpush.msra.mxu0 0.0
  %6848 = vmatpush.msra.mxu0 0.0
  %6849 = vmatpush.msra.mxu0 0.0
  %6850 = vmatpush.msra.mxu0 0.0
  %6851 = vmatpush.msra.mxu0 0.0
  %6852 = vmatpush.msra.mxu0 0.0
  %6853 = vmatpush.msra.mxu0 0.0
  %6854 = vmatpush.msra.mxu0 0.0
  %6855 = vmatpush.msra.mxu0 0.0
  %6856 = vmatpush.msra.mxu0 0.0
  %6857 = vmatpush.msra.mxu0 0.0
  %6858 = vmatpush.msra.mxu0 %v4853
  %6859 = vmatpush.msra.mxu0 %v4799
  %6860 = vmatpush.msra.mxu0 %v4745
  %6861 = vmatmul.f32.gmra.mxu0 %v6837
  %v6862 = vpop.f32.mrf.mxu0
  %v6863 = vadd.f32 0.0, %v6862
  %6864 = vmatmul.f32.gmra.mxu0 %v6840
  %v6865 = vpop.f32.mrf.mxu0
  %v6866 = vadd.f32 0.0, %v6865
  %6867 = vmatmul.f32.gmra.mxu0 %v6843
  %v6868 = vpop.f32.mrf.mxu0
  %v6869 = vadd.f32 0.0, %v6868
  %6870 = vdwg.mxu0
  %v6872 = vsel %vm5817, %v6343, 0
  %v6875 = vsel %vm5817, %v6344, 0
  %v6878 = vsel %vm5817, %v6345, 0
  %6880 = vmatpush.msra.mxu0 0.0
  %6881 = vmatpush.msra.mxu0 0.0
  %6882 = vmatpush.msra.mxu0 0.0
  %6883 = vmatpush.msra.mxu0 0.0
  %6884 = vmatpush.msra.mxu0 0.0
  %6885 = vmatpush.msra.mxu0 0.0
  %6886 = vmatpush.msra.mxu0 0.0
  %6887 = vmatpush.msra.mxu0 0.0
  %6888 = vmatpush.msra.mxu0 0.0
  %6889 = vmatpush.msra.mxu0 0.0
  %6890 = vmatpush.msra.mxu0 0.0
  %6891 = vmatpush.msra.mxu0 0.0
  %6892 = vmatpush.msra.mxu0 0.0
  %6893 = vmatpush.msra.mxu0 %v5015
  %6894 = vmatpush.msra.mxu0 %v4961
  %6895 = vmatpush.msra.mxu0 %v4907
  %6896 = vmatmul.f32.gmra.mxu0 %v6872
  %v6897 = vpop.f32.mrf.mxu0
  %v6898 = vadd.f32 0.0, %v6897
  %6899 = vmatmul.f32.gmra.mxu0 %v6875
  %v6900 = vpop.f32.mrf.mxu0
  %v6901 = vadd.f32 0.0, %v6900
  %6902 = vmatmul.f32.gmra.mxu0 %v6878
  %v6903 = vpop.f32.mrf.mxu0
  %v6904 = vadd.f32 0.0, %v6903
  %6905 = vdwg.mxu0
  %v6906 = vrot.slane %v6653, 4
  %v6907 = vsel %vm1008, %v6906, %v6373
  %v6908 = vrot.slane %v6373, 4
  %v6909 = vsel %vm1008, %v6653, %v6908
  %v6911 = vunpack.c.l.s4 1983009808
  %v6912 = vunpack.c.0.s8 %v6911
  %v6913 = vperm.slane %v6907, %v6912
  %v6915 = vunpack.c.l.s4 1983009808
  %v6916 = vunpack.c.0.s8 %v6915
  %v6917 = vperm.slane %v6909, %v6916
  %v6918 = vrot.slane %v6793, 4
  %v6919 = vsel %vm1008, %v6918, %v6513
  %v6920 = vrot.slane %v6513, 4
  %v6921 = vsel %vm1008, %v6793, %v6920
  %v6923 = vunpack.c.l.s4 1983009808
  %v6924 = vunpack.c.0.s8 %v6923
  %v6925 = vperm.slane %v6919, %v6924
  %v6927 = vunpack.c.l.s4 1983009808
  %v6928 = vunpack.c.0.s8 %v6927
  %v6929 = vperm.slane %v6921, %v6928
  %v6930 = vrot.slane %v6925, 4
  %v6931 = vsel %vm1008, %v6930, %v6913
  %v6932 = vrot.slane %v6913, 4
  %v6933 = vsel %vm1008, %v6925, %v6932
  %v6935 = vunpack.c.l.s4 1934713408
  %v6936 = vunpack.c.0.s8 %v6935
  %v6937 = vperm.slane %v6931, %v6936
  %v6939 = vunpack.c.l.s4 1934713408
  %v6940 = vunpack.c.0.s8 %v6939
  %v6941 = vperm.slane %v6933, %v6940
  %v6942 = vrot.slane %v6929, 4
  %v6943 = vsel %vm1008, %v6942, %v6917
  %v6944 = vrot.slane %v6917, 4
  %v6945 = vsel %vm1008, %v6929, %v6944
  %v6947 = vunpack.c.l.s4 1934713408
  %v6948 = vunpack.c.0.s8 %v6947
  %v6949 = vperm.slane %v6943, %v6948
  %v6951 = vunpack.c.l.s4 1934713408
  %v6952 = vunpack.c.0.s8 %v6951
  %v6953 = vperm.slane %v6945, %v6952
  %v6954 = vrot.slane %v6937, 4
  %v6955 = vsel %vm1008, 0.0, %v6954
  %v6956 = vrot.slane %v6941, 4
  %v6957 = vsel %vm1008, 0.0, %v6956
  %v6958 = vrot.slane %v6949, 4
  %v6959 = vsel %vm1008, 0.0, %v6958
  %v6960 = vrot.slane %v6953, 4
  %v6961 = vsel %vm1008, 0.0, %v6960
  %v6962 = vrot.slane %v6656, 4
  %v6963 = vsel %vm1008, %v6962, %v6376
  %v6964 = vrot.slane %v6376, 4
  %v6965 = vsel %vm1008, %v6656, %v6964
  %v6967 = vunpack.c.l.s4 1983009808
  %v6968 = vunpack.c.0.s8 %v6967
  %v6969 = vperm.slane %v6963, %v6968
  %v6971 = vunpack.c.l.s4 1983009808
  %v6972 = vunpack.c.0.s8 %v6971
  %v6973 = vperm.slane %v6965, %v6972
  %v6974 = vrot.slane %v6796, 4
  %v6975 = vsel %vm1008, %v6974, %v6516
  %v6976 = vrot.slane %v6516, 4
  %v6977 = vsel %vm1008, %v6796, %v6976
  %v6979 = vunpack.c.l.s4 1983009808
  %v6980 = vunpack.c.0.s8 %v6979
  %v6981 = vperm.slane %v6975, %v6980
  %v6983 = vunpack.c.l.s4 1983009808
  %v6984 = vunpack.c.0.s8 %v6983
  %v6985 = vperm.slane %v6977, %v6984
  %v6986 = vrot.slane %v6981, 4
  %v6987 = vsel %vm1008, %v6986, %v6969
  %v6988 = vrot.slane %v6969, 4
  %v6989 = vsel %vm1008, %v6981, %v6988
  %v6991 = vunpack.c.l.s4 1934713408
  %v6992 = vunpack.c.0.s8 %v6991
  %v6993 = vperm.slane %v6987, %v6992
  %v6995 = vunpack.c.l.s4 1934713408
  %v6996 = vunpack.c.0.s8 %v6995
  %v6997 = vperm.slane %v6989, %v6996
  %v6998 = vrot.slane %v6985, 4
  %v6999 = vsel %vm1008, %v6998, %v6973
  %v7000 = vrot.slane %v6973, 4
  %v7001 = vsel %vm1008, %v6985, %v7000
  %v7003 = vunpack.c.l.s4 1934713408
  %v7004 = vunpack.c.0.s8 %v7003
  %v7005 = vperm.slane %v6999, %v7004
  %v7007 = vunpack.c.l.s4 1934713408
  %v7008 = vunpack.c.0.s8 %v7007
  %v7009 = vperm.slane %v7001, %v7008
  %v7010 = vrot.slane %v6993, 4
  %v7011 = vsel %vm1008, 0.0, %v7010
  %v7012 = vrot.slane %v6997, 4
  %v7013 = vsel %vm1008, 0.0, %v7012
  %v7014 = vrot.slane %v7005, 4
  %v7015 = vsel %vm1008, 0.0, %v7014
  %v7016 = vrot.slane %v7009, 4
  %v7017 = vsel %vm1008, 0.0, %v7016
  %v7018 = vrot.slane %v6659, 4
  %v7019 = vsel %vm1008, %v7018, %v6379
  %v7020 = vrot.slane %v6379, 4
  %v7021 = vsel %vm1008, %v6659, %v7020
  %v7023 = vunpack.c.l.s4 1983009808
  %v7024 = vunpack.c.0.s8 %v7023
  %v7025 = vperm.slane %v7019, %v7024
  %v7027 = vunpack.c.l.s4 1983009808
  %v7028 = vunpack.c.0.s8 %v7027
  %v7029 = vperm.slane %v7021, %v7028
  %v7030 = vrot.slane %v6799, 4
  %v7031 = vsel %vm1008, %v7030, %v6519
  %v7032 = vrot.slane %v6519, 4
  %v7033 = vsel %vm1008, %v6799, %v7032
  %v7035 = vunpack.c.l.s4 1983009808
  %v7036 = vunpack.c.0.s8 %v7035
  %v7037 = vperm.slane %v7031, %v7036
  %v7039 = vunpack.c.l.s4 1983009808
  %v7040 = vunpack.c.0.s8 %v7039
  %v7041 = vperm.slane %v7033, %v7040
  %v7042 = vrot.slane %v7037, 4
  %v7043 = vsel %vm1008, %v7042, %v7025
  %v7044 = vrot.slane %v7025, 4
  %v7045 = vsel %vm1008, %v7037, %v7044
  %v7047 = vunpack.c.l.s4 1934713408
  %v7048 = vunpack.c.0.s8 %v7047
  %v7049 = vperm.slane %v7043, %v7048
  %v7051 = vunpack.c.l.s4 1934713408
  %v7052 = vunpack.c.0.s8 %v7051
  %v7053 = vperm.slane %v7045, %v7052
  %v7054 = vrot.slane %v7041, 4
  %v7055 = vsel %vm1008, %v7054, %v7029
  %v7056 = vrot.slane %v7029, 4
  %v7057 = vsel %vm1008, %v7041, %v7056
  %v7059 = vunpack.c.l.s4 1934713408
  %v7060 = vunpack.c.0.s8 %v7059
  %v7061 = vperm.slane %v7055, %v7060
  %v7063 = vunpack.c.l.s4 1934713408
  %v7064 = vunpack.c.0.s8 %v7063
  %v7065 = vperm.slane %v7057, %v7064
  %v7066 = vrot.slane %v7049, 4
  %v7067 = vsel %vm1008, 0.0, %v7066
  %v7068 = vrot.slane %v7053, 4
  %v7069 = vsel %vm1008, 0.0, %v7068
  %v7070 = vrot.slane %v7061, 4
  %v7071 = vsel %vm1008, 0.0, %v7070
  %v7072 = vrot.slane %v7065, 4
  %v7073 = vsel %vm1008, 0.0, %v7072
  %v7074 = vrot.slane %v6688, 4
  %v7075 = vsel %vm1008, %v7074, %v6408
  %v7076 = vrot.slane %v6408, 4
  %v7077 = vsel %vm1008, %v6688, %v7076
  %v7079 = vunpack.c.l.s4 1983009808
  %v7080 = vunpack.c.0.s8 %v7079
  %v7081 = vperm.slane %v7075, %v7080
  %v7083 = vunpack.c.l.s4 1983009808
  %v7084 = vunpack.c.0.s8 %v7083
  %v7085 = vperm.slane %v7077, %v7084
  %v7086 = vrot.slane %v6828, 4
  %v7087 = vsel %vm1008, %v7086, %v6548
  %v7088 = vrot.slane %v6548, 4
  %v7089 = vsel %vm1008, %v6828, %v7088
  %v7091 = vunpack.c.l.s4 1983009808
  %v7092 = vunpack.c.0.s8 %v7091
  %v7093 = vperm.slane %v7087, %v7092
  %v7095 = vunpack.c.l.s4 1983009808
  %v7096 = vunpack.c.0.s8 %v7095
  %v7097 = vperm.slane %v7089, %v7096
  %v7098 = vrot.slane %v7093, 4
  %v7099 = vsel %vm1008, %v7098, %v7081
  %v7100 = vrot.slane %v7081, 4
  %v7101 = vsel %vm1008, %v7093, %v7100
  %v7103 = vunpack.c.l.s4 1934713408
  %v7104 = vunpack.c.0.s8 %v7103
  %v7105 = vperm.slane %v7099, %v7104
  %v7107 = vunpack.c.l.s4 1934713408
  %v7108 = vunpack.c.0.s8 %v7107
  %v7109 = vperm.slane %v7101, %v7108
  %v7110 = vrot.slane %v7097, 4
  %v7111 = vsel %vm1008, %v7110, %v7085
  %v7112 = vrot.slane %v7085, 4
  %v7113 = vsel %vm1008, %v7097, %v7112
  %v7115 = vunpack.c.l.s4 1934713408
  %v7116 = vunpack.c.0.s8 %v7115
  %v7117 = vperm.slane %v7111, %v7116
  %v7119 = vunpack.c.l.s4 1934713408
  %v7120 = vunpack.c.0.s8 %v7119
  %v7121 = vperm.slane %v7113, %v7120
  %v7122 = vrot.slane %v7105, 4
  %v7123 = vsel %vm1008, 0.0, %v7122
  %v7124 = vrot.slane %v7109, 4
  %v7125 = vsel %vm1008, 0.0, %v7124
  %v7126 = vrot.slane %v7117, 4
  %v7127 = vsel %vm1008, 0.0, %v7126
  %v7128 = vrot.slane %v7121, 4
  %v7129 = vsel %vm1008, 0.0, %v7128
  %v7130 = vrot.slane %v6691, 4
  %v7131 = vsel %vm1008, %v7130, %v6411
  %v7132 = vrot.slane %v6411, 4
  %v7133 = vsel %vm1008, %v6691, %v7132
  %v7135 = vunpack.c.l.s4 1983009808
  %v7136 = vunpack.c.0.s8 %v7135
  %v7137 = vperm.slane %v7131, %v7136
  %v7139 = vunpack.c.l.s4 1983009808
  %v7140 = vunpack.c.0.s8 %v7139
  %v7141 = vperm.slane %v7133, %v7140
  %v7142 = vrot.slane %v6831, 4
  %v7143 = vsel %vm1008, %v7142, %v6551
  %v7144 = vrot.slane %v6551, 4
  %v7145 = vsel %vm1008, %v6831, %v7144
  %v7147 = vunpack.c.l.s4 1983009808
  %v7148 = vunpack.c.0.s8 %v7147
  %v7149 = vperm.slane %v7143, %v7148
  %v7151 = vunpack.c.l.s4 1983009808
  %v7152 = vunpack.c.0.s8 %v7151
  %v7153 = vperm.slane %v7145, %v7152
  %v7154 = vrot.slane %v7149, 4
  %v7155 = vsel %vm1008, %v7154, %v7137
  %v7156 = vrot.slane %v7137, 4
  %v7157 = vsel %vm1008, %v7149, %v7156
  %v7159 = vunpack.c.l.s4 1934713408
  %v7160 = vunpack.c.0.s8 %v7159
  %v7161 = vperm.slane %v7155, %v7160
  %v7163 = vunpack.c.l.s4 1934713408
  %v7164 = vunpack.c.0.s8 %v7163
  %v7165 = vperm.slane %v7157, %v7164
  %v7166 = vrot.slane %v7153, 4
  %v7167 = vsel %vm1008, %v7166, %v7141
  %v7168 = vrot.slane %v7141, 4
  %v7169 = vsel %vm1008, %v7153, %v7168
  %v7171 = vunpack.c.l.s4 1934713408
  %v7172 = vunpack.c.0.s8 %v7171
  %v7173 = vperm.slane %v7167, %v7172
  %v7175 = vunpack.c.l.s4 1934713408
  %v7176 = vunpack.c.0.s8 %v7175
  %v7177 = vperm.slane %v7169, %v7176
  %v7178 = vrot.slane %v7161, 4
  %v7179 = vsel %vm1008, 0.0, %v7178
  %v7180 = vrot.slane %v7165, 4
  %v7181 = vsel %vm1008, 0.0, %v7180
  %v7182 = vrot.slane %v7173, 4
  %v7183 = vsel %vm1008, 0.0, %v7182
  %v7184 = vrot.slane %v7177, 4
  %v7185 = vsel %vm1008, 0.0, %v7184
  %v7186 = vrot.slane %v6694, 4
  %v7187 = vsel %vm1008, %v7186, %v6414
  %v7188 = vrot.slane %v6414, 4
  %v7189 = vsel %vm1008, %v6694, %v7188
  %v7191 = vunpack.c.l.s4 1983009808
  %v7192 = vunpack.c.0.s8 %v7191
  %v7193 = vperm.slane %v7187, %v7192
  %v7195 = vunpack.c.l.s4 1983009808
  %v7196 = vunpack.c.0.s8 %v7195
  %v7197 = vperm.slane %v7189, %v7196
  %v7198 = vrot.slane %v6834, 4
  %v7199 = vsel %vm1008, %v7198, %v6554
  %v7200 = vrot.slane %v6554, 4
  %v7201 = vsel %vm1008, %v6834, %v7200
  %v7203 = vunpack.c.l.s4 1983009808
  %v7204 = vunpack.c.0.s8 %v7203
  %v7205 = vperm.slane %v7199, %v7204
  %v7207 = vunpack.c.l.s4 1983009808
  %v7208 = vunpack.c.0.s8 %v7207
  %v7209 = vperm.slane %v7201, %v7208
  %v7210 = vrot.slane %v7205, 4
  %v7211 = vsel %vm1008, %v7210, %v7193
  %v7212 = vrot.slane %v7193, 4
  %v7213 = vsel %vm1008, %v7205, %v7212
  %v7215 = vunpack.c.l.s4 1934713408
  %v7216 = vunpack.c.0.s8 %v7215
  %v7217 = vperm.slane %v7211, %v7216
  %v7219 = vunpack.c.l.s4 1934713408
  %v7220 = vunpack.c.0.s8 %v7219
  %v7221 = vperm.slane %v7213, %v7220
  %v7222 = vrot.slane %v7209, 4
  %v7223 = vsel %vm1008, %v7222, %v7197
  %v7224 = vrot.slane %v7197, 4
  %v7225 = vsel %vm1008, %v7209, %v7224
  %v7227 = vunpack.c.l.s4 1934713408
  %v7228 = vunpack.c.0.s8 %v7227
  %v7229 = vperm.slane %v7223, %v7228
  %v7231 = vunpack.c.l.s4 1934713408
  %v7232 = vunpack.c.0.s8 %v7231
  %v7233 = vperm.slane %v7225, %v7232
  %v7234 = vrot.slane %v7217, 4
  %v7235 = vsel %vm1008, 0.0, %v7234
  %v7236 = vrot.slane %v7221, 4
  %v7237 = vsel %vm1008, 0.0, %v7236
  %v7238 = vrot.slane %v7229, 4
  %v7239 = vsel %vm1008, 0.0, %v7238
  %v7240 = vrot.slane %v7233, 4
  %v7241 = vsel %vm1008, 0.0, %v7240
  %v7242 = vrot.slane %v6723, 4
  %v7243 = vsel %vm1008, %v7242, %v6443
  %v7244 = vrot.slane %v6443, 4
  %v7245 = vsel %vm1008, %v6723, %v7244
  %v7247 = vunpack.c.l.s4 1983009808
  %v7248 = vunpack.c.0.s8 %v7247
  %v7249 = vperm.slane %v7243, %v7248
  %v7251 = vunpack.c.l.s4 1983009808
  %v7252 = vunpack.c.0.s8 %v7251
  %v7253 = vperm.slane %v7245, %v7252
  %v7254 = vrot.slane %v6863, 4
  %v7255 = vsel %vm1008, %v7254, %v6583
  %v7256 = vrot.slane %v6583, 4
  %v7257 = vsel %vm1008, %v6863, %v7256
  %v7259 = vunpack.c.l.s4 1983009808
  %v7260 = vunpack.c.0.s8 %v7259
  %v7261 = vperm.slane %v7255, %v7260
  %v7263 = vunpack.c.l.s4 1983009808
  %v7264 = vunpack.c.0.s8 %v7263
  %v7265 = vperm.slane %v7257, %v7264
  %v7266 = vrot.slane %v7261, 4
  %v7267 = vsel %vm1008, %v7266, %v7249
  %v7268 = vrot.slane %v7249, 4
  %v7269 = vsel %vm1008, %v7261, %v7268
  %v7271 = vunpack.c.l.s4 1934713408
  %v7272 = vunpack.c.0.s8 %v7271
  %v7273 = vperm.slane %v7267, %v7272
  %v7275 = vunpack.c.l.s4 1934713408
  %v7276 = vunpack.c.0.s8 %v7275
  %v7277 = vperm.slane %v7269, %v7276
  %v7278 = vrot.slane %v7265, 4
  %v7279 = vsel %vm1008, %v7278, %v7253
  %v7280 = vrot.slane %v7253, 4
  %v7281 = vsel %vm1008, %v7265, %v7280
  %v7283 = vunpack.c.l.s4 1934713408
  %v7284 = vunpack.c.0.s8 %v7283
  %v7285 = vperm.slane %v7279, %v7284
  %v7287 = vunpack.c.l.s4 1934713408
  %v7288 = vunpack.c.0.s8 %v7287
  %v7289 = vperm.slane %v7281, %v7288
  %v7290 = vrot.slane %v7273, 4
  %v7291 = vsel %vm1008, 0.0, %v7290
  %v7292 = vrot.slane %v7277, 4
  %v7293 = vsel %vm1008, 0.0, %v7292
  %v7294 = vrot.slane %v7285, 4
  %v7295 = vsel %vm1008, 0.0, %v7294
  %v7296 = vrot.slane %v7289, 4
  %v7297 = vsel %vm1008, 0.0, %v7296
  %v7298 = vrot.slane %v6726, 4
  %v7299 = vsel %vm1008, %v7298, %v6446
  %v7300 = vrot.slane %v6446, 4
  %v7301 = vsel %vm1008, %v6726, %v7300
  %v7303 = vunpack.c.l.s4 1983009808
  %v7304 = vunpack.c.0.s8 %v7303
  %v7305 = vperm.slane %v7299, %v7304
  %v7307 = vunpack.c.l.s4 1983009808
  %v7308 = vunpack.c.0.s8 %v7307
  %v7309 = vperm.slane %v7301, %v7308
  %v7310 = vrot.slane %v6866, 4
  %v7311 = vsel %vm1008, %v7310, %v6586
  %v7312 = vrot.slane %v6586, 4
  %v7313 = vsel %vm1008, %v6866, %v7312
  %v7315 = vunpack.c.l.s4 1983009808
  %v7316 = vunpack.c.0.s8 %v7315
  %v7317 = vperm.slane %v7311, %v7316
  %v7319 = vunpack.c.l.s4 1983009808
  %v7320 = vunpack.c.0.s8 %v7319
  %v7321 = vperm.slane %v7313, %v7320
  %v7322 = vrot.slane %v7317, 4
  %v7323 = vsel %vm1008, %v7322, %v7305
  %v7324 = vrot.slane %v7305, 4
  %v7325 = vsel %vm1008, %v7317, %v7324
  %v7327 = vunpack.c.l.s4 1934713408
  %v7328 = vunpack.c.0.s8 %v7327
  %v7329 = vperm.slane %v7323, %v7328
  %v7331 = vunpack.c.l.s4 1934713408
  %v7332 = vunpack.c.0.s8 %v7331
  %v7333 = vperm.slane %v7325, %v7332
  %v7334 = vrot.slane %v7321, 4
  %v7335 = vsel %vm1008, %v7334, %v7309
  %v7336 = vrot.slane %v7309, 4
  %v7337 = vsel %vm1008, %v7321, %v7336
  %v7339 = vunpack.c.l.s4 1934713408
  %v7340 = vunpack.c.0.s8 %v7339
  %v7341 = vperm.slane %v7335, %v7340
  %v7343 = vunpack.c.l.s4 1934713408
  %v7344 = vunpack.c.0.s8 %v7343
  %v7345 = vperm.slane %v7337, %v7344
  %v7346 = vrot.slane %v7329, 4
  %v7347 = vsel %vm1008, 0.0, %v7346
  %v7348 = vrot.slane %v7333, 4
  %v7349 = vsel %vm1008, 0.0, %v7348
  %v7350 = vrot.slane %v7341, 4
  %v7351 = vsel %vm1008, 0.0, %v7350
  %v7352 = vrot.slane %v7345, 4
  %v7353 = vsel %vm1008, 0.0, %v7352
  %v7354 = vrot.slane %v6729, 4
  %v7355 = vsel %vm1008, %v7354, %v6449
  %v7356 = vrot.slane %v6449, 4
  %v7357 = vsel %vm1008, %v6729, %v7356
  %v7359 = vunpack.c.l.s4 1983009808
  %v7360 = vunpack.c.0.s8 %v7359
  %v7361 = vperm.slane %v7355, %v7360
  %v7363 = vunpack.c.l.s4 1983009808
  %v7364 = vunpack.c.0.s8 %v7363
  %v7365 = vperm.slane %v7357, %v7364
  %v7366 = vrot.slane %v6869, 4
  %v7367 = vsel %vm1008, %v7366, %v6589
  %v7368 = vrot.slane %v6589, 4
  %v7369 = vsel %vm1008, %v6869, %v7368
  %v7371 = vunpack.c.l.s4 1983009808
  %v7372 = vunpack.c.0.s8 %v7371
  %v7373 = vperm.slane %v7367, %v7372
  %v7375 = vunpack.c.l.s4 1983009808
  %v7376 = vunpack.c.0.s8 %v7375
  %v7377 = vperm.slane %v7369, %v7376
  %v7378 = vrot.slane %v7373, 4
  %v7379 = vsel %vm1008, %v7378, %v7361
  %v7380 = vrot.slane %v7361, 4
  %v7381 = vsel %vm1008, %v7373, %v7380
  %v7383 = vunpack.c.l.s4 1934713408
  %v7384 = vunpack.c.0.s8 %v7383
  %v7385 = vperm.slane %v7379, %v7384
  %v7387 = vunpack.c.l.s4 1934713408
  %v7388 = vunpack.c.0.s8 %v7387
  %v7389 = vperm.slane %v7381, %v7388
  %v7390 = vrot.slane %v7377, 4
  %v7391 = vsel %vm1008, %v7390, %v7365
  %v7392 = vrot.slane %v7365, 4
  %v7393 = vsel %vm1008, %v7377, %v7392
  %v7395 = vunpack.c.l.s4 1934713408
  %v7396 = vunpack.c.0.s8 %v7395
  %v7397 = vperm.slane %v7391, %v7396
  %v7399 = vunpack.c.l.s4 1934713408
  %v7400 = vunpack.c.0.s8 %v7399
  %v7401 = vperm.slane %v7393, %v7400
  %v7402 = vrot.slane %v7385, 4
  %v7403 = vsel %vm1008, 0.0, %v7402
  %v7404 = vrot.slane %v7389, 4
  %v7405 = vsel %vm1008, 0.0, %v7404
  %v7406 = vrot.slane %v7397, 4
  %v7407 = vsel %vm1008, 0.0, %v7406
  %v7408 = vrot.slane %v7401, 4
  %v7409 = vsel %vm1008, 0.0, %v7408
  %v7410 = vrot.slane %v6758, 4
  %v7411 = vsel %vm1008, %v7410, %v6478
  %v7412 = vrot.slane %v6478, 4
  %v7413 = vsel %vm1008, %v6758, %v7412
  %v7415 = vunpack.c.l.s4 1983009808
  %v7416 = vunpack.c.0.s8 %v7415
  %v7417 = vperm.slane %v7411, %v7416
  %v7419 = vunpack.c.l.s4 1983009808
  %v7420 = vunpack.c.0.s8 %v7419
  %v7421 = vperm.slane %v7413, %v7420
  %v7422 = vrot.slane %v6898, 4
  %v7423 = vsel %vm1008, %v7422, %v6618
  %v7424 = vrot.slane %v6618, 4
  %v7425 = vsel %vm1008, %v6898, %v7424
  %v7427 = vunpack.c.l.s4 1983009808
  %v7428 = vunpack.c.0.s8 %v7427
  %v7429 = vperm.slane %v7423, %v7428
  %v7431 = vunpack.c.l.s4 1983009808
  %v7432 = vunpack.c.0.s8 %v7431
  %v7433 = vperm.slane %v7425, %v7432
  %v7434 = vrot.slane %v7429, 4
  %v7435 = vsel %vm1008, %v7434, %v7417
  %v7436 = vrot.slane %v7417, 4
  %v7437 = vsel %vm1008, %v7429, %v7436
  %v7439 = vunpack.c.l.s4 1934713408
  %v7440 = vunpack.c.0.s8 %v7439
  %v7441 = vperm.slane %v7435, %v7440
  %v7443 = vunpack.c.l.s4 1934713408
  %v7444 = vunpack.c.0.s8 %v7443
  %v7445 = vperm.slane %v7437, %v7444
  %v7446 = vrot.slane %v7433, 4
  %v7447 = vsel %vm1008, %v7446, %v7421
  %v7448 = vrot.slane %v7421, 4
  %v7449 = vsel %vm1008, %v7433, %v7448
  %v7451 = vunpack.c.l.s4 1934713408
  %v7452 = vunpack.c.0.s8 %v7451
  %v7453 = vperm.slane %v7447, %v7452
  %v7455 = vunpack.c.l.s4 1934713408
  %v7456 = vunpack.c.0.s8 %v7455
  %v7457 = vperm.slane %v7449, %v7456
  %v7458 = vrot.slane %v7441, 4
  %v7459 = vsel %vm1008, 0.0, %v7458
  %v7460 = vrot.slane %v7445, 4
  %v7461 = vsel %vm1008, 0.0, %v7460
  %v7462 = vrot.slane %v7453, 4
  %v7463 = vsel %vm1008, 0.0, %v7462
  %v7464 = vrot.slane %v7457, 4
  %v7465 = vsel %vm1008, 0.0, %v7464
  %v7466 = vrot.slane %v6761, 4
  %v7467 = vsel %vm1008, %v7466, %v6481
  %v7468 = vrot.slane %v6481, 4
  %v7469 = vsel %vm1008, %v6761, %v7468
  %v7471 = vunpack.c.l.s4 1983009808
  %v7472 = vunpack.c.0.s8 %v7471
  %v7473 = vperm.slane %v7467, %v7472
  %v7475 = vunpack.c.l.s4 1983009808
  %v7476 = vunpack.c.0.s8 %v7475
  %v7477 = vperm.slane %v7469, %v7476
  %v7478 = vrot.slane %v6901, 4
  %v7479 = vsel %vm1008, %v7478, %v6621
  %v7480 = vrot.slane %v6621, 4
  %v7481 = vsel %vm1008, %v6901, %v7480
  %v7483 = vunpack.c.l.s4 1983009808
  %v7484 = vunpack.c.0.s8 %v7483
  %v7485 = vperm.slane %v7479, %v7484
  %v7487 = vunpack.c.l.s4 1983009808
  %v7488 = vunpack.c.0.s8 %v7487
  %v7489 = vperm.slane %v7481, %v7488
  %v7490 = vrot.slane %v7485, 4
  %v7491 = vsel %vm1008, %v7490, %v7473
  %v7492 = vrot.slane %v7473, 4
  %v7493 = vsel %vm1008, %v7485, %v7492
  %v7495 = vunpack.c.l.s4 1934713408
  %v7496 = vunpack.c.0.s8 %v7495
  %v7497 = vperm.slane %v7491, %v7496
  %v7499 = vunpack.c.l.s4 1934713408
  %v7500 = vunpack.c.0.s8 %v7499
  %v7501 = vperm.slane %v7493, %v7500
  %v7502 = vrot.slane %v7489, 4
  %v7503 = vsel %vm1008, %v7502, %v7477
  %v7504 = vrot.slane %v7477, 4
  %v7505 = vsel %vm1008, %v7489, %v7504
  %v7507 = vunpack.c.l.s4 1934713408
  %v7508 = vunpack.c.0.s8 %v7507
  %v7509 = vperm.slane %v7503, %v7508
  %v7511 = vunpack.c.l.s4 1934713408
  %v7512 = vunpack.c.0.s8 %v7511
  %v7513 = vperm.slane %v7505, %v7512
  %v7514 = vrot.slane %v7497, 4
  %v7515 = vsel %vm1008, 0.0, %v7514
  %v7516 = vrot.slane %v7501, 4
  %v7517 = vsel %vm1008, 0.0, %v7516
  %v7518 = vrot.slane %v7509, 4
  %v7519 = vsel %vm1008, 0.0, %v7518
  %v7520 = vrot.slane %v7513, 4
  %v7521 = vsel %vm1008, 0.0, %v7520
  %v7522 = vrot.slane %v6764, 4
  %v7523 = vsel %vm1008, %v7522, %v6484
  %v7524 = vrot.slane %v6484, 4
  %v7525 = vsel %vm1008, %v6764, %v7524
  %v7527 = vunpack.c.l.s4 1983009808
  %v7528 = vunpack.c.0.s8 %v7527
  %v7529 = vperm.slane %v7523, %v7528
  %v7531 = vunpack.c.l.s4 1983009808
  %v7532 = vunpack.c.0.s8 %v7531
  %v7533 = vperm.slane %v7525, %v7532
  %v7534 = vrot.slane %v6904, 4
  %v7535 = vsel %vm1008, %v7534, %v6624
  %v7536 = vrot.slane %v6624, 4
  %v7537 = vsel %vm1008, %v6904, %v7536
  %v7539 = vunpack.c.l.s4 1983009808
  %v7540 = vunpack.c.0.s8 %v7539
  %v7541 = vperm.slane %v7535, %v7540
  %v7543 = vunpack.c.l.s4 1983009808
  %v7544 = vunpack.c.0.s8 %v7543
  %v7545 = vperm.slane %v7537, %v7544
  %v7546 = vrot.slane %v7541, 4
  %v7547 = vsel %vm1008, %v7546, %v7529
  %v7548 = vrot.slane %v7529, 4
  %v7549 = vsel %vm1008, %v7541, %v7548
  %v7551 = vunpack.c.l.s4 1934713408
  %v7552 = vunpack.c.0.s8 %v7551
  %v7553 = vperm.slane %v7547, %v7552
  %v7555 = vunpack.c.l.s4 1934713408
  %v7556 = vunpack.c.0.s8 %v7555
  %v7557 = vperm.slane %v7549, %v7556
  %v7558 = vrot.slane %v7545, 4
  %v7559 = vsel %vm1008, %v7558, %v7533
  %v7560 = vrot.slane %v7533, 4
  %v7561 = vsel %vm1008, %v7545, %v7560
  %v7563 = vunpack.c.l.s4 1934713408
  %v7564 = vunpack.c.0.s8 %v7563
  %v7565 = vperm.slane %v7559, %v7564
  %v7567 = vunpack.c.l.s4 1934713408
  %v7568 = vunpack.c.0.s8 %v7567
  %v7569 = vperm.slane %v7561, %v7568
  %v7570 = vrot.slane %v7553, 4
  %v7571 = vsel %vm1008, 0.0, %v7570
  %v7572 = vrot.slane %v7557, 4
  %v7573 = vsel %vm1008, 0.0, %v7572
  %v7574 = vrot.slane %v7565, 4
  %v7575 = vsel %vm1008, 0.0, %v7574
  %v7576 = vrot.slane %v7569, 4
  %v7577 = vsel %vm1008, 0.0, %v7576
  %v7578 = vsel %vm1008, %v6956, %v6937
  %v7580 = vunpack.c.l.s4 1983009808
  %v7581 = vunpack.c.0.s8 %v7580
  %v7582 = vperm.slane %v7578, %v7581
  %v7583 = vrot.slane %v6957, 4
  %v7584 = vsel %vm1008, %v7583, %v6955
  %v7586 = vunpack.c.l.s4 1983009808
  %v7587 = vunpack.c.0.s8 %v7586
  %v7588 = vperm.slane %v7584, %v7587
  %v7589 = vsel %vm1008, %v6960, %v6949
  %v7591 = vunpack.c.l.s4 1983009808
  %v7592 = vunpack.c.0.s8 %v7591
  %v7593 = vperm.slane %v7589, %v7592
  %v7594 = vrot.slane %v6961, 4
  %v7595 = vsel %vm1008, %v7594, %v6959
  %v7597 = vunpack.c.l.s4 1983009808
  %v7598 = vunpack.c.0.s8 %v7597
  %v7599 = vperm.slane %v7595, %v7598
  %v7600 = vrot.slane %v7588, 4
  %v7601 = vsel %vm1008, %v7600, %v7582
  %v7602 = vrot.slane %v7582, 4
  %v7603 = vsel %vm1008, %v7588, %v7602
  %v7605 = vunpack.c.l.s4 1934713408
  %v7606 = vunpack.c.0.s8 %v7605
  %v7607 = vperm.slane %v7601, %v7606
  %v7609 = vunpack.c.l.s4 1934713408
  %v7610 = vunpack.c.0.s8 %v7609
  %v7611 = vperm.slane %v7603, %v7610
  %v7612 = vrot.slane %v7599, 4
  %v7613 = vsel %vm1008, %v7612, %v7593
  %v7614 = vrot.slane %v7593, 4
  %v7615 = vsel %vm1008, %v7599, %v7614
  %v7617 = vunpack.c.l.s4 1934713408
  %v7618 = vunpack.c.0.s8 %v7617
  %v7619 = vperm.slane %v7613, %v7618
  %v7621 = vunpack.c.l.s4 1934713408
  %v7622 = vunpack.c.0.s8 %v7621
  %v7623 = vperm.slane %v7615, %v7622
  %v7624 = vrot.slane %v7619, 4
  %v7625 = vsel %vm1008, %v7624, %v7607
  %v7626 = vrot.slane %v7607, 4
  %v7627 = vsel %vm1008, %v7619, %v7626
  %v7628 = vrot.slane %v7623, 4
  %v7629 = vsel %vm1008, %v7628, %v7611
  %v7630 = vrot.slane %v7611, 4
  %v7631 = vsel %vm1008, %v7623, %v7630
  %v7632 = vsel %vm1008, %v7012, %v6993
  %v7634 = vunpack.c.l.s4 1983009808
  %v7635 = vunpack.c.0.s8 %v7634
  %v7636 = vperm.slane %v7632, %v7635
  %v7637 = vrot.slane %v7013, 4
  %v7638 = vsel %vm1008, %v7637, %v7011
  %v7640 = vunpack.c.l.s4 1983009808
  %v7641 = vunpack.c.0.s8 %v7640
  %v7642 = vperm.slane %v7638, %v7641
  %v7643 = vsel %vm1008, %v7016, %v7005
  %v7645 = vunpack.c.l.s4 1983009808
  %v7646 = vunpack.c.0.s8 %v7645
  %v7647 = vperm.slane %v7643, %v7646
  %v7648 = vrot.slane %v7017, 4
  %v7649 = vsel %vm1008, %v7648, %v7015
  %v7651 = vunpack.c.l.s4 1983009808
  %v7652 = vunpack.c.0.s8 %v7651
  %v7653 = vperm.slane %v7649, %v7652
  %v7654 = vrot.slane %v7642, 4
  %v7655 = vsel %vm1008, %v7654, %v7636
  %v7656 = vrot.slane %v7636, 4
  %v7657 = vsel %vm1008, %v7642, %v7656
  %v7659 = vunpack.c.l.s4 1934713408
  %v7660 = vunpack.c.0.s8 %v7659
  %v7661 = vperm.slane %v7655, %v7660
  %v7663 = vunpack.c.l.s4 1934713408
  %v7664 = vunpack.c.0.s8 %v7663
  %v7665 = vperm.slane %v7657, %v7664
  %v7666 = vrot.slane %v7653, 4
  %v7667 = vsel %vm1008, %v7666, %v7647
  %v7668 = vrot.slane %v7647, 4
  %v7669 = vsel %vm1008, %v7653, %v7668
  %v7671 = vunpack.c.l.s4 1934713408
  %v7672 = vunpack.c.0.s8 %v7671
  %v7673 = vperm.slane %v7667, %v7672
  %v7675 = vunpack.c.l.s4 1934713408
  %v7676 = vunpack.c.0.s8 %v7675
  %v7677 = vperm.slane %v7669, %v7676
  %v7678 = vrot.slane %v7673, 4
  %v7679 = vsel %vm1008, %v7678, %v7661
  %v7680 = vrot.slane %v7661, 4
  %v7681 = vsel %vm1008, %v7673, %v7680
  %v7682 = vrot.slane %v7677, 4
  %v7683 = vsel %vm1008, %v7682, %v7665
  %v7684 = vrot.slane %v7665, 4
  %v7685 = vsel %vm1008, %v7677, %v7684
  %v7686 = vsel %vm1008, %v7068, %v7049
  %v7688 = vunpack.c.l.s4 1983009808
  %v7689 = vunpack.c.0.s8 %v7688
  %v7690 = vperm.slane %v7686, %v7689
  %v7691 = vrot.slane %v7069, 4
  %v7692 = vsel %vm1008, %v7691, %v7067
  %v7694 = vunpack.c.l.s4 1983009808
  %v7695 = vunpack.c.0.s8 %v7694
  %v7696 = vperm.slane %v7692, %v7695
  %v7697 = vsel %vm1008, %v7072, %v7061
  %v7699 = vunpack.c.l.s4 1983009808
  %v7700 = vunpack.c.0.s8 %v7699
  %v7701 = vperm.slane %v7697, %v7700
  %v7702 = vrot.slane %v7073, 4
  %v7703 = vsel %vm1008, %v7702, %v7071
  %v7705 = vunpack.c.l.s4 1983009808
  %v7706 = vunpack.c.0.s8 %v7705
  %v7707 = vperm.slane %v7703, %v7706
  %v7708 = vrot.slane %v7696, 4
  %v7709 = vsel %vm1008, %v7708, %v7690
  %v7710 = vrot.slane %v7690, 4
  %v7711 = vsel %vm1008, %v7696, %v7710
  %v7713 = vunpack.c.l.s4 1934713408
  %v7714 = vunpack.c.0.s8 %v7713
  %v7715 = vperm.slane %v7709, %v7714
  %v7717 = vunpack.c.l.s4 1934713408
  %v7718 = vunpack.c.0.s8 %v7717
  %v7719 = vperm.slane %v7711, %v7718
  %v7720 = vrot.slane %v7707, 4
  %v7721 = vsel %vm1008, %v7720, %v7701
  %v7722 = vrot.slane %v7701, 4
  %v7723 = vsel %vm1008, %v7707, %v7722
  %v7725 = vunpack.c.l.s4 1934713408
  %v7726 = vunpack.c.0.s8 %v7725
  %v7727 = vperm.slane %v7721, %v7726
  %v7729 = vunpack.c.l.s4 1934713408
  %v7730 = vunpack.c.0.s8 %v7729
  %v7731 = vperm.slane %v7723, %v7730
  %v7732 = vrot.slane %v7727, 4
  %v7733 = vsel %vm1008, %v7732, %v7715
  %v7734 = vrot.slane %v7715, 4
  %v7735 = vsel %vm1008, %v7727, %v7734
  %v7736 = vrot.slane %v7731, 4
  %v7737 = vsel %vm1008, %v7736, %v7719
  %v7738 = vrot.slane %v7719, 4
  %v7739 = vsel %vm1008, %v7731, %v7738
  %v7740 = vsel %vm1008, %v7124, %v7105
  %v7742 = vunpack.c.l.s4 1983009808
  %v7743 = vunpack.c.0.s8 %v7742
  %v7744 = vperm.slane %v7740, %v7743
  %v7745 = vrot.slane %v7125, 4
  %v7746 = vsel %vm1008, %v7745, %v7123
  %v7748 = vunpack.c.l.s4 1983009808
  %v7749 = vunpack.c.0.s8 %v7748
  %v7750 = vperm.slane %v7746, %v7749
  %v7751 = vsel %vm1008, %v7128, %v7117
  %v7753 = vunpack.c.l.s4 1983009808
  %v7754 = vunpack.c.0.s8 %v7753
  %v7755 = vperm.slane %v7751, %v7754
  %v7756 = vrot.slane %v7129, 4
  %v7757 = vsel %vm1008, %v7756, %v7127
  %v7759 = vunpack.c.l.s4 1983009808
  %v7760 = vunpack.c.0.s8 %v7759
  %v7761 = vperm.slane %v7757, %v7760
  %v7762 = vrot.slane %v7750, 4
  %v7763 = vsel %vm1008, %v7762, %v7744
  %v7764 = vrot.slane %v7744, 4
  %v7765 = vsel %vm1008, %v7750, %v7764
  %v7767 = vunpack.c.l.s4 1934713408
  %v7768 = vunpack.c.0.s8 %v7767
  %v7769 = vperm.slane %v7763, %v7768
  %v7771 = vunpack.c.l.s4 1934713408
  %v7772 = vunpack.c.0.s8 %v7771
  %v7773 = vperm.slane %v7765, %v7772
  %v7774 = vrot.slane %v7761, 4
  %v7775 = vsel %vm1008, %v7774, %v7755
  %v7776 = vrot.slane %v7755, 4
  %v7777 = vsel %vm1008, %v7761, %v7776
  %v7779 = vunpack.c.l.s4 1934713408
  %v7780 = vunpack.c.0.s8 %v7779
  %v7781 = vperm.slane %v7775, %v7780
  %v7783 = vunpack.c.l.s4 1934713408
  %v7784 = vunpack.c.0.s8 %v7783
  %v7785 = vperm.slane %v7777, %v7784
  %v7786 = vrot.slane %v7781, 4
  %v7787 = vsel %vm1008, %v7786, %v7769
  %v7788 = vrot.slane %v7769, 4
  %v7789 = vsel %vm1008, %v7781, %v7788
  %v7790 = vrot.slane %v7785, 4
  %v7791 = vsel %vm1008, %v7790, %v7773
  %v7792 = vrot.slane %v7773, 4
  %v7793 = vsel %vm1008, %v7785, %v7792
  %v7794 = vsel %vm1008, %v7180, %v7161
  %v7796 = vunpack.c.l.s4 1983009808
  %v7797 = vunpack.c.0.s8 %v7796
  %v7798 = vperm.slane %v7794, %v7797
  %v7799 = vrot.slane %v7181, 4
  %v7800 = vsel %vm1008, %v7799, %v7179
  %v7802 = vunpack.c.l.s4 1983009808
  %v7803 = vunpack.c.0.s8 %v7802
  %v7804 = vperm.slane %v7800, %v7803
  %v7805 = vsel %vm1008, %v7184, %v7173
  %v7807 = vunpack.c.l.s4 1983009808
  %v7808 = vunpack.c.0.s8 %v7807
  %v7809 = vperm.slane %v7805, %v7808
  %v7810 = vrot.slane %v7185, 4
  %v7811 = vsel %vm1008, %v7810, %v7183
  %v7813 = vunpack.c.l.s4 1983009808
  %v7814 = vunpack.c.0.s8 %v7813
  %v7815 = vperm.slane %v7811, %v7814
  %v7816 = vrot.slane %v7804, 4
  %v7817 = vsel %vm1008, %v7816, %v7798
  %v7818 = vrot.slane %v7798, 4
  %v7819 = vsel %vm1008, %v7804, %v7818
  %v7821 = vunpack.c.l.s4 1934713408
  %v7822 = vunpack.c.0.s8 %v7821
  %v7823 = vperm.slane %v7817, %v7822
  %v7825 = vunpack.c.l.s4 1934713408
  %v7826 = vunpack.c.0.s8 %v7825
  %v7827 = vperm.slane %v7819, %v7826
  %v7828 = vrot.slane %v7815, 4
  %v7829 = vsel %vm1008, %v7828, %v7809
  %v7830 = vrot.slane %v7809, 4
  %v7831 = vsel %vm1008, %v7815, %v7830
  %v7833 = vunpack.c.l.s4 1934713408
  %v7834 = vunpack.c.0.s8 %v7833
  %v7835 = vperm.slane %v7829, %v7834
  %v7837 = vunpack.c.l.s4 1934713408
  %v7838 = vunpack.c.0.s8 %v7837
  %v7839 = vperm.slane %v7831, %v7838
  %v7840 = vrot.slane %v7835, 4
  %v7841 = vsel %vm1008, %v7840, %v7823
  %v7842 = vrot.slane %v7823, 4
  %v7843 = vsel %vm1008, %v7835, %v7842
  %v7844 = vrot.slane %v7839, 4
  %v7845 = vsel %vm1008, %v7844, %v7827
  %v7846 = vrot.slane %v7827, 4
  %v7847 = vsel %vm1008, %v7839, %v7846
  %v7848 = vsel %vm1008, %v7236, %v7217
  %v7850 = vunpack.c.l.s4 1983009808
  %v7851 = vunpack.c.0.s8 %v7850
  %v7852 = vperm.slane %v7848, %v7851
  %v7853 = vrot.slane %v7237, 4
  %v7854 = vsel %vm1008, %v7853, %v7235
  %v7856 = vunpack.c.l.s4 1983009808
  %v7857 = vunpack.c.0.s8 %v7856
  %v7858 = vperm.slane %v7854, %v7857
  %v7859 = vsel %vm1008, %v7240, %v7229
  %v7861 = vunpack.c.l.s4 1983009808
  %v7862 = vunpack.c.0.s8 %v7861
  %v7863 = vperm.slane %v7859, %v7862
  %v7864 = vrot.slane %v7241, 4
  %v7865 = vsel %vm1008, %v7864, %v7239
  %v7867 = vunpack.c.l.s4 1983009808
  %v7868 = vunpack.c.0.s8 %v7867
  %v7869 = vperm.slane %v7865, %v7868
  %v7870 = vrot.slane %v7858, 4
  %v7871 = vsel %vm1008, %v7870, %v7852
  %v7872 = vrot.slane %v7852, 4
  %v7873 = vsel %vm1008, %v7858, %v7872
  %v7875 = vunpack.c.l.s4 1934713408
  %v7876 = vunpack.c.0.s8 %v7875
  %v7877 = vperm.slane %v7871, %v7876
  %v7879 = vunpack.c.l.s4 1934713408
  %v7880 = vunpack.c.0.s8 %v7879
  %v7881 = vperm.slane %v7873, %v7880
  %v7882 = vrot.slane %v7869, 4
  %v7883 = vsel %vm1008, %v7882, %v7863
  %v7884 = vrot.slane %v7863, 4
  %v7885 = vsel %vm1008, %v7869, %v7884
  %v7887 = vunpack.c.l.s4 1934713408
  %v7888 = vunpack.c.0.s8 %v7887
  %v7889 = vperm.slane %v7883, %v7888
  %v7891 = vunpack.c.l.s4 1934713408
  %v7892 = vunpack.c.0.s8 %v7891
  %v7893 = vperm.slane %v7885, %v7892
  %v7894 = vrot.slane %v7889, 4
  %v7895 = vsel %vm1008, %v7894, %v7877
  %v7896 = vrot.slane %v7877, 4
  %v7897 = vsel %vm1008, %v7889, %v7896
  %v7898 = vrot.slane %v7893, 4
  %v7899 = vsel %vm1008, %v7898, %v7881
  %v7900 = vrot.slane %v7881, 4
  %v7901 = vsel %vm1008, %v7893, %v7900
  %v7902 = vsel %vm1008, %v7292, %v7273
  %v7904 = vunpack.c.l.s4 1983009808
  %v7905 = vunpack.c.0.s8 %v7904
  %v7906 = vperm.slane %v7902, %v7905
  %v7907 = vrot.slane %v7293, 4
  %v7908 = vsel %vm1008, %v7907, %v7291
  %v7910 = vunpack.c.l.s4 1983009808
  %v7911 = vunpack.c.0.s8 %v7910
  %v7912 = vperm.slane %v7908, %v7911
  %v7913 = vsel %vm1008, %v7296, %v7285
  %v7915 = vunpack.c.l.s4 1983009808
  %v7916 = vunpack.c.0.s8 %v7915
  %v7917 = vperm.slane %v7913, %v7916
  %v7918 = vrot.slane %v7297, 4
  %v7919 = vsel %vm1008, %v7918, %v7295
  %v7921 = vunpack.c.l.s4 1983009808
  %v7922 = vunpack.c.0.s8 %v7921
  %v7923 = vperm.slane %v7919, %v7922
  %v7924 = vrot.slane %v7912, 4
  %v7925 = vsel %vm1008, %v7924, %v7906
  %v7926 = vrot.slane %v7906, 4
  %v7927 = vsel %vm1008, %v7912, %v7926
  %v7929 = vunpack.c.l.s4 1934713408
  %v7930 = vunpack.c.0.s8 %v7929
  %v7931 = vperm.slane %v7925, %v7930
  %v7933 = vunpack.c.l.s4 1934713408
  %v7934 = vunpack.c.0.s8 %v7933
  %v7935 = vperm.slane %v7927, %v7934
  %v7936 = vrot.slane %v7923, 4
  %v7937 = vsel %vm1008, %v7936, %v7917
  %v7938 = vrot.slane %v7917, 4
  %v7939 = vsel %vm1008, %v7923, %v7938
  %v7941 = vunpack.c.l.s4 1934713408
  %v7942 = vunpack.c.0.s8 %v7941
  %v7943 = vperm.slane %v7937, %v7942
  %v7945 = vunpack.c.l.s4 1934713408
  %v7946 = vunpack.c.0.s8 %v7945
  %v7947 = vperm.slane %v7939, %v7946
  %v7948 = vrot.slane %v7943, 4
  %v7949 = vsel %vm1008, %v7948, %v7931
  %v7950 = vrot.slane %v7931, 4
  %v7951 = vsel %vm1008, %v7943, %v7950
  %v7952 = vrot.slane %v7947, 4
  %v7953 = vsel %vm1008, %v7952, %v7935
  %v7954 = vrot.slane %v7935, 4
  %v7955 = vsel %vm1008, %v7947, %v7954
  %v7956 = vsel %vm1008, %v7348, %v7329
  %v7958 = vunpack.c.l.s4 1983009808
  %v7959 = vunpack.c.0.s8 %v7958
  %v7960 = vperm.slane %v7956, %v7959
  %v7961 = vrot.slane %v7349, 4
  %v7962 = vsel %vm1008, %v7961, %v7347
  %v7964 = vunpack.c.l.s4 1983009808
  %v7965 = vunpack.c.0.s8 %v7964
  %v7966 = vperm.slane %v7962, %v7965
  %v7967 = vsel %vm1008, %v7352, %v7341
  %v7969 = vunpack.c.l.s4 1983009808
  %v7970 = vunpack.c.0.s8 %v7969
  %v7971 = vperm.slane %v7967, %v7970
  %v7972 = vrot.slane %v7353, 4
  %v7973 = vsel %vm1008, %v7972, %v7351
  %v7975 = vunpack.c.l.s4 1983009808
  %v7976 = vunpack.c.0.s8 %v7975
  %v7977 = vperm.slane %v7973, %v7976
  %v7978 = vrot.slane %v7966, 4
  %v7979 = vsel %vm1008, %v7978, %v7960
  %v7980 = vrot.slane %v7960, 4
  %v7981 = vsel %vm1008, %v7966, %v7980
  %v7983 = vunpack.c.l.s4 1934713408
  %v7984 = vunpack.c.0.s8 %v7983
  %v7985 = vperm.slane %v7979, %v7984
  %v7987 = vunpack.c.l.s4 1934713408
  %v7988 = vunpack.c.0.s8 %v7987
  %v7989 = vperm.slane %v7981, %v7988
  %v7990 = vrot.slane %v7977, 4
  %v7991 = vsel %vm1008, %v7990, %v7971
  %v7992 = vrot.slane %v7971, 4
  %v7993 = vsel %vm1008, %v7977, %v7992
  %v7995 = vunpack.c.l.s4 1934713408
  %v7996 = vunpack.c.0.s8 %v7995
  %v7997 = vperm.slane %v7991, %v7996
  %v7999 = vunpack.c.l.s4 1934713408
  %v8000 = vunpack.c.0.s8 %v7999
  %v8001 = vperm.slane %v7993, %v8000
  %v8002 = vrot.slane %v7997, 4
  %v8003 = vsel %vm1008, %v8002, %v7985
  %v8004 = vrot.slane %v7985, 4
  %v8005 = vsel %vm1008, %v7997, %v8004
  %v8006 = vrot.slane %v8001, 4
  %v8007 = vsel %vm1008, %v8006, %v7989
  %v8008 = vrot.slane %v7989, 4
  %v8009 = vsel %vm1008, %v8001, %v8008
  %v8010 = vsel %vm1008, %v7404, %v7385
  %v8012 = vunpack.c.l.s4 1983009808
  %v8013 = vunpack.c.0.s8 %v8012
  %v8014 = vperm.slane %v8010, %v8013
  %v8015 = vrot.slane %v7405, 4
  %v8016 = vsel %vm1008, %v8015, %v7403
  %v8018 = vunpack.c.l.s4 1983009808
  %v8019 = vunpack.c.0.s8 %v8018
  %v8020 = vperm.slane %v8016, %v8019
  %v8021 = vsel %vm1008, %v7408, %v7397
  %v8023 = vunpack.c.l.s4 1983009808
  %v8024 = vunpack.c.0.s8 %v8023
  %v8025 = vperm.slane %v8021, %v8024
  %v8026 = vrot.slane %v7409, 4
  %v8027 = vsel %vm1008, %v8026, %v7407
  %v8029 = vunpack.c.l.s4 1983009808
  %v8030 = vunpack.c.0.s8 %v8029
  %v8031 = vperm.slane %v8027, %v8030
  %v8032 = vrot.slane %v8020, 4
  %v8033 = vsel %vm1008, %v8032, %v8014
  %v8034 = vrot.slane %v8014, 4
  %v8035 = vsel %vm1008, %v8020, %v8034
  %v8037 = vunpack.c.l.s4 1934713408
  %v8038 = vunpack.c.0.s8 %v8037
  %v8039 = vperm.slane %v8033, %v8038
  %v8041 = vunpack.c.l.s4 1934713408
  %v8042 = vunpack.c.0.s8 %v8041
  %v8043 = vperm.slane %v8035, %v8042
  %v8044 = vrot.slane %v8031, 4
  %v8045 = vsel %vm1008, %v8044, %v8025
  %v8046 = vrot.slane %v8025, 4
  %v8047 = vsel %vm1008, %v8031, %v8046
  %v8049 = vunpack.c.l.s4 1934713408
  %v8050 = vunpack.c.0.s8 %v8049
  %v8051 = vperm.slane %v8045, %v8050
  %v8053 = vunpack.c.l.s4 1934713408
  %v8054 = vunpack.c.0.s8 %v8053
  %v8055 = vperm.slane %v8047, %v8054
  %v8056 = vrot.slane %v8051, 4
  %v8057 = vsel %vm1008, %v8056, %v8039
  %v8058 = vrot.slane %v8039, 4
  %v8059 = vsel %vm1008, %v8051, %v8058
  %v8060 = vrot.slane %v8055, 4
  %v8061 = vsel %vm1008, %v8060, %v8043
  %v8062 = vrot.slane %v8043, 4
  %v8063 = vsel %vm1008, %v8055, %v8062
  %v8064 = vsel %vm1008, %v7460, %v7441
  %v8066 = vunpack.c.l.s4 1983009808
  %v8067 = vunpack.c.0.s8 %v8066
  %v8068 = vperm.slane %v8064, %v8067
  %v8069 = vrot.slane %v7461, 4
  %v8070 = vsel %vm1008, %v8069, %v7459
  %v8072 = vunpack.c.l.s4 1983009808
  %v8073 = vunpack.c.0.s8 %v8072
  %v8074 = vperm.slane %v8070, %v8073
  %v8075 = vsel %vm1008, %v7464, %v7453
  %v8077 = vunpack.c.l.s4 1983009808
  %v8078 = vunpack.c.0.s8 %v8077
  %v8079 = vperm.slane %v8075, %v8078
  %v8080 = vrot.slane %v7465, 4
  %v8081 = vsel %vm1008, %v8080, %v7463
  %v8083 = vunpack.c.l.s4 1983009808
  %v8084 = vunpack.c.0.s8 %v8083
  %v8085 = vperm.slane %v8081, %v8084
  %v8086 = vrot.slane %v8074, 4
  %v8087 = vsel %vm1008, %v8086, %v8068
  %v8088 = vrot.slane %v8068, 4
  %v8089 = vsel %vm1008, %v8074, %v8088
  %v8091 = vunpack.c.l.s4 1934713408
  %v8092 = vunpack.c.0.s8 %v8091
  %v8093 = vperm.slane %v8087, %v8092
  %v8095 = vunpack.c.l.s4 1934713408
  %v8096 = vunpack.c.0.s8 %v8095
  %v8097 = vperm.slane %v8089, %v8096
  %v8098 = vrot.slane %v8085, 4
  %v8099 = vsel %vm1008, %v8098, %v8079
  %v8100 = vrot.slane %v8079, 4
  %v8101 = vsel %vm1008, %v8085, %v8100
  %v8103 = vunpack.c.l.s4 1934713408
  %v8104 = vunpack.c.0.s8 %v8103
  %v8105 = vperm.slane %v8099, %v8104
  %v8107 = vunpack.c.l.s4 1934713408
  %v8108 = vunpack.c.0.s8 %v8107
  %v8109 = vperm.slane %v8101, %v8108
  %v8110 = vrot.slane %v8105, 4
  %v8111 = vsel %vm1008, %v8110, %v8093
  %v8112 = vrot.slane %v8093, 4
  %v8113 = vsel %vm1008, %v8105, %v8112
  %v8114 = vrot.slane %v8109, 4
  %v8115 = vsel %vm1008, %v8114, %v8097
  %v8116 = vrot.slane %v8097, 4
  %v8117 = vsel %vm1008, %v8109, %v8116
  %v8118 = vsel %vm1008, %v7516, %v7497
  %v8120 = vunpack.c.l.s4 1983009808
  %v8121 = vunpack.c.0.s8 %v8120
  %v8122 = vperm.slane %v8118, %v8121
  %v8123 = vrot.slane %v7517, 4
  %v8124 = vsel %vm1008, %v8123, %v7515
  %v8126 = vunpack.c.l.s4 1983009808
  %v8127 = vunpack.c.0.s8 %v8126
  %v8128 = vperm.slane %v8124, %v8127
  %v8129 = vsel %vm1008, %v7520, %v7509
  %v8131 = vunpack.c.l.s4 1983009808
  %v8132 = vunpack.c.0.s8 %v8131
  %v8133 = vperm.slane %v8129, %v8132
  %v8134 = vrot.slane %v7521, 4
  %v8135 = vsel %vm1008, %v8134, %v7519
  %v8137 = vunpack.c.l.s4 1983009808
  %v8138 = vunpack.c.0.s8 %v8137
  %v8139 = vperm.slane %v8135, %v8138
  %v8140 = vrot.slane %v8128, 4
  %v8141 = vsel %vm1008, %v8140, %v8122
  %v8142 = vrot.slane %v8122, 4
  %v8143 = vsel %vm1008, %v8128, %v8142
  %v8145 = vunpack.c.l.s4 1934713408
  %v8146 = vunpack.c.0.s8 %v8145
  %v8147 = vperm.slane %v8141, %v8146
  %v8149 = vunpack.c.l.s4 1934713408
  %v8150 = vunpack.c.0.s8 %v8149
  %v8151 = vperm.slane %v8143, %v8150
  %v8152 = vrot.slane %v8139, 4
  %v8153 = vsel %vm1008, %v8152, %v8133
  %v8154 = vrot.slane %v8133, 4
  %v8155 = vsel %vm1008, %v8139, %v8154
  %v8157 = vunpack.c.l.s4 1934713408
  %v8158 = vunpack.c.0.s8 %v8157
  %v8159 = vperm.slane %v8153, %v8158
  %v8161 = vunpack.c.l.s4 1934713408
  %v8162 = vunpack.c.0.s8 %v8161
  %v8163 = vperm.slane %v8155, %v8162
  %v8164 = vrot.slane %v8159, 4
  %v8165 = vsel %vm1008, %v8164, %v8147
  %v8166 = vrot.slane %v8147, 4
  %v8167 = vsel %vm1008, %v8159, %v8166
  %v8168 = vrot.slane %v8163, 4
  %v8169 = vsel %vm1008, %v8168, %v8151
  %v8170 = vrot.slane %v8151, 4
  %v8171 = vsel %vm1008, %v8163, %v8170
  %v8172 = vsel %vm1008, %v7572, %v7553
  %v8174 = vunpack.c.l.s4 1983009808
  %v8175 = vunpack.c.0.s8 %v8174
  %v8176 = vperm.slane %v8172, %v8175
  %v8177 = vrot.slane %v7573, 4
  %v8178 = vsel %vm1008, %v8177, %v7571
  %v8180 = vunpack.c.l.s4 1983009808
  %v8181 = vunpack.c.0.s8 %v8180
  %v8182 = vperm.slane %v8178, %v8181
  %v8183 = vsel %vm1008, %v7576, %v7565
  %v8185 = vunpack.c.l.s4 1983009808
  %v8186 = vunpack.c.0.s8 %v8185
  %v8187 = vperm.slane %v8183, %v8186
  %v8188 = vrot.slane %v7577, 4
  %v8189 = vsel %vm1008, %v8188, %v7575
  %v8191 = vunpack.c.l.s4 1983009808
  %v8192 = vunpack.c.0.s8 %v8191
  %v8193 = vperm.slane %v8189, %v8192
  %v8194 = vrot.slane %v8182, 4
  %v8195 = vsel %vm1008, %v8194, %v8176
  %v8196 = vrot.slane %v8176, 4
  %v8197 = vsel %vm1008, %v8182, %v8196
  %v8199 = vunpack.c.l.s4 1934713408
  %v8200 = vunpack.c.0.s8 %v8199
  %v8201 = vperm.slane %v8195, %v8200
  %v8203 = vunpack.c.l.s4 1934713408
  %v8204 = vunpack.c.0.s8 %v8203
  %v8205 = vperm.slane %v8197, %v8204
  %v8206 = vrot.slane %v8193, 4
  %v8207 = vsel %vm1008, %v8206, %v8187
  %v8208 = vrot.slane %v8187, 4
  %v8209 = vsel %vm1008, %v8193, %v8208
  %v8211 = vunpack.c.l.s4 1934713408
  %v8212 = vunpack.c.0.s8 %v8211
  %v8213 = vperm.slane %v8207, %v8212
  %v8215 = vunpack.c.l.s4 1934713408
  %v8216 = vunpack.c.0.s8 %v8215
  %v8217 = vperm.slane %v8209, %v8216
  %v8218 = vrot.slane %v8213, 4
  %v8219 = vsel %vm1008, %v8218, %v8201
  %v8220 = vrot.slane %v8201, 4
  %v8221 = vsel %vm1008, %v8213, %v8220
  %v8222 = vrot.slane %v8217, 4
  %v8223 = vsel %vm1008, %v8222, %v8205
  %v8224 = vrot.slane %v8205, 4
  %v8225 = vsel %vm1008, %v8217, %v8224
  %8238 = vrot.lane.b32.xlu0 %v7627, 8
  %v8239 = vpop.permute.xlu0 %8238
  %8240 = vrot.lane.b32.xlu0 %v7681, 8
  %v8241 = vpop.permute.xlu0 %8240
  %8242 = vrot.lane.b32.xlu0 %v7735, 8
  %v8243 = vpop.permute.xlu0 %8242
  %8244 = vrot.lane.b32.xlu0 %v7789, 8
  %v8245 = vpop.permute.xlu0 %8244
  %8246 = vrot.lane.b32.xlu0 %v7843, 8
  %v8247 = vpop.permute.xlu0 %8246
  %8248 = vrot.lane.b32.xlu0 %v7897, 8
  %v8249 = vpop.permute.xlu0 %8248
  %8250 = vrot.lane.b32.xlu0 %v7951, 8
  %v8251 = vpop.permute.xlu0 %8250
  %8252 = vrot.lane.b32.xlu0 %v8005, 8
  %v8253 = vpop.permute.xlu0 %8252
  %8254 = vrot.lane.b32.xlu0 %v8059, 8
  %v8255 = vpop.permute.xlu0 %8254
  %8256 = vrot.lane.b32.xlu0 %v8113, 8
  %v8257 = vpop.permute.xlu0 %8256
  %8258 = vrot.lane.b32.xlu0 %v8167, 8
  %v8259 = vpop.permute.xlu0 %8258
  %8260 = vrot.lane.b32.xlu0 %v8221, 8
  %v8261 = vpop.permute.xlu0 %8260
  %8286 = vrot.lane.b32.xlu0 %v7629, 16
  %v8287 = vpop.permute.xlu0 %8286
  %8288 = vrot.lane.b32.xlu0 %v7683, 16
  %v8289 = vpop.permute.xlu0 %8288
  %8290 = vrot.lane.b32.xlu0 %v7737, 16
  %v8291 = vpop.permute.xlu0 %8290
  %8292 = vrot.lane.b32.xlu0 %v7791, 16
  %v8293 = vpop.permute.xlu0 %8292
  %8294 = vrot.lane.b32.xlu0 %v7845, 16
  %v8295 = vpop.permute.xlu0 %8294
  %8296 = vrot.lane.b32.xlu0 %v7899, 16
  %v8297 = vpop.permute.xlu0 %8296
  %8298 = vrot.lane.b32.xlu0 %v7953, 16
  %v8299 = vpop.permute.xlu0 %8298
  %8300 = vrot.lane.b32.xlu0 %v8007, 16
  %v8301 = vpop.permute.xlu0 %8300
  %8302 = vrot.lane.b32.xlu0 %v8061, 16
  %v8303 = vpop.permute.xlu0 %8302
  %8304 = vrot.lane.b32.xlu0 %v8115, 16
  %v8305 = vpop.permute.xlu0 %8304
  %8306 = vrot.lane.b32.xlu0 %v8169, 16
  %v8307 = vpop.permute.xlu0 %8306
  %8308 = vrot.lane.b32.xlu0 %v8223, 16
  %v8309 = vpop.permute.xlu0 %8308
  %8334 = vrot.lane.b32.xlu0 %v7631, 24
  %v8335 = vpop.permute.xlu0 %8334
  %8336 = vrot.lane.b32.xlu0 %v7685, 24
  %v8337 = vpop.permute.xlu0 %8336
  %8338 = vrot.lane.b32.xlu0 %v7739, 24
  %v8339 = vpop.permute.xlu0 %8338
  %8340 = vrot.lane.b32.xlu0 %v7793, 24
  %v8341 = vpop.permute.xlu0 %8340
  %8342 = vrot.lane.b32.xlu0 %v7847, 24
  %v8343 = vpop.permute.xlu0 %8342
  %8344 = vrot.lane.b32.xlu0 %v7901, 24
  %v8345 = vpop.permute.xlu0 %8344
  %8346 = vrot.lane.b32.xlu0 %v7955, 24
  %v8347 = vpop.permute.xlu0 %8346
  %8348 = vrot.lane.b32.xlu0 %v8009, 24
  %v8349 = vpop.permute.xlu0 %8348
  %8350 = vrot.lane.b32.xlu0 %v8063, 24
  %v8351 = vpop.permute.xlu0 %8350
  %8352 = vrot.lane.b32.xlu0 %v8117, 24
  %v8353 = vpop.permute.xlu0 %8352
  %8354 = vrot.lane.b32.xlu0 %v8171, 24
  %v8355 = vpop.permute.xlu0 %8354
  %8356 = vrot.lane.b32.xlu0 %v8225, 24
  %v8357 = vpop.permute.xlu0 %8356
  %v8370 = vsel %vm5016, %v7625, %v8239
  %v8371 = vsel %vm5016, %v7679, %v8241
  %v8372 = vsel %vm5016, %v7733, %v8243
  %v8373 = vsel %vm5016, %v7787, %v8245
  %v8374 = vsel %vm5016, %v7841, %v8247
  %v8375 = vsel %vm5016, %v7895, %v8249
  %v8376 = vsel %vm5016, %v7949, %v8251
  %v8377 = vsel %vm5016, %v8003, %v8253
  %v8378 = vsel %vm5016, %v8057, %v8255
  %v8379 = vsel %vm5016, %v8111, %v8257
  %v8380 = vsel %vm5016, %v8165, %v8259
  %v8381 = vsel %vm5016, %v8219, %v8261
  %vm8382 = vcmask 130048
  %v8383 = vsel %vm8382, %v8370, %v8287
  %v8384 = vsel %vm8382, %v8371, %v8289
  %v8385 = vsel %vm8382, %v8372, %v8291
  %v8386 = vsel %vm8382, %v8373, %v8293
  %v8387 = vsel %vm8382, %v8374, %v8295
  %v8388 = vsel %vm8382, %v8375, %v8297
  %v8389 = vsel %vm8382, %v8376, %v8299
  %v8390 = vsel %vm8382, %v8377, %v8301
  %v8391 = vsel %vm8382, %v8378, %v8303
  %v8392 = vsel %vm8382, %v8379, %v8305
  %v8393 = vsel %vm8382, %v8380, %v8307
  %v8394 = vsel %vm8382, %v8381, %v8309
  %v8395 = vsel %vm5817, %v8383, %v8335
  %v8396 = vsel %vm5817, %v8384, %v8337
  %v8397 = vsel %vm5817, %v8385, %v8339
  %v8398 = vsel %vm5817, %v8386, %v8341
  %v8399 = vsel %vm5817, %v8387, %v8343
  %v8400 = vsel %vm5817, %v8388, %v8345
  %v8401 = vsel %vm5817, %v8389, %v8347
  %v8402 = vsel %vm5817, %v8390, %v8349
  %v8403 = vsel %vm5817, %v8391, %v8351
  %v8404 = vsel %vm5817, %v8392, %v8353
  %v8405 = vsel %vm5817, %v8393, %v8355
  %v8406 = vsel %vm5817, %v8394, %v8357
  %v8407 = vld [vmem:[%s8] sm:$0xf]
  %v8408 = vld [vmem:[%s8 + $0x4] sm:$0xf]
  %v8409 = vld [vmem:[%s8 + $0x8] sm:$0xf]
  %v8410 = vld [vmem:[%s8 + $0xc] sm:$0xf]
  %v8411 = vpack.c.bf16 %v8396, %v8395
  %v8412 = vpack.c.bf16 %v8398, %v8397
  %v8413 = vpack.c.bf16 %v8400, %v8399
  %v8414 = vpack.c.bf16 %v8402, %v8401
  %v8415 = vpack.c.bf16 %v8404, %v8403
  %v8416 = vpack.c.bf16 %v8406, %v8405
  %v8417 = vld [vmem:[%s9] sm:$0x1]
  %v8419 = vperm.slane %v8417, 0
  %v8425 = vunpack.c.l.b16 %v8407
  %v8426 = vunpack.c.l.b16 %v8408
  %v8427 = vunpack.c.l.b16 %v8409
  %v8428 = vunpack.c.l.b16 %v8410
  %v8429 = vpack.c.b16 %v8426, %v8425
  %v8430 = vpack.c.b16 %v8428, %v8427
  %v8434 = vsel %vm286, %v8411, 0
  %v8437 = vsel %vm286, %v8412, 0
  %v8440 = vsel %vm286, %v8413, 0
  %v8443 = vsel %vm286, %v8414, 0
  %v8446 = vsel %vm286, %v8415, 0
  %v8449 = vsel %vm286, %v8416, 0
  %8451 = vmatpush.bf16.msra.mxu0 0
  %8452 = vmatpush.bf16.msra.mxu0 0
  %8453 = vmatpush.bf16.msra.mxu0 0
  %8454 = vmatpush.bf16.msra.mxu0 0
  %8455 = vmatpush.bf16.msra.mxu0 0
  %8456 = vmatpush.bf16.msra.mxu0 0
  %8457 = vmatpush.bf16.msra.mxu0 %v8430
  %8458 = vmatpush.bf16.msra.mxu0 %v8429
  %8459 = vmatmul.bf16.gmra.mxu0 %v8434
  %v8460 = vpop.f32.mrf.mxu0
  %v8461 = vadd.f32 %v8419, %v8460
  %v8462 = vpop.f32.mrf.mxu0
  %v8463 = vadd.f32 %v8419, %v8462
  %8464 = vmatmul.bf16.gmra.mxu0 %v8437
  %v8465 = vpop.f32.mrf.mxu0
  %v8466 = vadd.f32 %v8419, %v8465
  %v8467 = vpop.f32.mrf.mxu0
  %v8468 = vadd.f32 %v8419, %v8467
  %8469 = vmatmul.bf16.gmra.mxu0 %v8440
  %v8470 = vpop.f32.mrf.mxu0
  %v8471 = vadd.f32 %v8419, %v8470
  %v8472 = vpop.f32.mrf.mxu0
  %v8473 = vadd.f32 %v8419, %v8472
  %8474 = vmatmul.bf16.gmra.mxu0 %v8443
  %v8475 = vpop.f32.mrf.mxu0
  %v8476 = vadd.f32 %v8419, %v8475
  %v8477 = vpop.f32.mrf.mxu0
  %v8478 = vadd.f32 %v8419, %v8477
  %8479 = vmatmul.bf16.gmra.mxu0 %v8446
  %v8480 = vpop.f32.mrf.mxu0
  %v8481 = vadd.f32 %v8419, %v8480
  %v8482 = vpop.f32.mrf.mxu0
  %v8483 = vadd.f32 %v8419, %v8482
  %8484 = vmatmul.bf16.gmra.mxu0 %v8449
  %v8485 = vpop.f32.mrf.mxu0
  %v8486 = vadd.f32 %v8419, %v8485
  %v8487 = vpop.f32.mrf.mxu0
  %v8488 = vadd.f32 %v8419, %v8487
  %8489 = vdwg.mxu0
  %v8490 = vadd.f32 %v271, %v8461
  %v8491 = vadd.f32 %v272, %v8463
  %v8492 = vadd.f32 %v273, %v8466
  %v8493 = vadd.f32 %v274, %v8468
  %v8494 = vadd.f32 %v275, %v8471
  %v8495 = vadd.f32 %v273, %v8473
  %v8496 = vadd.f32 %v276, %v8476
  %v8497 = vadd.f32 %v277, %v8478
  %v8498 = vadd.f32 %v273, %v8481
  %v8499 = vadd.f32 %v278, %v8483
  %v8500 = vadd.f32 %v279, %v8486
  %v8501 = vadd.f32 %v273, %v8488
  %v8502 = vld [vmem:[%s10] sm:$0x1]
  %v8503 = vld [vmem:[%s11] sm:$0x1]
  %v8504 = vsel %vm286, %v8490, 0.0
  %8505 = vadd.xlane.f32.xlu0 %v8504
  %v8506 = vpop.xlane.xlu0 %8505
  %v8507 = vsel %vm286, %v8491, 0.0
  %8508 = vadd.xlane.f32.xlu0 %v8507
  %v8509 = vpop.xlane.xlu0 %8508
  %v8510 = vsel %vm286, %v8492, 0.0
  %8511 = vadd.xlane.f32.xlu0 %v8510
  %v8512 = vpop.xlane.xlu0 %8511
  %v8513 = vsel %vm286, %v8493, 0.0
  %8514 = vadd.xlane.f32.xlu0 %v8513
  %v8515 = vpop.xlane.xlu0 %8514
  %v8516 = vsel %vm286, %v8494, 0.0
  %8517 = vadd.xlane.f32.xlu0 %v8516
  %v8518 = vpop.xlane.xlu0 %8517
  %v8519 = vsel %vm286, %v8495, 0.0
  %8520 = vadd.xlane.f32.xlu0 %v8519
  %v8521 = vpop.xlane.xlu0 %8520
  %v8522 = vsel %vm286, %v8496, 0.0
  %8523 = vadd.xlane.f32.xlu0 %v8522
  %v8524 = vpop.xlane.xlu0 %8523
  %v8525 = vsel %vm286, %v8497, 0.0
  %8526 = vadd.xlane.f32.xlu0 %v8525
  %v8527 = vpop.xlane.xlu0 %8526
  %v8528 = vsel %vm286, %v8498, 0.0
  %8529 = vadd.xlane.f32.xlu0 %v8528
  %v8530 = vpop.xlane.xlu0 %8529
  %v8531 = vsel %vm286, %v8499, 0.0
  %8532 = vadd.xlane.f32.xlu0 %v8531
  %v8533 = vpop.xlane.xlu0 %8532
  %v8534 = vsel %vm286, %v8500, 0.0
  %8535 = vadd.xlane.f32.xlu0 %v8534
  %v8536 = vpop.xlane.xlu0 %8535
  %v8537 = vsel %vm286, %v8501, 0.0
  %8538 = vadd.xlane.f32.xlu0 %v8537
  %v8539 = vpop.xlane.xlu0 %8538
  %v8540 = vmul.f32 %v8506, %v320
  %v8541 = vmul.f32 %v8509, %v320
  %v8542 = vmul.f32 %v8512, %v320
  %v8543 = vmul.f32 %v8515, %v320
  %v8544 = vmul.f32 %v8518, %v320
  %v8545 = vmul.f32 %v8521, %v320
  %v8546 = vmul.f32 %v8524, %v320
  %v8547 = vmul.f32 %v8527, %v320
  %v8548 = vmul.f32 %v8530, %v320
  %v8549 = vmul.f32 %v8533, %v320
  %v8550 = vmul.f32 %v8536, %v320
  %v8551 = vmul.f32 %v8539, %v320
  %v8552 = vsub.f32 %v8490, %v8540
  %v8553 = vsub.f32 %v8491, %v8541
  %v8554 = vsub.f32 %v8492, %v8542
  %v8555 = vsub.f32 %v8493, %v8543
  %v8556 = vsub.f32 %v8494, %v8544
  %v8557 = vsub.f32 %v8495, %v8545
  %v8558 = vsub.f32 %v8496, %v8546
  %v8559 = vsub.f32 %v8497, %v8547
  %v8560 = vsub.f32 %v8498, %v8548
  %v8561 = vsub.f32 %v8499, %v8549
  %v8562 = vsub.f32 %v8500, %v8550
  %v8563 = vsub.f32 %v8501, %v8551
  %v8564 = vmul.f32 %v8552, %v8552
  %v8565 = vmul.f32 %v8553, %v8553
  %v8566 = vmul.f32 %v8554, %v8554
  %v8567 = vmul.f32 %v8555, %v8555
  %v8568 = vmul.f32 %v8556, %v8556
  %v8569 = vmul.f32 %v8557, %v8557
  %v8570 = vmul.f32 %v8558, %v8558
  %v8571 = vmul.f32 %v8559, %v8559
  %v8572 = vmul.f32 %v8560, %v8560
  %v8573 = vmul.f32 %v8561, %v8561
  %v8574 = vmul.f32 %v8562, %v8562
  %v8575 = vmul.f32 %v8563, %v8563
  %v8576 = vsel %vm286, %v8564, 0.0
  %8577 = vadd.xlane.f32.xlu0 %v8576
  %v8578 = vpop.xlane.xlu0 %8577
  %v8579 = vsel %vm286, %v8565, 0.0
  %8580 = vadd.xlane.f32.xlu0 %v8579
  %v8581 = vpop.xlane.xlu0 %8580
  %v8582 = vsel %vm286, %v8566, 0.0
  %8583 = vadd.xlane.f32.xlu0 %v8582
  %v8584 = vpop.xlane.xlu0 %8583
  %v8585 = vsel %vm286, %v8567, 0.0
  %8586 = vadd.xlane.f32.xlu0 %v8585
  %v8587 = vpop.xlane.xlu0 %8586
  %v8588 = vsel %vm286, %v8568, 0.0
  %8589 = vadd.xlane.f32.xlu0 %v8588
  %v8590 = vpop.xlane.xlu0 %8589
  %v8591 = vsel %vm286, %v8569, 0.0
  %8592 = vadd.xlane.f32.xlu0 %v8591
  %v8593 = vpop.xlane.xlu0 %8592
  %v8594 = vsel %vm286, %v8570, 0.0
  %8595 = vadd.xlane.f32.xlu0 %v8594
  %v8596 = vpop.xlane.xlu0 %8595
  %v8597 = vsel %vm286, %v8571, 0.0
  %8598 = vadd.xlane.f32.xlu0 %v8597
  %v8599 = vpop.xlane.xlu0 %8598
  %v8600 = vsel %vm286, %v8572, 0.0
  %8601 = vadd.xlane.f32.xlu0 %v8600
  %v8602 = vpop.xlane.xlu0 %8601
  %v8603 = vsel %vm286, %v8573, 0.0
  %8604 = vadd.xlane.f32.xlu0 %v8603
  %v8605 = vpop.xlane.xlu0 %8604
  %v8606 = vsel %vm286, %v8574, 0.0
  %8607 = vadd.xlane.f32.xlu0 %v8606
  %v8608 = vpop.xlane.xlu0 %8607
  %v8609 = vsel %vm286, %v8575, 0.0
  %8610 = vadd.xlane.f32.xlu0 %v8609
  %v8611 = vpop.xlane.xlu0 %8610
  %v8612 = vmul.f32 %v8578, %v320
  %v8613 = vmul.f32 %v8581, %v320
  %v8614 = vmul.f32 %v8584, %v320
  %v8615 = vmul.f32 %v8587, %v320
  %v8616 = vmul.f32 %v8590, %v320
  %v8617 = vmul.f32 %v8593, %v320
  %v8618 = vmul.f32 %v8596, %v320
  %v8619 = vmul.f32 %v8599, %v320
  %v8620 = vmul.f32 %v8602, %v320
  %v8621 = vmul.f32 %v8605, %v320
  %v8622 = vmul.f32 %v8608, %v320
  %v8623 = vmul.f32 %v8611, %v320
  %v8624 = vadd.f32 %v8612, 1e-06
  %v8625 = vadd.f32 %v8613, 1e-06
  %v8626 = vadd.f32 %v8614, 1e-06
  %v8627 = vadd.f32 %v8615, 1e-06
  %v8628 = vadd.f32 %v8616, 1e-06
  %v8629 = vadd.f32 %v8617, 1e-06
  %v8630 = vadd.f32 %v8618, 1e-06
  %v8631 = vadd.f32 %v8619, 1e-06
  %v8632 = vadd.f32 %v8620, 1e-06
  %v8633 = vadd.f32 %v8621, 1e-06
  %v8634 = vadd.f32 %v8622, 1e-06
  %v8635 = vadd.f32 %v8623, 1e-06
  %v8636 = vrsqrt.pop %v8624
  %v8637 = vmul.f32 %v8636, %v8624
  %v8638 = vmul.f32 %v8637, %v8636
  %v8639 = vmul.f32 0.5, %v8638
  %v8640 = vsub.f32 1.5, %v8639
  %v8641 = vmul.f32 %v8636, %v8640
  %vm8642 = vweird.f32 %v8624
  %vm8643 = vweird.f32 %v8636
  %vm8644 = vmor %vm8642, %vm8643
  %v8645 = vsel %vm8644, %v8636, %v8641
  %v8646 = vrsqrt.pop %v8625
  %v8647 = vmul.f32 %v8646, %v8625
  %v8648 = vmul.f32 %v8647, %v8646
  %v8649 = vmul.f32 0.5, %v8648
  %v8650 = vsub.f32 1.5, %v8649
  %v8651 = vmul.f32 %v8646, %v8650
  %vm8652 = vweird.f32 %v8625
  %vm8653 = vweird.f32 %v8646
  %vm8654 = vmor %vm8652, %vm8653
  %v8655 = vsel %vm8654, %v8646, %v8651
  %v8656 = vrsqrt.pop %v8626
  %v8657 = vmul.f32 %v8656, %v8626
  %v8658 = vmul.f32 %v8657, %v8656
  %v8659 = vmul.f32 0.5, %v8658
  %v8660 = vsub.f32 1.5, %v8659
  %v8661 = vmul.f32 %v8656, %v8660
  %vm8662 = vweird.f32 %v8626
  %vm8663 = vweird.f32 %v8656
  %vm8664 = vmor %vm8662, %vm8663
  %v8665 = vsel %vm8664, %v8656, %v8661
  %v8666 = vrsqrt.pop %v8627
  %v8667 = vmul.f32 %v8666, %v8627
  %v8668 = vmul.f32 %v8667, %v8666
  %v8669 = vmul.f32 0.5, %v8668
  %v8670 = vsub.f32 1.5, %v8669
  %v8671 = vmul.f32 %v8666, %v8670
  %vm8672 = vweird.f32 %v8627
  %vm8673 = vweird.f32 %v8666
  %vm8674 = vmor %vm8672, %vm8673
  %v8675 = vsel %vm8674, %v8666, %v8671
  %v8676 = vrsqrt.pop %v8628
  %v8677 = vmul.f32 %v8676, %v8628
  %v8678 = vmul.f32 %v8677, %v8676
  %v8679 = vmul.f32 0.5, %v8678
  %v8680 = vsub.f32 1.5, %v8679
  %v8681 = vmul.f32 %v8676, %v8680
  %vm8682 = vweird.f32 %v8628
  %vm8683 = vweird.f32 %v8676
  %vm8684 = vmor %vm8682, %vm8683
  %v8685 = vsel %vm8684, %v8676, %v8681
  %v8686 = vrsqrt.pop %v8629
  %v8687 = vmul.f32 %v8686, %v8629
  %v8688 = vmul.f32 %v8687, %v8686
  %v8689 = vmul.f32 0.5, %v8688
  %v8690 = vsub.f32 1.5, %v8689
  %v8691 = vmul.f32 %v8686, %v8690
  %vm8692 = vweird.f32 %v8629
  %vm8693 = vweird.f32 %v8686
  %vm8694 = vmor %vm8692, %vm8693
  %v8695 = vsel %vm8694, %v8686, %v8691
  %v8696 = vrsqrt.pop %v8630
  %v8697 = vmul.f32 %v8696, %v8630
  %v8698 = vmul.f32 %v8697, %v8696
  %v8699 = vmul.f32 0.5, %v8698
  %v8700 = vsub.f32 1.5, %v8699
  %v8701 = vmul.f32 %v8696, %v8700
  %vm8702 = vweird.f32 %v8630
  %vm8703 = vweird.f32 %v8696
  %vm8704 = vmor %vm8702, %vm8703
  %v8705 = vsel %vm8704, %v8696, %v8701
  %v8706 = vrsqrt.pop %v8631
  %v8707 = vmul.f32 %v8706, %v8631
  %v8708 = vmul.f32 %v8707, %v8706
  %v8709 = vmul.f32 0.5, %v8708
  %v8710 = vsub.f32 1.5, %v8709
  %v8711 = vmul.f32 %v8706, %v8710
  %vm8712 = vweird.f32 %v8631
  %vm8713 = vweird.f32 %v8706
  %vm8714 = vmor %vm8712, %vm8713
  %v8715 = vsel %vm8714, %v8706, %v8711
  %v8716 = vrsqrt.pop %v8632
  %v8717 = vmul.f32 %v8716, %v8632
  %v8718 = vmul.f32 %v8717, %v8716
  %v8719 = vmul.f32 0.5, %v8718
  %v8720 = vsub.f32 1.5, %v8719
  %v8721 = vmul.f32 %v8716, %v8720
  %vm8722 = vweird.f32 %v8632
  %vm8723 = vweird.f32 %v8716
  %vm8724 = vmor %vm8722, %vm8723
  %v8725 = vsel %vm8724, %v8716, %v8721
  %v8726 = vrsqrt.pop %v8633
  %v8727 = vmul.f32 %v8726, %v8633
  %v8728 = vmul.f32 %v8727, %v8726
  %v8729 = vmul.f32 0.5, %v8728
  %v8730 = vsub.f32 1.5, %v8729
  %v8731 = vmul.f32 %v8726, %v8730
  %vm8732 = vweird.f32 %v8633
  %vm8733 = vweird.f32 %v8726
  %vm8734 = vmor %vm8732, %vm8733
  %v8735 = vsel %vm8734, %v8726, %v8731
  %v8736 = vrsqrt.pop %v8634
  %v8737 = vmul.f32 %v8736, %v8634
  %v8738 = vmul.f32 %v8737, %v8736
  %v8739 = vmul.f32 0.5, %v8738
  %v8740 = vsub.f32 1.5, %v8739
  %v8741 = vmul.f32 %v8736, %v8740
  %vm8742 = vweird.f32 %v8634
  %vm8743 = vweird.f32 %v8736
  %vm8744 = vmor %vm8742, %vm8743
  %v8745 = vsel %vm8744, %v8736, %v8741
  %v8746 = vrsqrt.pop %v8635
  %v8747 = vmul.f32 %v8746, %v8635
  %v8748 = vmul.f32 %v8747, %v8746
  %v8749 = vmul.f32 0.5, %v8748
  %v8750 = vsub.f32 1.5, %v8749
  %v8751 = vmul.f32 %v8746, %v8750
  %vm8752 = vweird.f32 %v8635
  %vm8753 = vweird.f32 %v8746
  %vm8754 = vmor %vm8752, %vm8753
  %v8755 = vsel %vm8754, %v8746, %v8751
  %v8756 = vmul.f32 %v8552, %v8645
  %v8757 = vmul.f32 %v8553, %v8655
  %v8758 = vmul.f32 %v8554, %v8665
  %v8759 = vmul.f32 %v8555, %v8675
  %v8760 = vmul.f32 %v8556, %v8685
  %v8761 = vmul.f32 %v8557, %v8695
  %v8762 = vmul.f32 %v8558, %v8705
  %v8763 = vmul.f32 %v8559, %v8715
  %v8764 = vmul.f32 %v8560, %v8725
  %v8765 = vmul.f32 %v8561, %v8735
  %v8766 = vmul.f32 %v8562, %v8745
  %v8767 = vmul.f32 %v8563, %v8755
  %v8769 = vperm.slane %v8502, 0
  %v8771 = vmul.f32 %v8756, %v8769
  %v8772 = vmul.f32 %v8757, %v8769
  %v8773 = vmul.f32 %v8758, %v8769
  %v8774 = vmul.f32 %v8759, %v8769
  %v8775 = vmul.f32 %v8760, %v8769
  %v8776 = vmul.f32 %v8761, %v8769
  %v8777 = vmul.f32 %v8762, %v8769
  %v8778 = vmul.f32 %v8763, %v8769
  %v8779 = vmul.f32 %v8764, %v8769
  %v8780 = vmul.f32 %v8765, %v8769
  %v8781 = vmul.f32 %v8766, %v8769
  %v8782 = vmul.f32 %v8767, %v8769
  %v8784 = vperm.slane %v8503, 0
  %v8786 = vadd.f32 %v8771, %v8784
  %v8787 = vadd.f32 %v8772, %v8784
  %v8788 = vadd.f32 %v8773, %v8784
  %v8789 = vadd.f32 %v8774, %v8784
  %v8790 = vadd.f32 %v8775, %v8784
  %v8791 = vadd.f32 %v8776, %v8784
  %v8792 = vadd.f32 %v8777, %v8784
  %v8793 = vadd.f32 %v8778, %v8784
  %v8794 = vadd.f32 %v8779, %v8784
  %v8795 = vadd.f32 %v8780, %v8784
  %v8796 = vadd.f32 %v8781, %v8784
  %v8797 = vadd.f32 %v8782, %v8784
  %v8798 = vld [vmem:[%s12] sm:$0xf]
  %v8799 = vld [vmem:[%s12 + $0x4] sm:$0xf]
  %v8800 = vld [vmem:[%s12 + $0x8] sm:$0xf]
  %v8801 = vld [vmem:[%s12 + $0xc] sm:$0xf]
  %v8802 = vpack.c.bf16 %v8787, %v8786
  %v8803 = vpack.c.bf16 %v8789, %v8788
  %v8804 = vpack.c.bf16 %v8791, %v8790
  %v8805 = vpack.c.bf16 %v8793, %v8792
  %v8806 = vpack.c.bf16 %v8795, %v8794
  %v8807 = vpack.c.bf16 %v8797, %v8796
  %v8808 = vld [vmem:[%s13] sm:$0x1]
  %v8810 = vperm.slane %v8808, 0
  %v8816 = vunpack.c.l.b16 %v8798
  %v8817 = vunpack.c.l.b16 %v8799
  %v8818 = vunpack.c.l.b16 %v8800
  %v8819 = vunpack.c.l.b16 %v8801
  %v8820 = vpack.c.b16 %v8817, %v8816
  %v8821 = vpack.c.b16 %v8819, %v8818
  %v8825 = vsel %vm286, %v8802, 0
  %v8828 = vsel %vm286, %v8803, 0
  %v8831 = vsel %vm286, %v8804, 0
  %v8834 = vsel %vm286, %v8805, 0
  %v8837 = vsel %vm286, %v8806, 0
  %v8840 = vsel %vm286, %v8807, 0
  %8842 = vmatpush.bf16.msra.mxu0 0
  %8843 = vmatpush.bf16.msra.mxu0 0
  %8844 = vmatpush.bf16.msra.mxu0 0
  %8845 = vmatpush.bf16.msra.mxu0 0
  %8846 = vmatpush.bf16.msra.mxu0 0
  %8847 = vmatpush.bf16.msra.mxu0 0
  %8848 = vmatpush.bf16.msra.mxu0 %v8821
  %8849 = vmatpush.bf16.msra.mxu0 %v8820
  %8850 = vmatmul.bf16.gmra.mxu0 %v8825
  %v8851 = vpop.f32.mrf.mxu0
  %v8852 = vadd.f32 %v8810, %v8851
  %v8853 = vpop.f32.mrf.mxu0
  %v8854 = vadd.f32 %v8810, %v8853
  %8855 = vmatmul.bf16.gmra.mxu0 %v8828
  %v8856 = vpop.f32.mrf.mxu0
  %v8857 = vadd.f32 %v8810, %v8856
  %v8858 = vpop.f32.mrf.mxu0
  %v8859 = vadd.f32 %v8810, %v8858
  %8860 = vmatmul.bf16.gmra.mxu0 %v8831
  %v8861 = vpop.f32.mrf.mxu0
  %v8862 = vadd.f32 %v8810, %v8861
  %v8863 = vpop.f32.mrf.mxu0
  %v8864 = vadd.f32 %v8810, %v8863
  %8865 = vmatmul.bf16.gmra.mxu0 %v8834
  %v8866 = vpop.f32.mrf.mxu0
  %v8867 = vadd.f32 %v8810, %v8866
  %v8868 = vpop.f32.mrf.mxu0
  %v8869 = vadd.f32 %v8810, %v8868
  %8870 = vmatmul.bf16.gmra.mxu0 %v8837
  %v8871 = vpop.f32.mrf.mxu0
  %v8872 = vadd.f32 %v8810, %v8871
  %v8873 = vpop.f32.mrf.mxu0
  %v8874 = vadd.f32 %v8810, %v8873
  %8875 = vmatmul.bf16.gmra.mxu0 %v8840
  %v8876 = vpop.f32.mrf.mxu0
  %v8877 = vadd.f32 %v8810, %v8876
  %v8878 = vpop.f32.mrf.mxu0
  %v8879 = vadd.f32 %v8810, %v8878
  %8880 = vdwg.mxu0
  %v8881 = vmul.f32 %v8852, 0.5
  %v8882 = vmul.f32 %v8854, 0.5
  %v8883 = vmul.f32 %v8857, 0.5
  %v8884 = vmul.f32 %v8859, 0.5
  %v8885 = vmul.f32 %v8862, 0.5
  %v8886 = vmul.f32 %v8864, 0.5
  %v8887 = vmul.f32 %v8867, 0.5
  %v8888 = vmul.f32 %v8869, 0.5
  %v8889 = vmul.f32 %v8872, 0.5
  %v8890 = vmul.f32 %v8874, 0.5
  %v8891 = vmul.f32 %v8877, 0.5
  %v8892 = vmul.f32 %v8879, 0.5
  %v8893 = vmul.f32 %v8852, 0.70710677
  %v8894 = vmul.f32 %v8854, 0.70710677
  %v8895 = vmul.f32 %v8857, 0.70710677
  %v8896 = vmul.f32 %v8859, 0.70710677
  %v8897 = vmul.f32 %v8862, 0.70710677
  %v8898 = vmul.f32 %v8864, 0.70710677
  %v8899 = vmul.f32 %v8867, 0.70710677
  %v8900 = vmul.f32 %v8869, 0.70710677
  %v8901 = vmul.f32 %v8872, 0.70710677
  %v8902 = vmul.f32 %v8874, 0.70710677
  %v8903 = vmul.f32 %v8877, 0.70710677
  %v8904 = vmul.f32 %v8879, 0.70710677
  %v8905 = vmul.f32 %v8893, %v8893
  %v8906 = vmin.f32 16.0, %v8905
  %v8907 = vmul.f32 %v8906, 2.1237322e-06
  %v8908 = vadd.f32 %v8907, 0.00028619796
  %v8909 = vmul.f32 %v8906, %v8908
  %v8910 = vadd.f32 %v8909, 0.0036580483
  %v8911 = vmul.f32 %v8906, %v8910
  %v8912 = vadd.f32 %v8911, 0.05243302
  %v8913 = vmul.f32 %v8906, %v8912
  %v8914 = vadd.f32 %v8913, 0.18741608
  %v8915 = vmul.f32 %v8906, %v8914
  %v8916 = vadd.f32 %v8915, 1.1283791
  %v8917 = vmul.f32 %v8893, %v8916
  %v8918 = vmul.f32 %v8906, 3.8918573e-05
  %v8919 = vadd.f32 %v8918, 0.001143296
  %v8920 = vmul.f32 %v8906, %v8919
  %v8921 = vadd.f32 %v8920, 0.014752088
  %v8922 = vmul.f32 %v8906, %v8921
  %v8923 = vadd.f32 %v8922, 0.112945676
  %v8924 = vmul.f32 %v8906, %v8923
  %v8925 = vadd.f32 %v8924, 0.4994258
  %v8926 = vmul.f32 %v8906, %v8925
  %v8927 = vadd.f32 %v8926, 1.0
  %v8928 = vrcp.pop %v8927
  %v8929 = vmul.f32 %v8927, %v8928
  %v8930 = vsub.f32 1.0, %v8929
  %v8931 = vmul.f32 %v8928, %v8930
  %v8932 = vadd.f32 %v8928, %v8931
  %vm8933 = vweird.f32 %v8927
  %vm8934 = vweird.f32 %v8928
  %vm8935 = vmor %vm8933, %vm8934
  %v8936 = vsel %vm8935, %v8928, %v8932
  %v8937 = vand.u32 2147483647, %v8927
  %vm8938 = vcmp.eq.f32.partialorder %v8937, 8.507059e+37
  %v8939 = vand.u32 %v8927, 2147483648
  %v8940 = vor.u32 1.1754944e-38, %v8939
  %v8941 = vsel %vm8938, %v8940, %v8936
  %v8942 = vmul.f32 %v8917, %v8941
  %v8943 = vmin.f32 %v8942, 1.0
  %v8944 = vmax.f32 %v8943, -1.0
  %v8945 = vmul.f32 %v8894, %v8894
  %v8946 = vmin.f32 16.0, %v8945
  %v8947 = vmul.f32 %v8946, 2.1237322e-06
  %v8948 = vadd.f32 %v8947, 0.00028619796
  %v8949 = vmul.f32 %v8946, %v8948
  %v8950 = vadd.f32 %v8949, 0.0036580483
  %v8951 = vmul.f32 %v8946, %v8950
  %v8952 = vadd.f32 %v8951, 0.05243302
  %v8953 = vmul.f32 %v8946, %v8952
  %v8954 = vadd.f32 %v8953, 0.18741608
  %v8955 = vmul.f32 %v8946, %v8954
  %v8956 = vadd.f32 %v8955, 1.1283791
  %v8957 = vmul.f32 %v8894, %v8956
  %v8958 = vmul.f32 %v8946, 3.8918573e-05
  %v8959 = vadd.f32 %v8958, 0.001143296
  %v8960 = vmul.f32 %v8946, %v8959
  %v8961 = vadd.f32 %v8960, 0.014752088
  %v8962 = vmul.f32 %v8946, %v8961
  %v8963 = vadd.f32 %v8962, 0.112945676
  %v8964 = vmul.f32 %v8946, %v8963
  %v8965 = vadd.f32 %v8964, 0.4994258
  %v8966 = vmul.f32 %v8946, %v8965
  %v8967 = vadd.f32 %v8966, 1.0
  %v8968 = vrcp.pop %v8967
  %v8969 = vmul.f32 %v8967, %v8968
  %v8970 = vsub.f32 1.0, %v8969
  %v8971 = vmul.f32 %v8968, %v8970
  %v8972 = vadd.f32 %v8968, %v8971
  %vm8973 = vweird.f32 %v8967
  %vm8974 = vweird.f32 %v8968
  %vm8975 = vmor %vm8973, %vm8974
  %v8976 = vsel %vm8975, %v8968, %v8972
  %v8977 = vand.u32 2147483647, %v8967
  %vm8978 = vcmp.eq.f32.partialorder %v8977, 8.507059e+37
  %v8979 = vand.u32 %v8967, 2147483648
  %v8980 = vor.u32 1.1754944e-38, %v8979
  %v8981 = vsel %vm8978, %v8980, %v8976
  %v8982 = vmul.f32 %v8957, %v8981
  %v8983 = vmin.f32 %v8982, 1.0
  %v8984 = vmax.f32 %v8983, -1.0
  %v8985 = vmul.f32 %v8895, %v8895
  %v8986 = vmin.f32 16.0, %v8985
  %v8987 = vmul.f32 %v8986, 2.1237322e-06
  %v8988 = vadd.f32 %v8987, 0.00028619796
  %v8989 = vmul.f32 %v8986, %v8988
  %v8990 = vadd.f32 %v8989, 0.0036580483
  %v8991 = vmul.f32 %v8986, %v8990
  %v8992 = vadd.f32 %v8991, 0.05243302
  %v8993 = vmul.f32 %v8986, %v8992
  %v8994 = vadd.f32 %v8993, 0.18741608
  %v8995 = vmul.f32 %v8986, %v8994
  %v8996 = vadd.f32 %v8995, 1.1283791
  %v8997 = vmul.f32 %v8895, %v8996
  %v8998 = vmul.f32 %v8986, 3.8918573e-05
  %v8999 = vadd.f32 %v8998, 0.001143296
  %v9000 = vmul.f32 %v8986, %v8999
  %v9001 = vadd.f32 %v9000, 0.014752088
  %v9002 = vmul.f32 %v8986, %v9001
  %v9003 = vadd.f32 %v9002, 0.112945676
  %v9004 = vmul.f32 %v8986, %v9003
  %v9005 = vadd.f32 %v9004, 0.4994258
  %v9006 = vmul.f32 %v8986, %v9005
  %v9007 = vadd.f32 %v9006, 1.0
  %v9008 = vrcp.pop %v9007
  %v9009 = vmul.f32 %v9007, %v9008
  %v9010 = vsub.f32 1.0, %v9009
  %v9011 = vmul.f32 %v9008, %v9010
  %v9012 = vadd.f32 %v9008, %v9011
  %vm9013 = vweird.f32 %v9007
  %vm9014 = vweird.f32 %v9008
  %vm9015 = vmor %vm9013, %vm9014
  %v9016 = vsel %vm9015, %v9008, %v9012
  %v9017 = vand.u32 2147483647, %v9007
  %vm9018 = vcmp.eq.f32.partialorder %v9017, 8.507059e+37
  %v9019 = vand.u32 %v9007, 2147483648
  %v9020 = vor.u32 1.1754944e-38, %v9019
  %v9021 = vsel %vm9018, %v9020, %v9016
  %v9022 = vmul.f32 %v8997, %v9021
  %v9023 = vmin.f32 %v9022, 1.0
  %v9024 = vmax.f32 %v9023, -1.0
  %v9025 = vmul.f32 %v8896, %v8896
  %v9026 = vmin.f32 16.0, %v9025
  %v9027 = vmul.f32 %v9026, 2.1237322e-06
  %v9028 = vadd.f32 %v9027, 0.00028619796
  %v9029 = vmul.f32 %v9026, %v9028
  %v9030 = vadd.f32 %v9029, 0.0036580483
  %v9031 = vmul.f32 %v9026, %v9030
  %v9032 = vadd.f32 %v9031, 0.05243302
  %v9033 = vmul.f32 %v9026, %v9032
  %v9034 = vadd.f32 %v9033, 0.18741608
  %v9035 = vmul.f32 %v9026, %v9034
  %v9036 = vadd.f32 %v9035, 1.1283791
  %v9037 = vmul.f32 %v8896, %v9036
  %v9038 = vmul.f32 %v9026, 3.8918573e-05
  %v9039 = vadd.f32 %v9038, 0.001143296
  %v9040 = vmul.f32 %v9026, %v9039
  %v9041 = vadd.f32 %v9040, 0.014752088
  %v9042 = vmul.f32 %v9026, %v9041
  %v9043 = vadd.f32 %v9042, 0.112945676
  %v9044 = vmul.f32 %v9026, %v9043
  %v9045 = vadd.f32 %v9044, 0.4994258
  %v9046 = vmul.f32 %v9026, %v9045
  %v9047 = vadd.f32 %v9046, 1.0
  %v9048 = vrcp.pop %v9047
  %v9049 = vmul.f32 %v9047, %v9048
  %v9050 = vsub.f32 1.0, %v9049
  %v9051 = vmul.f32 %v9048, %v9050
  %v9052 = vadd.f32 %v9048, %v9051
  %vm9053 = vweird.f32 %v9047
  %vm9054 = vweird.f32 %v9048
  %vm9055 = vmor %vm9053, %vm9054
  %v9056 = vsel %vm9055, %v9048, %v9052
  %v9057 = vand.u32 2147483647, %v9047
  %vm9058 = vcmp.eq.f32.partialorder %v9057, 8.507059e+37
  %v9059 = vand.u32 %v9047, 2147483648
  %v9060 = vor.u32 1.1754944e-38, %v9059
  %v9061 = vsel %vm9058, %v9060, %v9056
  %v9062 = vmul.f32 %v9037, %v9061
  %v9063 = vmin.f32 %v9062, 1.0
  %v9064 = vmax.f32 %v9063, -1.0
  %v9065 = vmul.f32 %v8897, %v8897
  %v9066 = vmin.f32 16.0, %v9065
  %v9067 = vmul.f32 %v9066, 2.1237322e-06
  %v9068 = vadd.f32 %v9067, 0.00028619796
  %v9069 = vmul.f32 %v9066, %v9068
  %v9070 = vadd.f32 %v9069, 0.0036580483
  %v9071 = vmul.f32 %v9066, %v9070
  %v9072 = vadd.f32 %v9071, 0.05243302
  %v9073 = vmul.f32 %v9066, %v9072
  %v9074 = vadd.f32 %v9073, 0.18741608
  %v9075 = vmul.f32 %v9066, %v9074
  %v9076 = vadd.f32 %v9075, 1.1283791
  %v9077 = vmul.f32 %v8897, %v9076
  %v9078 = vmul.f32 %v9066, 3.8918573e-05
  %v9079 = vadd.f32 %v9078, 0.001143296
  %v9080 = vmul.f32 %v9066, %v9079
  %v9081 = vadd.f32 %v9080, 0.014752088
  %v9082 = vmul.f32 %v9066, %v9081
  %v9083 = vadd.f32 %v9082, 0.112945676
  %v9084 = vmul.f32 %v9066, %v9083
  %v9085 = vadd.f32 %v9084, 0.4994258
  %v9086 = vmul.f32 %v9066, %v9085
  %v9087 = vadd.f32 %v9086, 1.0
  %v9088 = vrcp.pop %v9087
  %v9089 = vmul.f32 %v9087, %v9088
  %v9090 = vsub.f32 1.0, %v9089
  %v9091 = vmul.f32 %v9088, %v9090
  %v9092 = vadd.f32 %v9088, %v9091
  %vm9093 = vweird.f32 %v9087
  %vm9094 = vweird.f32 %v9088
  %vm9095 = vmor %vm9093, %vm9094
  %v9096 = vsel %vm9095, %v9088, %v9092
  %v9097 = vand.u32 2147483647, %v9087
  %vm9098 = vcmp.eq.f32.partialorder %v9097, 8.507059e+37
  %v9099 = vand.u32 %v9087, 2147483648
  %v9100 = vor.u32 1.1754944e-38, %v9099
  %v9101 = vsel %vm9098, %v9100, %v9096
  %v9102 = vmul.f32 %v9077, %v9101
  %v9103 = vmin.f32 %v9102, 1.0
  %v9104 = vmax.f32 %v9103, -1.0
  %v9105 = vmul.f32 %v8898, %v8898
  %v9106 = vmin.f32 16.0, %v9105
  %v9107 = vmul.f32 %v9106, 2.1237322e-06
  %v9108 = vadd.f32 %v9107, 0.00028619796
  %v9109 = vmul.f32 %v9106, %v9108
  %v9110 = vadd.f32 %v9109, 0.0036580483
  %v9111 = vmul.f32 %v9106, %v9110
  %v9112 = vadd.f32 %v9111, 0.05243302
  %v9113 = vmul.f32 %v9106, %v9112
  %v9114 = vadd.f32 %v9113, 0.18741608
  %v9115 = vmul.f32 %v9106, %v9114
  %v9116 = vadd.f32 %v9115, 1.1283791
  %v9117 = vmul.f32 %v8898, %v9116
  %v9118 = vmul.f32 %v9106, 3.8918573e-05
  %v9119 = vadd.f32 %v9118, 0.001143296
  %v9120 = vmul.f32 %v9106, %v9119
  %v9121 = vadd.f32 %v9120, 0.014752088
  %v9122 = vmul.f32 %v9106, %v9121
  %v9123 = vadd.f32 %v9122, 0.112945676
  %v9124 = vmul.f32 %v9106, %v9123
  %v9125 = vadd.f32 %v9124, 0.4994258
  %v9126 = vmul.f32 %v9106, %v9125
  %v9127 = vadd.f32 %v9126, 1.0
  %v9128 = vrcp.pop %v9127
  %v9129 = vmul.f32 %v9127, %v9128
  %v9130 = vsub.f32 1.0, %v9129
  %v9131 = vmul.f32 %v9128, %v9130
  %v9132 = vadd.f32 %v9128, %v9131
  %vm9133 = vweird.f32 %v9127
  %vm9134 = vweird.f32 %v9128
  %vm9135 = vmor %vm9133, %vm9134
  %v9136 = vsel %vm9135, %v9128, %v9132
  %v9137 = vand.u32 2147483647, %v9127
  %vm9138 = vcmp.eq.f32.partialorder %v9137, 8.507059e+37
  %v9139 = vand.u32 %v9127, 2147483648
  %v9140 = vor.u32 1.1754944e-38, %v9139
  %v9141 = vsel %vm9138, %v9140, %v9136
  %v9142 = vmul.f32 %v9117, %v9141
  %v9143 = vmin.f32 %v9142, 1.0
  %v9144 = vmax.f32 %v9143, -1.0
  %v9145 = vmul.f32 %v8899, %v8899
  %v9146 = vmin.f32 16.0, %v9145
  %v9147 = vmul.f32 %v9146, 2.1237322e-06
  %v9148 = vadd.f32 %v9147, 0.00028619796
  %v9149 = vmul.f32 %v9146, %v9148
  %v9150 = vadd.f32 %v9149, 0.0036580483
  %v9151 = vmul.f32 %v9146, %v9150
  %v9152 = vadd.f32 %v9151, 0.05243302
  %v9153 = vmul.f32 %v9146, %v9152
  %v9154 = vadd.f32 %v9153, 0.18741608
  %v9155 = vmul.f32 %v9146, %v9154
  %v9156 = vadd.f32 %v9155, 1.1283791
  %v9157 = vmul.f32 %v8899, %v9156
  %v9158 = vmul.f32 %v9146, 3.8918573e-05
  %v9159 = vadd.f32 %v9158, 0.001143296
  %v9160 = vmul.f32 %v9146, %v9159
  %v9161 = vadd.f32 %v9160, 0.014752088
  %v9162 = vmul.f32 %v9146, %v9161
  %v9163 = vadd.f32 %v9162, 0.112945676
  %v9164 = vmul.f32 %v9146, %v9163
  %v9165 = vadd.f32 %v9164, 0.4994258
  %v9166 = vmul.f32 %v9146, %v9165
  %v9167 = vadd.f32 %v9166, 1.0
  %v9168 = vrcp.pop %v9167
  %v9169 = vmul.f32 %v9167, %v9168
  %v9170 = vsub.f32 1.0, %v9169
  %v9171 = vmul.f32 %v9168, %v9170
  %v9172 = vadd.f32 %v9168, %v9171
  %vm9173 = vweird.f32 %v9167
  %vm9174 = vweird.f32 %v9168
  %vm9175 = vmor %vm9173, %vm9174
  %v9176 = vsel %vm9175, %v9168, %v9172
  %v9177 = vand.u32 2147483647, %v9167
  %vm9178 = vcmp.eq.f32.partialorder %v9177, 8.507059e+37
  %v9179 = vand.u32 %v9167, 2147483648
  %v9180 = vor.u32 1.1754944e-38, %v9179
  %v9181 = vsel %vm9178, %v9180, %v9176
  %v9182 = vmul.f32 %v9157, %v9181
  %v9183 = vmin.f32 %v9182, 1.0
  %v9184 = vmax.f32 %v9183, -1.0
  %v9185 = vmul.f32 %v8900, %v8900
  %v9186 = vmin.f32 16.0, %v9185
  %v9187 = vmul.f32 %v9186, 2.1237322e-06
  %v9188 = vadd.f32 %v9187, 0.00028619796
  %v9189 = vmul.f32 %v9186, %v9188
  %v9190 = vadd.f32 %v9189, 0.0036580483
  %v9191 = vmul.f32 %v9186, %v9190
  %v9192 = vadd.f32 %v9191, 0.05243302
  %v9193 = vmul.f32 %v9186, %v9192
  %v9194 = vadd.f32 %v9193, 0.18741608
  %v9195 = vmul.f32 %v9186, %v9194
  %v9196 = vadd.f32 %v9195, 1.1283791
  %v9197 = vmul.f32 %v8900, %v9196
  %v9198 = vmul.f32 %v9186, 3.8918573e-05
  %v9199 = vadd.f32 %v9198, 0.001143296
  %v9200 = vmul.f32 %v9186, %v9199
  %v9201 = vadd.f32 %v9200, 0.014752088
  %v9202 = vmul.f32 %v9186, %v9201
  %v9203 = vadd.f32 %v9202, 0.112945676
  %v9204 = vmul.f32 %v9186, %v9203
  %v9205 = vadd.f32 %v9204, 0.4994258
  %v9206 = vmul.f32 %v9186, %v9205
  %v9207 = vadd.f32 %v9206, 1.0
  %v9208 = vrcp.pop %v9207
  %v9209 = vmul.f32 %v9207, %v9208
  %v9210 = vsub.f32 1.0, %v9209
  %v9211 = vmul.f32 %v9208, %v9210
  %v9212 = vadd.f32 %v9208, %v9211
  %vm9213 = vweird.f32 %v9207
  %vm9214 = vweird.f32 %v9208
  %vm9215 = vmor %vm9213, %vm9214
  %v9216 = vsel %vm9215, %v9208, %v9212
  %v9217 = vand.u32 2147483647, %v9207
  %vm9218 = vcmp.eq.f32.partialorder %v9217, 8.507059e+37
  %v9219 = vand.u32 %v9207, 2147483648
  %v9220 = vor.u32 1.1754944e-38, %v9219
  %v9221 = vsel %vm9218, %v9220, %v9216
  %v9222 = vmul.f32 %v9197, %v9221
  %v9223 = vmin.f32 %v9222, 1.0
  %v9224 = vmax.f32 %v9223, -1.0
  %v9225 = vmul.f32 %v8901, %v8901
  %v9226 = vmin.f32 16.0, %v9225
  %v9227 = vmul.f32 %v9226, 2.1237322e-06
  %v9228 = vadd.f32 %v9227, 0.00028619796
  %v9229 = vmul.f32 %v9226, %v9228
  %v9230 = vadd.f32 %v9229, 0.0036580483
  %v9231 = vmul.f32 %v9226, %v9230
  %v9232 = vadd.f32 %v9231, 0.05243302
  %v9233 = vmul.f32 %v9226, %v9232
  %v9234 = vadd.f32 %v9233, 0.18741608
  %v9235 = vmul.f32 %v9226, %v9234
  %v9236 = vadd.f32 %v9235, 1.1283791
  %v9237 = vmul.f32 %v8901, %v9236
  %v9238 = vmul.f32 %v9226, 3.8918573e-05
  %v9239 = vadd.f32 %v9238, 0.001143296
  %v9240 = vmul.f32 %v9226, %v9239
  %v9241 = vadd.f32 %v9240, 0.014752088
  %v9242 = vmul.f32 %v9226, %v9241
  %v9243 = vadd.f32 %v9242, 0.112945676
  %v9244 = vmul.f32 %v9226, %v9243
  %v9245 = vadd.f32 %v9244, 0.4994258
  %v9246 = vmul.f32 %v9226, %v9245
  %v9247 = vadd.f32 %v9246, 1.0
  %v9248 = vrcp.pop %v9247
  %v9249 = vmul.f32 %v9247, %v9248
  %v9250 = vsub.f32 1.0, %v9249
  %v9251 = vmul.f32 %v9248, %v9250
  %v9252 = vadd.f32 %v9248, %v9251
  %vm9253 = vweird.f32 %v9247
  %vm9254 = vweird.f32 %v9248
  %vm9255 = vmor %vm9253, %vm9254
  %v9256 = vsel %vm9255, %v9248, %v9252
  %v9257 = vand.u32 2147483647, %v9247
  %vm9258 = vcmp.eq.f32.partialorder %v9257, 8.507059e+37
  %v9259 = vand.u32 %v9247, 2147483648
  %v9260 = vor.u32 1.1754944e-38, %v9259
  %v9261 = vsel %vm9258, %v9260, %v9256
  %v9262 = vmul.f32 %v9237, %v9261
  %v9263 = vmin.f32 %v9262, 1.0
  %v9264 = vmax.f32 %v9263, -1.0
  %v9265 = vmul.f32 %v8902, %v8902
  %v9266 = vmin.f32 16.0, %v9265
  %v9267 = vmul.f32 %v9266, 2.1237322e-06
  %v9268 = vadd.f32 %v9267, 0.00028619796
  %v9269 = vmul.f32 %v9266, %v9268
  %v9270 = vadd.f32 %v9269, 0.0036580483
  %v9271 = vmul.f32 %v9266, %v9270
  %v9272 = vadd.f32 %v9271, 0.05243302
  %v9273 = vmul.f32 %v9266, %v9272
  %v9274 = vadd.f32 %v9273, 0.18741608
  %v9275 = vmul.f32 %v9266, %v9274
  %v9276 = vadd.f32 %v9275, 1.1283791
  %v9277 = vmul.f32 %v8902, %v9276
  %v9278 = vmul.f32 %v9266, 3.8918573e-05
  %v9279 = vadd.f32 %v9278, 0.001143296
  %v9280 = vmul.f32 %v9266, %v9279
  %v9281 = vadd.f32 %v9280, 0.014752088
  %v9282 = vmul.f32 %v9266, %v9281
  %v9283 = vadd.f32 %v9282, 0.112945676
  %v9284 = vmul.f32 %v9266, %v9283
  %v9285 = vadd.f32 %v9284, 0.4994258
  %v9286 = vmul.f32 %v9266, %v9285
  %v9287 = vadd.f32 %v9286, 1.0
  %v9288 = vrcp.pop %v9287
  %v9289 = vmul.f32 %v9287, %v9288
  %v9290 = vsub.f32 1.0, %v9289
  %v9291 = vmul.f32 %v9288, %v9290
  %v9292 = vadd.f32 %v9288, %v9291
  %vm9293 = vweird.f32 %v9287
  %vm9294 = vweird.f32 %v9288
  %vm9295 = vmor %vm9293, %vm9294
  %v9296 = vsel %vm9295, %v9288, %v9292
  %v9297 = vand.u32 2147483647, %v9287
  %vm9298 = vcmp.eq.f32.partialorder %v9297, 8.507059e+37
  %v9299 = vand.u32 %v9287, 2147483648
  %v9300 = vor.u32 1.1754944e-38, %v9299
  %v9301 = vsel %vm9298, %v9300, %v9296
  %v9302 = vmul.f32 %v9277, %v9301
  %v9303 = vmin.f32 %v9302, 1.0
  %v9304 = vmax.f32 %v9303, -1.0
  %v9305 = vmul.f32 %v8903, %v8903
  %v9306 = vmin.f32 16.0, %v9305
  %v9307 = vmul.f32 %v9306, 2.1237322e-06
  %v9308 = vadd.f32 %v9307, 0.00028619796
  %v9309 = vmul.f32 %v9306, %v9308
  %v9310 = vadd.f32 %v9309, 0.0036580483
  %v9311 = vmul.f32 %v9306, %v9310
  %v9312 = vadd.f32 %v9311, 0.05243302
  %v9313 = vmul.f32 %v9306, %v9312
  %v9314 = vadd.f32 %v9313, 0.18741608
  %v9315 = vmul.f32 %v9306, %v9314
  %v9316 = vadd.f32 %v9315, 1.1283791
  %v9317 = vmul.f32 %v8903, %v9316
  %v9318 = vmul.f32 %v9306, 3.8918573e-05
  %v9319 = vadd.f32 %v9318, 0.001143296
  %v9320 = vmul.f32 %v9306, %v9319
  %v9321 = vadd.f32 %v9320, 0.014752088
  %v9322 = vmul.f32 %v9306, %v9321
  %v9323 = vadd.f32 %v9322, 0.112945676
  %v9324 = vmul.f32 %v9306, %v9323
  %v9325 = vadd.f32 %v9324, 0.4994258
  %v9326 = vmul.f32 %v9306, %v9325
  %v9327 = vadd.f32 %v9326, 1.0
  %v9328 = vrcp.pop %v9327
  %v9329 = vmul.f32 %v9327, %v9328
  %v9330 = vsub.f32 1.0, %v9329
  %v9331 = vmul.f32 %v9328, %v9330
  %v9332 = vadd.f32 %v9328, %v9331
  %vm9333 = vweird.f32 %v9327
  %vm9334 = vweird.f32 %v9328
  %vm9335 = vmor %vm9333, %vm9334
  %v9336 = vsel %vm9335, %v9328, %v9332
  %v9337 = vand.u32 2147483647, %v9327
  %vm9338 = vcmp.eq.f32.partialorder %v9337, 8.507059e+37
  %v9339 = vand.u32 %v9327, 2147483648
  %v9340 = vor.u32 1.1754944e-38, %v9339
  %v9341 = vsel %vm9338, %v9340, %v9336
  %v9342 = vmul.f32 %v9317, %v9341
  %v9343 = vmin.f32 %v9342, 1.0
  %v9344 = vmax.f32 %v9343, -1.0
  %v9345 = vmul.f32 %v8904, %v8904
  %v9346 = vmin.f32 16.0, %v9345
  %v9347 = vmul.f32 %v9346, 2.1237322e-06
  %v9348 = vadd.f32 %v9347, 0.00028619796
  %v9349 = vmul.f32 %v9346, %v9348
  %v9350 = vadd.f32 %v9349, 0.0036580483
  %v9351 = vmul.f32 %v9346, %v9350
  %v9352 = vadd.f32 %v9351, 0.05243302
  %v9353 = vmul.f32 %v9346, %v9352
  %v9354 = vadd.f32 %v9353, 0.18741608
  %v9355 = vmul.f32 %v9346, %v9354
  %v9356 = vadd.f32 %v9355, 1.1283791
  %v9357 = vmul.f32 %v8904, %v9356
  %v9358 = vmul.f32 %v9346, 3.8918573e-05
  %v9359 = vadd.f32 %v9358, 0.001143296
  %v9360 = vmul.f32 %v9346, %v9359
  %v9361 = vadd.f32 %v9360, 0.014752088
  %v9362 = vmul.f32 %v9346, %v9361
  %v9363 = vadd.f32 %v9362, 0.112945676
  %v9364 = vmul.f32 %v9346, %v9363
  %v9365 = vadd.f32 %v9364, 0.4994258
  %v9366 = vmul.f32 %v9346, %v9365
  %v9367 = vadd.f32 %v9366, 1.0
  %v9368 = vrcp.pop %v9367
  %v9369 = vmul.f32 %v9367, %v9368
  %v9370 = vsub.f32 1.0, %v9369
  %v9371 = vmul.f32 %v9368, %v9370
  %v9372 = vadd.f32 %v9368, %v9371
  %vm9373 = vweird.f32 %v9367
  %vm9374 = vweird.f32 %v9368
  %vm9375 = vmor %vm9373, %vm9374
  %v9376 = vsel %vm9375, %v9368, %v9372
  %v9377 = vand.u32 2147483647, %v9367
  %vm9378 = vcmp.eq.f32.partialorder %v9377, 8.507059e+37
  %v9379 = vand.u32 %v9367, 2147483648
  %v9380 = vor.u32 1.1754944e-38, %v9379
  %v9381 = vsel %vm9378, %v9380, %v9376
  %v9382 = vmul.f32 %v9357, %v9381
  %v9383 = vmin.f32 %v9382, 1.0
  %v9384 = vmax.f32 %v9383, -1.0
  %v9385 = vadd.f32 %v8944, 1.0
  %v9386 = vadd.f32 %v8984, 1.0
  %v9387 = vadd.f32 %v9024, 1.0
  %v9388 = vadd.f32 %v9064, 1.0
  %v9389 = vadd.f32 %v9104, 1.0
  %v9390 = vadd.f32 %v9144, 1.0
  %v9391 = vadd.f32 %v9184, 1.0
  %v9392 = vadd.f32 %v9224, 1.0
  %v9393 = vadd.f32 %v9264, 1.0
  %v9394 = vadd.f32 %v9304, 1.0
  %v9395 = vadd.f32 %v9344, 1.0
  %v9396 = vadd.f32 %v9384, 1.0
  %v9397 = vmul.f32 %v8881, %v9385
  %v9398 = vmul.f32 %v8882, %v9386
  %v9399 = vmul.f32 %v8883, %v9387
  %v9400 = vmul.f32 %v8884, %v9388
  %v9401 = vmul.f32 %v8885, %v9389
  %v9402 = vmul.f32 %v8886, %v9390
  %v9403 = vmul.f32 %v8887, %v9391
  %v9404 = vmul.f32 %v8888, %v9392
  %v9405 = vmul.f32 %v8889, %v9393
  %v9406 = vmul.f32 %v8890, %v9394
  %v9407 = vmul.f32 %v8891, %v9395
  %v9408 = vmul.f32 %v8892, %v9396
  %v9409 = vld [vmem:[%s14] sm:$0xf]
  %v9410 = vld [vmem:[%s14 + $0x4] sm:$0xf]
  %v9411 = vld [vmem:[%s14 + $0x8] sm:$0xf]
  %v9412 = vld [vmem:[%s14 + $0xc] sm:$0xf]
  %v9413 = vld [vmem:[%s14 + $0x10] sm:$0xf]
  %v9414 = vld [vmem:[%s14 + $0x14] sm:$0xf]
  %v9415 = vld [vmem:[%s14 + $0x18] sm:$0xf]
  %v9416 = vld [vmem:[%s14 + $0x1c] sm:$0xf]
  %v9417 = vld [vmem:[%s14 + $0x20] sm:$0xf]
  %v9418 = vld [vmem:[%s14 + $0x24] sm:$0xf]
  %v9419 = vld [vmem:[%s14 + $0x28] sm:$0xf]
  %v9420 = vld [vmem:[%s14 + $0x2c] sm:$0xf]
  %v9421 = vld [vmem:[%s14 + $0x30] sm:$0xf]
  %v9422 = vld [vmem:[%s14 + $0x34] sm:$0xf]
  %v9423 = vld [vmem:[%s14 + $0x38] sm:$0xf]
  %v9424 = vld [vmem:[%s14 + $0x3c] sm:$0xf]
  %v9425 = vpack.c.bf16 %v9398, %v9397
  %v9426 = vpack.c.bf16 %v9400, %v9399
  %v9427 = vpack.c.bf16 %v9402, %v9401
  %v9428 = vpack.c.bf16 %v9404, %v9403
  %v9429 = vpack.c.bf16 %v9406, %v9405
  %v9430 = vpack.c.bf16 %v9408, %v9407
  %v9431 = vld [vmem:[%s15] sm:$0x1]
  %v9433 = vperm.slane %v9431, 0
  %v9451 = vunpack.c.l.b16 %v9409
  %v9452 = vunpack.c.l.b16 %v9410
  %v9453 = vunpack.c.l.b16 %v9411
  %v9454 = vunpack.c.l.b16 %v9412
  %v9455 = vunpack.c.l.b16 %v9413
  %v9456 = vunpack.c.l.b16 %v9414
  %v9457 = vunpack.c.l.b16 %v9415
  %v9458 = vunpack.c.l.b16 %v9416
  %v9459 = vunpack.c.l.b16 %v9417
  %v9460 = vunpack.c.l.b16 %v9418
  %v9461 = vunpack.c.l.b16 %v9419
  %v9462 = vunpack.c.l.b16 %v9420
  %v9463 = vunpack.c.l.b16 %v9421
  %v9464 = vunpack.c.l.b16 %v9422
  %v9465 = vunpack.c.l.b16 %v9423
  %v9466 = vunpack.c.l.b16 %v9424
  %v9467 = vpack.c.b16 %v9452, %v9451
  %v9468 = vpack.c.b16 %v9454, %v9453
  %v9469 = vpack.c.b16 %v9456, %v9455
  %v9470 = vpack.c.b16 %v9458, %v9457
  %v9471 = vpack.c.b16 %v9460, %v9459
  %v9472 = vpack.c.b16 %v9462, %v9461
  %v9473 = vpack.c.b16 %v9464, %v9463
  %v9474 = vpack.c.b16 %v9466, %v9465
  %9483 = vmatpush.bf16.msra.mxu0 %v9474
  %9484 = vmatpush.bf16.msra.mxu0 %v9473
  %9485 = vmatpush.bf16.msra.mxu0 %v9472
  %9486 = vmatpush.bf16.msra.mxu0 %v9471
  %9487 = vmatpush.bf16.msra.mxu0 %v9470
  %9488 = vmatpush.bf16.msra.mxu0 %v9469
  %9489 = vmatpush.bf16.msra.mxu0 %v9468
  %9490 = vmatpush.bf16.msra.mxu0 %v9467
  %9491 = vmatmul.bf16.gmra.mxu0 %v9425
  %v9492 = vpop.f32.mrf.mxu0
  %v9493 = vadd.f32 %v9433, %v9492
  %v9494 = vpop.f32.mrf.mxu0
  %v9495 = vadd.f32 %v9433, %v9494
  %9496 = vmatmul.bf16.gmra.mxu0 %v9426
  %v9497 = vpop.f32.mrf.mxu0
  %v9498 = vadd.f32 %v9433, %v9497
  %v9499 = vpop.f32.mrf.mxu0
  %v9500 = vadd.f32 %v9433, %v9499
  %9501 = vmatmul.bf16.gmra.mxu0 %v9427
  %v9502 = vpop.f32.mrf.mxu0
  %v9503 = vadd.f32 %v9433, %v9502
  %v9504 = vpop.f32.mrf.mxu0
  %v9505 = vadd.f32 %v9433, %v9504
  %9506 = vmatmul.bf16.gmra.mxu0 %v9428
  %v9507 = vpop.f32.mrf.mxu0
  %v9508 = vadd.f32 %v9433, %v9507
  %v9509 = vpop.f32.mrf.mxu0
  %v9510 = vadd.f32 %v9433, %v9509
  %9511 = vmatmul.bf16.gmra.mxu0 %v9429
  %v9512 = vpop.f32.mrf.mxu0
  %v9513 = vadd.f32 %v9433, %v9512
  %v9514 = vpop.f32.mrf.mxu0
  %v9515 = vadd.f32 %v9433, %v9514
  %9516 = vmatmul.bf16.gmra.mxu0 %v9430
  %v9517 = vpop.f32.mrf.mxu0
  %v9518 = vadd.f32 %v9433, %v9517
  %v9519 = vpop.f32.mrf.mxu0
  %v9520 = vadd.f32 %v9433, %v9519
  %9521 = vdwg.mxu0
  %v9522 = vadd.f32 %v8490, %v9493
  %v9523 = vadd.f32 %v8491, %v9495
  %v9524 = vadd.f32 %v8492, %v9498
  %v9525 = vadd.f32 %v8493, %v9500
  %v9526 = vadd.f32 %v8494, %v9503
  %v9527 = vadd.f32 %v8495, %v9505
  %v9528 = vadd.f32 %v8496, %v9508
  %v9529 = vadd.f32 %v8497, %v9510
  %v9530 = vadd.f32 %v8498, %v9513
  %v9531 = vadd.f32 %v8499, %v9515
  %v9532 = vadd.f32 %v8500, %v9518
  %v9533 = vadd.f32 %v8501, %v9520
  %s9534 = scalar_lea.vmem %s4, 1
  %v9535 = vld [vmem:[%s9534] sm:$0x1]
  %s9536 = scalar_lea.vmem %s5, 1
  %v9537 = vld [vmem:[%s9536] sm:$0x1]
  %v9538 = vsel %vm286, %v9522, 0.0
  %9539 = vadd.xlane.f32.xlu0 %v9538
  %v9540 = vpop.xlane.xlu0 %9539
  %v9541 = vsel %vm286, %v9523, 0.0
  %9542 = vadd.xlane.f32.xlu0 %v9541
  %v9543 = vpop.xlane.xlu0 %9542
  %v9544 = vsel %vm286, %v9524, 0.0
  %9545 = vadd.xlane.f32.xlu0 %v9544
  %v9546 = vpop.xlane.xlu0 %9545
  %v9547 = vsel %vm286, %v9525, 0.0
  %9548 = vadd.xlane.f32.xlu0 %v9547
  %v9549 = vpop.xlane.xlu0 %9548
  %v9550 = vsel %vm286, %v9526, 0.0
  %9551 = vadd.xlane.f32.xlu0 %v9550
  %v9552 = vpop.xlane.xlu0 %9551
  %v9553 = vsel %vm286, %v9527, 0.0
  %9554 = vadd.xlane.f32.xlu0 %v9553
  %v9555 = vpop.xlane.xlu0 %9554
  %v9556 = vsel %vm286, %v9528, 0.0
  %9557 = vadd.xlane.f32.xlu0 %v9556
  %v9558 = vpop.xlane.xlu0 %9557
  %v9559 = vsel %vm286, %v9529, 0.0
  %9560 = vadd.xlane.f32.xlu0 %v9559
  %v9561 = vpop.xlane.xlu0 %9560
  %v9562 = vsel %vm286, %v9530, 0.0
  %9563 = vadd.xlane.f32.xlu0 %v9562
  %v9564 = vpop.xlane.xlu0 %9563
  %v9565 = vsel %vm286, %v9531, 0.0
  %9566 = vadd.xlane.f32.xlu0 %v9565
  %v9567 = vpop.xlane.xlu0 %9566
  %v9568 = vsel %vm286, %v9532, 0.0
  %9569 = vadd.xlane.f32.xlu0 %v9568
  %v9570 = vpop.xlane.xlu0 %9569
  %v9571 = vsel %vm286, %v9533, 0.0
  %9572 = vadd.xlane.f32.xlu0 %v9571
  %v9573 = vpop.xlane.xlu0 %9572
  %v9574 = vmul.f32 %v9540, %v320
  %v9575 = vmul.f32 %v9543, %v320
  %v9576 = vmul.f32 %v9546, %v320
  %v9577 = vmul.f32 %v9549, %v320
  %v9578 = vmul.f32 %v9552, %v320
  %v9579 = vmul.f32 %v9555, %v320
  %v9580 = vmul.f32 %v9558, %v320
  %v9581 = vmul.f32 %v9561, %v320
  %v9582 = vmul.f32 %v9564, %v320
  %v9583 = vmul.f32 %v9567, %v320
  %v9584 = vmul.f32 %v9570, %v320
  %v9585 = vmul.f32 %v9573, %v320
  %v9586 = vsub.f32 %v9522, %v9574
  %v9587 = vsub.f32 %v9523, %v9575
  %v9588 = vsub.f32 %v9524, %v9576
  %v9589 = vsub.f32 %v9525, %v9577
  %v9590 = vsub.f32 %v9526, %v9578
  %v9591 = vsub.f32 %v9527, %v9579
  %v9592 = vsub.f32 %v9528, %v9580
  %v9593 = vsub.f32 %v9529, %v9581
  %v9594 = vsub.f32 %v9530, %v9582
  %v9595 = vsub.f32 %v9531, %v9583
  %v9596 = vsub.f32 %v9532, %v9584
  %v9597 = vsub.f32 %v9533, %v9585
  %v9598 = vmul.f32 %v9586, %v9586
  %v9599 = vmul.f32 %v9587, %v9587
  %v9600 = vmul.f32 %v9588, %v9588
  %v9601 = vmul.f32 %v9589, %v9589
  %v9602 = vmul.f32 %v9590, %v9590
  %v9603 = vmul.f32 %v9591, %v9591
  %v9604 = vmul.f32 %v9592, %v9592
  %v9605 = vmul.f32 %v9593, %v9593
  %v9606 = vmul.f32 %v9594, %v9594
  %v9607 = vmul.f32 %v9595, %v9595
  %v9608 = vmul.f32 %v9596, %v9596
  %v9609 = vmul.f32 %v9597, %v9597
  %v9610 = vsel %vm286, %v9598, 0.0
  %9611 = vadd.xlane.f32.xlu0 %v9610
  %v9612 = vpop.xlane.xlu0 %9611
  %v9613 = vsel %vm286, %v9599, 0.0
  %9614 = vadd.xlane.f32.xlu0 %v9613
  %v9615 = vpop.xlane.xlu0 %9614
  %v9616 = vsel %vm286, %v9600, 0.0
  %9617 = vadd.xlane.f32.xlu0 %v9616
  %v9618 = vpop.xlane.xlu0 %9617
  %v9619 = vsel %vm286, %v9601, 0.0
  %9620 = vadd.xlane.f32.xlu0 %v9619
  %v9621 = vpop.xlane.xlu0 %9620
  %v9622 = vsel %vm286, %v9602, 0.0
  %9623 = vadd.xlane.f32.xlu0 %v9622
  %v9624 = vpop.xlane.xlu0 %9623
  %v9625 = vsel %vm286, %v9603, 0.0
  %9626 = vadd.xlane.f32.xlu0 %v9625
  %v9627 = vpop.xlane.xlu0 %9626
  %v9628 = vsel %vm286, %v9604, 0.0
  %9629 = vadd.xlane.f32.xlu0 %v9628
  %v9630 = vpop.xlane.xlu0 %9629
  %v9631 = vsel %vm286, %v9605, 0.0
  %9632 = vadd.xlane.f32.xlu0 %v9631
  %v9633 = vpop.xlane.xlu0 %9632
  %v9634 = vsel %vm286, %v9606, 0.0
  %9635 = vadd.xlane.f32.xlu0 %v9634
  %v9636 = vpop.xlane.xlu0 %9635
  %v9637 = vsel %vm286, %v9607, 0.0
  %9638 = vadd.xlane.f32.xlu0 %v9637
  %v9639 = vpop.xlane.xlu0 %9638
  %v9640 = vsel %vm286, %v9608, 0.0
  %9641 = vadd.xlane.f32.xlu0 %v9640
  %v9642 = vpop.xlane.xlu0 %9641
  %v9643 = vsel %vm286, %v9609, 0.0
  %9644 = vadd.xlane.f32.xlu0 %v9643
  %v9645 = vpop.xlane.xlu0 %9644
  %v9646 = vmul.f32 %v9612, %v320
  %v9647 = vmul.f32 %v9615, %v320
  %v9648 = vmul.f32 %v9618, %v320
  %v9649 = vmul.f32 %v9621, %v320
  %v9650 = vmul.f32 %v9624, %v320
  %v9651 = vmul.f32 %v9627, %v320
  %v9652 = vmul.f32 %v9630, %v320
  %v9653 = vmul.f32 %v9633, %v320
  %v9654 = vmul.f32 %v9636, %v320
  %v9655 = vmul.f32 %v9639, %v320
  %v9656 = vmul.f32 %v9642, %v320
  %v9657 = vmul.f32 %v9645, %v320
  %v9658 = vadd.f32 %v9646, 1e-06
  %v9659 = vadd.f32 %v9647, 1e-06
  %v9660 = vadd.f32 %v9648, 1e-06
  %v9661 = vadd.f32 %v9649, 1e-06
  %v9662 = vadd.f32 %v9650, 1e-06
  %v9663 = vadd.f32 %v9651, 1e-06
  %v9664 = vadd.f32 %v9652, 1e-06
  %v9665 = vadd.f32 %v9653, 1e-06
  %v9666 = vadd.f32 %v9654, 1e-06
  %v9667 = vadd.f32 %v9655, 1e-06
  %v9668 = vadd.f32 %v9656, 1e-06
  %v9669 = vadd.f32 %v9657, 1e-06
  %v9670 = vrsqrt.pop %v9658
  %v9671 = vmul.f32 %v9670, %v9658
  %v9672 = vmul.f32 %v9671, %v9670
  %v9673 = vmul.f32 0.5, %v9672
  %v9674 = vsub.f32 1.5, %v9673
  %v9675 = vmul.f32 %v9670, %v9674
  %vm9676 = vweird.f32 %v9658
  %vm9677 = vweird.f32 %v9670
  %vm9678 = vmor %vm9676, %vm9677
  %v9679 = vsel %vm9678, %v9670, %v9675
  %v9680 = vrsqrt.pop %v9659
  %v9681 = vmul.f32 %v9680, %v9659
  %v9682 = vmul.f32 %v9681, %v9680
  %v9683 = vmul.f32 0.5, %v9682
  %v9684 = vsub.f32 1.5, %v9683
  %v9685 = vmul.f32 %v9680, %v9684
  %vm9686 = vweird.f32 %v9659
  %vm9687 = vweird.f32 %v9680
  %vm9688 = vmor %vm9686, %vm9687
  %v9689 = vsel %vm9688, %v9680, %v9685
  %v9690 = vrsqrt.pop %v9660
  %v9691 = vmul.f32 %v9690, %v9660
  %v9692 = vmul.f32 %v9691, %v9690
  %v9693 = vmul.f32 0.5, %v9692
  %v9694 = vsub.f32 1.5, %v9693
  %v9695 = vmul.f32 %v9690, %v9694
  %vm9696 = vweird.f32 %v9660
  %vm9697 = vweird.f32 %v9690
  %vm9698 = vmor %vm9696, %vm9697
  %v9699 = vsel %vm9698, %v9690, %v9695
  %v9700 = vrsqrt.pop %v9661
  %v9701 = vmul.f32 %v9700, %v9661
  %v9702 = vmul.f32 %v9701, %v9700
  %v9703 = vmul.f32 0.5, %v9702
  %v9704 = vsub.f32 1.5, %v9703
  %v9705 = vmul.f32 %v9700, %v9704
  %vm9706 = vweird.f32 %v9661
  %vm9707 = vweird.f32 %v9700
  %vm9708 = vmor %vm9706, %vm9707
  %v9709 = vsel %vm9708, %v9700, %v9705
  %v9710 = vrsqrt.pop %v9662
  %v9711 = vmul.f32 %v9710, %v9662
  %v9712 = vmul.f32 %v9711, %v9710
  %v9713 = vmul.f32 0.5, %v9712
  %v9714 = vsub.f32 1.5, %v9713
  %v9715 = vmul.f32 %v9710, %v9714
  %vm9716 = vweird.f32 %v9662
  %vm9717 = vweird.f32 %v9710
  %vm9718 = vmor %vm9716, %vm9717
  %v9719 = vsel %vm9718, %v9710, %v9715
  %v9720 = vrsqrt.pop %v9663
  %v9721 = vmul.f32 %v9720, %v9663
  %v9722 = vmul.f32 %v9721, %v9720
  %v9723 = vmul.f32 0.5, %v9722
  %v9724 = vsub.f32 1.5, %v9723
  %v9725 = vmul.f32 %v9720, %v9724
  %vm9726 = vweird.f32 %v9663
  %vm9727 = vweird.f32 %v9720
  %vm9728 = vmor %vm9726, %vm9727
  %v9729 = vsel %vm9728, %v9720, %v9725
  %v9730 = vrsqrt.pop %v9664
  %v9731 = vmul.f32 %v9730, %v9664
  %v9732 = vmul.f32 %v9731, %v9730
  %v9733 = vmul.f32 0.5, %v9732
  %v9734 = vsub.f32 1.5, %v9733
  %v9735 = vmul.f32 %v9730, %v9734
  %vm9736 = vweird.f32 %v9664
  %vm9737 = vweird.f32 %v9730
  %vm9738 = vmor %vm9736, %vm9737
  %v9739 = vsel %vm9738, %v9730, %v9735
  %v9740 = vrsqrt.pop %v9665
  %v9741 = vmul.f32 %v9740, %v9665
  %v9742 = vmul.f32 %v9741, %v9740
  %v9743 = vmul.f32 0.5, %v9742
  %v9744 = vsub.f32 1.5, %v9743
  %v9745 = vmul.f32 %v9740, %v9744
  %vm9746 = vweird.f32 %v9665
  %vm9747 = vweird.f32 %v9740
  %vm9748 = vmor %vm9746, %vm9747
  %v9749 = vsel %vm9748, %v9740, %v9745
  %v9750 = vrsqrt.pop %v9666
  %v9751 = vmul.f32 %v9750, %v9666
  %v9752 = vmul.f32 %v9751, %v9750
  %v9753 = vmul.f32 0.5, %v9752
  %v9754 = vsub.f32 1.5, %v9753
  %v9755 = vmul.f32 %v9750, %v9754
  %vm9756 = vweird.f32 %v9666
  %vm9757 = vweird.f32 %v9750
  %vm9758 = vmor %vm9756, %vm9757
  %v9759 = vsel %vm9758, %v9750, %v9755
  %v9760 = vrsqrt.pop %v9667
  %v9761 = vmul.f32 %v9760, %v9667
  %v9762 = vmul.f32 %v9761, %v9760
  %v9763 = vmul.f32 0.5, %v9762
  %v9764 = vsub.f32 1.5, %v9763
  %v9765 = vmul.f32 %v9760, %v9764
  %vm9766 = vweird.f32 %v9667
  %vm9767 = vweird.f32 %v9760
  %vm9768 = vmor %vm9766, %vm9767
  %v9769 = vsel %vm9768, %v9760, %v9765
  %v9770 = vrsqrt.pop %v9668
  %v9771 = vmul.f32 %v9770, %v9668
  %v9772 = vmul.f32 %v9771, %v9770
  %v9773 = vmul.f32 0.5, %v9772
  %v9774 = vsub.f32 1.5, %v9773
  %v9775 = vmul.f32 %v9770, %v9774
  %vm9776 = vweird.f32 %v9668
  %vm9777 = vweird.f32 %v9770
  %vm9778 = vmor %vm9776, %vm9777
  %v9779 = vsel %vm9778, %v9770, %v9775
  %v9780 = vrsqrt.pop %v9669
  %v9781 = vmul.f32 %v9780, %v9669
  %v9782 = vmul.f32 %v9781, %v9780
  %v9783 = vmul.f32 0.5, %v9782
  %v9784 = vsub.f32 1.5, %v9783
  %v9785 = vmul.f32 %v9780, %v9784
  %vm9786 = vweird.f32 %v9669
  %vm9787 = vweird.f32 %v9780
  %vm9788 = vmor %vm9786, %vm9787
  %v9789 = vsel %vm9788, %v9780, %v9785
  %v9790 = vmul.f32 %v9586, %v9679
  %v9791 = vmul.f32 %v9587, %v9689
  %v9792 = vmul.f32 %v9588, %v9699
  %v9793 = vmul.f32 %v9589, %v9709
  %v9794 = vmul.f32 %v9590, %v9719
  %v9795 = vmul.f32 %v9591, %v9729
  %v9796 = vmul.f32 %v9592, %v9739
  %v9797 = vmul.f32 %v9593, %v9749
  %v9798 = vmul.f32 %v9594, %v9759
  %v9799 = vmul.f32 %v9595, %v9769
  %v9800 = vmul.f32 %v9596, %v9779
  %v9801 = vmul.f32 %v9597, %v9789
  %v9803 = vperm.slane %v9535, 0
  %v9805 = vmul.f32 %v9790, %v9803
  %v9806 = vmul.f32 %v9791, %v9803
  %v9807 = vmul.f32 %v9792, %v9803
  %v9808 = vmul.f32 %v9793, %v9803
  %v9809 = vmul.f32 %v9794, %v9803
  %v9810 = vmul.f32 %v9795, %v9803
  %v9811 = vmul.f32 %v9796, %v9803
  %v9812 = vmul.f32 %v9797, %v9803
  %v9813 = vmul.f32 %v9798, %v9803
  %v9814 = vmul.f32 %v9799, %v9803
  %v9815 = vmul.f32 %v9800, %v9803
  %v9816 = vmul.f32 %v9801, %v9803
  %v9818 = vperm.slane %v9537, 0
  %v9820 = vadd.f32 %v9805, %v9818
  %v9821 = vadd.f32 %v9806, %v9818
  %v9822 = vadd.f32 %v9807, %v9818
  %v9823 = vadd.f32 %v9808, %v9818
  %v9824 = vadd.f32 %v9809, %v9818
  %v9825 = vadd.f32 %v9810, %v9818
  %v9826 = vadd.f32 %v9811, %v9818
  %v9827 = vadd.f32 %v9812, %v9818
  %v9828 = vadd.f32 %v9813, %v9818
  %v9829 = vadd.f32 %v9814, %v9818
  %v9830 = vadd.f32 %v9815, %v9818
  %v9831 = vadd.f32 %v9816, %v9818
  %s9832 = scalar_lea.vmem %s6, 16
  %v9833 = vld [vmem:[%s9832] sm:$0xf]
  %v9834 = vld [vmem:[%s9832 + $0x4] sm:$0xf]
  %v9835 = vld [vmem:[%s9832 + $0x8] sm:$0xf]
  %v9836 = vld [vmem:[%s9832 + $0xc] sm:$0xf]
  %s9837 = scalar_lea.vmem %s7, 1
  %v9838 = vld [vmem:[%s9837] sm:$0x1]
  %v9839 = vpack.c.bf16 %v9821, %v9820
  %v9840 = vpack.c.bf16 %v9823, %v9822
  %v9841 = vpack.c.bf16 %v9825, %v9824
  %v9842 = vpack.c.bf16 %v9827, %v9826
  %v9843 = vpack.c.bf16 %v9829, %v9828
  %v9844 = vpack.c.bf16 %v9831, %v9830
  %v9846 = vperm.slane %v9838, 0
  %v9852 = vunpack.c.l.b16 %v9833
  %v9853 = vunpack.c.l.b16 %v9834
  %v9854 = vunpack.c.l.b16 %v9835
  %v9855 = vunpack.c.l.b16 %v9836
  %v9856 = vpack.c.b16 %v9853, %v9852
  %v9857 = vpack.c.b16 %v9855, %v9854
  %v9861 = vsel %vm286, %v9839, 0
  %v9864 = vsel %vm286, %v9840, 0
  %v9867 = vsel %vm286, %v9841, 0
  %v9870 = vsel %vm286, %v9842, 0
  %v9873 = vsel %vm286, %v9843, 0
  %v9876 = vsel %vm286, %v9844, 0
  %9878 = vmatpush.bf16.msra.mxu0 0
  %9879 = vmatpush.bf16.msra.mxu0 0
  %9880 = vmatpush.bf16.msra.mxu0 0
  %9881 = vmatpush.bf16.msra.mxu0 0
  %9882 = vmatpush.bf16.msra.mxu0 0
  %9883 = vmatpush.bf16.msra.mxu0 0
  %9884 = vmatpush.bf16.msra.mxu0 %v9857
  %9885 = vmatpush.bf16.msra.mxu0 %v9856
  %9886 = vmatmul.bf16.gmra.mxu0 %v9861
  %v9887 = vpop.f32.mrf.mxu0
  %v9888 = vadd.f32 %v9846, %v9887
  %v9889 = vpop.f32.mrf.mxu0
  %v9890 = vadd.f32 %v9846, %v9889
  %9891 = vmatmul.bf16.gmra.mxu0 %v9864
  %v9892 = vpop.f32.mrf.mxu0
  %v9893 = vpop.f32.mrf.mxu0
  %v9894 = vadd.f32 %v9846, %v9893
  %9895 = vmatmul.bf16.gmra.mxu0 %v9867
  %v9896 = vpop.f32.mrf.mxu0
  %v9897 = vadd.f32 %v9846, %v9896
  %v9898 = vpop.f32.mrf.mxu0
  %9899 = vmatmul.bf16.gmra.mxu0 %v9870
  %v9900 = vpop.f32.mrf.mxu0
  %v9901 = vadd.f32 %v9846, %v9900
  %v9902 = vpop.f32.mrf.mxu0
  %v9903 = vadd.f32 %v9846, %v9902
  %9904 = vmatmul.bf16.gmra.mxu0 %v9873
  %v9905 = vpop.f32.mrf.mxu0
  %v9906 = vpop.f32.mrf.mxu0
  %v9907 = vadd.f32 %v9846, %v9906
  %9908 = vmatmul.bf16.gmra.mxu0 %v9876
  %v9909 = vpop.f32.mrf.mxu0
  %v9910 = vadd.f32 %v9846, %v9909
  %v9911 = vpop.f32.mrf.mxu0
  %9912 = vdwg.mxu0
  %v9913 = vsel %vm286, %v9888, 0.0
  %v9914 = vsel %vm286, %v9890, 0.0
  %v9915 = vsel %vm286, %v9894, 0.0
  %v9916 = vsel %vm286, %v9897, 0.0
  %v9917 = vsel %vm286, %v9901, 0.0
  %v9918 = vsel %vm286, %v9903, 0.0
  %v9919 = vsel %vm286, %v9907, 0.0
  %v9920 = vsel %vm286, %v9910, 0.0
  %9921 = vst [vmem:[%s16] sm:$0xff] %v9913
  %9922 = vst [vmem:[%s16 + $0x8] sm:$0xff] %v9914
  %9923 = vst [vmem:[%s16 + $0x10] sm:$0xff] %v9915
  %9924 = vst [vmem:[%s16 + $0x18] sm:$0xff] %v9916
  %9925 = vst [vmem:[%s16 + $0x20] sm:$0xff] %v9917
  %9926 = vst [vmem:[%s16 + $0x28] sm:$0xff] %v9918
  %9927 = vst [vmem:[%s16 + $0x30] sm:$0xff] %v9919
  %9928 = vst [vmem:[%s16 + $0x38] sm:$0xff] %v9920
  // Predicated region
  $region66: #{dino_encoder_forward.1} parent=0 // pred_check
    _
  $region67: #{dino_encoder_forward.1} parent=0 // pred_check_branch
    %9930 = sbr.rel (0) target = $region69
  $region68: #{dino_encoder_forward.1} parent=0 // pred_region
    _
  $region69: #{dino_encoder_forward.1} parent=0 // pred_fallthru
    _
  // Predicated region
  $region70: #{dino_encoder_forward.1} parent=0 // pred_check
    _
  $region71: #{dino_encoder_forward.1} parent=0 // pred_check_branch
    %9932 = sbr.rel (0) target = $region73
  $region72: #{dino_encoder_forward.1} parent=0 // pred_region
    _
  $region73: #{dino_encoder_forward.1} parent=0 // pred_fallthru
    _

</llo_original>
